<compile_context>
chip_gen: v7x
topology: tpu7x:2x2x1
jax: 0.10.0
libtpu: 0.0.40
codegen_flags: <defaults>
</compile_context>

<pallas_src>
import numpy as np
import jax
import jax.numpy as jnp
from jax import lax
from jax.experimental import pallas as pl
from jax.experimental.pallas import tpu as pltpu

NEG_SLOPE = 0.3          # must stay > 0 for the "bias+LeakyReLU after max" hoist
H = W = 80               # implied by fc1.in_features == 10240
C_OUT = 16
POOL = 20
N_GROUPS = 4             # 80 / POOL pool windows along the pooled axis

# left : Conv2d(1,16,(10,23),'same') -> LeakyReLU(0.3) -> MaxPool2d((1,20))
KH_L, KW_L = 10, 23
# right: Conv2d(1,16,(21,20),'same') -> LeakyReLU(0.3) -> MaxPool2d((20,1))
# (run on the transposed image so its pool window is also the last axis)
KH_R, KW_R = 20, 21


def _leaky_relu(x):
    return jnp.where(x >= 0, x, NEG_SLOPE * x)


# --------------------- conv -> LeakyReLU -> maxpool kernel ------------------

def _conv_pool_kernel(bw_ref, sg_ref, b_ref, o_ref):
    # bw_ref : (POOL*C_OUT, K) bf16 banded conv weight, rows ordered (pool_pos, c)
    # sg_ref : (K, TILE_R)     bf16 input slab, cols = pooled output positions
    # b_ref  : (C_OUT, 1)      f32  conv bias
    # o_ref  : (C_OUT, TILE_R) f32  pooled activations (lane-dense)
    z = jnp.dot(bw_ref[...], sg_ref[...], preferred_element_type=jnp.float32)
    # max over POOL candidates: 16-row sublane-aligned slabs -> pure VPU maximums
    m = z[0:C_OUT, :]
    for j in range(1, POOL):
        m = jnp.maximum(m, z[j * C_OUT:(j + 1) * C_OUT, :])
    # bias + LeakyReLU hoisted after the max (monotonic since NEG_SLOPE > 0)
    o_ref[...] = _leaky_relu(m + b_ref[...])


def conv_lrelu_maxpool(band_w, slab, bias, *, tile_r):
    k = band_w.shape[1]
    r_pad = slab.shape[1]
    assert r_pad % tile_r == 0
    return pl.pallas_call(
        _conv_pool_kernel,
        out_shape=jax.ShapeDtypeStruct((C_OUT, r_pad), jnp.float32),
        grid_spec=pltpu.PrefetchScalarGridSpec(
            num_scalar_prefetch=0,
            grid=(r_pad // tile_r,),                               # 2 steps -> 1/1 on v7x megacore
            in_specs=[
                pl.BlockSpec((POOL * C_OUT, k), lambda i: (0, 0)),  # resident band weight
                pl.BlockSpec((k, tile_r), lambda i: (0, i)),        # slab column block
                pl.BlockSpec((C_OUT, 1), lambda i: (0, 0)),         # resident bias
            ],
            out_specs=pl.BlockSpec((C_OUT, tile_r), lambda i: (0, i)),
        ),
        compiler_params=pltpu.CompilerParams(
            dimension_semantics=("parallel",)),
    )(band_w, slab, bias)


# ------------------- fused fc1 -> LeakyReLU -> fc2 head ---------------------

def _mlp_kernel(x_ref, w1_ref, b1_ref, w2_ref, b2_ref, o_ref, acc_ref):
    k = pl.program_id(0)

    @pl.when(k == 0)
    def _():
        acc_ref[...] = jnp.zeros_like(acc_ref)

    acc_ref[...] += jnp.dot(x_ref[...], w1_ref[...], preferred_element_type=jnp.float32)

    @pl.when(k == pl.num_programs(0) - 1)
    def _():
        h = _leaky_relu(acc_ref[...] + b1_ref[...])
        o_ref[...] = (jnp.dot(h, w2_ref[...], preferred_element_type=jnp.float32)
                      + b2_ref[...]).astype(o_ref.dtype)


def mlp_head(x, w1, b1, w2, b2, *, tile_k=5120):
    b, kin = x.shape
    hid, c = w1.shape[1], w2.shape[1]
    assert kin % tile_k == 0
    return pl.pallas_call(
        _mlp_kernel,
        out_shape=jax.ShapeDtypeStruct((b, c), jnp.float32),
        grid_spec=pltpu.PrefetchScalarGridSpec(
            num_scalar_prefetch=0,
            grid=(kin // tile_k,),                                 # 2 steps: enough to pipeline w1
            in_specs=[
                pl.BlockSpec((b, tile_k), lambda k: (0, k)),
                pl.BlockSpec((tile_k, hid), lambda k: (k, 0)),
                pl.BlockSpec((1, hid), lambda k: (0, 0)),
                pl.BlockSpec((hid, c), lambda k: (0, 0)),
                pl.BlockSpec((1, c), lambda k: (0, 0)),
            ],
            out_specs=pl.BlockSpec((b, c), lambda k: (0, 0)),
            scratch_shapes=[pltpu.VMEM((b, hid), jnp.float32)],
        ),
        compiler_params=pltpu.CompilerParams(
            dimension_semantics=("arbitrary",)),
    )(x, w1, b1, w2, b2)


# ------------------------------- JAX glue -----------------------------------

def _build_slab_T(xp, kh, oh, gw, r_pad):
    """xp: (B, Hp, Wp) padded bf16 image.
    Returns (kh*gw, r_pad) bf16 slab with
      slab[a*gw + q, b*oh*N_GROUPS + i*N_GROUPS + jp] = xp[b, i+a, jp*POOL + q]
    (zero-padded columns beyond B*oh*N_GROUPS)."""
    rows = jnp.stack([xp[:, a:a + oh, :] for a in range(kh)], axis=0)          # (kh,B,oh,Wp)
    grps = jnp.stack([rows[..., jp * POOL: jp * POOL + gw]
                      for jp in range(N_GROUPS)], axis=3)                       # (kh,B,oh,NG,gw)
    slab = jnp.transpose(grps, (0, 4, 1, 2, 3)).reshape(kh * gw, -1)            # (kh*gw, B*oh*NG)
    return jnp.pad(slab, ((0, 0), (0, r_pad - slab.shape[1])))


def _make_band_weight(w_adc, kh, kw):
    """w_adc: numpy (kh, kw, C_OUT) conv kernel.  Returns bf16 banded matrix
    B[j*C_OUT + c, a*gw + q] = w[a, q-j, c] if 0 <= q-j < kw else 0."""
    gw = POOL + kw - 1
    band = np.zeros((POOL, C_OUT, kh, gw), np.float32)
    w_cad = np.transpose(w_adc, (2, 0, 1))                 # (C_OUT, kh, kw)
    for j in range(POOL):
        band[j, :, :, j:j + kw] = w_cad
    return jnp.asarray(band.reshape(POOL * C_OUT, kh * gw), dtype=jnp.bfloat16)


def prepare_params(params):
    """One-time weight relayout / bf16 casts, done OUTSIDE the jitted forward."""
    wl, bl, wr, br, w1, b1, w2, b2 = params
    wl_adc = np.transpose(np.asarray(wl)[:, 0], (1, 2, 0))           # (10, 23, 16)
    # right branch runs on the transposed image: conv(x, W)^T == conv(x^T, W^T)
    wr_adc = np.transpose(np.asarray(wr)[:, 0], (2, 1, 0))           # (20, 21, 16)
    return dict(
        band_l=_make_band_weight(wl_adc, KH_L, KW_L),                # (320, 420)
        band_r=_make_band_weight(wr_adc, KH_R, KW_R),                # (320, 800)
        bias_l=jnp.asarray(bl, jnp.float32).reshape(C_OUT, 1),
        bias_r=jnp.asarray(br, jnp.float32).reshape(C_OUT, 1),
        w1=jnp.asarray(w1, jnp.bfloat16),                            # (10240, 200), (in,out)
        b1=jnp.asarray(b1, jnp.float32).reshape(1, -1),
        w2=jnp.asarray(w2, jnp.float32),
        b2=jnp.asarray(b2, jnp.float32).reshape(1, -1),
    )


@jax.jit
def shallow_net_forward(u, prep):
    B = u.shape[0]
    x = u[:, 0]                                                      # (B, 80, 80)
    r = B * H * N_GROUPS                                             # pooled output positions / branch
    tile_r = ((-(-r // 2)) + 127) // 128 * 128                       # 2 conv grid steps, lane-aligned
    r_pad = 2 * tile_r

    # left branch: pool over width (groups of 20 output columns)
    xpl = jnp.pad(x, ((0, 0), (4, 5), (11, 11))).astype(jnp.bfloat16)     # torch 'same' for (10,23)
    slab_l = _build_slab_T(xpl, KH_L, H, POOL + KW_L - 1, r_pad)          # (420, r_pad)
    left = conv_lrelu_maxpool(prep["band_l"], slab_l, prep["bias_l"], tile_r=tile_r)
    # cols are (b, h, wp); torch flatten order is (c, h, wp)
    left = left[:, :r].reshape(C_OUT, B, H, N_GROUPS).transpose(1, 0, 2, 3).reshape(B, -1)

    # right branch: pool over height; run on the transposed image so the pool
    # window is again the last axis of the conv output.
    xt = jnp.swapaxes(x, 1, 2)
    xpr = jnp.pad(xt, ((0, 0), (9, 10), (10, 10))).astype(jnp.bfloat16)   # torch 'same' for (21,20), transposed
    slab_r = _build_slab_T(xpr, KH_R, W, POOL + KW_R - 1, r_pad)          # (800, r_pad)
    right = conv_lrelu_maxpool(prep["band_r"], slab_r, prep["bias_r"], tile_r=tile_r)
    # cols are (b, w, hp); torch flatten order is (c, hp, w)
    right = right[:, :r].reshape(C_OUT, B, W, N_GROUPS).transpose(1, 0, 3, 2).reshape(B, -1)

    feats = jnp.concatenate([left, right], axis=1).astype(jnp.bfloat16)   # (B, 10240)
    return mlp_head(feats, prep["w1"], prep["b1"], prep["w2"], prep["b2"])


# ---------------------- pure-JAX reference (for checking) -------------------

def reference_forward(u, params):
    (wl, bl, wr, br, w1, b1, w2, b2) = params

    def conv_block(x, w, b, pad, pool):
        y = lax.conv_general_dilated(
            x, w, window_strides=(1, 1), padding=pad,
            dimension_numbers=("NCHW", "OIHW", "NCHW"),
            precision=lax.Precision.HIGHEST)
        y = _leaky_relu(y + b[None, :, None, None])
        return lax.reduce_window(y, -jnp.inf, lax.max,
                                 (1, 1) + pool, (1, 1) + pool, "VALID")

    B = u.shape[0]
    xl = conv_block(u, wl, bl, [(4, 5), (11, 11)], (1, 20)).reshape(B, -1)
    xr = conv_block(u, wr, br, [(10, 10), (9, 10)], (20, 1)).reshape(B, -1)
    x = jnp.concatenate([xl, xr], axis=1)
    h = _leaky_relu(jnp.dot(x, w1, precision=lax.Precision.HIGHEST) + b1)
    return jnp.dot(h, w2, precision=lax.Precision.HIGHEST) + b2


# ------------------------------ params / main -------------------------------

def init_params(key, class_count):
    ks = jax.random.split(key, 8)

    def uni(k, shape, fan_in):
        bound = 1.0 / np.sqrt(fan_in)
        return jax.random.uniform(k, shape, jnp.float32, -bound, bound)

    wl = uni(ks[0], (C_OUT, 1, 10, 23), 10 * 23)
    bl = uni(ks[1], (C_OUT,), 10 * 23)
    wr = uni(ks[2], (C_OUT, 1, 21, 20), 21 * 20)
    br = uni(ks[3], (C_OUT,), 21 * 20)
    w1 = uni(ks[4], (10240, 200), 10240)     # stored (in, out) == torch weight.T
    b1 = uni(ks[5], (200,), 10240)
    w2 = uni(ks[6], (200, class_count), 200)
    b2 = uni(ks[7], (class_count,), 200)
    return (wl, bl, wr, br, w1, b1, w2, b2)


if __name__ == "__main__":
    CLASS_COUNT = 10
    B = 2
    key = jax.random.PRNGKey(0)
    pkey, xkey = jax.random.split(key)
    params = init_params(pkey, CLASS_COUNT)
    prep = prepare_params(params)                 # one-time, outside the jitted forward
    u = jax.random.normal(xkey, (B, 1, H, W), jnp.float32)   # PyTorch NCHW input

    out = jax.block_until_ready(shallow_net_forward(u, prep))
    ref = jax.block_until_ready(reference_forward(u, params))

    assert out.shape == (B, CLASS_COUNT), out.shape
    # NOTE: bf16 image/weight/activation casts are an intentional inference-precision
    # choice; tolerance is loosened accordingly.
    np.testing.assert_allclose(np.asarray(out), np.asarray(ref), rtol=3e-2, atol=3e-2)
    print("KERNEL_OK")
</pallas_src>

<mosaic_0001>
module attributes {stable_mosaic.version = 11 : i64} {
  func.func @_conv_pool_kernel(%arg0: i32, %arg1: memref<320x420xbf16, #tpu.memory_space<vmem>>, %arg2: memref<420x384xbf16, #tpu.memory_space<vmem>>, %arg3: memref<16x1xf32, #tpu.memory_space<vmem>>, %arg4: memref<16x384xf32, #tpu.memory_space<vmem>>) attributes {dimension_semantics = [#tpu.dimension_semantics<parallel>], iteration_bounds = array<i64: 2>, scalar_prefetch = 0 : i64, scratch_operands = 0 : i64, tpu.core_type = #tpu.core_type<tc>, window_params = [{pipeline_mode = #tpu.pipeline_mode<synchronous>, transform_indices = @transform_0, window_bounds = array<i64: 320, 420>}, {transform_indices = @transform_1, window_bounds = array<i64: 420, 384>}, {pipeline_mode = #tpu.pipeline_mode<synchronous>, transform_indices = @transform_2, window_bounds = array<i64: 16, 1>}, {transform_indices = @transform_3, window_bounds = array<i64: 16, 384>}]} {
    %c0 = arith.constant 0 : index
    %c0_0 = arith.constant 0 : index
    %0 = vector.load %arg1[%c0, %c0_0] : memref<320x420xbf16, #tpu.memory_space<vmem>>, vector<320x420xbf16>
    %c0_1 = arith.constant 0 : index
    %c0_2 = arith.constant 0 : index
    %1 = vector.load %arg2[%c0_1, %c0_2] : memref<420x384xbf16, #tpu.memory_space<vmem>>, vector<420x384xbf16>
    %cst = arith.constant dense<0.000000e+00> : vector<320x384xf32>
    %2 = tpu.matmul %0, %1, %cst {dimension_numbers = #tpu.dot_dimension_numbers<[1], [0], [0], [1], [0, 0, 1, 1], [], []>} : vector<320x420xbf16>, vector<420x384xbf16>, vector<320x384xf32> -> vector<320x384xf32>
    %3 = vector.extract_strided_slice %2 {offsets = [0, 0], sizes = [16, 384], strides = [1, 1]} : vector<320x384xf32> to vector<16x384xf32>
    %4 = vector.extract_strided_slice %2 {offsets = [16, 0], sizes = [16, 384], strides = [1, 1]} : vector<320x384xf32> to vector<16x384xf32>
    %5 = arith.maximumf %3, %4 : vector<16x384xf32>
    %6 = vector.extract_strided_slice %2 {offsets = [32, 0], sizes = [16, 384], strides = [1, 1]} : vector<320x384xf32> to vector<16x384xf32>
    %7 = arith.maximumf %5, %6 : vector<16x384xf32>
    %8 = vector.extract_strided_slice %2 {offsets = [48, 0], sizes = [16, 384], strides = [1, 1]} : vector<320x384xf32> to vector<16x384xf32>
    %9 = arith.maximumf %7, %8 : vector<16x384xf32>
    %10 = vector.extract_strided_slice %2 {offsets = [64, 0], sizes = [16, 384], strides = [1, 1]} : vector<320x384xf32> to vector<16x384xf32>
    %11 = arith.maximumf %9, %10 : vector<16x384xf32>
    %12 = vector.extract_strided_slice %2 {offsets = [80, 0], sizes = [16, 384], strides = [1, 1]} : vector<320x384xf32> to vector<16x384xf32>
    %13 = arith.maximumf %11, %12 : vector<16x384xf32>
    %14 = vector.extract_strided_slice %2 {offsets = [96, 0], sizes = [16, 384], strides = [1, 1]} : vector<320x384xf32> to vector<16x384xf32>
    %15 = arith.maximumf %13, %14 : vector<16x384xf32>
    %16 = vector.extract_strided_slice %2 {offsets = [112, 0], sizes = [16, 384], strides = [1, 1]} : vector<320x384xf32> to vector<16x384xf32>
    %17 = arith.maximumf %15, %16 : vector<16x384xf32>
    %18 = vector.extract_strided_slice %2 {offsets = [128, 0], sizes = [16, 384], strides = [1, 1]} : vector<320x384xf32> to vector<16x384xf32>
    %19 = arith.maximumf %17, %18 : vector<16x384xf32>
    %20 = vector.extract_strided_slice %2 {offsets = [144, 0], sizes = [16, 384], strides = [1, 1]} : vector<320x384xf32> to vector<16x384xf32>
    %21 = arith.maximumf %19, %20 : vector<16x384xf32>
    %22 = vector.extract_strided_slice %2 {offsets = [160, 0], sizes = [16, 384], strides = [1, 1]} : vector<320x384xf32> to vector<16x384xf32>
    %23 = arith.maximumf %21, %22 : vector<16x384xf32>
    %24 = vector.extract_strided_slice %2 {offsets = [176, 0], sizes = [16, 384], strides = [1, 1]} : vector<320x384xf32> to vector<16x384xf32>
    %25 = arith.maximumf %23, %24 : vector<16x384xf32>
    %26 = vector.extract_strided_slice %2 {offsets = [192, 0], sizes = [16, 384], strides = [1, 1]} : vector<320x384xf32> to vector<16x384xf32>
    %27 = arith.maximumf %25, %26 : vector<16x384xf32>
    %28 = vector.extract_strided_slice %2 {offsets = [208, 0], sizes = [16, 384], strides = [1, 1]} : vector<320x384xf32> to vector<16x384xf32>
    %29 = arith.maximumf %27, %28 : vector<16x384xf32>
    %30 = vector.extract_strided_slice %2 {offsets = [224, 0], sizes = [16, 384], strides = [1, 1]} : vector<320x384xf32> to vector<16x384xf32>
    %31 = arith.maximumf %29, %30 : vector<16x384xf32>
    %32 = vector.extract_strided_slice %2 {offsets = [240, 0], sizes = [16, 384], strides = [1, 1]} : vector<320x384xf32> to vector<16x384xf32>
    %33 = arith.maximumf %31, %32 : vector<16x384xf32>
    %34 = vector.extract_strided_slice %2 {offsets = [256, 0], sizes = [16, 384], strides = [1, 1]} : vector<320x384xf32> to vector<16x384xf32>
    %35 = arith.maximumf %33, %34 : vector<16x384xf32>
    %36 = vector.extract_strided_slice %2 {offsets = [272, 0], sizes = [16, 384], strides = [1, 1]} : vector<320x384xf32> to vector<16x384xf32>
    %37 = arith.maximumf %35, %36 : vector<16x384xf32>
    %38 = vector.extract_strided_slice %2 {offsets = [288, 0], sizes = [16, 384], strides = [1, 1]} : vector<320x384xf32> to vector<16x384xf32>
    %39 = arith.maximumf %37, %38 : vector<16x384xf32>
    %40 = vector.extract_strided_slice %2 {offsets = [304, 0], sizes = [16, 384], strides = [1, 1]} : vector<320x384xf32> to vector<16x384xf32>
    %41 = arith.maximumf %39, %40 : vector<16x384xf32>
    %c0_3 = arith.constant 0 : index
    %c0_4 = arith.constant 0 : index
    %42 = vector.load %arg3[%c0_3, %c0_4] : memref<16x1xf32, #tpu.memory_space<vmem>>, vector<16x1xf32>
    %43 = vector.broadcast %42 : vector<16x1xf32> to vector<16x384xf32>
    %44 = arith.addf %41, %43 : vector<16x384xf32>
    %cst_5 = arith.constant 0.000000e+00 : f32
    %45 = vector.broadcast %cst_5 : f32 to vector<16x384xf32>
    %46 = arith.cmpf oge, %44, %45 : vector<16x384xf32>
    %cst_6 = arith.constant 3.000000e-01 : f32
    %47 = vector.broadcast %cst_6 : f32 to vector<16x384xf32>
    %48 = arith.mulf %47, %44 : vector<16x384xf32>
    %49 = arith.select %46, %44, %48 : vector<16x384xi1>, vector<16x384xf32>
    %c0_7 = arith.constant 0 : index
    %c0_8 = arith.constant 0 : index
    %50 = vector.load %arg4[%c0_7, %c0_8] : memref<16x384xf32, #tpu.memory_space<vmem>>, vector<16x384xf32>
    tpu.vector_store %arg4[%c0_7, %c0_8], %49 {strides = array<i32>} : memref<16x384xf32, #tpu.memory_space<vmem>>, vector<16x384xf32>,
    return
  }
  func.func @transform_0(%arg0: i32) -> (i32, i32) {
    %c0_i32 = arith.constant 0 : i32
    %c0_i32_0 = arith.constant 0 : i32
    %c0_i32_1 = arith.constant 0 : i32
    return %c0_i32, %c0_i32_0 : i32, i32
  }
  func.func @transform_1(%arg0: i32) -> (i32, i32) {
    %c0_i32 = arith.constant 0 : i32
    %c0_i32_0 = arith.constant 0 : i32
    return %c0_i32, %arg0 : i32, i32
  }
  func.func @transform_2(%arg0: i32) -> (i32, i32) {
    %c0_i32 = arith.constant 0 : i32
    %c0_i32_0 = arith.constant 0 : i32
    %c0_i32_1 = arith.constant 0 : i32
    return %c0_i32, %c0_i32_0 : i32, i32
  }
  func.func @transform_3(%arg0: i32) -> (i32, i32) {
    %c0_i32 = arith.constant 0 : i32
    %c0_i32_0 = arith.constant 0 : i32
    return %c0_i32, %arg0 : i32, i32
  }
}

module attributes {stable_mosaic.version = 11 : i64} {
  func.func @_conv_pool_kernel(%arg0: i32, %arg1: memref<320x800xbf16, #tpu.memory_space<vmem>>, %arg2: memref<800x384xbf16, #tpu.memory_space<vmem>>, %arg3: memref<16x1xf32, #tpu.memory_space<vmem>>, %arg4: memref<16x384xf32, #tpu.memory_space<vmem>>) attributes {dimension_semantics = [#tpu.dimension_semantics<parallel>], iteration_bounds = array<i64: 2>, scalar_prefetch = 0 : i64, scratch_operands = 0 : i64, tpu.core_type = #tpu.core_type<tc>, window_params = [{pipeline_mode = #tpu.pipeline_mode<synchronous>, transform_indices = @transform_0, window_bounds = array<i64: 320, 800>}, {transform_indices = @transform_1, window_bounds = array<i64: 800, 384>}, {pipeline_mode = #tpu.pipeline_mode<synchronous>, transform_indices = @transform_2, window_bounds = array<i64: 16, 1>}, {transform_indices = @transform_3, window_bounds = array<i64: 16, 384>}]} {
    %c0 = arith.constant 0 : index
    %c0_0 = arith.constant 0 : index
    %0 = vector.load %arg1[%c0, %c0_0] : memref<320x800xbf16, #tpu.memory_space<vmem>>, vector<320x800xbf16>
    %c0_1 = arith.constant 0 : index
    %c0_2 = arith.constant 0 : index
    %1 = vector.load %arg2[%c0_1, %c0_2] : memref<800x384xbf16, #tpu.memory_space<vmem>>, vector<800x384xbf16>
    %cst = arith.constant dense<0.000000e+00> : vector<320x384xf32>
    %2 = tpu.matmul %0, %1, %cst {dimension_numbers = #tpu.dot_dimension_numbers<[1], [0], [0], [1], [0, 0, 1, 1], [], []>} : vector<320x800xbf16>, vector<800x384xbf16>, vector<320x384xf32> -> vector<320x384xf32>
    %3 = vector.extract_strided_slice %2 {offsets = [0, 0], sizes = [16, 384], strides = [1, 1]} : vector<320x384xf32> to vector<16x384xf32>
    %4 = vector.extract_strided_slice %2 {offsets = [16, 0], sizes = [16, 384], strides = [1, 1]} : vector<320x384xf32> to vector<16x384xf32>
    %5 = arith.maximumf %3, %4 : vector<16x384xf32>
    %6 = vector.extract_strided_slice %2 {offsets = [32, 0], sizes = [16, 384], strides = [1, 1]} : vector<320x384xf32> to vector<16x384xf32>
    %7 = arith.maximumf %5, %6 : vector<16x384xf32>
    %8 = vector.extract_strided_slice %2 {offsets = [48, 0], sizes = [16, 384], strides = [1, 1]} : vector<320x384xf32> to vector<16x384xf32>
    %9 = arith.maximumf %7, %8 : vector<16x384xf32>
    %10 = vector.extract_strided_slice %2 {offsets = [64, 0], sizes = [16, 384], strides = [1, 1]} : vector<320x384xf32> to vector<16x384xf32>
    %11 = arith.maximumf %9, %10 : vector<16x384xf32>
    %12 = vector.extract_strided_slice %2 {offsets = [80, 0], sizes = [16, 384], strides = [1, 1]} : vector<320x384xf32> to vector<16x384xf32>
    %13 = arith.maximumf %11, %12 : vector<16x384xf32>
    %14 = vector.extract_strided_slice %2 {offsets = [96, 0], sizes = [16, 384], strides = [1, 1]} : vector<320x384xf32> to vector<16x384xf32>
    %15 = arith.maximumf %13, %14 : vector<16x384xf32>
    %16 = vector.extract_strided_slice %2 {offsets = [112, 0], sizes = [16, 384], strides = [1, 1]} : vector<320x384xf32> to vector<16x384xf32>
    %17 = arith.maximumf %15, %16 : vector<16x384xf32>
    %18 = vector.extract_strided_slice %2 {offsets = [128, 0], sizes = [16, 384], strides = [1, 1]} : vector<320x384xf32> to vector<16x384xf32>
    %19 = arith.maximumf %17, %18 : vector<16x384xf32>
    %20 = vector.extract_strided_slice %2 {offsets = [144, 0], sizes = [16, 384], strides = [1, 1]} : vector<320x384xf32> to vector<16x384xf32>
    %21 = arith.maximumf %19, %20 : vector<16x384xf32>
    %22 = vector.extract_strided_slice %2 {offsets = [160, 0], sizes = [16, 384], strides = [1, 1]} : vector<320x384xf32> to vector<16x384xf32>
    %23 = arith.maximumf %21, %22 : vector<16x384xf32>
    %24 = vector.extract_strided_slice %2 {offsets = [176, 0], sizes = [16, 384], strides = [1, 1]} : vector<320x384xf32> to vector<16x384xf32>
    %25 = arith.maximumf %23, %24 : vector<16x384xf32>
    %26 = vector.extract_strided_slice %2 {offsets = [192, 0], sizes = [16, 384], strides = [1, 1]} : vector<320x384xf32> to vector<16x384xf32>
    %27 = arith.maximumf %25, %26 : vector<16x384xf32>
    %28 = vector.extract_strided_slice %2 {offsets = [208, 0], sizes = [16, 384], strides = [1, 1]} : vector<320x384xf32> to vector<16x384xf32>
    %29 = arith.maximumf %27, %28 : vector<16x384xf32>
    %30 = vector.extract_strided_slice %2 {offsets = [224, 0], sizes = [16, 384], strides = [1, 1]} : vector<320x384xf32> to vector<16x384xf32>
    %31 = arith.maximumf %29, %30 : vector<16x384xf32>
    %32 = vector.extract_strided_slice %2 {offsets = [240, 0], sizes = [16, 384], strides = [1, 1]} : vector<320x384xf32> to vector<16x384xf32>
    %33 = arith.maximumf %31, %32 : vector<16x384xf32>
    %34 = vector.extract_strided_slice %2 {offsets = [256, 0], sizes = [16, 384], strides = [1, 1]} : vector<320x384xf32> to vector<16x384xf32>
    %35 = arith.maximumf %33, %34 : vector<16x384xf32>
    %36 = vector.extract_strided_slice %2 {offsets = [272, 0], sizes = [16, 384], strides = [1, 1]} : vector<320x384xf32> to vector<16x384xf32>
    %37 = arith.maximumf %35, %36 : vector<16x384xf32>
    %38 = vector.extract_strided_slice %2 {offsets = [288, 0], sizes = [16, 384], strides = [1, 1]} : vector<320x384xf32> to vector<16x384xf32>
    %39 = arith.maximumf %37, %38 : vector<16x384xf32>
    %40 = vector.extract_strided_slice %2 {offsets = [304, 0], sizes = [16, 384], strides = [1, 1]} : vector<320x384xf32> to vector<16x384xf32>
    %41 = arith.maximumf %39, %40 : vector<16x384xf32>
    %c0_3 = arith.constant 0 : index
    %c0_4 = arith.constant 0 : index
    %42 = vector.load %arg3[%c0_3, %c0_4] : memref<16x1xf32, #tpu.memory_space<vmem>>, vector<16x1xf32>
    %43 = vector.broadcast %42 : vector<16x1xf32> to vector<16x384xf32>
    %44 = arith.addf %41, %43 : vector<16x384xf32>
    %cst_5 = arith.constant 0.000000e+00 : f32
    %45 = vector.broadcast %cst_5 : f32 to vector<16x384xf32>
    %46 = arith.cmpf oge, %44, %45 : vector<16x384xf32>
    %cst_6 = arith.constant 3.000000e-01 : f32
    %47 = vector.broadcast %cst_6 : f32 to vector<16x384xf32>
    %48 = arith.mulf %47, %44 : vector<16x384xf32>
    %49 = arith.select %46, %44, %48 : vector<16x384xi1>, vector<16x384xf32>
    %c0_7 = arith.constant 0 : index
    %c0_8 = arith.constant 0 : index
    %50 = vector.load %arg4[%c0_7, %c0_8] : memref<16x384xf32, #tpu.memory_space<vmem>>, vector<16x384xf32>
    tpu.vector_store %arg4[%c0_7, %c0_8], %49 {strides = array<i32>} : memref<16x384xf32, #tpu.memory_space<vmem>>, vector<16x384xf32>,
    return
  }
  func.func @transform_0(%arg0: i32) -> (i32, i32) {
    %c0_i32 = arith.constant 0 : i32
    %c0_i32_0 = arith.constant 0 : i32
    %c0_i32_1 = arith.constant 0 : i32
    return %c0_i32, %c0_i32_0 : i32, i32
  }
  func.func @transform_1(%arg0: i32) -> (i32, i32) {
    %c0_i32 = arith.constant 0 : i32
    %c0_i32_0 = arith.constant 0 : i32
    return %c0_i32, %arg0 : i32, i32
  }
  func.func @transform_2(%arg0: i32) -> (i32, i32) {
    %c0_i32 = arith.constant 0 : i32
    %c0_i32_0 = arith.constant 0 : i32
    %c0_i32_1 = arith.constant 0 : i32
    return %c0_i32, %c0_i32_0 : i32, i32
  }
  func.func @transform_3(%arg0: i32) -> (i32, i32) {
    %c0_i32 = arith.constant 0 : i32
    %c0_i32_0 = arith.constant 0 : i32
    return %c0_i32, %arg0 : i32, i32
  }
}

module attributes {stable_mosaic.version = 11 : i64} {
  func.func @_mlp_kernel(%arg0: i32, %arg1: memref<2x5120xbf16, #tpu.memory_space<vmem>>, %arg2: memref<5120x200xbf16, #tpu.memory_space<vmem>>, %arg3: memref<1x200xf32, #tpu.memory_space<vmem>>, %arg4: memref<200x10xf32, #tpu.memory_space<vmem>>, %arg5: memref<1x10xf32, #tpu.memory_space<vmem>>, %arg6: memref<2x10xf32, #tpu.memory_space<vmem>>, %arg7: memref<2x200xf32, #tpu.memory_space<vmem>>) attributes {dimension_semantics = [#tpu.dimension_semantics<arbitrary>], iteration_bounds = array<i64: 2>, scalar_prefetch = 0 : i64, scratch_operands = 1 : i64, tpu.core_type = #tpu.core_type<tc>, window_params = [{transform_indices = @transform_0, window_bounds = array<i64: 2, 5120>}, {transform_indices = @transform_1, window_bounds = array<i64: 5120, 200>}, {pipeline_mode = #tpu.pipeline_mode<synchronous>, transform_indices = @transform_2, window_bounds = array<i64: 1, 200>}, {pipeline_mode = #tpu.pipeline_mode<synchronous>, transform_indices = @transform_3, window_bounds = array<i64: 200, 10>}, {pipeline_mode = #tpu.pipeline_mode<synchronous>, transform_indices = @transform_4, window_bounds = array<i64: 1, 10>}, {pipeline_mode = #tpu.pipeline_mode<synchronous>, transform_indices = @transform_5, window_bounds = array<i64: 2, 10>}]} {
    %c0_i32 = arith.constant 0 : i32
    %0 = arith.cmpi eq, %arg0, %c0_i32 : i32
    %1 = arith.extui %0 : i1 to i32
    %c0_i32_0 = arith.constant 0 : i32
    %2 = arith.cmpi ne, %1, %c0_i32_0 : i32
    scf.if %2 {
      %cst_9 = arith.constant 0.000000e+00 : f32
      %12 = vector.broadcast %cst_9 : f32 to vector<2x200xf32>
      %c0_10 = arith.constant 0 : index
      %c0_11 = arith.constant 0 : index
      %13 = vector.load %arg7[%c0_10, %c0_11] : memref<2x200xf32, #tpu.memory_space<vmem>>, vector<2x200xf32>
      tpu.vector_store %arg7[%c0_10, %c0_11], %12 {strides = array<i32>} : memref<2x200xf32, #tpu.memory_space<vmem>>, vector<2x200xf32>,
    } else {
    }
    %c0 = arith.constant 0 : index
    %c0_1 = arith.constant 0 : index
    %3 = vector.load %arg7[%c0, %c0_1] : memref<2x200xf32, #tpu.memory_space<vmem>>, vector<2x200xf32>
    %c0_2 = arith.constant 0 : index
    %c0_3 = arith.constant 0 : index
    %4 = vector.load %arg1[%c0_2, %c0_3] : memref<2x5120xbf16, #tpu.memory_space<vmem>>, vector<2x5120xbf16>
    %c0_4 = arith.constant 0 : index
    %c0_5 = arith.constant 0 : index
    %5 = vector.load %arg2[%c0_4, %c0_5] : memref<5120x200xbf16, #tpu.memory_space<vmem>>, vector<5120x200xbf16>
    %cst = arith.constant dense<0.000000e+00> : vector<2x200xf32>
    %6 = tpu.matmul %4, %5, %cst {dimension_numbers = #tpu.dot_dimension_numbers<[1], [0], [0], [1], [0, 0, 1, 1], [], []>} : vector<2x5120xbf16>, vector<5120x200xbf16>, vector<2x200xf32> -> vector<2x200xf32>
    %7 = arith.addf %3, %6 : vector<2x200xf32>
    %c0_6 = arith.constant 0 : index
    %c0_7 = arith.constant 0 : index
    %8 = vector.load %arg7[%c0_6, %c0_7] : memref<2x200xf32, #tpu.memory_space<vmem>>, vector<2x200xf32>
    tpu.vector_store %arg7[%c0_6, %c0_7], %7 {strides = array<i32>} : memref<2x200xf32, #tpu.memory_space<vmem>>, vector<2x200xf32>,
    %c1_i32 = arith.constant 1 : i32
    %9 = arith.cmpi eq, %arg0, %c1_i32 : i32
    %10 = arith.extui %9 : i1 to i32
    %c0_i32_8 = arith.constant 0 : i32
    %11 = arith.cmpi ne, %10, %c0_i32_8 : i32
    scf.if %11 {
      %c0_9 = arith.constant 0 : index
      %c0_10 = arith.constant 0 : index
      %12 = vector.load %arg7[%c0_9, %c0_10] : memref<2x200xf32, #tpu.memory_space<vmem>>, vector<2x200xf32>
      %c0_11 = arith.constant 0 : index
      %c0_12 = arith.constant 0 : index
      %13 = vector.load %arg3[%c0_11, %c0_12] : memref<1x200xf32, #tpu.memory_space<vmem>>, vector<1x200xf32>
      %14 = vector.broadcast %13 : vector<1x200xf32> to vector<2x200xf32>
      %15 = arith.addf %12, %14 : vector<2x200xf32>
      %cst_13 = arith.constant 0.000000e+00 : f32
      %16 = vector.broadcast %cst_13 : f32 to vector<2x200xf32>
      %17 = arith.cmpf oge, %15, %16 : vector<2x200xf32>
      %cst_14 = arith.constant 3.000000e-01 : f32
      %18 = vector.broadcast %cst_14 : f32 to vector<2x200xf32>
      %19 = arith.mulf %18, %15 : vector<2x200xf32>
      %20 = arith.select %17, %15, %19 : vector<2x200xi1>, vector<2x200xf32>
      %c0_15 = arith.constant 0 : index
      %c0_16 = arith.constant 0 : index
      %21 = vector.load %arg4[%c0_15, %c0_16] : memref<200x10xf32, #tpu.memory_space<vmem>>, vector<200x10xf32>
      %cst_17 = arith.constant dense<0.000000e+00> : vector<2x10xf32>
      %22 = tpu.matmul %20, %21, %cst_17 {dimension_numbers = #tpu.dot_dimension_numbers<[1], [0], [0], [1], [0, 0, 1, 1], [], []>} : vector<2x200xf32>, vector<200x10xf32>, vector<2x10xf32> -> vector<2x10xf32>
      %c0_18 = arith.constant 0 : index
      %c0_19 = arith.constant 0 : index
      %23 = vector.load %arg5[%c0_18, %c0_19] : memref<1x10xf32, #tpu.memory_space<vmem>>, vector<1x10xf32>
      %24 = vector.broadcast %23 : vector<1x10xf32> to vector<2x10xf32>
      %25 = arith.addf %22, %24 : vector<2x10xf32>
      %c0_20 = arith.constant 0 : index
      %c0_21 = arith.constant 0 : index
      %26 = vector.load %arg6[%c0_20, %c0_21] : memref<2x10xf32, #tpu.memory_space<vmem>>, vector<2x10xf32>
      tpu.vector_store %arg6[%c0_20, %c0_21], %25 {strides = array<i32>} : memref<2x10xf32, #tpu.memory_space<vmem>>, vector<2x10xf32>,
    } else {
    }
    return
  }
  func.func @transform_0(%arg0: i32) -> (i32, i32) {
    %c0_i32 = arith.constant 0 : i32
    %c0_i32_0 = arith.constant 0 : i32
    return %c0_i32, %arg0 : i32, i32
  }
  func.func @transform_1(%arg0: i32) -> (i32, i32) {
    %c0_i32 = arith.constant 0 : i32
    %c0_i32_0 = arith.constant 0 : i32
    return %arg0, %c0_i32 : i32, i32
  }
  func.func @transform_2(%arg0: i32) -> (i32, i32) {
    %c0_i32 = arith.constant 0 : i32
    %c0_i32_0 = arith.constant 0 : i32
    %c0_i32_1 = arith.constant 0 : i32
    return %c0_i32, %c0_i32_0 : i32, i32
  }
  func.func @transform_3(%arg0: i32) -> (i32, i32) {
    %c0_i32 = arith.constant 0 : i32
    %c0_i32_0 = arith.constant 0 : i32
    %c0_i32_1 = arith.constant 0 : i32
    return %c0_i32, %c0_i32_0 : i32, i32
  }
  func.func @transform_4(%arg0: i32) -> (i32, i32) {
    %c0_i32 = arith.constant 0 : i32
    %c0_i32_0 = arith.constant 0 : i32
    %c0_i32_1 = arith.constant 0 : i32
    return %c0_i32, %c0_i32_0 : i32, i32
  }
  func.func @transform_5(%arg0: i32) -> (i32, i32) {
    %c0_i32 = arith.constant 0 : i32
    %c0_i32_0 = arith.constant 0 : i32
    %c0_i32_1 = arith.constant 0 : i32
    return %c0_i32, %c0_i32_0 : i32, i32
  }
}

</mosaic_0001>

<llo_original>
// kernel: shallow_net_forward.3
$region0: #{shallow_net_forward.3}
  #allocation0 [shape = 'u32[]', space=smem, size = 0x4, offset = 0x4, fixed_abs, tag = 'smem constant byte address 0x4 - core index']
  #allocation1 [shape = 'u32[144,128]{1,0:T(1,128)}', space=vmem, size = 0x12000, scoped, tag = 'internal scratch']
  %s0 = inlined_call_operand.vmem [shape: bf16[320,420], index: 0, kind: input, shape index: {}]
  %s1 = inlined_call_operand.vmem [shape: bf16[420,768], index: 1, kind: input, shape index: {}]
  %s2 = inlined_call_operand.vmem [shape: f32[16,1], index: 2, kind: input, shape index: {}]
  %s3 = inlined_call_operand.vmem [shape: f32[16,768], index: 3, kind: output, shape index: {}]
  %s4 = sld [smem:[#allocation0]]
  $region90: #{shallow_net_forward.3} parent=0
    _
  %s6 = ssub.s32 1, %s4
  %s7 = scalar_select 0, %s6, %s4
  $region1: #{shallow_net_forward.3} parent=0
    #allocation2 [shape = 'u8[651264]{0}', space=vmem, size = 0x9f000, scoped, tag = 'input window, operand 1']
    #allocation3 [shape = 'u8[49152]{0}', space=vmem, size = 0xc000, scoped, tag = 'output window, operand 0']
    loop: start=0, step=1, limit=4
    $region2: #{shallow_net_forward.3} parent=1 // loop_pre_header
      _
    $region3: #{shallow_net_forward.3} parent=1 // loop_header
      %s9 = sphi 0, %s13
      %p10 = scmp.ge.s32.totalorder %s9, 4
      %s17 = sphi 0, %s17
      %s19 = sphi 0, %s17
      %s20 = sphi 0, %s19
      %s34 = sphi 0, %s20
      %s40 = sphi 0, %s42
      %s43 = sphi 0, %s40
      %s44 = sphi 0, %s43
      %s60 = sphi 0, %s44
      %s64 = sphi 0, %s64
      %s66 = sphi 0, %s64
      %s67 = sphi 0, %s66
      %s81 = sphi 0, %s67
      %s87 = sphi 0, %s89
      %s90 = sphi 0, %s87
      %s91 = sphi 0, %s90
      %s107 = sphi 0, %s91
    $region4: #{shallow_net_forward.3} parent=1 // loop_header_branch
      %12 = sbr.rel (%p10) target = $region8
    $region5: #{shallow_net_forward.3} parent=1 // loop_body
      %s14 = ssub.s32 %s9, 1
      %s15 = ssub.s32 %s9, 2
      %s16 = sadd.s32 %s9, 1
      %s18 = sadd.s32 %s17, 1
      %p21 = scmp.eq.s32.totalorder %s9, 1
      %p22 = scmp.ne.s32.totalorder %s17, %s19
      %p23 = scmp.eq.s32.totalorder %s9, 0
      %p24 = por %p22, %p23
      %p25 = scmp.ne.s32.totalorder %s17, %s19
      %p26 = scmp.eq.s32.totalorder %s14, 1
      %p27 = por %p25, %p26
      %p28 = scmp.ne.s32.totalorder %s19, %s20
      %p29 = scmp.eq.s32.totalorder %s14, 0
      %p30 = por %p28, %p29
      %p31 = scmp.ne.s32.totalorder %s19, %s20
      %p32 = scmp.eq.s32.totalorder %s15, 1
      %p33 = por %p31, %p32
      %p35 = scmp.ne.s32.totalorder %s20, %s34
      %p36 = scmp.eq.s32.totalorder %s15, 0
      %p37 = por %p35, %p36
      %s38 = ssub.s32 %s9, %s16
      %p39 = scmp.eq.s32.totalorder %s38, 0
      %s41 = sadd.s32 %s40, 1
      %s42 = scalar_select %p39, %s40, %s41
      %p45 = pneg %p39
      %p46 = scmp.eq.s32.totalorder %s9, 1
      %p47 = por %p45, %p46
      %p48 = scmp.ne.s32.totalorder %s40, %s43
      %p49 = scmp.eq.s32.totalorder %s9, 0
      %p50 = por %p48, %p49
      %p51 = scmp.ne.s32.totalorder %s40, %s43
      %p52 = scmp.eq.s32.totalorder %s14, 1
      %p53 = por %p51, %p52
      %p54 = scmp.ne.s32.totalorder %s43, %s44
      %p55 = scmp.eq.s32.totalorder %s14, 0
      %p56 = por %p54, %p55
      %p57 = scmp.ne.s32.totalorder %s43, %s44
      %p58 = scmp.eq.s32.totalorder %s15, 1
      %p59 = por %p57, %p58
      %p61 = scmp.ne.s32.totalorder %s44, %s60
      %p62 = scmp.eq.s32.totalorder %s15, 0
      %p63 = por %p61, %p62
      %s65 = sadd.s32 %s64, 1
      %p68 = scmp.eq.s32.totalorder %s9, 1
      %p69 = scmp.ne.s32.totalorder %s64, %s66
      %p70 = scmp.eq.s32.totalorder %s9, 0
      %p71 = por %p69, %p70
      %p72 = scmp.ne.s32.totalorder %s64, %s66
      %p73 = scmp.eq.s32.totalorder %s14, 1
      %p74 = por %p72, %p73
      %p75 = scmp.ne.s32.totalorder %s66, %s67
      %p76 = scmp.eq.s32.totalorder %s14, 0
      %p77 = por %p75, %p76
      %p78 = scmp.ne.s32.totalorder %s66, %s67
      %p79 = scmp.eq.s32.totalorder %s15, 1
      %p80 = por %p78, %p79
      %p82 = scmp.ne.s32.totalorder %s67, %s81
      %p83 = scmp.eq.s32.totalorder %s15, 0
      %p84 = por %p82, %p83
      %s85 = ssub.s32 %s9, %s16
      %p86 = scmp.eq.s32.totalorder %s85, 0
      %s88 = sadd.s32 %s87, 1
      %s89 = scalar_select %p86, %s87, %s88
      %p92 = pneg %p86
      %p93 = scmp.eq.s32.totalorder %s9, 1
      %p94 = por %p92, %p93
      %p95 = scmp.ne.s32.totalorder %s87, %s90
      %p96 = scmp.eq.s32.totalorder %s9, 0
      %p97 = por %p95, %p96
      %p98 = scmp.ne.s32.totalorder %s87, %s90
      %p99 = scmp.eq.s32.totalorder %s14, 1
      %p100 = por %p98, %p99
      %p101 = scmp.ne.s32.totalorder %s90, %s91
      %p102 = scmp.eq.s32.totalorder %s14, 0
      %p103 = por %p101, %p102
      %p104 = scmp.ne.s32.totalorder %s90, %s91
      %p105 = scmp.eq.s32.totalorder %s15, 1
      %p106 = por %p104, %p105
      %p108 = scmp.ne.s32.totalorder %s91, %s107
      %p109 = scmp.eq.s32.totalorder %s15, 0
      %p110 = por %p108, %p109
      %p111 = scmp.le.s32.totalorder 1, %s9
      %p112 = scmp.lt.s32.totalorder %s9, 3
      %p113 = pnand %p111, %p112
      %p114 = pneg %p113
      // Predicated region
      $region9: #{shallow_net_forward.3} parent=5 // pred_check
        _
      $region10: #{shallow_net_forward.3} parent=5 // pred_check_branch
        %116 = sbr.rel (%p113) target = $region12
      $region11: #{shallow_net_forward.3} parent=5 // pred_region
        %s117 = ssub.s32 %s9, 1
        // Predicated region
        $region13: #{shallow_net_forward.3} parent=11 // pred_check
          %p118 = pneg %p30
        $region14: #{shallow_net_forward.3} parent=11 // pred_check_branch
          %120 = sbr.rel (%p118) target = $region16
        $region15: #{shallow_net_forward.3} parent=11 // pred_region
          _
        $region16: #{shallow_net_forward.3} parent=11 // pred_fallthru
          _
        // Predicated region
        $region17: #{shallow_net_forward.3} parent=11 // pred_check
          %p121 = pneg %p77
        $region18: #{shallow_net_forward.3} parent=11 // pred_check_branch
          %123 = sbr.rel (%p121) target = $region20
        $region19: #{shallow_net_forward.3} parent=11 // pred_region
          _
        $region20: #{shallow_net_forward.3} parent=11 // pred_fallthru
          _
      $region12: #{shallow_net_forward.3} parent=5 // pred_fallthru
        _
      %p124 = scmp.lt.s32.totalorder %s9, 2
      // Predicated region
      $region21: #{shallow_net_forward.3} parent=5 // pred_check
        %p125 = pneg %p124
      $region22: #{shallow_net_forward.3} parent=5 // pred_check_branch
        %127 = sbr.rel (%p125) target = $region24
      $region23: #{shallow_net_forward.3} parent=5 // pred_region
        // Predicated region
        $region25: #{shallow_net_forward.3} parent=23 // pred_check
          %p128 = pneg %p50
        $region26: #{shallow_net_forward.3} parent=23 // pred_check_branch
          %130 = sbr.rel (%p128) target = $region28
        $region27: #{shallow_net_forward.3} parent=23 // pred_region
          %s131 = sand.u32 %s40, 1
          %s132 = sand.u32 %s40, 1
          %s133 = smul.addr %s132, 636
          %s134 = scalar_lea.vmem [#allocation2], %s133
          %s135 = smul.u32 3, %s9
          %s136 = smul.addr %s135, 4
          %s137 = scalar_lea.vmem %s1, %s136
          // Predicated region
          $region29: #{shallow_net_forward.3} parent=27 // pred_check
            _
          $region30: #{shallow_net_forward.3} parent=27 // pred_check_branch
            %139 = sbr.rel (0) target = $region32
          $region31: #{shallow_net_forward.3} parent=27 // pred_region
            // Predicated region
            $region33: #{shallow_net_forward.3} parent=31 // pred_check
              _
            $region34: #{shallow_net_forward.3} parent=31 // pred_check_branch
              %141 = sbr.rel (0) target = $region36
            $region35: #{shallow_net_forward.3} parent=31 // pred_region
              %s142 = scalar_lea.vmem %s137, 8
              %s143 = scalar_lea.vmem %s134, 8 [#allocation2]
              loop: start=0, step=1, limit=1
              $region37: #{shallow_net_forward.3} parent=35 // loop_pre_header
                _
              $region38: #{shallow_net_forward.3} parent=35 // loop_header
                %s145 = sphi 0, %s149
                %p146 = scmp.ge.s32.totalorder %s145, 1
                %s150 = sphi %s137, %s137
                %s151 = sphi %s134, %s134
              $region39: #{shallow_net_forward.3} parent=35 // loop_header_branch
                %148 = sbr.rel (%p146) target = $region43
              $region40: #{shallow_net_forward.3} parent=35 // loop_body
                %v152 = vld [vmem:[%s150] sm:$0xff]
                %153 = vst [vmem:[%s151] sm:$0xff] %v152
                %v154 = vld [vmem:[%s150 + $0x18] sm:$0xff]
                %155 = vst [vmem:[%s151 + $0xc] sm:$0xff] %v154
                %v156 = vld [vmem:[%s150 + $0x30] sm:$0xff]
                %157 = vst [vmem:[%s151 + $0x18] sm:$0xff] %v156
                %v158 = vld [vmem:[%s150 + $0x48] sm:$0xff]
                %159 = vst [vmem:[%s151 + $0x24] sm:$0xff] %v158
                %v160 = vld [vmem:[%s150 + $0x60] sm:$0xff]
                %161 = vst [vmem:[%s151 + $0x30] sm:$0xff] %v160
                %v162 = vld [vmem:[%s150 + $0x78] sm:$0xff]
                %163 = vst [vmem:[%s151 + $0x3c] sm:$0xff] %v162
                %v164 = vld [vmem:[%s150 + $0x90] sm:$0xff]
                %165 = vst [vmem:[%s151 + $0x48] sm:$0xff] %v164
                %v166 = vld [vmem:[%s150 + $0xa8] sm:$0xff]
                %167 = vst [vmem:[%s151 + $0x54] sm:$0xff] %v166
                %v168 = vld [vmem:[%s150 + $0xc0] sm:$0xff]
                %169 = vst [vmem:[%s151 + $0x60] sm:$0xff] %v168
                %v170 = vld [vmem:[%s150 + $0xd8] sm:$0xff]
                %171 = vst [vmem:[%s151 + $0x6c] sm:$0xff] %v170
                %v172 = vld [vmem:[%s150 + $0xf0] sm:$0xff]
                %173 = vst [vmem:[%s151 + $0x78] sm:$0xff] %v172
                %v174 = vld [vmem:[%s150 + $0x108] sm:$0xff]
                %175 = vst [vmem:[%s151 + $0x84] sm:$0xff] %v174
                %v176 = vld [vmem:[%s150 + $0x120] sm:$0xff]
                %177 = vst [vmem:[%s151 + $0x90] sm:$0xff] %v176
                %v178 = vld [vmem:[%s150 + $0x138] sm:$0xff]
                %179 = vst [vmem:[%s151 + $0x9c] sm:$0xff] %v178
                %v180 = vld [vmem:[%s150 + $0x150] sm:$0xff]
                %181 = vst [vmem:[%s151 + $0xa8] sm:$0xff] %v180
                %v182 = vld [vmem:[%s150 + $0x168] sm:$0xff]
                %183 = vst [vmem:[%s151 + $0xb4] sm:$0xff] %v182
                %v184 = vld [vmem:[%s150 + $0x180] sm:$0xff]
                %185 = vst [vmem:[%s151 + $0xc0] sm:$0xff] %v184
                %v186 = vld [vmem:[%s150 + $0x198] sm:$0xff]
                %187 = vst [vmem:[%s151 + $0xcc] sm:$0xff] %v186
                %v188 = vld [vmem:[%s150 + $0x1b0] sm:$0xff]
                %189 = vst [vmem:[%s151 + $0xd8] sm:$0xff] %v188
                %v190 = vld [vmem:[%s150 + $0x1c8] sm:$0xff]
                %191 = vst [vmem:[%s151 + $0xe4] sm:$0xff] %v190
                %v192 = vld [vmem:[%s150 + $0x1e0] sm:$0xff]
                %193 = vst [vmem:[%s151 + $0xf0] sm:$0xff] %v192
                %v194 = vld [vmem:[%s150 + $0x1f8] sm:$0xff]
                %195 = vst [vmem:[%s151 + $0xfc] sm:$0xff] %v194
                %v196 = vld [vmem:[%s150 + $0x210] sm:$0xff]
                %197 = vst [vmem:[%s151 + $0x108] sm:$0xff] %v196
                %v198 = vld [vmem:[%s150 + $0x228] sm:$0xff]
                %199 = vst [vmem:[%s151 + $0x114] sm:$0xff] %v198
                %v200 = vld [vmem:[%s150 + $0x240] sm:$0xff]
                %201 = vst [vmem:[%s151 + $0x120] sm:$0xff] %v200
                %v202 = vld [vmem:[%s150 + $0x258] sm:$0xff]
                %203 = vst [vmem:[%s151 + $0x12c] sm:$0xff] %v202
                %v204 = vld [vmem:[%s150 + $0x270] sm:$0xff]
                %205 = vst [vmem:[%s151 + $0x138] sm:$0xff] %v204
                %v206 = vld [vmem:[%s150 + $0x288] sm:$0xff]
                %207 = vst [vmem:[%s151 + $0x144] sm:$0xff] %v206
                %v208 = vld [vmem:[%s150 + $0x2a0] sm:$0xff]
                %209 = vst [vmem:[%s151 + $0x150] sm:$0xff] %v208
                %v210 = vld [vmem:[%s150 + $0x2b8] sm:$0xff]
                %211 = vst [vmem:[%s151 + $0x15c] sm:$0xff] %v210
                %v212 = vld [vmem:[%s150 + $0x2d0] sm:$0xff]
                %213 = vst [vmem:[%s151 + $0x168] sm:$0xff] %v212
                %v214 = vld [vmem:[%s150 + $0x2e8] sm:$0xff]
                %215 = vst [vmem:[%s151 + $0x174] sm:$0xff] %v214
                %v216 = vld [vmem:[%s150 + $0x300] sm:$0xff]
                %217 = vst [vmem:[%s151 + $0x180] sm:$0xff] %v216
                %v218 = vld [vmem:[%s150 + $0x318] sm:$0xff]
                %219 = vst [vmem:[%s151 + $0x18c] sm:$0xff] %v218
                %v220 = vld [vmem:[%s150 + $0x330] sm:$0xff]
                %221 = vst [vmem:[%s151 + $0x198] sm:$0xff] %v220
                %v222 = vld [vmem:[%s150 + $0x348] sm:$0xff]
                %223 = vst [vmem:[%s151 + $0x1a4] sm:$0xff] %v222
                %v224 = vld [vmem:[%s150 + $0x360] sm:$0xff]
                %225 = vst [vmem:[%s151 + $0x1b0] sm:$0xff] %v224
                %v226 = vld [vmem:[%s150 + $0x378] sm:$0xff]
                %227 = vst [vmem:[%s151 + $0x1bc] sm:$0xff] %v226
                %v228 = vld [vmem:[%s150 + $0x390] sm:$0xff]
                %229 = vst [vmem:[%s151 + $0x1c8] sm:$0xff] %v228
                %v230 = vld [vmem:[%s150 + $0x3a8] sm:$0xff]
                %231 = vst [vmem:[%s151 + $0x1d4] sm:$0xff] %v230
                %v232 = vld [vmem:[%s150 + $0x3c0] sm:$0xff]
                %233 = vst [vmem:[%s151 + $0x1e0] sm:$0xff] %v232
                %v234 = vld [vmem:[%s150 + $0x3d8] sm:$0xff]
                %235 = vst [vmem:[%s151 + $0x1ec] sm:$0xff] %v234
                %v236 = vld [vmem:[%s150 + $0x3f0] sm:$0xff]
                %237 = vst [vmem:[%s151 + $0x1f8] sm:$0xff] %v236
                %v238 = vld [vmem:[%s150 + $0x408] sm:$0xff]
                %239 = vst [vmem:[%s151 + $0x204] sm:$0xff] %v238
                %v240 = vld [vmem:[%s150 + $0x420] sm:$0xff]
                %241 = vst [vmem:[%s151 + $0x210] sm:$0xff] %v240
                %v242 = vld [vmem:[%s150 + $0x438] sm:$0xff]
                %243 = vst [vmem:[%s151 + $0x21c] sm:$0xff] %v242
                %v244 = vld [vmem:[%s150 + $0x450] sm:$0xff]
                %245 = vst [vmem:[%s151 + $0x228] sm:$0xff] %v244
                %v246 = vld [vmem:[%s150 + $0x468] sm:$0xff]
                %247 = vst [vmem:[%s151 + $0x234] sm:$0xff] %v246
                %v248 = vld [vmem:[%s150 + $0x480] sm:$0xff]
                %249 = vst [vmem:[%s151 + $0x240] sm:$0xff] %v248
                %v250 = vld [vmem:[%s150 + $0x498] sm:$0xff]
                %251 = vst [vmem:[%s151 + $0x24c] sm:$0xff] %v250
                %v252 = vld [vmem:[%s150 + $0x4b0] sm:$0xff]
                %253 = vst [vmem:[%s151 + $0x258] sm:$0xff] %v252
                %v254 = vld [vmem:[%s150 + $0x4c8] sm:$0xff]
                %255 = vst [vmem:[%s151 + $0x264] sm:$0xff] %v254
                %v256 = vld [vmem:[%s150 + $0x4e0] sm:$0xff]
                %257 = vst [vmem:[%s151 + $0x270] sm:$0xff] %v256
              $region41: #{shallow_net_forward.3} parent=35 // loop_footer
                %s149 = sadd.s32 1, %s145
              $region42: #{shallow_net_forward.3} parent=35 // loop_footer_branch
                %144 = sbr.rel target = $region38
              $region43: #{shallow_net_forward.3} parent=35 // loop_exit
                _
              loop: start=0, step=1, limit=1
              $region44: #{shallow_net_forward.3} parent=35 // loop_pre_header
                _
              $region45: #{shallow_net_forward.3} parent=35 // loop_header
                %s260 = sphi 0, %s264
                %p261 = scmp.ge.s32.totalorder %s260, 1
                %s265 = sphi %s142, %s142
                %s266 = sphi %s143, %s143
              $region46: #{shallow_net_forward.3} parent=35 // loop_header_branch
                %263 = sbr.rel (%p261) target = $region50
              $region47: #{shallow_net_forward.3} parent=35 // loop_body
                %v267 = vld [vmem:[%s265] sm:$0xf]
                %268 = vst [vmem:[%s266] sm:$0xf] %v267
                %v269 = vld [vmem:[%s265 + $0x18] sm:$0xf]
                %270 = vst [vmem:[%s266 + $0xc] sm:$0xf] %v269
                %v271 = vld [vmem:[%s265 + $0x30] sm:$0xf]
                %272 = vst [vmem:[%s266 + $0x18] sm:$0xf] %v271
                %v273 = vld [vmem:[%s265 + $0x48] sm:$0xf]
                %274 = vst [vmem:[%s266 + $0x24] sm:$0xf] %v273
                %v275 = vld [vmem:[%s265 + $0x60] sm:$0xf]
                %276 = vst [vmem:[%s266 + $0x30] sm:$0xf] %v275
                %v277 = vld [vmem:[%s265 + $0x78] sm:$0xf]
                %278 = vst [vmem:[%s266 + $0x3c] sm:$0xf] %v277
                %v279 = vld [vmem:[%s265 + $0x90] sm:$0xf]
                %280 = vst [vmem:[%s266 + $0x48] sm:$0xf] %v279
                %v281 = vld [vmem:[%s265 + $0xa8] sm:$0xf]
                %282 = vst [vmem:[%s266 + $0x54] sm:$0xf] %v281
                %v283 = vld [vmem:[%s265 + $0xc0] sm:$0xf]
                %284 = vst [vmem:[%s266 + $0x60] sm:$0xf] %v283
                %v285 = vld [vmem:[%s265 + $0xd8] sm:$0xf]
                %286 = vst [vmem:[%s266 + $0x6c] sm:$0xf] %v285
                %v287 = vld [vmem:[%s265 + $0xf0] sm:$0xf]
                %288 = vst [vmem:[%s266 + $0x78] sm:$0xf] %v287
                %v289 = vld [vmem:[%s265 + $0x108] sm:$0xf]
                %290 = vst [vmem:[%s266 + $0x84] sm:$0xf] %v289
                %v291 = vld [vmem:[%s265 + $0x120] sm:$0xf]
                %292 = vst [vmem:[%s266 + $0x90] sm:$0xf] %v291
                %v293 = vld [vmem:[%s265 + $0x138] sm:$0xf]
                %294 = vst [vmem:[%s266 + $0x9c] sm:$0xf] %v293
                %v295 = vld [vmem:[%s265 + $0x150] sm:$0xf]
                %296 = vst [vmem:[%s266 + $0xa8] sm:$0xf] %v295
                %v297 = vld [vmem:[%s265 + $0x168] sm:$0xf]
                %298 = vst [vmem:[%s266 + $0xb4] sm:$0xf] %v297
                %v299 = vld [vmem:[%s265 + $0x180] sm:$0xf]
                %300 = vst [vmem:[%s266 + $0xc0] sm:$0xf] %v299
                %v301 = vld [vmem:[%s265 + $0x198] sm:$0xf]
                %302 = vst [vmem:[%s266 + $0xcc] sm:$0xf] %v301
                %v303 = vld [vmem:[%s265 + $0x1b0] sm:$0xf]
                %304 = vst [vmem:[%s266 + $0xd8] sm:$0xf] %v303
                %v305 = vld [vmem:[%s265 + $0x1c8] sm:$0xf]
                %306 = vst [vmem:[%s266 + $0xe4] sm:$0xf] %v305
                %v307 = vld [vmem:[%s265 + $0x1e0] sm:$0xf]
                %308 = vst [vmem:[%s266 + $0xf0] sm:$0xf] %v307
                %v309 = vld [vmem:[%s265 + $0x1f8] sm:$0xf]
                %310 = vst [vmem:[%s266 + $0xfc] sm:$0xf] %v309
                %v311 = vld [vmem:[%s265 + $0x210] sm:$0xf]
                %312 = vst [vmem:[%s266 + $0x108] sm:$0xf] %v311
                %v313 = vld [vmem:[%s265 + $0x228] sm:$0xf]
                %314 = vst [vmem:[%s266 + $0x114] sm:$0xf] %v313
                %v315 = vld [vmem:[%s265 + $0x240] sm:$0xf]
                %316 = vst [vmem:[%s266 + $0x120] sm:$0xf] %v315
                %v317 = vld [vmem:[%s265 + $0x258] sm:$0xf]
                %318 = vst [vmem:[%s266 + $0x12c] sm:$0xf] %v317
                %v319 = vld [vmem:[%s265 + $0x270] sm:$0xf]
                %320 = vst [vmem:[%s266 + $0x138] sm:$0xf] %v319
                %v321 = vld [vmem:[%s265 + $0x288] sm:$0xf]
                %322 = vst [vmem:[%s266 + $0x144] sm:$0xf] %v321
                %v323 = vld [vmem:[%s265 + $0x2a0] sm:$0xf]
                %324 = vst [vmem:[%s266 + $0x150] sm:$0xf] %v323
                %v325 = vld [vmem:[%s265 + $0x2b8] sm:$0xf]
                %326 = vst [vmem:[%s266 + $0x15c] sm:$0xf] %v325
                %v327 = vld [vmem:[%s265 + $0x2d0] sm:$0xf]
                %328 = vst [vmem:[%s266 + $0x168] sm:$0xf] %v327
                %v329 = vld [vmem:[%s265 + $0x2e8] sm:$0xf]
                %330 = vst [vmem:[%s266 + $0x174] sm:$0xf] %v329
                %v331 = vld [vmem:[%s265 + $0x300] sm:$0xf]
                %332 = vst [vmem:[%s266 + $0x180] sm:$0xf] %v331
                %v333 = vld [vmem:[%s265 + $0x318] sm:$0xf]
                %334 = vst [vmem:[%s266 + $0x18c] sm:$0xf] %v333
                %v335 = vld [vmem:[%s265 + $0x330] sm:$0xf]
                %336 = vst [vmem:[%s266 + $0x198] sm:$0xf] %v335
                %v337 = vld [vmem:[%s265 + $0x348] sm:$0xf]
                %338 = vst [vmem:[%s266 + $0x1a4] sm:$0xf] %v337
                %v339 = vld [vmem:[%s265 + $0x360] sm:$0xf]
                %340 = vst [vmem:[%s266 + $0x1b0] sm:$0xf] %v339
                %v341 = vld [vmem:[%s265 + $0x378] sm:$0xf]
                %342 = vst [vmem:[%s266 + $0x1bc] sm:$0xf] %v341
                %v343 = vld [vmem:[%s265 + $0x390] sm:$0xf]
                %344 = vst [vmem:[%s266 + $0x1c8] sm:$0xf] %v343
                %v345 = vld [vmem:[%s265 + $0x3a8] sm:$0xf]
                %346 = vst [vmem:[%s266 + $0x1d4] sm:$0xf] %v345
                %v347 = vld [vmem:[%s265 + $0x3c0] sm:$0xf]
                %348 = vst [vmem:[%s266 + $0x1e0] sm:$0xf] %v347
                %v349 = vld [vmem:[%s265 + $0x3d8] sm:$0xf]
                %350 = vst [vmem:[%s266 + $0x1ec] sm:$0xf] %v349
                %v351 = vld [vmem:[%s265 + $0x3f0] sm:$0xf]
                %352 = vst [vmem:[%s266 + $0x1f8] sm:$0xf] %v351
                %v353 = vld [vmem:[%s265 + $0x408] sm:$0xf]
                %354 = vst [vmem:[%s266 + $0x204] sm:$0xf] %v353
                %v355 = vld [vmem:[%s265 + $0x420] sm:$0xf]
                %356 = vst [vmem:[%s266 + $0x210] sm:$0xf] %v355
                %v357 = vld [vmem:[%s265 + $0x438] sm:$0xf]
                %358 = vst [vmem:[%s266 + $0x21c] sm:$0xf] %v357
                %v359 = vld [vmem:[%s265 + $0x450] sm:$0xf]
                %360 = vst [vmem:[%s266 + $0x228] sm:$0xf] %v359
                %v361 = vld [vmem:[%s265 + $0x468] sm:$0xf]
                %362 = vst [vmem:[%s266 + $0x234] sm:$0xf] %v361
                %v363 = vld [vmem:[%s265 + $0x480] sm:$0xf]
                %364 = vst [vmem:[%s266 + $0x240] sm:$0xf] %v363
                %v365 = vld [vmem:[%s265 + $0x498] sm:$0xf]
                %366 = vst [vmem:[%s266 + $0x24c] sm:$0xf] %v365
                %v367 = vld [vmem:[%s265 + $0x4b0] sm:$0xf]
                %368 = vst [vmem:[%s266 + $0x258] sm:$0xf] %v367
                %v369 = vld [vmem:[%s265 + $0x4c8] sm:$0xf]
                %370 = vst [vmem:[%s266 + $0x264] sm:$0xf] %v369
                %v371 = vld [vmem:[%s265 + $0x4e0] sm:$0xf]
                %372 = vst [vmem:[%s266 + $0x270] sm:$0xf] %v371
              $region48: #{shallow_net_forward.3} parent=35 // loop_footer
                %s264 = sadd.s32 1, %s260
              $region49: #{shallow_net_forward.3} parent=35 // loop_footer_branch
                %259 = sbr.rel target = $region45
              $region50: #{shallow_net_forward.3} parent=35 // loop_exit
                _
            $region36: #{shallow_net_forward.3} parent=31 // pred_fallthru
              _
          $region32: #{shallow_net_forward.3} parent=27 // pred_fallthru
            _
          %373 = vnop
        $region28: #{shallow_net_forward.3} parent=23 // pred_fallthru
          _
      $region24: #{shallow_net_forward.3} parent=5 // pred_fallthru
        _
      %p374 = scmp.le.s32.totalorder 1, %s9
      %p375 = scmp.lt.s32.totalorder %s9, 3
      %p376 = pnand %p374, %p375
      %p377 = pneg %p376
      // Predicated region
      $region51: #{shallow_net_forward.3} parent=5 // pred_check
        _
      $region52: #{shallow_net_forward.3} parent=5 // pred_check_branch
        %379 = sbr.rel (%p376) target = $region54
      $region53: #{shallow_net_forward.3} parent=5 // pred_region
        %s380 = ssub.s32 %s9, 1
        %s381 = sand.u32 %s43, 1
        %s382 = sand.u32 %s43, 1
        %s383 = smul.addr %s382, 636
        %s384 = scalar_lea.vmem [#allocation2], %s383
        // Predicated region
        $region55: #{shallow_net_forward.3} parent=53 // pred_check
          %p385 = pneg %p56
        $region56: #{shallow_net_forward.3} parent=53 // pred_check_branch
          %387 = sbr.rel (%p385) target = $region58
        $region57: #{shallow_net_forward.3} parent=53 // pred_region
          _
        $region58: #{shallow_net_forward.3} parent=53 // pred_fallthru
          _
        %p388 = pneg %p30
        %p389 = pneg %p27
        %s390 = sand.u32 %s43, 1
        %s391 = sand.u32 %s43, 1
        %s392 = smul.addr %s391, 636
        %s393 = scalar_lea.vmem [#allocation2], %s392
        %p394 = pneg %p56
        %p395 = pneg %p53
        %p396 = pneg %p77
        %p397 = pneg %p74
        %p398 = pneg %p103
        %p399 = pneg %p100
        %s400 = sand.u32 %s90, 1
        %s401 = sand.u32 %s90, 1
        %s402 = smul.addr %s401, 48
        %s403 = scalar_lea.vmem [#allocation3], %s402
        %s404 = smul.u32 3, %s14
        %s405 = smul.u32 3, %s14
        %v407 = vld [vmem:[%s0] sm:$0xff]
        %v408 = vld [vmem:[%s0 + $0x8] sm:$0xff]
        %v409 = vld [vmem:[%s0 + $0x10] sm:$0xff]
        %v410 = vld [vmem:[%s0 + $0x18] sm:$0xff]
        %v411 = vld [vmem:[%s0 + $0x20] sm:$0xff]
        %v412 = vld [vmem:[%s0 + $0x28] sm:$0xff]
        %v413 = vld [vmem:[%s0 + $0x30] sm:$0xff]
        %v414 = vld [vmem:[%s0 + $0x38] sm:$0xff]
        %v415 = vld [vmem:[%s0 + $0x40] sm:$0xff]
        %v416 = vld [vmem:[%s0 + $0x48] sm:$0xff]
        %v417 = vld [vmem:[%s0 + $0x50] sm:$0xff]
        %v418 = vld [vmem:[%s0 + $0x58] sm:$0xff]
        %v419 = vld [vmem:[%s0 + $0x60] sm:$0xff]
        %v420 = vld [vmem:[%s0 + $0x68] sm:$0xff]
        %v421 = vld [vmem:[%s0 + $0x70] sm:$0xff]
        %v422 = vld [vmem:[%s0 + $0x78] sm:$0xff]
        %v423 = vld [vmem:[%s0 + $0x80] sm:$0xff]
        %v424 = vld [vmem:[%s0 + $0x88] sm:$0xff]
        %v425 = vld [vmem:[%s0 + $0x90] sm:$0xff]
        %v426 = vld [vmem:[%s0 + $0x98] sm:$0xff]
        %v427 = vld [vmem:[%s0 + $0xa0] sm:$0xff]
        %v428 = vld [vmem:[%s0 + $0xa8] sm:$0xff]
        %v429 = vld [vmem:[%s0 + $0xb0] sm:$0xff]
        %v430 = vld [vmem:[%s0 + $0xb8] sm:$0xff]
        %v431 = vld [vmem:[%s0 + $0xc0] sm:$0xff]
        %v432 = vld [vmem:[%s0 + $0xc8] sm:$0xff]
        %v433 = vld [vmem:[%s0 + $0xd0] sm:$0xff]
        %v434 = vld [vmem:[%s0 + $0xd8] sm:$0xff]
        %v435 = vld [vmem:[%s0 + $0xe0] sm:$0xff]
        %v436 = vld [vmem:[%s0 + $0xe8] sm:$0xff]
        %v437 = vld [vmem:[%s0 + $0xf0] sm:$0xff]
        %v438 = vld [vmem:[%s0 + $0xf8] sm:$0xff]
        %v439 = vld [vmem:[%s0 + $0x100] sm:$0xff]
        %v440 = vld [vmem:[%s0 + $0x108] sm:$0xff]
        %v441 = vld [vmem:[%s0 + $0x110] sm:$0xff]
        %v442 = vld [vmem:[%s0 + $0x118] sm:$0xff]
        %v443 = vld [vmem:[%s0 + $0x120] sm:$0xff]
        %v444 = vld [vmem:[%s0 + $0x128] sm:$0xff]
        %v445 = vld [vmem:[%s0 + $0x130] sm:$0xff]
        %v446 = vld [vmem:[%s0 + $0x138] sm:$0xff]
        %v447 = vld [vmem:[%s0 + $0x140] sm:$0xff]
        %v448 = vld [vmem:[%s0 + $0x148] sm:$0xff]
        %v449 = vld [vmem:[%s0 + $0x150] sm:$0xff]
        %v450 = vld [vmem:[%s0 + $0x158] sm:$0xff]
        %v451 = vld [vmem:[%s0 + $0x160] sm:$0xff]
        %v452 = vld [vmem:[%s0 + $0x168] sm:$0xff]
        %v453 = vld [vmem:[%s0 + $0x170] sm:$0xff]
        %v454 = vld [vmem:[%s0 + $0x178] sm:$0xff]
        %v455 = vld [vmem:[%s0 + $0x180] sm:$0xff]
        %v456 = vld [vmem:[%s0 + $0x188] sm:$0xff]
        %v457 = vld [vmem:[%s0 + $0x190] sm:$0xff]
        %v458 = vld [vmem:[%s0 + $0x198] sm:$0xff]
        %v459 = vld [vmem:[%s0 + $0x1a0] sm:$0xff]
        %v460 = vld [vmem:[%s0 + $0x1a8] sm:$0xff]
        %v461 = vld [vmem:[%s0 + $0x1b0] sm:$0xff]
        %v462 = vld [vmem:[%s0 + $0x1b8] sm:$0xff]
        %v463 = vld [vmem:[%s0 + $0x1c0] sm:$0xff]
        %v464 = vld [vmem:[%s0 + $0x1c8] sm:$0xff]
        %v465 = vld [vmem:[%s0 + $0x1d0] sm:$0xff]
        %v466 = vld [vmem:[%s0 + $0x1d8] sm:$0xff]
        %v467 = vld [vmem:[%s0 + $0x1e0] sm:$0xff]
        %v468 = vld [vmem:[%s0 + $0x1e8] sm:$0xff]
        %v469 = vld [vmem:[%s0 + $0x1f0] sm:$0xff]
        %v470 = vld [vmem:[%s0 + $0x1f8] sm:$0xff]
        %v471 = vld [vmem:[%s0 + $0x200] sm:$0xff]
        %v472 = vld [vmem:[%s0 + $0x208] sm:$0xff]
        %v473 = vld [vmem:[%s0 + $0x210] sm:$0xff]
        %v474 = vld [vmem:[%s0 + $0x218] sm:$0xff]
        %v475 = vld [vmem:[%s0 + $0x220] sm:$0xff]
        %v476 = vld [vmem:[%s0 + $0x228] sm:$0xff]
        %v477 = vld [vmem:[%s0 + $0x230] sm:$0xff]
        %v478 = vld [vmem:[%s0 + $0x238] sm:$0xff]
        %v479 = vld [vmem:[%s0 + $0x240] sm:$0xff]
        %v480 = vld [vmem:[%s0 + $0x248] sm:$0xff]
        %v481 = vld [vmem:[%s0 + $0x250] sm:$0xff]
        %v482 = vld [vmem:[%s0 + $0x258] sm:$0xff]
        %v483 = vld [vmem:[%s0 + $0x260] sm:$0xff]
        %v484 = vld [vmem:[%s0 + $0x268] sm:$0xff]
        %v485 = vld [vmem:[%s0 + $0x270] sm:$0xff]
        %v486 = vld [vmem:[%s0 + $0x278] sm:$0xff]
        %v487 = vld [vmem:[%s384] sm:$0xff]
        %v488 = vld [vmem:[%s384 + $0x8] sm:$0xf]
        %v489 = vld [vmem:[%s384 + $0xc] sm:$0xff]
        %v490 = vld [vmem:[%s384 + $0x14] sm:$0xf]
        %v491 = vld [vmem:[%s384 + $0x18] sm:$0xff]
        %v492 = vld [vmem:[%s384 + $0x20] sm:$0xf]
        %v493 = vld [vmem:[%s384 + $0x24] sm:$0xff]
        %v494 = vld [vmem:[%s384 + $0x2c] sm:$0xf]
        %v495 = vld [vmem:[%s384 + $0x30] sm:$0xff]
        %v496 = vld [vmem:[%s384 + $0x38] sm:$0xf]
        %v497 = vld [vmem:[%s384 + $0x3c] sm:$0xff]
        %v498 = vld [vmem:[%s384 + $0x44] sm:$0xf]
        %v499 = vld [vmem:[%s384 + $0x48] sm:$0xff]
        %v500 = vld [vmem:[%s384 + $0x50] sm:$0xf]
        %v501 = vld [vmem:[%s384 + $0x54] sm:$0xff]
        %v502 = vld [vmem:[%s384 + $0x5c] sm:$0xf]
        %v503 = vld [vmem:[%s384 + $0x60] sm:$0xff]
        %v504 = vld [vmem:[%s384 + $0x68] sm:$0xf]
        %v505 = vld [vmem:[%s384 + $0x6c] sm:$0xff]
        %v506 = vld [vmem:[%s384 + $0x74] sm:$0xf]
        %v507 = vld [vmem:[%s384 + $0x78] sm:$0xff]
        %v508 = vld [vmem:[%s384 + $0x80] sm:$0xf]
        %v509 = vld [vmem:[%s384 + $0x84] sm:$0xff]
        %v510 = vld [vmem:[%s384 + $0x8c] sm:$0xf]
        %v511 = vld [vmem:[%s384 + $0x90] sm:$0xff]
        %v512 = vld [vmem:[%s384 + $0x98] sm:$0xf]
        %v513 = vld [vmem:[%s384 + $0x9c] sm:$0xff]
        %v514 = vld [vmem:[%s384 + $0xa4] sm:$0xf]
        %v515 = vld [vmem:[%s384 + $0xa8] sm:$0xff]
        %v516 = vld [vmem:[%s384 + $0xb0] sm:$0xf]
        %v517 = vld [vmem:[%s384 + $0xb4] sm:$0xff]
        %v518 = vld [vmem:[%s384 + $0xbc] sm:$0xf]
        %v519 = vld [vmem:[%s384 + $0xc0] sm:$0xff]
        %v520 = vld [vmem:[%s384 + $0xc8] sm:$0xf]
        %v521 = vld [vmem:[%s384 + $0xcc] sm:$0xff]
        %v522 = vld [vmem:[%s384 + $0xd4] sm:$0xf]
        %v523 = vld [vmem:[%s384 + $0xd8] sm:$0xff]
        %v524 = vld [vmem:[%s384 + $0xe0] sm:$0xf]
        %v525 = vld [vmem:[%s384 + $0xe4] sm:$0xff]
        %v526 = vld [vmem:[%s384 + $0xec] sm:$0xf]
        %v527 = vld [vmem:[%s384 + $0xf0] sm:$0xff]
        %v528 = vld [vmem:[%s384 + $0xf8] sm:$0xf]
        %v529 = vld [vmem:[%s384 + $0xfc] sm:$0xff]
        %v530 = vld [vmem:[%s384 + $0x104] sm:$0xf]
        %v531 = vld [vmem:[%s384 + $0x108] sm:$0xff]
        %v532 = vld [vmem:[%s384 + $0x110] sm:$0xf]
        %v533 = vld [vmem:[%s384 + $0x114] sm:$0xff]
        %v534 = vld [vmem:[%s384 + $0x11c] sm:$0xf]
        %v535 = vld [vmem:[%s384 + $0x120] sm:$0xff]
        %v536 = vld [vmem:[%s384 + $0x128] sm:$0xf]
        %v537 = vld [vmem:[%s384 + $0x12c] sm:$0xff]
        %v538 = vld [vmem:[%s384 + $0x134] sm:$0xf]
        %v539 = vld [vmem:[%s384 + $0x138] sm:$0xff]
        %v540 = vld [vmem:[%s384 + $0x140] sm:$0xf]
        %v541 = vld [vmem:[%s384 + $0x144] sm:$0xff]
        %v542 = vld [vmem:[%s384 + $0x14c] sm:$0xf]
        %v543 = vld [vmem:[%s384 + $0x150] sm:$0xff]
        %v544 = vld [vmem:[%s384 + $0x158] sm:$0xf]
        %v545 = vld [vmem:[%s384 + $0x15c] sm:$0xff]
        %v546 = vld [vmem:[%s384 + $0x164] sm:$0xf]
        %v547 = vld [vmem:[%s384 + $0x168] sm:$0xff]
        %v548 = vld [vmem:[%s384 + $0x170] sm:$0xf]
        %v549 = vld [vmem:[%s384 + $0x174] sm:$0xff]
        %v550 = vld [vmem:[%s384 + $0x17c] sm:$0xf]
        %v551 = vld [vmem:[%s384 + $0x180] sm:$0xff]
        %v552 = vld [vmem:[%s384 + $0x188] sm:$0xf]
        %v553 = vld [vmem:[%s384 + $0x18c] sm:$0xff]
        %v554 = vld [vmem:[%s384 + $0x194] sm:$0xf]
        %v555 = vld [vmem:[%s384 + $0x198] sm:$0xff]
        %v556 = vld [vmem:[%s384 + $0x1a0] sm:$0xf]
        %v557 = vld [vmem:[%s384 + $0x1a4] sm:$0xff]
        %v558 = vld [vmem:[%s384 + $0x1ac] sm:$0xf]
        %v559 = vld [vmem:[%s384 + $0x1b0] sm:$0xff]
        %v560 = vld [vmem:[%s384 + $0x1b8] sm:$0xf]
        %v561 = vld [vmem:[%s384 + $0x1bc] sm:$0xff]
        %v562 = vld [vmem:[%s384 + $0x1c4] sm:$0xf]
        %v563 = vld [vmem:[%s384 + $0x1c8] sm:$0xff]
        %v564 = vld [vmem:[%s384 + $0x1d0] sm:$0xf]
        %v565 = vld [vmem:[%s384 + $0x1d4] sm:$0xff]
        %v566 = vld [vmem:[%s384 + $0x1dc] sm:$0xf]
        %v567 = vld [vmem:[%s384 + $0x1e0] sm:$0xff]
        %v568 = vld [vmem:[%s384 + $0x1e8] sm:$0xf]
        %v569 = vld [vmem:[%s384 + $0x1ec] sm:$0xff]
        %v570 = vld [vmem:[%s384 + $0x1f4] sm:$0xf]
        %v571 = vld [vmem:[%s384 + $0x1f8] sm:$0xff]
        %v572 = vld [vmem:[%s384 + $0x200] sm:$0xf]
        %v573 = vld [vmem:[%s384 + $0x204] sm:$0xff]
        %v574 = vld [vmem:[%s384 + $0x20c] sm:$0xf]
        %v575 = vld [vmem:[%s384 + $0x210] sm:$0xff]
        %v576 = vld [vmem:[%s384 + $0x218] sm:$0xf]
        %v577 = vld [vmem:[%s384 + $0x21c] sm:$0xff]
        %v578 = vld [vmem:[%s384 + $0x224] sm:$0xf]
        %v579 = vld [vmem:[%s384 + $0x228] sm:$0xff]
        %v580 = vld [vmem:[%s384 + $0x230] sm:$0xf]
        %v581 = vld [vmem:[%s384 + $0x234] sm:$0xff]
        %v582 = vld [vmem:[%s384 + $0x23c] sm:$0xf]
        %v583 = vld [vmem:[%s384 + $0x240] sm:$0xff]
        %v584 = vld [vmem:[%s384 + $0x248] sm:$0xf]
        %v585 = vld [vmem:[%s384 + $0x24c] sm:$0xff]
        %v586 = vld [vmem:[%s384 + $0x254] sm:$0xf]
        %v587 = vld [vmem:[%s384 + $0x258] sm:$0xff]
        %v588 = vld [vmem:[%s384 + $0x260] sm:$0xf]
        %v589 = vld [vmem:[%s384 + $0x264] sm:$0xff]
        %v590 = vld [vmem:[%s384 + $0x26c] sm:$0xf]
        %v591 = vld [vmem:[%s384 + $0x270] sm:$0x33]
        %v592 = vld [vmem:[%s384 + $0x278] sm:$0x3]
        %v673 = vunpack.c.l.b16 %v407
        %v674 = vunpack.c.h.b16 %v407
        %v675 = vunpack.c.l.b16 %v408
        %v676 = vunpack.c.h.b16 %v408
        %v677 = vunpack.c.l.b16 %v409
        %v678 = vunpack.c.h.b16 %v409
        %v679 = vunpack.c.l.b16 %v410
        %v680 = vunpack.c.h.b16 %v410
        %v681 = vunpack.c.l.b16 %v411
        %v682 = vunpack.c.h.b16 %v411
        %v683 = vunpack.c.l.b16 %v412
        %v684 = vunpack.c.h.b16 %v412
        %v685 = vunpack.c.l.b16 %v413
        %v686 = vunpack.c.h.b16 %v413
        %v687 = vunpack.c.l.b16 %v414
        %v688 = vunpack.c.h.b16 %v414
        %v689 = vunpack.c.l.b16 %v415
        %v690 = vunpack.c.h.b16 %v415
        %v691 = vunpack.c.l.b16 %v416
        %v692 = vunpack.c.h.b16 %v416
        %v693 = vunpack.c.l.b16 %v417
        %v694 = vunpack.c.h.b16 %v417
        %v695 = vunpack.c.l.b16 %v418
        %v696 = vunpack.c.h.b16 %v418
        %v697 = vunpack.c.l.b16 %v419
        %v698 = vunpack.c.h.b16 %v419
        %v699 = vunpack.c.l.b16 %v420
        %v700 = vunpack.c.h.b16 %v420
        %v701 = vunpack.c.l.b16 %v421
        %v702 = vunpack.c.h.b16 %v421
        %v703 = vunpack.c.l.b16 %v422
        %v704 = vunpack.c.h.b16 %v422
        %v705 = vunpack.c.l.b16 %v423
        %v706 = vunpack.c.h.b16 %v423
        %v707 = vunpack.c.l.b16 %v424
        %v708 = vunpack.c.h.b16 %v424
        %v709 = vunpack.c.l.b16 %v425
        %v710 = vunpack.c.h.b16 %v425
        %v711 = vunpack.c.l.b16 %v426
        %v712 = vunpack.c.h.b16 %v426
        %v713 = vunpack.c.l.b16 %v427
        %v714 = vunpack.c.h.b16 %v427
        %v715 = vunpack.c.l.b16 %v428
        %v716 = vunpack.c.h.b16 %v428
        %v717 = vunpack.c.l.b16 %v429
        %v718 = vunpack.c.h.b16 %v429
        %v719 = vunpack.c.l.b16 %v430
        %v720 = vunpack.c.h.b16 %v430
        %v721 = vunpack.c.l.b16 %v431
        %v722 = vunpack.c.h.b16 %v431
        %v723 = vunpack.c.l.b16 %v432
        %v724 = vunpack.c.h.b16 %v432
        %v725 = vunpack.c.l.b16 %v433
        %v726 = vunpack.c.h.b16 %v433
        %v727 = vunpack.c.l.b16 %v434
        %v728 = vunpack.c.h.b16 %v434
        %v729 = vunpack.c.l.b16 %v435
        %v730 = vunpack.c.h.b16 %v435
        %v731 = vunpack.c.l.b16 %v436
        %v732 = vunpack.c.h.b16 %v436
        %v733 = vunpack.c.l.b16 %v437
        %v734 = vunpack.c.h.b16 %v437
        %v735 = vunpack.c.l.b16 %v438
        %v736 = vunpack.c.h.b16 %v438
        %v737 = vunpack.c.l.b16 %v439
        %v738 = vunpack.c.h.b16 %v439
        %v739 = vunpack.c.l.b16 %v440
        %v740 = vunpack.c.h.b16 %v440
        %v741 = vunpack.c.l.b16 %v441
        %v742 = vunpack.c.h.b16 %v441
        %v743 = vunpack.c.l.b16 %v442
        %v744 = vunpack.c.h.b16 %v442
        %v745 = vunpack.c.l.b16 %v443
        %v746 = vunpack.c.h.b16 %v443
        %v747 = vunpack.c.l.b16 %v444
        %v748 = vunpack.c.h.b16 %v444
        %v749 = vunpack.c.l.b16 %v445
        %v750 = vunpack.c.h.b16 %v445
        %v751 = vunpack.c.l.b16 %v446
        %v752 = vunpack.c.h.b16 %v446
        %v753 = vunpack.c.l.b16 %v447
        %v754 = vunpack.c.h.b16 %v447
        %v755 = vunpack.c.l.b16 %v448
        %v756 = vunpack.c.h.b16 %v448
        %v757 = vunpack.c.l.b16 %v449
        %v758 = vunpack.c.h.b16 %v449
        %v759 = vunpack.c.l.b16 %v450
        %v760 = vunpack.c.h.b16 %v450
        %v761 = vunpack.c.l.b16 %v451
        %v762 = vunpack.c.h.b16 %v451
        %v763 = vunpack.c.l.b16 %v452
        %v764 = vunpack.c.h.b16 %v452
        %v765 = vunpack.c.l.b16 %v453
        %v766 = vunpack.c.h.b16 %v453
        %v767 = vunpack.c.l.b16 %v454
        %v768 = vunpack.c.h.b16 %v454
        %v769 = vunpack.c.l.b16 %v455
        %v770 = vunpack.c.h.b16 %v455
        %v771 = vunpack.c.l.b16 %v456
        %v772 = vunpack.c.h.b16 %v456
        %v773 = vunpack.c.l.b16 %v457
        %v774 = vunpack.c.h.b16 %v457
        %v775 = vunpack.c.l.b16 %v458
        %v776 = vunpack.c.h.b16 %v458
        %v777 = vunpack.c.l.b16 %v459
        %v778 = vunpack.c.h.b16 %v459
        %v779 = vunpack.c.l.b16 %v460
        %v780 = vunpack.c.h.b16 %v460
        %v781 = vunpack.c.l.b16 %v461
        %v782 = vunpack.c.h.b16 %v461
        %v783 = vunpack.c.l.b16 %v462
        %v784 = vunpack.c.h.b16 %v462
        %v785 = vunpack.c.l.b16 %v463
        %v786 = vunpack.c.h.b16 %v463
        %v787 = vunpack.c.l.b16 %v464
        %v788 = vunpack.c.h.b16 %v464
        %v789 = vunpack.c.l.b16 %v465
        %v790 = vunpack.c.h.b16 %v465
        %v791 = vunpack.c.l.b16 %v466
        %v792 = vunpack.c.h.b16 %v466
        %v793 = vunpack.c.l.b16 %v467
        %v794 = vunpack.c.h.b16 %v467
        %v795 = vunpack.c.l.b16 %v468
        %v796 = vunpack.c.h.b16 %v468
        %v797 = vunpack.c.l.b16 %v469
        %v798 = vunpack.c.h.b16 %v469
        %v799 = vunpack.c.l.b16 %v470
        %v800 = vunpack.c.h.b16 %v470
        %v801 = vunpack.c.l.b16 %v471
        %v802 = vunpack.c.h.b16 %v471
        %v803 = vunpack.c.l.b16 %v472
        %v804 = vunpack.c.h.b16 %v472
        %v805 = vunpack.c.l.b16 %v473
        %v806 = vunpack.c.h.b16 %v473
        %v807 = vunpack.c.l.b16 %v474
        %v808 = vunpack.c.h.b16 %v474
        %v809 = vunpack.c.l.b16 %v475
        %v810 = vunpack.c.h.b16 %v475
        %v811 = vunpack.c.l.b16 %v476
        %v812 = vunpack.c.h.b16 %v476
        %v813 = vunpack.c.l.b16 %v477
        %v814 = vunpack.c.h.b16 %v477
        %v815 = vunpack.c.l.b16 %v478
        %v816 = vunpack.c.h.b16 %v478
        %v817 = vunpack.c.l.b16 %v479
        %v818 = vunpack.c.h.b16 %v479
        %v819 = vunpack.c.l.b16 %v480
        %v820 = vunpack.c.h.b16 %v480
        %v821 = vunpack.c.l.b16 %v481
        %v822 = vunpack.c.h.b16 %v481
        %v823 = vunpack.c.l.b16 %v482
        %v824 = vunpack.c.h.b16 %v482
        %v825 = vunpack.c.l.b16 %v483
        %v826 = vunpack.c.h.b16 %v483
        %v827 = vunpack.c.l.b16 %v484
        %v828 = vunpack.c.h.b16 %v484
        %v829 = vunpack.c.l.b16 %v485
        %v830 = vunpack.c.h.b16 %v485
        %v831 = vunpack.c.l.b16 %v486
        %v832 = vunpack.c.h.b16 %v486
        %v833 = vpack.c.b16 %v677, %v673
        %v834 = vpack.c.b16 %v678, %v674
        %v835 = vpack.c.b16 %v679, %v675
        %v836 = vpack.c.b16 %v680, %v676
        %v837 = vpack.c.b16 %v685, %v681
        %v838 = vpack.c.b16 %v686, %v682
        %v839 = vpack.c.b16 %v687, %v683
        %v840 = vpack.c.b16 %v688, %v684
        %v841 = vpack.c.b16 %v693, %v689
        %v842 = vpack.c.b16 %v694, %v690
        %v843 = vpack.c.b16 %v695, %v691
        %v844 = vpack.c.b16 %v696, %v692
        %v845 = vpack.c.b16 %v701, %v697
        %v846 = vpack.c.b16 %v702, %v698
        %v847 = vpack.c.b16 %v703, %v699
        %v848 = vpack.c.b16 %v704, %v700
        %v849 = vpack.c.b16 %v709, %v705
        %v850 = vpack.c.b16 %v710, %v706
        %v851 = vpack.c.b16 %v711, %v707
        %v852 = vpack.c.b16 %v712, %v708
        %v853 = vpack.c.b16 %v717, %v713
        %v854 = vpack.c.b16 %v718, %v714
        %v855 = vpack.c.b16 %v719, %v715
        %v856 = vpack.c.b16 %v720, %v716
        %v857 = vpack.c.b16 %v725, %v721
        %v858 = vpack.c.b16 %v726, %v722
        %v859 = vpack.c.b16 %v727, %v723
        %v860 = vpack.c.b16 %v728, %v724
        %v861 = vpack.c.b16 %v733, %v729
        %v862 = vpack.c.b16 %v734, %v730
        %v863 = vpack.c.b16 %v735, %v731
        %v864 = vpack.c.b16 %v736, %v732
        %v865 = vpack.c.b16 %v741, %v737
        %v866 = vpack.c.b16 %v742, %v738
        %v867 = vpack.c.b16 %v743, %v739
        %v868 = vpack.c.b16 %v744, %v740
        %v869 = vpack.c.b16 %v749, %v745
        %v870 = vpack.c.b16 %v750, %v746
        %v871 = vpack.c.b16 %v751, %v747
        %v872 = vpack.c.b16 %v752, %v748
        %v873 = vpack.c.b16 %v757, %v753
        %v874 = vpack.c.b16 %v758, %v754
        %v875 = vpack.c.b16 %v759, %v755
        %v876 = vpack.c.b16 %v760, %v756
        %v877 = vpack.c.b16 %v765, %v761
        %v878 = vpack.c.b16 %v766, %v762
        %v879 = vpack.c.b16 %v767, %v763
        %v880 = vpack.c.b16 %v768, %v764
        %v881 = vpack.c.b16 %v773, %v769
        %v882 = vpack.c.b16 %v774, %v770
        %v883 = vpack.c.b16 %v775, %v771
        %v884 = vpack.c.b16 %v776, %v772
        %v885 = vpack.c.b16 %v781, %v777
        %v886 = vpack.c.b16 %v782, %v778
        %v887 = vpack.c.b16 %v783, %v779
        %v888 = vpack.c.b16 %v784, %v780
        %v889 = vpack.c.b16 %v789, %v785
        %v890 = vpack.c.b16 %v790, %v786
        %v891 = vpack.c.b16 %v791, %v787
        %v892 = vpack.c.b16 %v792, %v788
        %v893 = vpack.c.b16 %v797, %v793
        %v894 = vpack.c.b16 %v798, %v794
        %v895 = vpack.c.b16 %v799, %v795
        %v896 = vpack.c.b16 %v800, %v796
        %v897 = vpack.c.b16 %v805, %v801
        %v898 = vpack.c.b16 %v806, %v802
        %v899 = vpack.c.b16 %v807, %v803
        %v900 = vpack.c.b16 %v808, %v804
        %v901 = vpack.c.b16 %v813, %v809
        %v902 = vpack.c.b16 %v814, %v810
        %v903 = vpack.c.b16 %v815, %v811
        %v904 = vpack.c.b16 %v816, %v812
        %v905 = vpack.c.b16 %v821, %v817
        %v906 = vpack.c.b16 %v822, %v818
        %v907 = vpack.c.b16 %v823, %v819
        %v908 = vpack.c.b16 %v824, %v820
        %v909 = vpack.c.b16 %v829, %v825
        %v910 = vpack.c.b16 %v830, %v826
        %v911 = vpack.c.b16 %v831, %v827
        %v912 = vpack.c.b16 %v832, %v828
        %v1079 = vunpack.c.l.b16 %v487
        %v1080 = vunpack.c.h.b16 %v487
        %v1081 = vunpack.c.l.b16 %v488
        %v1082 = vunpack.c.l.b16 %v489
        %v1083 = vunpack.c.h.b16 %v489
        %v1084 = vunpack.c.l.b16 %v490
        %v1085 = vunpack.c.l.b16 %v491
        %v1086 = vunpack.c.h.b16 %v491
        %v1087 = vunpack.c.l.b16 %v492
        %v1088 = vunpack.c.l.b16 %v493
        %v1089 = vunpack.c.h.b16 %v493
        %v1090 = vunpack.c.l.b16 %v494
        %v1091 = vunpack.c.l.b16 %v495
        %v1092 = vunpack.c.h.b16 %v495
        %v1093 = vunpack.c.l.b16 %v496
        %v1094 = vunpack.c.l.b16 %v497
        %v1095 = vunpack.c.h.b16 %v497
        %v1096 = vunpack.c.l.b16 %v498
        %v1097 = vunpack.c.l.b16 %v499
        %v1098 = vunpack.c.h.b16 %v499
        %v1099 = vunpack.c.l.b16 %v500
        %v1100 = vunpack.c.l.b16 %v501
        %v1101 = vunpack.c.h.b16 %v501
        %v1102 = vunpack.c.l.b16 %v502
        %v1103 = vunpack.c.l.b16 %v503
        %v1104 = vunpack.c.h.b16 %v503
        %v1105 = vunpack.c.l.b16 %v504
        %v1106 = vunpack.c.l.b16 %v505
        %v1107 = vunpack.c.h.b16 %v505
        %v1108 = vunpack.c.l.b16 %v506
        %v1109 = vunpack.c.l.b16 %v507
        %v1110 = vunpack.c.h.b16 %v507
        %v1111 = vunpack.c.l.b16 %v508
        %v1112 = vunpack.c.l.b16 %v509
        %v1113 = vunpack.c.h.b16 %v509
        %v1114 = vunpack.c.l.b16 %v510
        %v1115 = vunpack.c.l.b16 %v511
        %v1116 = vunpack.c.h.b16 %v511
        %v1117 = vunpack.c.l.b16 %v512
        %v1118 = vunpack.c.l.b16 %v513
        %v1119 = vunpack.c.h.b16 %v513
        %v1120 = vunpack.c.l.b16 %v514
        %v1121 = vunpack.c.l.b16 %v515
        %v1122 = vunpack.c.h.b16 %v515
        %v1123 = vunpack.c.l.b16 %v516
        %v1124 = vunpack.c.l.b16 %v517
        %v1125 = vunpack.c.h.b16 %v517
        %v1126 = vunpack.c.l.b16 %v518
        %v1127 = vunpack.c.l.b16 %v519
        %v1128 = vunpack.c.h.b16 %v519
        %v1129 = vunpack.c.l.b16 %v520
        %v1130 = vunpack.c.l.b16 %v521
        %v1131 = vunpack.c.h.b16 %v521
        %v1132 = vunpack.c.l.b16 %v522
        %v1133 = vunpack.c.l.b16 %v523
        %v1134 = vunpack.c.h.b16 %v523
        %v1135 = vunpack.c.l.b16 %v524
        %v1136 = vunpack.c.l.b16 %v525
        %v1137 = vunpack.c.h.b16 %v525
        %v1138 = vunpack.c.l.b16 %v526
        %v1139 = vunpack.c.l.b16 %v527
        %v1140 = vunpack.c.h.b16 %v527
        %v1141 = vunpack.c.l.b16 %v528
        %v1142 = vunpack.c.l.b16 %v529
        %v1143 = vunpack.c.h.b16 %v529
        %v1144 = vunpack.c.l.b16 %v530
        %v1145 = vunpack.c.l.b16 %v531
        %v1146 = vunpack.c.h.b16 %v531
        %v1147 = vunpack.c.l.b16 %v532
        %v1148 = vunpack.c.l.b16 %v533
        %v1149 = vunpack.c.h.b16 %v533
        %v1150 = vunpack.c.l.b16 %v534
        %v1151 = vunpack.c.l.b16 %v535
        %v1152 = vunpack.c.h.b16 %v535
        %v1153 = vunpack.c.l.b16 %v536
        %v1154 = vunpack.c.l.b16 %v537
        %v1155 = vunpack.c.h.b16 %v537
        %v1156 = vunpack.c.l.b16 %v538
        %v1157 = vunpack.c.l.b16 %v539
        %v1158 = vunpack.c.h.b16 %v539
        %v1159 = vunpack.c.l.b16 %v540
        %v1160 = vunpack.c.l.b16 %v541
        %v1161 = vunpack.c.h.b16 %v541
        %v1162 = vunpack.c.l.b16 %v542
        %v1163 = vunpack.c.l.b16 %v543
        %v1164 = vunpack.c.h.b16 %v543
        %v1165 = vunpack.c.l.b16 %v544
        %v1166 = vunpack.c.l.b16 %v545
        %v1167 = vunpack.c.h.b16 %v545
        %v1168 = vunpack.c.l.b16 %v546
        %v1169 = vunpack.c.l.b16 %v547
        %v1170 = vunpack.c.h.b16 %v547
        %v1171 = vunpack.c.l.b16 %v548
        %v1172 = vunpack.c.l.b16 %v549
        %v1173 = vunpack.c.h.b16 %v549
        %v1174 = vunpack.c.l.b16 %v550
        %v1175 = vunpack.c.l.b16 %v551
        %v1176 = vunpack.c.h.b16 %v551
        %v1177 = vunpack.c.l.b16 %v552
        %v1178 = vunpack.c.l.b16 %v553
        %v1179 = vunpack.c.h.b16 %v553
        %v1180 = vunpack.c.l.b16 %v554
        %v1181 = vunpack.c.l.b16 %v555
        %v1182 = vunpack.c.h.b16 %v555
        %v1183 = vunpack.c.l.b16 %v556
        %v1184 = vunpack.c.l.b16 %v557
        %v1185 = vunpack.c.h.b16 %v557
        %v1186 = vunpack.c.l.b16 %v558
        %v1187 = vunpack.c.l.b16 %v559
        %v1188 = vunpack.c.h.b16 %v559
        %v1189 = vunpack.c.l.b16 %v560
        %v1190 = vunpack.c.l.b16 %v561
        %v1191 = vunpack.c.h.b16 %v561
        %v1192 = vunpack.c.l.b16 %v562
        %v1193 = vunpack.c.l.b16 %v563
        %v1194 = vunpack.c.h.b16 %v563
        %v1195 = vunpack.c.l.b16 %v564
        %v1196 = vunpack.c.l.b16 %v565
        %v1197 = vunpack.c.h.b16 %v565
        %v1198 = vunpack.c.l.b16 %v566
        %v1199 = vunpack.c.l.b16 %v567
        %v1200 = vunpack.c.h.b16 %v567
        %v1201 = vunpack.c.l.b16 %v568
        %v1202 = vunpack.c.l.b16 %v569
        %v1203 = vunpack.c.h.b16 %v569
        %v1204 = vunpack.c.l.b16 %v570
        %v1205 = vunpack.c.l.b16 %v571
        %v1206 = vunpack.c.h.b16 %v571
        %v1207 = vunpack.c.l.b16 %v572
        %v1208 = vunpack.c.l.b16 %v573
        %v1209 = vunpack.c.h.b16 %v573
        %v1210 = vunpack.c.l.b16 %v574
        %v1211 = vunpack.c.l.b16 %v575
        %v1212 = vunpack.c.h.b16 %v575
        %v1213 = vunpack.c.l.b16 %v576
        %v1214 = vunpack.c.l.b16 %v577
        %v1215 = vunpack.c.h.b16 %v577
        %v1216 = vunpack.c.l.b16 %v578
        %v1217 = vunpack.c.l.b16 %v579
        %v1218 = vunpack.c.h.b16 %v579
        %v1219 = vunpack.c.l.b16 %v580
        %v1220 = vunpack.c.l.b16 %v581
        %v1221 = vunpack.c.h.b16 %v581
        %v1222 = vunpack.c.l.b16 %v582
        %v1223 = vunpack.c.l.b16 %v583
        %v1224 = vunpack.c.h.b16 %v583
        %v1225 = vunpack.c.l.b16 %v584
        %v1226 = vunpack.c.l.b16 %v585
        %v1227 = vunpack.c.h.b16 %v585
        %v1228 = vunpack.c.l.b16 %v586
        %v1229 = vunpack.c.l.b16 %v587
        %v1230 = vunpack.c.h.b16 %v587
        %v1231 = vunpack.c.l.b16 %v588
        %v1232 = vunpack.c.l.b16 %v589
        %v1233 = vunpack.c.h.b16 %v589
        %v1234 = vunpack.c.l.b16 %v590
        %v1235 = vunpack.c.l.b16 %v591
        %v1236 = vunpack.c.h.b16 %v591
        %v1237 = vunpack.c.l.b16 %v592
        %v1238 = vpack.c.b16 %v1082, %v1079
        %v1239 = vpack.c.b16 %v1083, %v1080
        %v1240 = vpack.c.b16 %v1084, %v1081
        %v1241 = vpack.c.b16 %v1088, %v1085
        %v1242 = vpack.c.b16 %v1089, %v1086
        %v1243 = vpack.c.b16 %v1090, %v1087
        %v1244 = vpack.c.b16 %v1094, %v1091
        %v1245 = vpack.c.b16 %v1095, %v1092
        %v1246 = vpack.c.b16 %v1096, %v1093
        %v1247 = vpack.c.b16 %v1100, %v1097
        %v1248 = vpack.c.b16 %v1101, %v1098
        %v1249 = vpack.c.b16 %v1102, %v1099
        %v1250 = vpack.c.b16 %v1106, %v1103
        %v1251 = vpack.c.b16 %v1107, %v1104
        %v1252 = vpack.c.b16 %v1108, %v1105
        %v1253 = vpack.c.b16 %v1112, %v1109
        %v1254 = vpack.c.b16 %v1113, %v1110
        %v1255 = vpack.c.b16 %v1114, %v1111
        %v1256 = vpack.c.b16 %v1118, %v1115
        %v1257 = vpack.c.b16 %v1119, %v1116
        %v1258 = vpack.c.b16 %v1120, %v1117
        %v1259 = vpack.c.b16 %v1124, %v1121
        %v1260 = vpack.c.b16 %v1125, %v1122
        %v1261 = vpack.c.b16 %v1126, %v1123
        %v1262 = vpack.c.b16 %v1130, %v1127
        %v1263 = vpack.c.b16 %v1131, %v1128
        %v1264 = vpack.c.b16 %v1132, %v1129
        %v1265 = vpack.c.b16 %v1136, %v1133
        %v1266 = vpack.c.b16 %v1137, %v1134
        %v1267 = vpack.c.b16 %v1138, %v1135
        %v1268 = vpack.c.b16 %v1142, %v1139
        %v1269 = vpack.c.b16 %v1143, %v1140
        %v1270 = vpack.c.b16 %v1144, %v1141
        %v1271 = vpack.c.b16 %v1148, %v1145
        %v1272 = vpack.c.b16 %v1149, %v1146
        %v1273 = vpack.c.b16 %v1150, %v1147
        %v1274 = vpack.c.b16 %v1154, %v1151
        %v1275 = vpack.c.b16 %v1155, %v1152
        %v1276 = vpack.c.b16 %v1156, %v1153
        %v1277 = vpack.c.b16 %v1160, %v1157
        %v1278 = vpack.c.b16 %v1161, %v1158
        %v1279 = vpack.c.b16 %v1162, %v1159
        %v1280 = vpack.c.b16 %v1166, %v1163
        %v1281 = vpack.c.b16 %v1167, %v1164
        %v1282 = vpack.c.b16 %v1168, %v1165
        %v1283 = vpack.c.b16 %v1172, %v1169
        %v1284 = vpack.c.b16 %v1173, %v1170
        %v1285 = vpack.c.b16 %v1174, %v1171
        %v1286 = vpack.c.b16 %v1178, %v1175
        %v1287 = vpack.c.b16 %v1179, %v1176
        %v1288 = vpack.c.b16 %v1180, %v1177
        %v1289 = vpack.c.b16 %v1184, %v1181
        %v1290 = vpack.c.b16 %v1185, %v1182
        %v1291 = vpack.c.b16 %v1186, %v1183
        %v1292 = vpack.c.b16 %v1190, %v1187
        %v1293 = vpack.c.b16 %v1191, %v1188
        %v1294 = vpack.c.b16 %v1192, %v1189
        %v1295 = vpack.c.b16 %v1196, %v1193
        %v1296 = vpack.c.b16 %v1197, %v1194
        %v1297 = vpack.c.b16 %v1198, %v1195
        %v1298 = vpack.c.b16 %v1202, %v1199
        %v1299 = vpack.c.b16 %v1203, %v1200
        %v1300 = vpack.c.b16 %v1204, %v1201
        %v1301 = vpack.c.b16 %v1208, %v1205
        %v1302 = vpack.c.b16 %v1209, %v1206
        %v1303 = vpack.c.b16 %v1210, %v1207
        %v1304 = vpack.c.b16 %v1214, %v1211
        %v1305 = vpack.c.b16 %v1215, %v1212
        %v1306 = vpack.c.b16 %v1216, %v1213
        %v1307 = vpack.c.b16 %v1220, %v1217
        %v1308 = vpack.c.b16 %v1221, %v1218
        %v1309 = vpack.c.b16 %v1222, %v1219
        %v1310 = vpack.c.b16 %v1226, %v1223
        %v1311 = vpack.c.b16 %v1227, %v1224
        %v1312 = vpack.c.b16 %v1228, %v1225
        %v1313 = vpack.c.b16 %v1232, %v1229
        %v1314 = vpack.c.b16 %v1233, %v1230
        %v1315 = vpack.c.b16 %v1234, %v1231
        %v1316 = vpack.c.b16 %v1235, %v1235
        %v1317 = vpack.c.b16 %v1236, %v1236
        %v1318 = vpack.c.b16 %v1237, %v1237
        %vm1397 = vcmask 293888
        %v1399 = vsel %vm1397, %v836, 0
        %v1402 = vsel %vm1397, %v840, 0
        %v1405 = vsel %vm1397, %v844, 0
        %v1408 = vsel %vm1397, %v848, 0
        %v1411 = vsel %vm1397, %v852, 0
        %v1414 = vsel %vm1397, %v856, 0
        %v1417 = vsel %vm1397, %v860, 0
        %v1420 = vsel %vm1397, %v864, 0
        %v1423 = vsel %vm1397, %v868, 0
        %v1426 = vsel %vm1397, %v872, 0
        %v1429 = vsel %vm1397, %v876, 0
        %v1432 = vsel %vm1397, %v880, 0
        %v1435 = vsel %vm1397, %v884, 0
        %v1438 = vsel %vm1397, %v888, 0
        %v1441 = vsel %vm1397, %v892, 0
        %v1444 = vsel %vm1397, %v896, 0
        %v1447 = vsel %vm1397, %v900, 0
        %v1450 = vsel %vm1397, %v904, 0
        %v1453 = vsel %vm1397, %v908, 0
        %v1456 = vsel %vm1397, %v912, 0
        %vm1458 = vcmask 1041408
        %v1460 = vsel %vm1458, %v1316, 0
        %v1463 = vsel %vm1458, %v1317, 0
        %v1466 = vsel %vm1458, %v1318, 0
        %1468 = vmatprep.subr.bf16.mxu0 %v1239
        %1469 = vmatpush1.bf16.msra.mxu0 %v1238
        %1470 = vmatprep.subr.bf16.mxu0 %v1242
        %1471 = vmatpush1.bf16.msra.mxu0 %v1241
        %1472 = vmatprep.subr.bf16.mxu0 %v1245
        %1473 = vmatpush1.bf16.msra.mxu0 %v1244
        %1474 = vmatprep.subr.bf16.mxu0 %v1248
        %1475 = vmatpush1.bf16.msra.mxu0 %v1247
        %1476 = vmatprep.subr.bf16.mxu0 %v1251
        %1477 = vmatpush1.bf16.msra.mxu0 %v1250
        %1478 = vmatprep.subr.bf16.mxu0 %v1254
        %1479 = vmatpush1.bf16.msra.mxu0 %v1253
        %1480 = vmatprep.subr.bf16.mxu0 %v1257
        %1481 = vmatpush1.bf16.msra.mxu0 %v1256
        %1482 = vmatprep.subr.bf16.mxu0 %v1260
        %1483 = vmatpush1.bf16.msra.mxu0 %v1259
        %1484 = vmatprep.subr.bf16.mxu0 %v1263
        %1485 = vmatpush1.bf16.msra.mxu0 %v1262
        %1486 = vmatprep.subr.bf16.mxu0 %v1266
        %1487 = vmatpush1.bf16.msra.mxu0 %v1265
        %1488 = vmatprep.subr.bf16.mxu0 %v1269
        %1489 = vmatpush1.bf16.msra.mxu0 %v1268
        %1490 = vmatprep.subr.bf16.mxu0 %v1272
        %1491 = vmatpush1.bf16.msra.mxu0 %v1271
        %1492 = vmatprep.subr.bf16.mxu0 %v1275
        %1493 = vmatpush1.bf16.msra.mxu0 %v1274
        %1494 = vmatprep.subr.bf16.mxu0 %v1278
        %1495 = vmatpush1.bf16.msra.mxu0 %v1277
        %1496 = vmatprep.subr.bf16.mxu0 %v1281
        %1497 = vmatpush1.bf16.msra.mxu0 %v1280
        %1498 = vmatprep.subr.bf16.mxu0 %v1284
        %1499 = vmatpush1.bf16.msra.mxu0 %v1283
        %1500 = vmatprep.mubr.bf16.mxu0 %v834
        %1501 = vmatmul.mubr.bf16.gmra.mrb[0].mxu0 %v833
        %v1502 = vpop.f32.mrb[0].mxu0
        %v1503 = vadd.f32 0.0, %v1502
        %v1504 = vpop.f32.mrb[0].mxu0
        %v1505 = vadd.f32 0.0, %v1504
        %v1506 = vpop.f32.mrb[0].mxu0
        %v1507 = vadd.f32 0.0, %v1506
        %v1508 = vpop.f32.mrb[0].mxu0
        %v1509 = vadd.f32 0.0, %v1508
        %1510 = vmatprep.mubr.bf16.mxu0 %v838
        %1511 = vmatmul.mubr.bf16.gmra.mrb[0].mxu0 %v837
        %v1512 = vpop.f32.mrb[0].mxu0
        %v1513 = vadd.f32 0.0, %v1512
        %v1514 = vpop.f32.mrb[0].mxu0
        %v1515 = vadd.f32 0.0, %v1514
        %v1516 = vpop.f32.mrb[0].mxu0
        %v1517 = vadd.f32 0.0, %v1516
        %v1518 = vpop.f32.mrb[0].mxu0
        %v1519 = vadd.f32 0.0, %v1518
        %1520 = vmatprep.mubr.bf16.mxu0 %v842
        %1521 = vmatmul.mubr.bf16.gmra.mrb[0].mxu0 %v841
        %v1522 = vpop.f32.mrb[0].mxu0
        %v1523 = vadd.f32 0.0, %v1522
        %v1524 = vpop.f32.mrb[0].mxu0
        %v1525 = vadd.f32 0.0, %v1524
        %v1526 = vpop.f32.mrb[0].mxu0
        %v1527 = vadd.f32 0.0, %v1526
        %v1528 = vpop.f32.mrb[0].mxu0
        %v1529 = vadd.f32 0.0, %v1528
        %1530 = vmatprep.mubr.bf16.mxu0 %v846
        %1531 = vmatmul.mubr.bf16.gmra.mrb[0].mxu0 %v845
        %v1532 = vpop.f32.mrb[0].mxu0
        %v1533 = vadd.f32 0.0, %v1532
        %v1534 = vpop.f32.mrb[0].mxu0
        %v1535 = vadd.f32 0.0, %v1534
        %v1536 = vpop.f32.mrb[0].mxu0
        %v1537 = vadd.f32 0.0, %v1536
        %v1538 = vpop.f32.mrb[0].mxu0
        %v1539 = vadd.f32 0.0, %v1538
        %1540 = vmatprep.mubr.bf16.mxu0 %v850
        %1541 = vmatmul.mubr.bf16.gmra.mrb[0].mxu0 %v849
        %v1542 = vpop.f32.mrb[0].mxu0
        %v1543 = vadd.f32 0.0, %v1542
        %v1544 = vpop.f32.mrb[0].mxu0
        %v1545 = vadd.f32 0.0, %v1544
        %v1546 = vpop.f32.mrb[0].mxu0
        %v1547 = vadd.f32 0.0, %v1546
        %v1548 = vpop.f32.mrb[0].mxu0
        %v1549 = vadd.f32 0.0, %v1548
        %1550 = vmatprep.mubr.bf16.mxu0 %v854
        %1551 = vmatmul.mubr.bf16.gmra.mrb[0].mxu0 %v853
        %v1552 = vpop.f32.mrb[0].mxu0
        %v1553 = vadd.f32 0.0, %v1552
        %v1554 = vpop.f32.mrb[0].mxu0
        %v1555 = vadd.f32 0.0, %v1554
        %v1556 = vpop.f32.mrb[0].mxu0
        %v1557 = vadd.f32 0.0, %v1556
        %v1558 = vpop.f32.mrb[0].mxu0
        %v1559 = vadd.f32 0.0, %v1558
        %1560 = vmatprep.mubr.bf16.mxu0 %v858
        %1561 = vmatmul.mubr.bf16.gmra.mrb[0].mxu0 %v857
        %v1562 = vpop.f32.mrb[0].mxu0
        %v1563 = vadd.f32 0.0, %v1562
        %v1564 = vpop.f32.mrb[0].mxu0
        %v1565 = vadd.f32 0.0, %v1564
        %v1566 = vpop.f32.mrb[0].mxu0
        %v1567 = vadd.f32 0.0, %v1566
        %v1568 = vpop.f32.mrb[0].mxu0
        %v1569 = vadd.f32 0.0, %v1568
        %1570 = vmatprep.mubr.bf16.mxu0 %v862
        %1571 = vmatmul.mubr.bf16.gmra.mrb[0].mxu0 %v861
        %v1572 = vpop.f32.mrb[0].mxu0
        %v1573 = vadd.f32 0.0, %v1572
        %v1574 = vpop.f32.mrb[0].mxu0
        %v1575 = vadd.f32 0.0, %v1574
        %v1576 = vpop.f32.mrb[0].mxu0
        %v1577 = vadd.f32 0.0, %v1576
        %v1578 = vpop.f32.mrb[0].mxu0
        %v1579 = vadd.f32 0.0, %v1578
        %1580 = vmatprep.mubr.bf16.mxu0 %v866
        %1581 = vmatmul.mubr.bf16.gmra.mrb[0].mxu0 %v865
        %v1582 = vpop.f32.mrb[0].mxu0
        %v1583 = vadd.f32 0.0, %v1582
        %v1584 = vpop.f32.mrb[0].mxu0
        %v1585 = vadd.f32 0.0, %v1584
        %v1586 = vpop.f32.mrb[0].mxu0
        %v1587 = vadd.f32 0.0, %v1586
        %v1588 = vpop.f32.mrb[0].mxu0
        %v1589 = vadd.f32 0.0, %v1588
        %1590 = vmatprep.mubr.bf16.mxu0 %v870
        %1591 = vmatmul.mubr.bf16.gmra.mrb[0].mxu0 %v869
        %v1592 = vpop.f32.mrb[0].mxu0
        %v1593 = vadd.f32 0.0, %v1592
        %v1594 = vpop.f32.mrb[0].mxu0
        %v1595 = vadd.f32 0.0, %v1594
        %v1596 = vpop.f32.mrb[0].mxu0
        %v1597 = vadd.f32 0.0, %v1596
        %v1598 = vpop.f32.mrb[0].mxu0
        %v1599 = vadd.f32 0.0, %v1598
        %1600 = vmatprep.mubr.bf16.mxu0 %v874
        %1601 = vmatmul.mubr.bf16.gmra.mrb[0].mxu0 %v873
        %v1602 = vpop.f32.mrb[0].mxu0
        %v1603 = vadd.f32 0.0, %v1602
        %v1604 = vpop.f32.mrb[0].mxu0
        %v1605 = vadd.f32 0.0, %v1604
        %v1606 = vpop.f32.mrb[0].mxu0
        %v1607 = vadd.f32 0.0, %v1606
        %v1608 = vpop.f32.mrb[0].mxu0
        %v1609 = vadd.f32 0.0, %v1608
        %1610 = vmatprep.mubr.bf16.mxu0 %v878
        %1611 = vmatmul.mubr.bf16.gmra.mrb[0].mxu0 %v877
        %v1612 = vpop.f32.mrb[0].mxu0
        %v1613 = vadd.f32 0.0, %v1612
        %v1614 = vpop.f32.mrb[0].mxu0
        %v1615 = vadd.f32 0.0, %v1614
        %v1616 = vpop.f32.mrb[0].mxu0
        %v1617 = vadd.f32 0.0, %v1616
        %v1618 = vpop.f32.mrb[0].mxu0
        %v1619 = vadd.f32 0.0, %v1618
        %1620 = vmatprep.mubr.bf16.mxu0 %v882
        %1621 = vmatmul.mubr.bf16.gmra.mrb[0].mxu0 %v881
        %v1622 = vpop.f32.mrb[0].mxu0
        %v1623 = vadd.f32 0.0, %v1622
        %v1624 = vpop.f32.mrb[0].mxu0
        %v1625 = vadd.f32 0.0, %v1624
        %v1626 = vpop.f32.mrb[0].mxu0
        %v1627 = vadd.f32 0.0, %v1626
        %v1628 = vpop.f32.mrb[0].mxu0
        %v1629 = vadd.f32 0.0, %v1628
        %1630 = vmatprep.mubr.bf16.mxu0 %v886
        %1631 = vmatmul.mubr.bf16.gmra.mrb[0].mxu0 %v885
        %v1632 = vpop.f32.mrb[0].mxu0
        %v1633 = vadd.f32 0.0, %v1632
        %v1634 = vpop.f32.mrb[0].mxu0
        %v1635 = vadd.f32 0.0, %v1634
        %v1636 = vpop.f32.mrb[0].mxu0
        %v1637 = vadd.f32 0.0, %v1636
        %v1638 = vpop.f32.mrb[0].mxu0
        %v1639 = vadd.f32 0.0, %v1638
        %1640 = vmatprep.mubr.bf16.mxu0 %v890
        %1641 = vmatmul.mubr.bf16.gmra.mrb[0].mxu0 %v889
        %v1642 = vpop.f32.mrb[0].mxu0
        %v1643 = vadd.f32 0.0, %v1642
        %v1644 = vpop.f32.mrb[0].mxu0
        %v1645 = vadd.f32 0.0, %v1644
        %v1646 = vpop.f32.mrb[0].mxu0
        %v1647 = vadd.f32 0.0, %v1646
        %v1648 = vpop.f32.mrb[0].mxu0
        %v1649 = vadd.f32 0.0, %v1648
        %1650 = vmatprep.mubr.bf16.mxu0 %v894
        %1651 = vmatmul.mubr.bf16.gmra.mrb[0].mxu0 %v893
        %v1652 = vpop.f32.mrb[0].mxu0
        %v1653 = vadd.f32 0.0, %v1652
        %v1654 = vpop.f32.mrb[0].mxu0
        %v1655 = vadd.f32 0.0, %v1654
        %v1656 = vpop.f32.mrb[0].mxu0
        %v1657 = vadd.f32 0.0, %v1656
        %v1658 = vpop.f32.mrb[0].mxu0
        %v1659 = vadd.f32 0.0, %v1658
        %1660 = vmatprep.mubr.bf16.mxu0 %v898
        %1661 = vmatmul.mubr.bf16.gmra.mrb[0].mxu0 %v897
        %v1662 = vpop.f32.mrb[0].mxu0
        %v1663 = vadd.f32 0.0, %v1662
        %v1664 = vpop.f32.mrb[0].mxu0
        %v1665 = vadd.f32 0.0, %v1664
        %v1666 = vpop.f32.mrb[0].mxu0
        %v1667 = vadd.f32 0.0, %v1666
        %v1668 = vpop.f32.mrb[0].mxu0
        %v1669 = vadd.f32 0.0, %v1668
        %1670 = vmatprep.mubr.bf16.mxu0 %v902
        %1671 = vmatmul.mubr.bf16.gmra.mrb[0].mxu0 %v901
        %v1672 = vpop.f32.mrb[0].mxu0
        %v1673 = vadd.f32 0.0, %v1672
        %v1674 = vpop.f32.mrb[0].mxu0
        %v1675 = vadd.f32 0.0, %v1674
        %v1676 = vpop.f32.mrb[0].mxu0
        %v1677 = vadd.f32 0.0, %v1676
        %v1678 = vpop.f32.mrb[0].mxu0
        %v1679 = vadd.f32 0.0, %v1678
        %1680 = vmatprep.mubr.bf16.mxu0 %v906
        %1681 = vmatmul.mubr.bf16.gmra.mrb[0].mxu0 %v905
        %v1682 = vpop.f32.mrb[0].mxu0
        %v1683 = vadd.f32 0.0, %v1682
        %v1684 = vpop.f32.mrb[0].mxu0
        %v1685 = vadd.f32 0.0, %v1684
        %v1686 = vpop.f32.mrb[0].mxu0
        %v1687 = vadd.f32 0.0, %v1686
        %v1688 = vpop.f32.mrb[0].mxu0
        %v1689 = vadd.f32 0.0, %v1688
        %1690 = vmatprep.mubr.bf16.mxu0 %v910
        %1691 = vmatmul.mubr.bf16.gmra.mrb[0].mxu0 %v909
        %v1692 = vpop.f32.mrb[0].mxu0
        %v1693 = vadd.f32 0.0, %v1692
        %v1694 = vpop.f32.mrb[0].mxu0
        %v1695 = vadd.f32 0.0, %v1694
        %v1696 = vpop.f32.mrb[0].mxu0
        %v1697 = vadd.f32 0.0, %v1696
        %v1698 = vpop.f32.mrb[0].mxu0
        %v1699 = vadd.f32 0.0, %v1698
        %1700 = vdwg.mxu0
        %1701 = vmatprep.subr.bf16.mxu0 %v1287
        %1702 = vmatpush1.bf16.msra.mxu0 %v1286
        %1703 = vmatprep.subr.bf16.mxu0 %v1290
        %1704 = vmatpush1.bf16.msra.mxu0 %v1289
        %1705 = vmatprep.subr.bf16.mxu0 %v1293
        %1706 = vmatpush1.bf16.msra.mxu0 %v1292
        %1707 = vmatprep.subr.bf16.mxu0 %v1296
        %1708 = vmatpush1.bf16.msra.mxu0 %v1295
        %1709 = vmatprep.subr.bf16.mxu0 %v1299
        %1710 = vmatpush1.bf16.msra.mxu0 %v1298
        %1711 = vmatprep.subr.bf16.mxu0 %v1302
        %1712 = vmatpush1.bf16.msra.mxu0 %v1301
        %1713 = vmatprep.subr.bf16.mxu0 %v1305
        %1714 = vmatpush1.bf16.msra.mxu0 %v1304
        %1715 = vmatprep.subr.bf16.mxu0 %v1308
        %1716 = vmatpush1.bf16.msra.mxu0 %v1307
        %1717 = vmatprep.subr.bf16.mxu0 %v1311
        %1718 = vmatpush1.bf16.msra.mxu0 %v1310
        %1719 = vmatprep.subr.bf16.mxu0 %v1314
        %1720 = vmatpush1.bf16.msra.mxu0 %v1313
        %1721 = vmatprep.subr.bf16.mxu0 %v1463
        %1722 = vmatpush1.bf16.msra.mxu0 %v1460
        %1723 = vmatprep.subr.bf16.mxu0 0
        %1724 = vmatpush1.bf16.msra.mxu0 0
        %1725 = vmatprep.subr.bf16.mxu0 0
        %1726 = vmatpush1.bf16.msra.mxu0 0
        %1727 = vmatprep.subr.bf16.mxu0 0
        %1728 = vmatpush1.bf16.msra.mxu0 0
        %1729 = vmatprep.subr.bf16.mxu0 0
        %1730 = vmatpush1.bf16.msra.mxu0 0
        %1731 = vmatprep.subr.bf16.mxu0 0
        %1732 = vmatpush1.bf16.msra.mxu0 0
        %1733 = vmatprep.mubr.bf16.mxu0 %v1399
        %1734 = vmatmul.mubr.bf16.gmra.mrb[0].mxu0 %v835
        %v1735 = vpop.f32.mrb[0].mxu0
        %v1736 = vadd.f32 %v1503, %v1735
        %v1737 = vpop.f32.mrb[0].mxu0
        %v1738 = vadd.f32 %v1505, %v1737
        %v1739 = vpop.f32.mrb[0].mxu0
        %v1740 = vadd.f32 %v1507, %v1739
        %v1741 = vpop.f32.mrb[0].mxu0
        %v1742 = vadd.f32 %v1509, %v1741
        %1743 = vmatprep.mubr.bf16.mxu0 %v1402
        %1744 = vmatmul.mubr.bf16.gmra.mrb[0].mxu0 %v839
        %v1745 = vpop.f32.mrb[0].mxu0
        %v1746 = vadd.f32 %v1513, %v1745
        %v1747 = vpop.f32.mrb[0].mxu0
        %v1748 = vadd.f32 %v1515, %v1747
        %v1749 = vpop.f32.mrb[0].mxu0
        %v1750 = vadd.f32 %v1517, %v1749
        %v1751 = vpop.f32.mrb[0].mxu0
        %v1752 = vadd.f32 %v1519, %v1751
        %1753 = vmatprep.mubr.bf16.mxu0 %v1405
        %1754 = vmatmul.mubr.bf16.gmra.mrb[0].mxu0 %v843
        %v1755 = vpop.f32.mrb[0].mxu0
        %v1756 = vadd.f32 %v1523, %v1755
        %v1757 = vpop.f32.mrb[0].mxu0
        %v1758 = vadd.f32 %v1525, %v1757
        %v1759 = vpop.f32.mrb[0].mxu0
        %v1760 = vadd.f32 %v1527, %v1759
        %v1761 = vpop.f32.mrb[0].mxu0
        %v1762 = vadd.f32 %v1529, %v1761
        %1763 = vmatprep.mubr.bf16.mxu0 %v1408
        %1764 = vmatmul.mubr.bf16.gmra.mrb[0].mxu0 %v847
        %v1765 = vpop.f32.mrb[0].mxu0
        %v1766 = vadd.f32 %v1533, %v1765
        %v1767 = vpop.f32.mrb[0].mxu0
        %v1768 = vadd.f32 %v1535, %v1767
        %v1769 = vpop.f32.mrb[0].mxu0
        %v1770 = vadd.f32 %v1537, %v1769
        %v1771 = vpop.f32.mrb[0].mxu0
        %v1772 = vadd.f32 %v1539, %v1771
        %1773 = vmatprep.mubr.bf16.mxu0 %v1411
        %1774 = vmatmul.mubr.bf16.gmra.mrb[0].mxu0 %v851
        %v1775 = vpop.f32.mrb[0].mxu0
        %v1776 = vadd.f32 %v1543, %v1775
        %v1777 = vpop.f32.mrb[0].mxu0
        %v1778 = vadd.f32 %v1545, %v1777
        %v1779 = vpop.f32.mrb[0].mxu0
        %v1780 = vadd.f32 %v1547, %v1779
        %v1781 = vpop.f32.mrb[0].mxu0
        %v1782 = vadd.f32 %v1549, %v1781
        %1783 = vmatprep.mubr.bf16.mxu0 %v1414
        %1784 = vmatmul.mubr.bf16.gmra.mrb[0].mxu0 %v855
        %v1785 = vpop.f32.mrb[0].mxu0
        %v1786 = vadd.f32 %v1553, %v1785
        %v1787 = vpop.f32.mrb[0].mxu0
        %v1788 = vadd.f32 %v1555, %v1787
        %v1789 = vpop.f32.mrb[0].mxu0
        %v1790 = vadd.f32 %v1557, %v1789
        %v1791 = vpop.f32.mrb[0].mxu0
        %v1792 = vadd.f32 %v1559, %v1791
        %1793 = vmatprep.mubr.bf16.mxu0 %v1417
        %1794 = vmatmul.mubr.bf16.gmra.mrb[0].mxu0 %v859
        %v1795 = vpop.f32.mrb[0].mxu0
        %v1796 = vadd.f32 %v1563, %v1795
        %v1797 = vpop.f32.mrb[0].mxu0
        %v1798 = vadd.f32 %v1565, %v1797
        %v1799 = vpop.f32.mrb[0].mxu0
        %v1800 = vadd.f32 %v1567, %v1799
        %v1801 = vpop.f32.mrb[0].mxu0
        %v1802 = vadd.f32 %v1569, %v1801
        %1803 = vmatprep.mubr.bf16.mxu0 %v1420
        %1804 = vmatmul.mubr.bf16.gmra.mrb[0].mxu0 %v863
        %v1805 = vpop.f32.mrb[0].mxu0
        %v1806 = vadd.f32 %v1573, %v1805
        %v1807 = vpop.f32.mrb[0].mxu0
        %v1808 = vadd.f32 %v1575, %v1807
        %v1809 = vpop.f32.mrb[0].mxu0
        %v1810 = vadd.f32 %v1577, %v1809
        %v1811 = vpop.f32.mrb[0].mxu0
        %v1812 = vadd.f32 %v1579, %v1811
        %1813 = vmatprep.mubr.bf16.mxu0 %v1423
        %1814 = vmatmul.mubr.bf16.gmra.mrb[0].mxu0 %v867
        %v1815 = vpop.f32.mrb[0].mxu0
        %v1816 = vadd.f32 %v1583, %v1815
        %v1817 = vpop.f32.mrb[0].mxu0
        %v1818 = vadd.f32 %v1585, %v1817
        %v1819 = vpop.f32.mrb[0].mxu0
        %v1820 = vadd.f32 %v1587, %v1819
        %v1821 = vpop.f32.mrb[0].mxu0
        %v1822 = vadd.f32 %v1589, %v1821
        %1823 = vmatprep.mubr.bf16.mxu0 %v1426
        %1824 = vmatmul.mubr.bf16.gmra.mrb[0].mxu0 %v871
        %v1825 = vpop.f32.mrb[0].mxu0
        %v1826 = vadd.f32 %v1593, %v1825
        %v1827 = vpop.f32.mrb[0].mxu0
        %v1828 = vadd.f32 %v1595, %v1827
        %v1829 = vpop.f32.mrb[0].mxu0
        %v1830 = vadd.f32 %v1597, %v1829
        %v1831 = vpop.f32.mrb[0].mxu0
        %v1832 = vadd.f32 %v1599, %v1831
        %1833 = vmatprep.mubr.bf16.mxu0 %v1429
        %1834 = vmatmul.mubr.bf16.gmra.mrb[0].mxu0 %v875
        %v1835 = vpop.f32.mrb[0].mxu0
        %v1836 = vadd.f32 %v1603, %v1835
        %v1837 = vpop.f32.mrb[0].mxu0
        %v1838 = vadd.f32 %v1605, %v1837
        %v1839 = vpop.f32.mrb[0].mxu0
        %v1840 = vadd.f32 %v1607, %v1839
        %v1841 = vpop.f32.mrb[0].mxu0
        %v1842 = vadd.f32 %v1609, %v1841
        %1843 = vmatprep.mubr.bf16.mxu0 %v1432
        %1844 = vmatmul.mubr.bf16.gmra.mrb[0].mxu0 %v879
        %v1845 = vpop.f32.mrb[0].mxu0
        %v1846 = vadd.f32 %v1613, %v1845
        %v1847 = vpop.f32.mrb[0].mxu0
        %v1848 = vadd.f32 %v1615, %v1847
        %v1849 = vpop.f32.mrb[0].mxu0
        %v1850 = vadd.f32 %v1617, %v1849
        %v1851 = vpop.f32.mrb[0].mxu0
        %v1852 = vadd.f32 %v1619, %v1851
        %1853 = vmatprep.mubr.bf16.mxu0 %v1435
        %1854 = vmatmul.mubr.bf16.gmra.mrb[0].mxu0 %v883
        %v1855 = vpop.f32.mrb[0].mxu0
        %v1856 = vadd.f32 %v1623, %v1855
        %v1857 = vpop.f32.mrb[0].mxu0
        %v1858 = vadd.f32 %v1625, %v1857
        %v1859 = vpop.f32.mrb[0].mxu0
        %v1860 = vadd.f32 %v1627, %v1859
        %v1861 = vpop.f32.mrb[0].mxu0
        %v1862 = vadd.f32 %v1629, %v1861
        %1863 = vmatprep.mubr.bf16.mxu0 %v1438
        %1864 = vmatmul.mubr.bf16.gmra.mrb[0].mxu0 %v887
        %v1865 = vpop.f32.mrb[0].mxu0
        %v1866 = vadd.f32 %v1633, %v1865
        %v1867 = vpop.f32.mrb[0].mxu0
        %v1868 = vadd.f32 %v1635, %v1867
        %v1869 = vpop.f32.mrb[0].mxu0
        %v1870 = vadd.f32 %v1637, %v1869
        %v1871 = vpop.f32.mrb[0].mxu0
        %v1872 = vadd.f32 %v1639, %v1871
        %1873 = vmatprep.mubr.bf16.mxu0 %v1441
        %1874 = vmatmul.mubr.bf16.gmra.mrb[0].mxu0 %v891
        %v1875 = vpop.f32.mrb[0].mxu0
        %v1876 = vadd.f32 %v1643, %v1875
        %v1877 = vpop.f32.mrb[0].mxu0
        %v1878 = vadd.f32 %v1645, %v1877
        %v1879 = vpop.f32.mrb[0].mxu0
        %v1880 = vadd.f32 %v1647, %v1879
        %v1881 = vpop.f32.mrb[0].mxu0
        %v1882 = vadd.f32 %v1649, %v1881
        %1883 = vmatprep.mubr.bf16.mxu0 %v1444
        %1884 = vmatmul.mubr.bf16.gmra.mrb[0].mxu0 %v895
        %v1885 = vpop.f32.mrb[0].mxu0
        %v1886 = vadd.f32 %v1653, %v1885
        %v1887 = vpop.f32.mrb[0].mxu0
        %v1888 = vadd.f32 %v1655, %v1887
        %v1889 = vpop.f32.mrb[0].mxu0
        %v1890 = vadd.f32 %v1657, %v1889
        %v1891 = vpop.f32.mrb[0].mxu0
        %v1892 = vadd.f32 %v1659, %v1891
        %1893 = vmatprep.mubr.bf16.mxu0 %v1447
        %1894 = vmatmul.mubr.bf16.gmra.mrb[0].mxu0 %v899
        %v1895 = vpop.f32.mrb[0].mxu0
        %v1896 = vadd.f32 %v1663, %v1895
        %v1897 = vpop.f32.mrb[0].mxu0
        %v1898 = vadd.f32 %v1665, %v1897
        %v1899 = vpop.f32.mrb[0].mxu0
        %v1900 = vadd.f32 %v1667, %v1899
        %v1901 = vpop.f32.mrb[0].mxu0
        %v1902 = vadd.f32 %v1669, %v1901
        %1903 = vmatprep.mubr.bf16.mxu0 %v1450
        %1904 = vmatmul.mubr.bf16.gmra.mrb[0].mxu0 %v903
        %v1905 = vpop.f32.mrb[0].mxu0
        %v1906 = vadd.f32 %v1673, %v1905
        %v1907 = vpop.f32.mrb[0].mxu0
        %v1908 = vadd.f32 %v1675, %v1907
        %v1909 = vpop.f32.mrb[0].mxu0
        %v1910 = vadd.f32 %v1677, %v1909
        %v1911 = vpop.f32.mrb[0].mxu0
        %v1912 = vadd.f32 %v1679, %v1911
        %1913 = vmatprep.mubr.bf16.mxu0 %v1453
        %1914 = vmatmul.mubr.bf16.gmra.mrb[0].mxu0 %v907
        %v1915 = vpop.f32.mrb[0].mxu0
        %v1916 = vadd.f32 %v1683, %v1915
        %v1917 = vpop.f32.mrb[0].mxu0
        %v1918 = vadd.f32 %v1685, %v1917
        %v1919 = vpop.f32.mrb[0].mxu0
        %v1920 = vadd.f32 %v1687, %v1919
        %v1921 = vpop.f32.mrb[0].mxu0
        %v1922 = vadd.f32 %v1689, %v1921
        %1923 = vmatprep.mubr.bf16.mxu0 %v1456
        %1924 = vmatmul.mubr.bf16.gmra.mrb[0].mxu0 %v911
        %v1925 = vpop.f32.mrb[0].mxu0
        %v1926 = vadd.f32 %v1693, %v1925
        %v1927 = vpop.f32.mrb[0].mxu0
        %v1928 = vadd.f32 %v1695, %v1927
        %v1929 = vpop.f32.mrb[0].mxu0
        %v1930 = vadd.f32 %v1697, %v1929
        %v1931 = vpop.f32.mrb[0].mxu0
        %v1932 = vadd.f32 %v1699, %v1931
        %1933 = vdwg.mxu0
        %1934 = vmatprep.subr.bf16.mxu0 0
        %1935 = vmatpush1.bf16.msra.mxu0 %v1240
        %1936 = vmatprep.subr.bf16.mxu0 0
        %1937 = vmatpush1.bf16.msra.mxu0 %v1243
        %1938 = vmatprep.subr.bf16.mxu0 0
        %1939 = vmatpush1.bf16.msra.mxu0 %v1246
        %1940 = vmatprep.subr.bf16.mxu0 0
        %1941 = vmatpush1.bf16.msra.mxu0 %v1249
        %1942 = vmatprep.subr.bf16.mxu0 0
        %1943 = vmatpush1.bf16.msra.mxu0 %v1252
        %1944 = vmatprep.subr.bf16.mxu0 0
        %1945 = vmatpush1.bf16.msra.mxu0 %v1255
        %1946 = vmatprep.subr.bf16.mxu0 0
        %1947 = vmatpush1.bf16.msra.mxu0 %v1258
        %1948 = vmatprep.subr.bf16.mxu0 0
        %1949 = vmatpush1.bf16.msra.mxu0 %v1261
        %1950 = vmatprep.subr.bf16.mxu0 0
        %1951 = vmatpush1.bf16.msra.mxu0 %v1264
        %1952 = vmatprep.subr.bf16.mxu0 0
        %1953 = vmatpush1.bf16.msra.mxu0 %v1267
        %1954 = vmatprep.subr.bf16.mxu0 0
        %1955 = vmatpush1.bf16.msra.mxu0 %v1270
        %1956 = vmatprep.subr.bf16.mxu0 0
        %1957 = vmatpush1.bf16.msra.mxu0 %v1273
        %1958 = vmatprep.subr.bf16.mxu0 0
        %1959 = vmatpush1.bf16.msra.mxu0 %v1276
        %1960 = vmatprep.subr.bf16.mxu0 0
        %1961 = vmatpush1.bf16.msra.mxu0 %v1279
        %1962 = vmatprep.subr.bf16.mxu0 0
        %1963 = vmatpush1.bf16.msra.mxu0 %v1282
        %1964 = vmatprep.subr.bf16.mxu0 0
        %1965 = vmatpush1.bf16.msra.mxu0 %v1285
        %1966 = vmatprep.mubr.bf16.mxu0 %v834
        %1967 = vmatmul.mubr.bf16.gmra.mrb[0].mxu0 %v833
        %v1968 = vpop.f32.mrb[0].mxu0
        %v1969 = vadd.f32 0.0, %v1968
        %v1970 = vpop.f32.mrb[0].mxu0
        %v1971 = vpop.f32.mrb[0].mxu0
        %v1972 = vadd.f32 0.0, %v1971
        %v1973 = vpop.f32.mrb[0].mxu0
        %1974 = vmatprep.mubr.bf16.mxu0 %v838
        %1975 = vmatmul.mubr.bf16.gmra.mrb[0].mxu0 %v837
        %v1976 = vpop.f32.mrb[0].mxu0
        %v1977 = vadd.f32 0.0, %v1976
        %v1978 = vpop.f32.mrb[0].mxu0
        %v1979 = vpop.f32.mrb[0].mxu0
        %v1980 = vadd.f32 0.0, %v1979
        %v1981 = vpop.f32.mrb[0].mxu0
        %1982 = vmatprep.mubr.bf16.mxu0 %v842
        %1983 = vmatmul.mubr.bf16.gmra.mrb[0].mxu0 %v841
        %v1984 = vpop.f32.mrb[0].mxu0
        %v1985 = vadd.f32 0.0, %v1984
        %v1986 = vpop.f32.mrb[0].mxu0
        %v1987 = vpop.f32.mrb[0].mxu0
        %v1988 = vadd.f32 0.0, %v1987
        %v1989 = vpop.f32.mrb[0].mxu0
        %1990 = vmatprep.mubr.bf16.mxu0 %v846
        %1991 = vmatmul.mubr.bf16.gmra.mrb[0].mxu0 %v845
        %v1992 = vpop.f32.mrb[0].mxu0
        %v1993 = vadd.f32 0.0, %v1992
        %v1994 = vpop.f32.mrb[0].mxu0
        %v1995 = vpop.f32.mrb[0].mxu0
        %v1996 = vadd.f32 0.0, %v1995
        %v1997 = vpop.f32.mrb[0].mxu0
        %1998 = vmatprep.mubr.bf16.mxu0 %v850
        %1999 = vmatmul.mubr.bf16.gmra.mrb[0].mxu0 %v849
        %v2000 = vpop.f32.mrb[0].mxu0
        %v2001 = vadd.f32 0.0, %v2000
        %v2002 = vpop.f32.mrb[0].mxu0
        %v2003 = vpop.f32.mrb[0].mxu0
        %v2004 = vadd.f32 0.0, %v2003
        %v2005 = vpop.f32.mrb[0].mxu0
        %2006 = vmatprep.mubr.bf16.mxu0 %v854
        %2007 = vmatmul.mubr.bf16.gmra.mrb[0].mxu0 %v853
        %v2008 = vpop.f32.mrb[0].mxu0
        %v2009 = vadd.f32 0.0, %v2008
        %v2010 = vpop.f32.mrb[0].mxu0
        %v2011 = vpop.f32.mrb[0].mxu0
        %v2012 = vadd.f32 0.0, %v2011
        %v2013 = vpop.f32.mrb[0].mxu0
        %2014 = vmatprep.mubr.bf16.mxu0 %v858
        %2015 = vmatmul.mubr.bf16.gmra.mrb[0].mxu0 %v857
        %v2016 = vpop.f32.mrb[0].mxu0
        %v2017 = vadd.f32 0.0, %v2016
        %v2018 = vpop.f32.mrb[0].mxu0
        %v2019 = vpop.f32.mrb[0].mxu0
        %v2020 = vadd.f32 0.0, %v2019
        %v2021 = vpop.f32.mrb[0].mxu0
        %2022 = vmatprep.mubr.bf16.mxu0 %v862
        %2023 = vmatmul.mubr.bf16.gmra.mrb[0].mxu0 %v861
        %v2024 = vpop.f32.mrb[0].mxu0
        %v2025 = vadd.f32 0.0, %v2024
        %v2026 = vpop.f32.mrb[0].mxu0
        %v2027 = vpop.f32.mrb[0].mxu0
        %v2028 = vadd.f32 0.0, %v2027
        %v2029 = vpop.f32.mrb[0].mxu0
        %2030 = vmatprep.mubr.bf16.mxu0 %v866
        %2031 = vmatmul.mubr.bf16.gmra.mrb[0].mxu0 %v865
        %v2032 = vpop.f32.mrb[0].mxu0
        %v2033 = vadd.f32 0.0, %v2032
        %v2034 = vpop.f32.mrb[0].mxu0
        %v2035 = vpop.f32.mrb[0].mxu0
        %v2036 = vadd.f32 0.0, %v2035
        %v2037 = vpop.f32.mrb[0].mxu0
        %2038 = vmatprep.mubr.bf16.mxu0 %v870
        %2039 = vmatmul.mubr.bf16.gmra.mrb[0].mxu0 %v869
        %v2040 = vpop.f32.mrb[0].mxu0
        %v2041 = vadd.f32 0.0, %v2040
        %v2042 = vpop.f32.mrb[0].mxu0
        %v2043 = vpop.f32.mrb[0].mxu0
        %v2044 = vadd.f32 0.0, %v2043
        %v2045 = vpop.f32.mrb[0].mxu0
        %2046 = vmatprep.mubr.bf16.mxu0 %v874
        %2047 = vmatmul.mubr.bf16.gmra.mrb[0].mxu0 %v873
        %v2048 = vpop.f32.mrb[0].mxu0
        %v2049 = vadd.f32 0.0, %v2048
        %v2050 = vpop.f32.mrb[0].mxu0
        %v2051 = vpop.f32.mrb[0].mxu0
        %v2052 = vadd.f32 0.0, %v2051
        %v2053 = vpop.f32.mrb[0].mxu0
        %2054 = vmatprep.mubr.bf16.mxu0 %v878
        %2055 = vmatmul.mubr.bf16.gmra.mrb[0].mxu0 %v877
        %v2056 = vpop.f32.mrb[0].mxu0
        %v2057 = vadd.f32 0.0, %v2056
        %v2058 = vpop.f32.mrb[0].mxu0
        %v2059 = vpop.f32.mrb[0].mxu0
        %v2060 = vadd.f32 0.0, %v2059
        %v2061 = vpop.f32.mrb[0].mxu0
        %2062 = vmatprep.mubr.bf16.mxu0 %v882
        %2063 = vmatmul.mubr.bf16.gmra.mrb[0].mxu0 %v881
        %v2064 = vpop.f32.mrb[0].mxu0
        %v2065 = vadd.f32 0.0, %v2064
        %v2066 = vpop.f32.mrb[0].mxu0
        %v2067 = vpop.f32.mrb[0].mxu0
        %v2068 = vadd.f32 0.0, %v2067
        %v2069 = vpop.f32.mrb[0].mxu0
        %2070 = vmatprep.mubr.bf16.mxu0 %v886
        %2071 = vmatmul.mubr.bf16.gmra.mrb[0].mxu0 %v885
        %v2072 = vpop.f32.mrb[0].mxu0
        %v2073 = vadd.f32 0.0, %v2072
        %v2074 = vpop.f32.mrb[0].mxu0
        %v2075 = vpop.f32.mrb[0].mxu0
        %v2076 = vadd.f32 0.0, %v2075
        %v2077 = vpop.f32.mrb[0].mxu0
        %2078 = vmatprep.mubr.bf16.mxu0 %v890
        %2079 = vmatmul.mubr.bf16.gmra.mrb[0].mxu0 %v889
        %v2080 = vpop.f32.mrb[0].mxu0
        %v2081 = vadd.f32 0.0, %v2080
        %v2082 = vpop.f32.mrb[0].mxu0
        %v2083 = vpop.f32.mrb[0].mxu0
        %v2084 = vadd.f32 0.0, %v2083
        %v2085 = vpop.f32.mrb[0].mxu0
        %2086 = vmatprep.mubr.bf16.mxu0 %v894
        %2087 = vmatmul.mubr.bf16.gmra.mrb[0].mxu0 %v893
        %v2088 = vpop.f32.mrb[0].mxu0
        %v2089 = vadd.f32 0.0, %v2088
        %v2090 = vpop.f32.mrb[0].mxu0
        %v2091 = vpop.f32.mrb[0].mxu0
        %v2092 = vadd.f32 0.0, %v2091
        %v2093 = vpop.f32.mrb[0].mxu0
        %2094 = vmatprep.mubr.bf16.mxu0 %v898
        %2095 = vmatmul.mubr.bf16.gmra.mrb[0].mxu0 %v897
        %v2096 = vpop.f32.mrb[0].mxu0
        %v2097 = vadd.f32 0.0, %v2096
        %v2098 = vpop.f32.mrb[0].mxu0
        %v2099 = vpop.f32.mrb[0].mxu0
        %v2100 = vadd.f32 0.0, %v2099
        %v2101 = vpop.f32.mrb[0].mxu0
        %2102 = vmatprep.mubr.bf16.mxu0 %v902
        %2103 = vmatmul.mubr.bf16.gmra.mrb[0].mxu0 %v901
        %v2104 = vpop.f32.mrb[0].mxu0
        %v2105 = vadd.f32 0.0, %v2104
        %v2106 = vpop.f32.mrb[0].mxu0
        %v2107 = vpop.f32.mrb[0].mxu0
        %v2108 = vadd.f32 0.0, %v2107
        %v2109 = vpop.f32.mrb[0].mxu0
        %2110 = vmatprep.mubr.bf16.mxu0 %v906
        %2111 = vmatmul.mubr.bf16.gmra.mrb[0].mxu0 %v905
        %v2112 = vpop.f32.mrb[0].mxu0
        %v2113 = vadd.f32 0.0, %v2112
        %v2114 = vpop.f32.mrb[0].mxu0
        %v2115 = vpop.f32.mrb[0].mxu0
        %v2116 = vadd.f32 0.0, %v2115
        %v2117 = vpop.f32.mrb[0].mxu0
        %2118 = vmatprep.mubr.bf16.mxu0 %v910
        %2119 = vmatmul.mubr.bf16.gmra.mrb[0].mxu0 %v909
        %v2120 = vpop.f32.mrb[0].mxu0
        %v2121 = vadd.f32 0.0, %v2120
        %v2122 = vpop.f32.mrb[0].mxu0
        %v2123 = vpop.f32.mrb[0].mxu0
        %v2124 = vadd.f32 0.0, %v2123
        %v2125 = vpop.f32.mrb[0].mxu0
        %2126 = vdwg.mxu0
        %2127 = vmatprep.subr.bf16.mxu0 0
        %2128 = vmatpush1.bf16.msra.mxu0 %v1288
        %2129 = vmatprep.subr.bf16.mxu0 0
        %2130 = vmatpush1.bf16.msra.mxu0 %v1291
        %2131 = vmatprep.subr.bf16.mxu0 0
        %2132 = vmatpush1.bf16.msra.mxu0 %v1294
        %2133 = vmatprep.subr.bf16.mxu0 0
        %2134 = vmatpush1.bf16.msra.mxu0 %v1297
        %2135 = vmatprep.subr.bf16.mxu0 0
        %2136 = vmatpush1.bf16.msra.mxu0 %v1300
        %2137 = vmatprep.subr.bf16.mxu0 0
        %2138 = vmatpush1.bf16.msra.mxu0 %v1303
        %2139 = vmatprep.subr.bf16.mxu0 0
        %2140 = vmatpush1.bf16.msra.mxu0 %v1306
        %2141 = vmatprep.subr.bf16.mxu0 0
        %2142 = vmatpush1.bf16.msra.mxu0 %v1309
        %2143 = vmatprep.subr.bf16.mxu0 0
        %2144 = vmatpush1.bf16.msra.mxu0 %v1312
        %2145 = vmatprep.subr.bf16.mxu0 0
        %2146 = vmatpush1.bf16.msra.mxu0 %v1315
        %2147 = vmatprep.subr.bf16.mxu0 0
        %2148 = vmatpush1.bf16.msra.mxu0 %v1466
        %2149 = vmatprep.subr.bf16.mxu0 0
        %2150 = vmatpush1.bf16.msra.mxu0 0
        %2151 = vmatprep.subr.bf16.mxu0 0
        %2152 = vmatpush1.bf16.msra.mxu0 0
        %2153 = vmatprep.subr.bf16.mxu0 0
        %2154 = vmatpush1.bf16.msra.mxu0 0
        %2155 = vmatprep.subr.bf16.mxu0 0
        %2156 = vmatpush1.bf16.msra.mxu0 0
        %2157 = vmatprep.subr.bf16.mxu0 0
        %2158 = vmatpush1.bf16.msra.mxu0 0
        %2159 = vmatprep.mubr.bf16.mxu0 %v1399
        %2160 = vmatmul.mubr.bf16.gmra.mrb[0].mxu0 %v835
        %v2161 = vpop.f32.mrb[0].mxu0
        %v2162 = vadd.f32 %v1969, %v2161
        %v2163 = vpop.f32.mrb[0].mxu0
        %v2164 = vpop.f32.mrb[0].mxu0
        %v2165 = vadd.f32 %v1972, %v2164
        %v2166 = vpop.f32.mrb[0].mxu0
        %2167 = vmatprep.mubr.bf16.mxu0 %v1402
        %2168 = vmatmul.mubr.bf16.gmra.mrb[0].mxu0 %v839
        %v2169 = vpop.f32.mrb[0].mxu0
        %v2170 = vadd.f32 %v1977, %v2169
        %v2171 = vpop.f32.mrb[0].mxu0
        %v2172 = vpop.f32.mrb[0].mxu0
        %v2173 = vadd.f32 %v1980, %v2172
        %v2174 = vpop.f32.mrb[0].mxu0
        %2175 = vmatprep.mubr.bf16.mxu0 %v1405
        %2176 = vmatmul.mubr.bf16.gmra.mrb[0].mxu0 %v843
        %v2177 = vpop.f32.mrb[0].mxu0
        %v2178 = vadd.f32 %v1985, %v2177
        %v2179 = vpop.f32.mrb[0].mxu0
        %v2180 = vpop.f32.mrb[0].mxu0
        %v2181 = vadd.f32 %v1988, %v2180
        %v2182 = vpop.f32.mrb[0].mxu0
        %2183 = vmatprep.mubr.bf16.mxu0 %v1408
        %2184 = vmatmul.mubr.bf16.gmra.mrb[0].mxu0 %v847
        %v2185 = vpop.f32.mrb[0].mxu0
        %v2186 = vadd.f32 %v1993, %v2185
        %v2187 = vpop.f32.mrb[0].mxu0
        %v2188 = vpop.f32.mrb[0].mxu0
        %v2189 = vadd.f32 %v1996, %v2188
        %v2190 = vpop.f32.mrb[0].mxu0
        %2191 = vmatprep.mubr.bf16.mxu0 %v1411
        %2192 = vmatmul.mubr.bf16.gmra.mrb[0].mxu0 %v851
        %v2193 = vpop.f32.mrb[0].mxu0
        %v2194 = vadd.f32 %v2001, %v2193
        %v2195 = vpop.f32.mrb[0].mxu0
        %v2196 = vpop.f32.mrb[0].mxu0
        %v2197 = vadd.f32 %v2004, %v2196
        %v2198 = vpop.f32.mrb[0].mxu0
        %2199 = vmatprep.mubr.bf16.mxu0 %v1414
        %2200 = vmatmul.mubr.bf16.gmra.mrb[0].mxu0 %v855
        %v2201 = vpop.f32.mrb[0].mxu0
        %v2202 = vadd.f32 %v2009, %v2201
        %v2203 = vpop.f32.mrb[0].mxu0
        %v2204 = vpop.f32.mrb[0].mxu0
        %v2205 = vadd.f32 %v2012, %v2204
        %v2206 = vpop.f32.mrb[0].mxu0
        %2207 = vmatprep.mubr.bf16.mxu0 %v1417
        %2208 = vmatmul.mubr.bf16.gmra.mrb[0].mxu0 %v859
        %v2209 = vpop.f32.mrb[0].mxu0
        %v2210 = vadd.f32 %v2017, %v2209
        %v2211 = vpop.f32.mrb[0].mxu0
        %v2212 = vpop.f32.mrb[0].mxu0
        %v2213 = vadd.f32 %v2020, %v2212
        %v2214 = vpop.f32.mrb[0].mxu0
        %2215 = vmatprep.mubr.bf16.mxu0 %v1420
        %2216 = vmatmul.mubr.bf16.gmra.mrb[0].mxu0 %v863
        %v2217 = vpop.f32.mrb[0].mxu0
        %v2218 = vadd.f32 %v2025, %v2217
        %v2219 = vpop.f32.mrb[0].mxu0
        %v2220 = vpop.f32.mrb[0].mxu0
        %v2221 = vadd.f32 %v2028, %v2220
        %v2222 = vpop.f32.mrb[0].mxu0
        %2223 = vmatprep.mubr.bf16.mxu0 %v1423
        %2224 = vmatmul.mubr.bf16.gmra.mrb[0].mxu0 %v867
        %v2225 = vpop.f32.mrb[0].mxu0
        %v2226 = vadd.f32 %v2033, %v2225
        %v2227 = vpop.f32.mrb[0].mxu0
        %v2228 = vpop.f32.mrb[0].mxu0
        %v2229 = vadd.f32 %v2036, %v2228
        %v2230 = vpop.f32.mrb[0].mxu0
        %2231 = vmatprep.mubr.bf16.mxu0 %v1426
        %2232 = vmatmul.mubr.bf16.gmra.mrb[0].mxu0 %v871
        %v2233 = vpop.f32.mrb[0].mxu0
        %v2234 = vadd.f32 %v2041, %v2233
        %v2235 = vpop.f32.mrb[0].mxu0
        %v2236 = vpop.f32.mrb[0].mxu0
        %v2237 = vadd.f32 %v2044, %v2236
        %v2238 = vpop.f32.mrb[0].mxu0
        %2239 = vmatprep.mubr.bf16.mxu0 %v1429
        %2240 = vmatmul.mubr.bf16.gmra.mrb[0].mxu0 %v875
        %v2241 = vpop.f32.mrb[0].mxu0
        %v2242 = vadd.f32 %v2049, %v2241
        %v2243 = vpop.f32.mrb[0].mxu0
        %v2244 = vpop.f32.mrb[0].mxu0
        %v2245 = vadd.f32 %v2052, %v2244
        %v2246 = vpop.f32.mrb[0].mxu0
        %2247 = vmatprep.mubr.bf16.mxu0 %v1432
        %2248 = vmatmul.mubr.bf16.gmra.mrb[0].mxu0 %v879
        %v2249 = vpop.f32.mrb[0].mxu0
        %v2250 = vadd.f32 %v2057, %v2249
        %v2251 = vpop.f32.mrb[0].mxu0
        %v2252 = vpop.f32.mrb[0].mxu0
        %v2253 = vadd.f32 %v2060, %v2252
        %v2254 = vpop.f32.mrb[0].mxu0
        %2255 = vmatprep.mubr.bf16.mxu0 %v1435
        %2256 = vmatmul.mubr.bf16.gmra.mrb[0].mxu0 %v883
        %v2257 = vpop.f32.mrb[0].mxu0
        %v2258 = vadd.f32 %v2065, %v2257
        %v2259 = vpop.f32.mrb[0].mxu0
        %v2260 = vpop.f32.mrb[0].mxu0
        %v2261 = vadd.f32 %v2068, %v2260
        %v2262 = vpop.f32.mrb[0].mxu0
        %2263 = vmatprep.mubr.bf16.mxu0 %v1438
        %2264 = vmatmul.mubr.bf16.gmra.mrb[0].mxu0 %v887
        %v2265 = vpop.f32.mrb[0].mxu0
        %v2266 = vadd.f32 %v2073, %v2265
        %v2267 = vpop.f32.mrb[0].mxu0
        %v2268 = vpop.f32.mrb[0].mxu0
        %v2269 = vadd.f32 %v2076, %v2268
        %v2270 = vpop.f32.mrb[0].mxu0
        %2271 = vmatprep.mubr.bf16.mxu0 %v1441
        %2272 = vmatmul.mubr.bf16.gmra.mrb[0].mxu0 %v891
        %v2273 = vpop.f32.mrb[0].mxu0
        %v2274 = vadd.f32 %v2081, %v2273
        %v2275 = vpop.f32.mrb[0].mxu0
        %v2276 = vpop.f32.mrb[0].mxu0
        %v2277 = vadd.f32 %v2084, %v2276
        %v2278 = vpop.f32.mrb[0].mxu0
        %2279 = vmatprep.mubr.bf16.mxu0 %v1444
        %2280 = vmatmul.mubr.bf16.gmra.mrb[0].mxu0 %v895
        %v2281 = vpop.f32.mrb[0].mxu0
        %v2282 = vadd.f32 %v2089, %v2281
        %v2283 = vpop.f32.mrb[0].mxu0
        %v2284 = vpop.f32.mrb[0].mxu0
        %v2285 = vadd.f32 %v2092, %v2284
        %v2286 = vpop.f32.mrb[0].mxu0
        %2287 = vmatprep.mubr.bf16.mxu0 %v1447
        %2288 = vmatmul.mubr.bf16.gmra.mrb[0].mxu0 %v899
        %v2289 = vpop.f32.mrb[0].mxu0
        %v2290 = vadd.f32 %v2097, %v2289
        %v2291 = vpop.f32.mrb[0].mxu0
        %v2292 = vpop.f32.mrb[0].mxu0
        %v2293 = vadd.f32 %v2100, %v2292
        %v2294 = vpop.f32.mrb[0].mxu0
        %2295 = vmatprep.mubr.bf16.mxu0 %v1450
        %2296 = vmatmul.mubr.bf16.gmra.mrb[0].mxu0 %v903
        %v2297 = vpop.f32.mrb[0].mxu0
        %v2298 = vadd.f32 %v2105, %v2297
        %v2299 = vpop.f32.mrb[0].mxu0
        %v2300 = vpop.f32.mrb[0].mxu0
        %v2301 = vadd.f32 %v2108, %v2300
        %v2302 = vpop.f32.mrb[0].mxu0
        %2303 = vmatprep.mubr.bf16.mxu0 %v1453
        %2304 = vmatmul.mubr.bf16.gmra.mrb[0].mxu0 %v907
        %v2305 = vpop.f32.mrb[0].mxu0
        %v2306 = vadd.f32 %v2113, %v2305
        %v2307 = vpop.f32.mrb[0].mxu0
        %v2308 = vpop.f32.mrb[0].mxu0
        %v2309 = vadd.f32 %v2116, %v2308
        %v2310 = vpop.f32.mrb[0].mxu0
        %2311 = vmatprep.mubr.bf16.mxu0 %v1456
        %2312 = vmatmul.mubr.bf16.gmra.mrb[0].mxu0 %v911
        %v2313 = vpop.f32.mrb[0].mxu0
        %v2314 = vadd.f32 %v2121, %v2313
        %v2315 = vpop.f32.mrb[0].mxu0
        %v2316 = vpop.f32.mrb[0].mxu0
        %v2317 = vadd.f32 %v2124, %v2316
        %v2318 = vpop.f32.mrb[0].mxu0
        %2319 = vdwg.mxu0
        %v2320 = vmax.f32 %v1736, %v1746
        %v2321 = vmax.f32 %v1738, %v1748
        %v2322 = vmax.f32 %v2162, %v2170
        %v2323 = vmax.f32 %v1740, %v1750
        %v2324 = vmax.f32 %v1742, %v1752
        %v2325 = vmax.f32 %v2165, %v2173
        %v2326 = vmax.f32 %v2320, %v1756
        %v2327 = vmax.f32 %v2321, %v1758
        %v2328 = vmax.f32 %v2322, %v2178
        %v2329 = vmax.f32 %v2323, %v1760
        %v2330 = vmax.f32 %v2324, %v1762
        %v2331 = vmax.f32 %v2325, %v2181
        %v2332 = vmax.f32 %v2326, %v1766
        %v2333 = vmax.f32 %v2327, %v1768
        %v2334 = vmax.f32 %v2328, %v2186
        %v2335 = vmax.f32 %v2329, %v1770
        %v2336 = vmax.f32 %v2330, %v1772
        %v2337 = vmax.f32 %v2331, %v2189
        %v2338 = vmax.f32 %v2332, %v1776
        %v2339 = vmax.f32 %v2333, %v1778
        %v2340 = vmax.f32 %v2334, %v2194
        %v2341 = vmax.f32 %v2335, %v1780
        %v2342 = vmax.f32 %v2336, %v1782
        %v2343 = vmax.f32 %v2337, %v2197
        %v2344 = vmax.f32 %v2338, %v1786
        %v2345 = vmax.f32 %v2339, %v1788
        %v2346 = vmax.f32 %v2340, %v2202
        %v2347 = vmax.f32 %v2341, %v1790
        %v2348 = vmax.f32 %v2342, %v1792
        %v2349 = vmax.f32 %v2343, %v2205
        %v2350 = vmax.f32 %v2344, %v1796
        %v2351 = vmax.f32 %v2345, %v1798
        %v2352 = vmax.f32 %v2346, %v2210
        %v2353 = vmax.f32 %v2347, %v1800
        %v2354 = vmax.f32 %v2348, %v1802
        %v2355 = vmax.f32 %v2349, %v2213
        %v2356 = vmax.f32 %v2350, %v1806
        %v2357 = vmax.f32 %v2351, %v1808
        %v2358 = vmax.f32 %v2352, %v2218
        %v2359 = vmax.f32 %v2353, %v1810
        %v2360 = vmax.f32 %v2354, %v1812
        %v2361 = vmax.f32 %v2355, %v2221
        %v2362 = vmax.f32 %v2356, %v1816
        %v2363 = vmax.f32 %v2357, %v1818
        %v2364 = vmax.f32 %v2358, %v2226
        %v2365 = vmax.f32 %v2359, %v1820
        %v2366 = vmax.f32 %v2360, %v1822
        %v2367 = vmax.f32 %v2361, %v2229
        %v2368 = vmax.f32 %v2362, %v1826
        %v2369 = vmax.f32 %v2363, %v1828
        %v2370 = vmax.f32 %v2364, %v2234
        %v2371 = vmax.f32 %v2365, %v1830
        %v2372 = vmax.f32 %v2366, %v1832
        %v2373 = vmax.f32 %v2367, %v2237
        %v2374 = vmax.f32 %v2368, %v1836
        %v2375 = vmax.f32 %v2369, %v1838
        %v2376 = vmax.f32 %v2370, %v2242
        %v2377 = vmax.f32 %v2371, %v1840
        %v2378 = vmax.f32 %v2372, %v1842
        %v2379 = vmax.f32 %v2373, %v2245
        %v2380 = vmax.f32 %v2374, %v1846
        %v2381 = vmax.f32 %v2375, %v1848
        %v2382 = vmax.f32 %v2376, %v2250
        %v2383 = vmax.f32 %v2377, %v1850
        %v2384 = vmax.f32 %v2378, %v1852
        %v2385 = vmax.f32 %v2379, %v2253
        %v2386 = vmax.f32 %v2380, %v1856
        %v2387 = vmax.f32 %v2381, %v1858
        %v2388 = vmax.f32 %v2382, %v2258
        %v2389 = vmax.f32 %v2383, %v1860
        %v2390 = vmax.f32 %v2384, %v1862
        %v2391 = vmax.f32 %v2385, %v2261
        %v2392 = vmax.f32 %v2386, %v1866
        %v2393 = vmax.f32 %v2387, %v1868
        %v2394 = vmax.f32 %v2388, %v2266
        %v2395 = vmax.f32 %v2389, %v1870
        %v2396 = vmax.f32 %v2390, %v1872
        %v2397 = vmax.f32 %v2391, %v2269
        %v2398 = vmax.f32 %v2392, %v1876
        %v2399 = vmax.f32 %v2393, %v1878
        %v2400 = vmax.f32 %v2394, %v2274
        %v2401 = vmax.f32 %v2395, %v1880
        %v2402 = vmax.f32 %v2396, %v1882
        %v2403 = vmax.f32 %v2397, %v2277
        %v2404 = vmax.f32 %v2398, %v1886
        %v2405 = vmax.f32 %v2399, %v1888
        %v2406 = vmax.f32 %v2400, %v2282
        %v2407 = vmax.f32 %v2401, %v1890
        %v2408 = vmax.f32 %v2402, %v1892
        %v2409 = vmax.f32 %v2403, %v2285
        %v2410 = vmax.f32 %v2404, %v1896
        %v2411 = vmax.f32 %v2405, %v1898
        %v2412 = vmax.f32 %v2406, %v2290
        %v2413 = vmax.f32 %v2407, %v1900
        %v2414 = vmax.f32 %v2408, %v1902
        %v2415 = vmax.f32 %v2409, %v2293
        %v2416 = vmax.f32 %v2410, %v1906
        %v2417 = vmax.f32 %v2411, %v1908
        %v2418 = vmax.f32 %v2412, %v2298
        %v2419 = vmax.f32 %v2413, %v1910
        %v2420 = vmax.f32 %v2414, %v1912
        %v2421 = vmax.f32 %v2415, %v2301
        %v2422 = vmax.f32 %v2416, %v1916
        %v2423 = vmax.f32 %v2417, %v1918
        %v2424 = vmax.f32 %v2418, %v2306
        %v2425 = vmax.f32 %v2419, %v1920
        %v2426 = vmax.f32 %v2420, %v1922
        %v2427 = vmax.f32 %v2421, %v2309
        %v2428 = vmax.f32 %v2422, %v1926
        %v2429 = vmax.f32 %v2423, %v1928
        %v2430 = vmax.f32 %v2424, %v2314
        %v2431 = vmax.f32 %v2425, %v1930
        %v2432 = vmax.f32 %v2426, %v1932
        %v2433 = vmax.f32 %v2427, %v2317
        %v2434 = vld [vmem:[%s2] sm:$0xff]
        %v2435 = vld [vmem:[%s2 + $0x8] sm:$0xff]
        %2437 = vset.pattern.permute.xlu0 0
        %2438 = vperm.xlu0 %2437, %v2434
        %v2439 = vpop.permute.xlu0 %2438
        %2442 = vset.pattern.permute.xlu0 0
        %2443 = vperm.xlu0 %2442, %v2435
        %v2444 = vpop.permute.xlu0 %2443
        %v2446 = vadd.f32 %v2428, %v2439
        %v2447 = vadd.f32 %v2429, %v2439
        %v2448 = vadd.f32 %v2430, %v2439
        %v2449 = vadd.f32 %v2431, %v2444
        %v2450 = vadd.f32 %v2432, %v2444
        %v2451 = vadd.f32 %v2433, %v2444
        %vm2452 = vcmp.ge.f32.partialorder %v2446, 0.0
        %vm2453 = vcmp.ge.f32.partialorder %v2447, 0.0
        %vm2454 = vcmp.ge.f32.partialorder %v2448, 0.0
        %vm2455 = vcmp.ge.f32.partialorder %v2449, 0.0
        %vm2456 = vcmp.ge.f32.partialorder %v2450, 0.0
        %vm2457 = vcmp.ge.f32.partialorder %v2451, 0.0
        %v2458 = vmul.f32 %v2446, 0.3
        %v2459 = vmul.f32 %v2447, 0.3
        %v2460 = vmul.f32 %v2448, 0.3
        %v2461 = vmul.f32 %v2449, 0.3
        %v2462 = vmul.f32 %v2450, 0.3
        %v2463 = vmul.f32 %v2451, 0.3
        %v2464 = vsel %vm2452, %v2446, %v2458
        %v2465 = vsel %vm2453, %v2447, %v2459
        %v2466 = vsel %vm2454, %v2448, %v2460
        %v2467 = vsel %vm2455, %v2449, %v2461
        %v2468 = vsel %vm2456, %v2450, %v2462
        %v2469 = vsel %vm2457, %v2451, %v2463
        %2470 = vst [vmem:[%s403] sm:$0xff] %v2464
        %2471 = vst [vmem:[%s403 + $0x8] sm:$0xff] %v2465
        %2472 = vst [vmem:[%s403 + $0x10] sm:$0xff] %v2466
        %2473 = vst [vmem:[%s403 + $0x18] sm:$0xff] %v2467
        %2474 = vst [vmem:[%s403 + $0x20] sm:$0xff] %v2468
        %2475 = vst [vmem:[%s403 + $0x28] sm:$0xff] %v2469
        %s2476 = sand.u32 %s90, 1
        %s2477 = sand.u32 %s90, 1
        %s2478 = smul.addr %s2477, 48
        %s2479 = scalar_lea.vmem [#allocation3], %s2478
        // Predicated region
        $region59: #{shallow_net_forward.3} parent=53 // pred_check
          %p2480 = pneg %p100
        $region60: #{shallow_net_forward.3} parent=53 // pred_check_branch
          %2482 = sbr.rel (%p2480) target = $region62
        $region61: #{shallow_net_forward.3} parent=53 // pred_region
          %s2483 = smul.u32 3, %s14
          %s2484 = smul.addr %s2483, 8
          %s2485 = scalar_lea.vmem %s3, %s2484
          // Predicated region
          $region63: #{shallow_net_forward.3} parent=61 // pred_check
            _
          $region64: #{shallow_net_forward.3} parent=61 // pred_check_branch
            %2487 = sbr.rel (0) target = $region66
          $region65: #{shallow_net_forward.3} parent=61 // pred_region
            // Predicated region
            $region67: #{shallow_net_forward.3} parent=65 // pred_check
              _
            $region68: #{shallow_net_forward.3} parent=65 // pred_check_branch
              %2489 = sbr.rel (0) target = $region70
            $region69: #{shallow_net_forward.3} parent=65 // pred_region
              loop: start=0, step=1, limit=1
              $region71: #{shallow_net_forward.3} parent=69 // loop_pre_header
                _
              $region72: #{shallow_net_forward.3} parent=69 // loop_header
                %s2491 = sphi 0, %s2495
                %p2492 = scmp.ge.s32.totalorder %s2491, 1
                %s2496 = sphi %s2479, %s2479
                %s2497 = sphi %s2485, %s2485
              $region73: #{shallow_net_forward.3} parent=69 // loop_header_branch
                %2494 = sbr.rel (%p2492) target = $region77
              $region74: #{shallow_net_forward.3} parent=69 // loop_body
                %v2498 = vld [vmem:[%s2496] sm:$0xff]
                %2499 = vst [vmem:[%s2497] sm:$0xff] %v2498
                %v2500 = vld [vmem:[%s2496 + $0x8] sm:$0xff]
                %2501 = vst [vmem:[%s2497 + $0x8] sm:$0xff] %v2500
                %v2502 = vld [vmem:[%s2496 + $0x10] sm:$0xff]
                %2503 = vst [vmem:[%s2497 + $0x10] sm:$0xff] %v2502
                %v2504 = vld [vmem:[%s2496 + $0x18] sm:$0xff]
                %2505 = vst [vmem:[%s2497 + $0x30] sm:$0xff] %v2504
                %v2506 = vld [vmem:[%s2496 + $0x20] sm:$0xff]
                %2507 = vst [vmem:[%s2497 + $0x38] sm:$0xff] %v2506
                %v2508 = vld [vmem:[%s2496 + $0x28] sm:$0xff]
                %2509 = vst [vmem:[%s2497 + $0x40] sm:$0xff] %v2508
              $region75: #{shallow_net_forward.3} parent=69 // loop_footer
                %s2495 = sadd.s32 1, %s2491
              $region76: #{shallow_net_forward.3} parent=69 // loop_footer_branch
                %2490 = sbr.rel target = $region72
              $region77: #{shallow_net_forward.3} parent=69 // loop_exit
                _
            $region70: #{shallow_net_forward.3} parent=65 // pred_fallthru
              _
            // Predicated region
            $region78: #{shallow_net_forward.3} parent=65 // pred_check
              _
            $region79: #{shallow_net_forward.3} parent=65 // pred_check_branch
              %2511 = sbr.rel target = $region81
            $region80: #{shallow_net_forward.3} parent=65 // pred_region
              _
            $region81: #{shallow_net_forward.3} parent=65 // pred_fallthru
              _
          $region66: #{shallow_net_forward.3} parent=61 // pred_fallthru
            _
          %2512 = vnop
        $region62: #{shallow_net_forward.3} parent=53 // pred_fallthru
          _
      $region54: #{shallow_net_forward.3} parent=5 // pred_fallthru
        _
      %p2513 = scmp.le.s32.totalorder 2, %s9
      // Predicated region
      $region82: #{shallow_net_forward.3} parent=5 // pred_check
        %p2514 = pneg %p2513
      $region83: #{shallow_net_forward.3} parent=5 // pred_check_branch
        %2516 = sbr.rel (%p2514) target = $region85
      $region84: #{shallow_net_forward.3} parent=5 // pred_region
        %s2517 = ssub.s32 %s9, 2
        // Predicated region
        $region86: #{shallow_net_forward.3} parent=84 // pred_check
          %p2518 = pneg %p106
        $region87: #{shallow_net_forward.3} parent=84 // pred_check_branch
          %2520 = sbr.rel (%p2518) target = $region89
        $region88: #{shallow_net_forward.3} parent=84 // pred_region
          %s2521 = sand.u32 %s91, 1
          %s2522 = sand.u32 %s91, 1
          %s2523 = smul.addr %s2522, 48
          %s2524 = scalar_lea.vmem [#allocation3], %s2523
        $region89: #{shallow_net_forward.3} parent=84 // pred_fallthru
          _
      $region85: #{shallow_net_forward.3} parent=5 // pred_fallthru
        _
    $region6: #{shallow_net_forward.3} parent=1 // loop_footer
      %s13 = sadd.s32 1, %s9
    $region7: #{shallow_net_forward.3} parent=1 // loop_footer_branch
      %8 = sbr.rel target = $region3
    $region8: #{shallow_net_forward.3} parent=1 // loop_exit
      _

// kernel: shallow_net_forward.4
$region0: #{shallow_net_forward.4}
  #allocation0 [shape = 'u32[]', space=smem, size = 0x4, offset = 0x4, fixed_abs, tag = 'smem constant byte address 0x4 - core index']
  #allocation1 [shape = 'u32[144,128]{1,0:T(1,128)}', space=vmem, size = 0x12000, scoped, tag = 'internal scratch']
  %s0 = inlined_call_operand.vmem [shape: bf16[320,800], index: 0, kind: input, shape index: {}]
  %s1 = inlined_call_operand.vmem [shape: bf16[800,768], index: 1, kind: input, shape index: {}]
  %s2 = inlined_call_operand.vmem [shape: f32[16,1], index: 2, kind: input, shape index: {}]
  %s3 = inlined_call_operand.vmem [shape: f32[16,768], index: 3, kind: output, shape index: {}]
  %s4 = sld [smem:[#allocation0]]
  $region90: #{shallow_net_forward.4} parent=0
    _
  %s6 = ssub.s32 1, %s4
  %s7 = scalar_select 0, %s6, %s4
  $region1: #{shallow_net_forward.4} parent=0
    #allocation2 [shape = 'u8[1228800]{0}', space=vmem, size = 0x12c000, scoped, tag = 'input window, operand 1']
    #allocation3 [shape = 'u8[49152]{0}', space=vmem, size = 0xc000, scoped, tag = 'output window, operand 0']
    loop: start=0, step=1, limit=4
    $region2: #{shallow_net_forward.4} parent=1 // loop_pre_header
      _
    $region3: #{shallow_net_forward.4} parent=1 // loop_header
      %s9 = sphi 0, %s13
      %p10 = scmp.ge.s32.totalorder %s9, 4
      %s17 = sphi 0, %s17
      %s19 = sphi 0, %s17
      %s20 = sphi 0, %s19
      %s34 = sphi 0, %s20
      %s40 = sphi 0, %s42
      %s43 = sphi 0, %s40
      %s44 = sphi 0, %s43
      %s60 = sphi 0, %s44
      %s64 = sphi 0, %s64
      %s66 = sphi 0, %s64
      %s67 = sphi 0, %s66
      %s81 = sphi 0, %s67
      %s87 = sphi 0, %s89
      %s90 = sphi 0, %s87
      %s91 = sphi 0, %s90
      %s107 = sphi 0, %s91
    $region4: #{shallow_net_forward.4} parent=1 // loop_header_branch
      %12 = sbr.rel (%p10) target = $region8
    $region5: #{shallow_net_forward.4} parent=1 // loop_body
      %s14 = ssub.s32 %s9, 1
      %s15 = ssub.s32 %s9, 2
      %s16 = sadd.s32 %s9, 1
      %s18 = sadd.s32 %s17, 1
      %p21 = scmp.eq.s32.totalorder %s9, 1
      %p22 = scmp.ne.s32.totalorder %s17, %s19
      %p23 = scmp.eq.s32.totalorder %s9, 0
      %p24 = por %p22, %p23
      %p25 = scmp.ne.s32.totalorder %s17, %s19
      %p26 = scmp.eq.s32.totalorder %s14, 1
      %p27 = por %p25, %p26
      %p28 = scmp.ne.s32.totalorder %s19, %s20
      %p29 = scmp.eq.s32.totalorder %s14, 0
      %p30 = por %p28, %p29
      %p31 = scmp.ne.s32.totalorder %s19, %s20
      %p32 = scmp.eq.s32.totalorder %s15, 1
      %p33 = por %p31, %p32
      %p35 = scmp.ne.s32.totalorder %s20, %s34
      %p36 = scmp.eq.s32.totalorder %s15, 0
      %p37 = por %p35, %p36
      %s38 = ssub.s32 %s9, %s16
      %p39 = scmp.eq.s32.totalorder %s38, 0
      %s41 = sadd.s32 %s40, 1
      %s42 = scalar_select %p39, %s40, %s41
      %p45 = pneg %p39
      %p46 = scmp.eq.s32.totalorder %s9, 1
      %p47 = por %p45, %p46
      %p48 = scmp.ne.s32.totalorder %s40, %s43
      %p49 = scmp.eq.s32.totalorder %s9, 0
      %p50 = por %p48, %p49
      %p51 = scmp.ne.s32.totalorder %s40, %s43
      %p52 = scmp.eq.s32.totalorder %s14, 1
      %p53 = por %p51, %p52
      %p54 = scmp.ne.s32.totalorder %s43, %s44
      %p55 = scmp.eq.s32.totalorder %s14, 0
      %p56 = por %p54, %p55
      %p57 = scmp.ne.s32.totalorder %s43, %s44
      %p58 = scmp.eq.s32.totalorder %s15, 1
      %p59 = por %p57, %p58
      %p61 = scmp.ne.s32.totalorder %s44, %s60
      %p62 = scmp.eq.s32.totalorder %s15, 0
      %p63 = por %p61, %p62
      %s65 = sadd.s32 %s64, 1
      %p68 = scmp.eq.s32.totalorder %s9, 1
      %p69 = scmp.ne.s32.totalorder %s64, %s66
      %p70 = scmp.eq.s32.totalorder %s9, 0
      %p71 = por %p69, %p70
      %p72 = scmp.ne.s32.totalorder %s64, %s66
      %p73 = scmp.eq.s32.totalorder %s14, 1
      %p74 = por %p72, %p73
      %p75 = scmp.ne.s32.totalorder %s66, %s67
      %p76 = scmp.eq.s32.totalorder %s14, 0
      %p77 = por %p75, %p76
      %p78 = scmp.ne.s32.totalorder %s66, %s67
      %p79 = scmp.eq.s32.totalorder %s15, 1
      %p80 = por %p78, %p79
      %p82 = scmp.ne.s32.totalorder %s67, %s81
      %p83 = scmp.eq.s32.totalorder %s15, 0
      %p84 = por %p82, %p83
      %s85 = ssub.s32 %s9, %s16
      %p86 = scmp.eq.s32.totalorder %s85, 0
      %s88 = sadd.s32 %s87, 1
      %s89 = scalar_select %p86, %s87, %s88
      %p92 = pneg %p86
      %p93 = scmp.eq.s32.totalorder %s9, 1
      %p94 = por %p92, %p93
      %p95 = scmp.ne.s32.totalorder %s87, %s90
      %p96 = scmp.eq.s32.totalorder %s9, 0
      %p97 = por %p95, %p96
      %p98 = scmp.ne.s32.totalorder %s87, %s90
      %p99 = scmp.eq.s32.totalorder %s14, 1
      %p100 = por %p98, %p99
      %p101 = scmp.ne.s32.totalorder %s90, %s91
      %p102 = scmp.eq.s32.totalorder %s14, 0
      %p103 = por %p101, %p102
      %p104 = scmp.ne.s32.totalorder %s90, %s91
      %p105 = scmp.eq.s32.totalorder %s15, 1
      %p106 = por %p104, %p105
      %p108 = scmp.ne.s32.totalorder %s91, %s107
      %p109 = scmp.eq.s32.totalorder %s15, 0
      %p110 = por %p108, %p109
      %p111 = scmp.le.s32.totalorder 1, %s9
      %p112 = scmp.lt.s32.totalorder %s9, 3
      %p113 = pnand %p111, %p112
      %p114 = pneg %p113
      // Predicated region
      $region9: #{shallow_net_forward.4} parent=5 // pred_check
        _
      $region10: #{shallow_net_forward.4} parent=5 // pred_check_branch
        %116 = sbr.rel (%p113) target = $region12
      $region11: #{shallow_net_forward.4} parent=5 // pred_region
        %s117 = ssub.s32 %s9, 1
        // Predicated region
        $region13: #{shallow_net_forward.4} parent=11 // pred_check
          %p118 = pneg %p30
        $region14: #{shallow_net_forward.4} parent=11 // pred_check_branch
          %120 = sbr.rel (%p118) target = $region16
        $region15: #{shallow_net_forward.4} parent=11 // pred_region
          _
        $region16: #{shallow_net_forward.4} parent=11 // pred_fallthru
          _
        // Predicated region
        $region17: #{shallow_net_forward.4} parent=11 // pred_check
          %p121 = pneg %p77
        $region18: #{shallow_net_forward.4} parent=11 // pred_check_branch
          %123 = sbr.rel (%p121) target = $region20
        $region19: #{shallow_net_forward.4} parent=11 // pred_region
          _
        $region20: #{shallow_net_forward.4} parent=11 // pred_fallthru
          _
      $region12: #{shallow_net_forward.4} parent=5 // pred_fallthru
        _
      %p124 = scmp.lt.s32.totalorder %s9, 2
      // Predicated region
      $region21: #{shallow_net_forward.4} parent=5 // pred_check
        %p125 = pneg %p124
      $region22: #{shallow_net_forward.4} parent=5 // pred_check_branch
        %127 = sbr.rel (%p125) target = $region24
      $region23: #{shallow_net_forward.4} parent=5 // pred_region
        // Predicated region
        $region25: #{shallow_net_forward.4} parent=23 // pred_check
          %p128 = pneg %p50
        $region26: #{shallow_net_forward.4} parent=23 // pred_check_branch
          %130 = sbr.rel (%p128) target = $region28
        $region27: #{shallow_net_forward.4} parent=23 // pred_region
          %s131 = sand.u32 %s40, 1
          %s132 = sand.u32 %s40, 1
          %s133 = smul.addr %s132, 1200
          %s134 = scalar_lea.vmem [#allocation2], %s133
          %s135 = smul.u32 3, %s9
          %s136 = smul.addr %s135, 4
          %s137 = scalar_lea.vmem %s1, %s136
          // Predicated region
          $region29: #{shallow_net_forward.4} parent=27 // pred_check
            _
          $region30: #{shallow_net_forward.4} parent=27 // pred_check_branch
            %139 = sbr.rel (0) target = $region32
          $region31: #{shallow_net_forward.4} parent=27 // pred_region
            // Predicated region
            $region33: #{shallow_net_forward.4} parent=31 // pred_check
              _
            $region34: #{shallow_net_forward.4} parent=31 // pred_check_branch
              %141 = sbr.rel (0) target = $region36
            $region35: #{shallow_net_forward.4} parent=31 // pred_region
              %s142 = scalar_lea.vmem %s137, 8
              %s143 = scalar_lea.vmem %s134, 8 [#allocation2]
              loop: start=0, step=1, limit=1
              $region37: #{shallow_net_forward.4} parent=35 // loop_pre_header
                _
              $region38: #{shallow_net_forward.4} parent=35 // loop_header
                %s145 = sphi 0, %s149
                %p146 = scmp.ge.s32.totalorder %s145, 1
                %s150 = sphi %s137, %s137
                %s151 = sphi %s134, %s134
              $region39: #{shallow_net_forward.4} parent=35 // loop_header_branch
                %148 = sbr.rel (%p146) target = $region43
              $region40: #{shallow_net_forward.4} parent=35 // loop_body
                %v152 = vld [vmem:[%s150] sm:$0xff]
                %153 = vst [vmem:[%s151] sm:$0xff] %v152
                %v154 = vld [vmem:[%s150 + $0x18] sm:$0xff]
                %155 = vst [vmem:[%s151 + $0xc] sm:$0xff] %v154
                %v156 = vld [vmem:[%s150 + $0x30] sm:$0xff]
                %157 = vst [vmem:[%s151 + $0x18] sm:$0xff] %v156
                %v158 = vld [vmem:[%s150 + $0x48] sm:$0xff]
                %159 = vst [vmem:[%s151 + $0x24] sm:$0xff] %v158
                %v160 = vld [vmem:[%s150 + $0x60] sm:$0xff]
                %161 = vst [vmem:[%s151 + $0x30] sm:$0xff] %v160
                %v162 = vld [vmem:[%s150 + $0x78] sm:$0xff]
                %163 = vst [vmem:[%s151 + $0x3c] sm:$0xff] %v162
                %v164 = vld [vmem:[%s150 + $0x90] sm:$0xff]
                %165 = vst [vmem:[%s151 + $0x48] sm:$0xff] %v164
                %v166 = vld [vmem:[%s150 + $0xa8] sm:$0xff]
                %167 = vst [vmem:[%s151 + $0x54] sm:$0xff] %v166
                %v168 = vld [vmem:[%s150 + $0xc0] sm:$0xff]
                %169 = vst [vmem:[%s151 + $0x60] sm:$0xff] %v168
                %v170 = vld [vmem:[%s150 + $0xd8] sm:$0xff]
                %171 = vst [vmem:[%s151 + $0x6c] sm:$0xff] %v170
                %v172 = vld [vmem:[%s150 + $0xf0] sm:$0xff]
                %173 = vst [vmem:[%s151 + $0x78] sm:$0xff] %v172
                %v174 = vld [vmem:[%s150 + $0x108] sm:$0xff]
                %175 = vst [vmem:[%s151 + $0x84] sm:$0xff] %v174
                %v176 = vld [vmem:[%s150 + $0x120] sm:$0xff]
                %177 = vst [vmem:[%s151 + $0x90] sm:$0xff] %v176
                %v178 = vld [vmem:[%s150 + $0x138] sm:$0xff]
                %179 = vst [vmem:[%s151 + $0x9c] sm:$0xff] %v178
                %v180 = vld [vmem:[%s150 + $0x150] sm:$0xff]
                %181 = vst [vmem:[%s151 + $0xa8] sm:$0xff] %v180
                %v182 = vld [vmem:[%s150 + $0x168] sm:$0xff]
                %183 = vst [vmem:[%s151 + $0xb4] sm:$0xff] %v182
                %v184 = vld [vmem:[%s150 + $0x180] sm:$0xff]
                %185 = vst [vmem:[%s151 + $0xc0] sm:$0xff] %v184
                %v186 = vld [vmem:[%s150 + $0x198] sm:$0xff]
                %187 = vst [vmem:[%s151 + $0xcc] sm:$0xff] %v186
                %v188 = vld [vmem:[%s150 + $0x1b0] sm:$0xff]
                %189 = vst [vmem:[%s151 + $0xd8] sm:$0xff] %v188
                %v190 = vld [vmem:[%s150 + $0x1c8] sm:$0xff]
                %191 = vst [vmem:[%s151 + $0xe4] sm:$0xff] %v190
                %v192 = vld [vmem:[%s150 + $0x1e0] sm:$0xff]
                %193 = vst [vmem:[%s151 + $0xf0] sm:$0xff] %v192
                %v194 = vld [vmem:[%s150 + $0x1f8] sm:$0xff]
                %195 = vst [vmem:[%s151 + $0xfc] sm:$0xff] %v194
                %v196 = vld [vmem:[%s150 + $0x210] sm:$0xff]
                %197 = vst [vmem:[%s151 + $0x108] sm:$0xff] %v196
                %v198 = vld [vmem:[%s150 + $0x228] sm:$0xff]
                %199 = vst [vmem:[%s151 + $0x114] sm:$0xff] %v198
                %v200 = vld [vmem:[%s150 + $0x240] sm:$0xff]
                %201 = vst [vmem:[%s151 + $0x120] sm:$0xff] %v200
                %v202 = vld [vmem:[%s150 + $0x258] sm:$0xff]
                %203 = vst [vmem:[%s151 + $0x12c] sm:$0xff] %v202
                %v204 = vld [vmem:[%s150 + $0x270] sm:$0xff]
                %205 = vst [vmem:[%s151 + $0x138] sm:$0xff] %v204
                %v206 = vld [vmem:[%s150 + $0x288] sm:$0xff]
                %207 = vst [vmem:[%s151 + $0x144] sm:$0xff] %v206
                %v208 = vld [vmem:[%s150 + $0x2a0] sm:$0xff]
                %209 = vst [vmem:[%s151 + $0x150] sm:$0xff] %v208
                %v210 = vld [vmem:[%s150 + $0x2b8] sm:$0xff]
                %211 = vst [vmem:[%s151 + $0x15c] sm:$0xff] %v210
                %v212 = vld [vmem:[%s150 + $0x2d0] sm:$0xff]
                %213 = vst [vmem:[%s151 + $0x168] sm:$0xff] %v212
                %v214 = vld [vmem:[%s150 + $0x2e8] sm:$0xff]
                %215 = vst [vmem:[%s151 + $0x174] sm:$0xff] %v214
                %v216 = vld [vmem:[%s150 + $0x300] sm:$0xff]
                %217 = vst [vmem:[%s151 + $0x180] sm:$0xff] %v216
                %v218 = vld [vmem:[%s150 + $0x318] sm:$0xff]
                %219 = vst [vmem:[%s151 + $0x18c] sm:$0xff] %v218
                %v220 = vld [vmem:[%s150 + $0x330] sm:$0xff]
                %221 = vst [vmem:[%s151 + $0x198] sm:$0xff] %v220
                %v222 = vld [vmem:[%s150 + $0x348] sm:$0xff]
                %223 = vst [vmem:[%s151 + $0x1a4] sm:$0xff] %v222
                %v224 = vld [vmem:[%s150 + $0x360] sm:$0xff]
                %225 = vst [vmem:[%s151 + $0x1b0] sm:$0xff] %v224
                %v226 = vld [vmem:[%s150 + $0x378] sm:$0xff]
                %227 = vst [vmem:[%s151 + $0x1bc] sm:$0xff] %v226
                %v228 = vld [vmem:[%s150 + $0x390] sm:$0xff]
                %229 = vst [vmem:[%s151 + $0x1c8] sm:$0xff] %v228
                %v230 = vld [vmem:[%s150 + $0x3a8] sm:$0xff]
                %231 = vst [vmem:[%s151 + $0x1d4] sm:$0xff] %v230
                %v232 = vld [vmem:[%s150 + $0x3c0] sm:$0xff]
                %233 = vst [vmem:[%s151 + $0x1e0] sm:$0xff] %v232
                %v234 = vld [vmem:[%s150 + $0x3d8] sm:$0xff]
                %235 = vst [vmem:[%s151 + $0x1ec] sm:$0xff] %v234
                %v236 = vld [vmem:[%s150 + $0x3f0] sm:$0xff]
                %237 = vst [vmem:[%s151 + $0x1f8] sm:$0xff] %v236
                %v238 = vld [vmem:[%s150 + $0x408] sm:$0xff]
                %239 = vst [vmem:[%s151 + $0x204] sm:$0xff] %v238
                %v240 = vld [vmem:[%s150 + $0x420] sm:$0xff]
                %241 = vst [vmem:[%s151 + $0x210] sm:$0xff] %v240
                %v242 = vld [vmem:[%s150 + $0x438] sm:$0xff]
                %243 = vst [vmem:[%s151 + $0x21c] sm:$0xff] %v242
                %v244 = vld [vmem:[%s150 + $0x450] sm:$0xff]
                %245 = vst [vmem:[%s151 + $0x228] sm:$0xff] %v244
                %v246 = vld [vmem:[%s150 + $0x468] sm:$0xff]
                %247 = vst [vmem:[%s151 + $0x234] sm:$0xff] %v246
                %v248 = vld [vmem:[%s150 + $0x480] sm:$0xff]
                %249 = vst [vmem:[%s151 + $0x240] sm:$0xff] %v248
                %v250 = vld [vmem:[%s150 + $0x498] sm:$0xff]
                %251 = vst [vmem:[%s151 + $0x24c] sm:$0xff] %v250
                %v252 = vld [vmem:[%s150 + $0x4b0] sm:$0xff]
                %253 = vst [vmem:[%s151 + $0x258] sm:$0xff] %v252
                %v254 = vld [vmem:[%s150 + $0x4c8] sm:$0xff]
                %255 = vst [vmem:[%s151 + $0x264] sm:$0xff] %v254
                %v256 = vld [vmem:[%s150 + $0x4e0] sm:$0xff]
                %257 = vst [vmem:[%s151 + $0x270] sm:$0xff] %v256
                %v258 = vld [vmem:[%s150 + $0x4f8] sm:$0xff]
                %259 = vst [vmem:[%s151 + $0x27c] sm:$0xff] %v258
                %v260 = vld [vmem:[%s150 + $0x510] sm:$0xff]
                %261 = vst [vmem:[%s151 + $0x288] sm:$0xff] %v260
                %v262 = vld [vmem:[%s150 + $0x528] sm:$0xff]
                %263 = vst [vmem:[%s151 + $0x294] sm:$0xff] %v262
                %v264 = vld [vmem:[%s150 + $0x540] sm:$0xff]
                %265 = vst [vmem:[%s151 + $0x2a0] sm:$0xff] %v264
                %v266 = vld [vmem:[%s150 + $0x558] sm:$0xff]
                %267 = vst [vmem:[%s151 + $0x2ac] sm:$0xff] %v266
                %v268 = vld [vmem:[%s150 + $0x570] sm:$0xff]
                %269 = vst [vmem:[%s151 + $0x2b8] sm:$0xff] %v268
                %v270 = vld [vmem:[%s150 + $0x588] sm:$0xff]
                %271 = vst [vmem:[%s151 + $0x2c4] sm:$0xff] %v270
                %v272 = vld [vmem:[%s150 + $0x5a0] sm:$0xff]
                %273 = vst [vmem:[%s151 + $0x2d0] sm:$0xff] %v272
                %v274 = vld [vmem:[%s150 + $0x5b8] sm:$0xff]
                %275 = vst [vmem:[%s151 + $0x2dc] sm:$0xff] %v274
                %v276 = vld [vmem:[%s150 + $0x5d0] sm:$0xff]
                %277 = vst [vmem:[%s151 + $0x2e8] sm:$0xff] %v276
                %v278 = vld [vmem:[%s150 + $0x5e8] sm:$0xff]
                %279 = vst [vmem:[%s151 + $0x2f4] sm:$0xff] %v278
                %v280 = vld [vmem:[%s150 + $0x600] sm:$0xff]
                %281 = vst [vmem:[%s151 + $0x300] sm:$0xff] %v280
                %v282 = vld [vmem:[%s150 + $0x618] sm:$0xff]
                %283 = vst [vmem:[%s151 + $0x30c] sm:$0xff] %v282
                %v284 = vld [vmem:[%s150 + $0x630] sm:$0xff]
                %285 = vst [vmem:[%s151 + $0x318] sm:$0xff] %v284
                %v286 = vld [vmem:[%s150 + $0x648] sm:$0xff]
                %287 = vst [vmem:[%s151 + $0x324] sm:$0xff] %v286
                %v288 = vld [vmem:[%s150 + $0x660] sm:$0xff]
                %289 = vst [vmem:[%s151 + $0x330] sm:$0xff] %v288
                %v290 = vld [vmem:[%s150 + $0x678] sm:$0xff]
                %291 = vst [vmem:[%s151 + $0x33c] sm:$0xff] %v290
                %v292 = vld [vmem:[%s150 + $0x690] sm:$0xff]
                %293 = vst [vmem:[%s151 + $0x348] sm:$0xff] %v292
                %v294 = vld [vmem:[%s150 + $0x6a8] sm:$0xff]
                %295 = vst [vmem:[%s151 + $0x354] sm:$0xff] %v294
                %v296 = vld [vmem:[%s150 + $0x6c0] sm:$0xff]
                %297 = vst [vmem:[%s151 + $0x360] sm:$0xff] %v296
                %v298 = vld [vmem:[%s150 + $0x6d8] sm:$0xff]
                %299 = vst [vmem:[%s151 + $0x36c] sm:$0xff] %v298
                %v300 = vld [vmem:[%s150 + $0x6f0] sm:$0xff]
                %301 = vst [vmem:[%s151 + $0x378] sm:$0xff] %v300
                %v302 = vld [vmem:[%s150 + $0x708] sm:$0xff]
                %303 = vst [vmem:[%s151 + $0x384] sm:$0xff] %v302
                %v304 = vld [vmem:[%s150 + $0x720] sm:$0xff]
                %305 = vst [vmem:[%s151 + $0x390] sm:$0xff] %v304
                %v306 = vld [vmem:[%s150 + $0x738] sm:$0xff]
                %307 = vst [vmem:[%s151 + $0x39c] sm:$0xff] %v306
                %v308 = vld [vmem:[%s150 + $0x750] sm:$0xff]
                %309 = vst [vmem:[%s151 + $0x3a8] sm:$0xff] %v308
                %v310 = vld [vmem:[%s150 + $0x768] sm:$0xff]
                %311 = vst [vmem:[%s151 + $0x3b4] sm:$0xff] %v310
                %v312 = vld [vmem:[%s150 + $0x780] sm:$0xff]
                %313 = vst [vmem:[%s151 + $0x3c0] sm:$0xff] %v312
                %v314 = vld [vmem:[%s150 + $0x798] sm:$0xff]
                %315 = vst [vmem:[%s151 + $0x3cc] sm:$0xff] %v314
                %v316 = vld [vmem:[%s150 + $0x7b0] sm:$0xff]
                %317 = vst [vmem:[%s151 + $0x3d8] sm:$0xff] %v316
                %v318 = vld [vmem:[%s150 + $0x7c8] sm:$0xff]
                %319 = vst [vmem:[%s151 + $0x3e4] sm:$0xff] %v318
                %v320 = vld [vmem:[%s150 + $0x7e0] sm:$0xff]
                %321 = vst [vmem:[%s151 + $0x3f0] sm:$0xff] %v320
                %v322 = vld [vmem:[%s150 + $0x7f8] sm:$0xff]
                %323 = vst [vmem:[%s151 + $0x3fc] sm:$0xff] %v322
                %v324 = vld [vmem:[%s150 + $0x810] sm:$0xff]
                %325 = vst [vmem:[%s151 + $0x408] sm:$0xff] %v324
                %v326 = vld [vmem:[%s150 + $0x828] sm:$0xff]
                %327 = vst [vmem:[%s151 + $0x414] sm:$0xff] %v326
                %v328 = vld [vmem:[%s150 + $0x840] sm:$0xff]
                %329 = vst [vmem:[%s151 + $0x420] sm:$0xff] %v328
                %v330 = vld [vmem:[%s150 + $0x858] sm:$0xff]
                %331 = vst [vmem:[%s151 + $0x42c] sm:$0xff] %v330
                %v332 = vld [vmem:[%s150 + $0x870] sm:$0xff]
                %333 = vst [vmem:[%s151 + $0x438] sm:$0xff] %v332
                %v334 = vld [vmem:[%s150 + $0x888] sm:$0xff]
                %335 = vst [vmem:[%s151 + $0x444] sm:$0xff] %v334
                %v336 = vld [vmem:[%s150 + $0x8a0] sm:$0xff]
                %337 = vst [vmem:[%s151 + $0x450] sm:$0xff] %v336
                %v338 = vld [vmem:[%s150 + $0x8b8] sm:$0xff]
                %339 = vst [vmem:[%s151 + $0x45c] sm:$0xff] %v338
                %v340 = vld [vmem:[%s150 + $0x8d0] sm:$0xff]
                %341 = vst [vmem:[%s151 + $0x468] sm:$0xff] %v340
                %v342 = vld [vmem:[%s150 + $0x8e8] sm:$0xff]
                %343 = vst [vmem:[%s151 + $0x474] sm:$0xff] %v342
                %v344 = vld [vmem:[%s150 + $0x900] sm:$0xff]
                %345 = vst [vmem:[%s151 + $0x480] sm:$0xff] %v344
                %v346 = vld [vmem:[%s150 + $0x918] sm:$0xff]
                %347 = vst [vmem:[%s151 + $0x48c] sm:$0xff] %v346
                %v348 = vld [vmem:[%s150 + $0x930] sm:$0xff]
                %349 = vst [vmem:[%s151 + $0x498] sm:$0xff] %v348
                %v350 = vld [vmem:[%s150 + $0x948] sm:$0xff]
                %351 = vst [vmem:[%s151 + $0x4a4] sm:$0xff] %v350
              $region41: #{shallow_net_forward.4} parent=35 // loop_footer
                %s149 = sadd.s32 1, %s145
              $region42: #{shallow_net_forward.4} parent=35 // loop_footer_branch
                %144 = sbr.rel target = $region38
              $region43: #{shallow_net_forward.4} parent=35 // loop_exit
                _
              loop: start=0, step=1, limit=1
              $region44: #{shallow_net_forward.4} parent=35 // loop_pre_header
                _
              $region45: #{shallow_net_forward.4} parent=35 // loop_header
                %s354 = sphi 0, %s358
                %p355 = scmp.ge.s32.totalorder %s354, 1
                %s359 = sphi %s142, %s142
                %s360 = sphi %s143, %s143
              $region46: #{shallow_net_forward.4} parent=35 // loop_header_branch
                %357 = sbr.rel (%p355) target = $region50
              $region47: #{shallow_net_forward.4} parent=35 // loop_body
                %v361 = vld [vmem:[%s359] sm:$0xf]
                %362 = vst [vmem:[%s360] sm:$0xf] %v361
                %v363 = vld [vmem:[%s359 + $0x18] sm:$0xf]
                %364 = vst [vmem:[%s360 + $0xc] sm:$0xf] %v363
                %v365 = vld [vmem:[%s359 + $0x30] sm:$0xf]
                %366 = vst [vmem:[%s360 + $0x18] sm:$0xf] %v365
                %v367 = vld [vmem:[%s359 + $0x48] sm:$0xf]
                %368 = vst [vmem:[%s360 + $0x24] sm:$0xf] %v367
                %v369 = vld [vmem:[%s359 + $0x60] sm:$0xf]
                %370 = vst [vmem:[%s360 + $0x30] sm:$0xf] %v369
                %v371 = vld [vmem:[%s359 + $0x78] sm:$0xf]
                %372 = vst [vmem:[%s360 + $0x3c] sm:$0xf] %v371
                %v373 = vld [vmem:[%s359 + $0x90] sm:$0xf]
                %374 = vst [vmem:[%s360 + $0x48] sm:$0xf] %v373
                %v375 = vld [vmem:[%s359 + $0xa8] sm:$0xf]
                %376 = vst [vmem:[%s360 + $0x54] sm:$0xf] %v375
                %v377 = vld [vmem:[%s359 + $0xc0] sm:$0xf]
                %378 = vst [vmem:[%s360 + $0x60] sm:$0xf] %v377
                %v379 = vld [vmem:[%s359 + $0xd8] sm:$0xf]
                %380 = vst [vmem:[%s360 + $0x6c] sm:$0xf] %v379
                %v381 = vld [vmem:[%s359 + $0xf0] sm:$0xf]
                %382 = vst [vmem:[%s360 + $0x78] sm:$0xf] %v381
                %v383 = vld [vmem:[%s359 + $0x108] sm:$0xf]
                %384 = vst [vmem:[%s360 + $0x84] sm:$0xf] %v383
                %v385 = vld [vmem:[%s359 + $0x120] sm:$0xf]
                %386 = vst [vmem:[%s360 + $0x90] sm:$0xf] %v385
                %v387 = vld [vmem:[%s359 + $0x138] sm:$0xf]
                %388 = vst [vmem:[%s360 + $0x9c] sm:$0xf] %v387
                %v389 = vld [vmem:[%s359 + $0x150] sm:$0xf]
                %390 = vst [vmem:[%s360 + $0xa8] sm:$0xf] %v389
                %v391 = vld [vmem:[%s359 + $0x168] sm:$0xf]
                %392 = vst [vmem:[%s360 + $0xb4] sm:$0xf] %v391
                %v393 = vld [vmem:[%s359 + $0x180] sm:$0xf]
                %394 = vst [vmem:[%s360 + $0xc0] sm:$0xf] %v393
                %v395 = vld [vmem:[%s359 + $0x198] sm:$0xf]
                %396 = vst [vmem:[%s360 + $0xcc] sm:$0xf] %v395
                %v397 = vld [vmem:[%s359 + $0x1b0] sm:$0xf]
                %398 = vst [vmem:[%s360 + $0xd8] sm:$0xf] %v397
                %v399 = vld [vmem:[%s359 + $0x1c8] sm:$0xf]
                %400 = vst [vmem:[%s360 + $0xe4] sm:$0xf] %v399
                %v401 = vld [vmem:[%s359 + $0x1e0] sm:$0xf]
                %402 = vst [vmem:[%s360 + $0xf0] sm:$0xf] %v401
                %v403 = vld [vmem:[%s359 + $0x1f8] sm:$0xf]
                %404 = vst [vmem:[%s360 + $0xfc] sm:$0xf] %v403
                %v405 = vld [vmem:[%s359 + $0x210] sm:$0xf]
                %406 = vst [vmem:[%s360 + $0x108] sm:$0xf] %v405
                %v407 = vld [vmem:[%s359 + $0x228] sm:$0xf]
                %408 = vst [vmem:[%s360 + $0x114] sm:$0xf] %v407
                %v409 = vld [vmem:[%s359 + $0x240] sm:$0xf]
                %410 = vst [vmem:[%s360 + $0x120] sm:$0xf] %v409
                %v411 = vld [vmem:[%s359 + $0x258] sm:$0xf]
                %412 = vst [vmem:[%s360 + $0x12c] sm:$0xf] %v411
                %v413 = vld [vmem:[%s359 + $0x270] sm:$0xf]
                %414 = vst [vmem:[%s360 + $0x138] sm:$0xf] %v413
                %v415 = vld [vmem:[%s359 + $0x288] sm:$0xf]
                %416 = vst [vmem:[%s360 + $0x144] sm:$0xf] %v415
                %v417 = vld [vmem:[%s359 + $0x2a0] sm:$0xf]
                %418 = vst [vmem:[%s360 + $0x150] sm:$0xf] %v417
                %v419 = vld [vmem:[%s359 + $0x2b8] sm:$0xf]
                %420 = vst [vmem:[%s360 + $0x15c] sm:$0xf] %v419
                %v421 = vld [vmem:[%s359 + $0x2d0] sm:$0xf]
                %422 = vst [vmem:[%s360 + $0x168] sm:$0xf] %v421
                %v423 = vld [vmem:[%s359 + $0x2e8] sm:$0xf]
                %424 = vst [vmem:[%s360 + $0x174] sm:$0xf] %v423
                %v425 = vld [vmem:[%s359 + $0x300] sm:$0xf]
                %426 = vst [vmem:[%s360 + $0x180] sm:$0xf] %v425
                %v427 = vld [vmem:[%s359 + $0x318] sm:$0xf]
                %428 = vst [vmem:[%s360 + $0x18c] sm:$0xf] %v427
                %v429 = vld [vmem:[%s359 + $0x330] sm:$0xf]
                %430 = vst [vmem:[%s360 + $0x198] sm:$0xf] %v429
                %v431 = vld [vmem:[%s359 + $0x348] sm:$0xf]
                %432 = vst [vmem:[%s360 + $0x1a4] sm:$0xf] %v431
                %v433 = vld [vmem:[%s359 + $0x360] sm:$0xf]
                %434 = vst [vmem:[%s360 + $0x1b0] sm:$0xf] %v433
                %v435 = vld [vmem:[%s359 + $0x378] sm:$0xf]
                %436 = vst [vmem:[%s360 + $0x1bc] sm:$0xf] %v435
                %v437 = vld [vmem:[%s359 + $0x390] sm:$0xf]
                %438 = vst [vmem:[%s360 + $0x1c8] sm:$0xf] %v437
                %v439 = vld [vmem:[%s359 + $0x3a8] sm:$0xf]
                %440 = vst [vmem:[%s360 + $0x1d4] sm:$0xf] %v439
                %v441 = vld [vmem:[%s359 + $0x3c0] sm:$0xf]
                %442 = vst [vmem:[%s360 + $0x1e0] sm:$0xf] %v441
                %v443 = vld [vmem:[%s359 + $0x3d8] sm:$0xf]
                %444 = vst [vmem:[%s360 + $0x1ec] sm:$0xf] %v443
                %v445 = vld [vmem:[%s359 + $0x3f0] sm:$0xf]
                %446 = vst [vmem:[%s360 + $0x1f8] sm:$0xf] %v445
                %v447 = vld [vmem:[%s359 + $0x408] sm:$0xf]
                %448 = vst [vmem:[%s360 + $0x204] sm:$0xf] %v447
                %v449 = vld [vmem:[%s359 + $0x420] sm:$0xf]
                %450 = vst [vmem:[%s360 + $0x210] sm:$0xf] %v449
                %v451 = vld [vmem:[%s359 + $0x438] sm:$0xf]
                %452 = vst [vmem:[%s360 + $0x21c] sm:$0xf] %v451
                %v453 = vld [vmem:[%s359 + $0x450] sm:$0xf]
                %454 = vst [vmem:[%s360 + $0x228] sm:$0xf] %v453
                %v455 = vld [vmem:[%s359 + $0x468] sm:$0xf]
                %456 = vst [vmem:[%s360 + $0x234] sm:$0xf] %v455
                %v457 = vld [vmem:[%s359 + $0x480] sm:$0xf]
                %458 = vst [vmem:[%s360 + $0x240] sm:$0xf] %v457
                %v459 = vld [vmem:[%s359 + $0x498] sm:$0xf]
                %460 = vst [vmem:[%s360 + $0x24c] sm:$0xf] %v459
                %v461 = vld [vmem:[%s359 + $0x4b0] sm:$0xf]
                %462 = vst [vmem:[%s360 + $0x258] sm:$0xf] %v461
                %v463 = vld [vmem:[%s359 + $0x4c8] sm:$0xf]
                %464 = vst [vmem:[%s360 + $0x264] sm:$0xf] %v463
                %v465 = vld [vmem:[%s359 + $0x4e0] sm:$0xf]
                %466 = vst [vmem:[%s360 + $0x270] sm:$0xf] %v465
                %v467 = vld [vmem:[%s359 + $0x4f8] sm:$0xf]
                %468 = vst [vmem:[%s360 + $0x27c] sm:$0xf] %v467
                %v469 = vld [vmem:[%s359 + $0x510] sm:$0xf]
                %470 = vst [vmem:[%s360 + $0x288] sm:$0xf] %v469
                %v471 = vld [vmem:[%s359 + $0x528] sm:$0xf]
                %472 = vst [vmem:[%s360 + $0x294] sm:$0xf] %v471
                %v473 = vld [vmem:[%s359 + $0x540] sm:$0xf]
                %474 = vst [vmem:[%s360 + $0x2a0] sm:$0xf] %v473
                %v475 = vld [vmem:[%s359 + $0x558] sm:$0xf]
                %476 = vst [vmem:[%s360 + $0x2ac] sm:$0xf] %v475
                %v477 = vld [vmem:[%s359 + $0x570] sm:$0xf]
                %478 = vst [vmem:[%s360 + $0x2b8] sm:$0xf] %v477
                %v479 = vld [vmem:[%s359 + $0x588] sm:$0xf]
                %480 = vst [vmem:[%s360 + $0x2c4] sm:$0xf] %v479
                %v481 = vld [vmem:[%s359 + $0x5a0] sm:$0xf]
                %482 = vst [vmem:[%s360 + $0x2d0] sm:$0xf] %v481
                %v483 = vld [vmem:[%s359 + $0x5b8] sm:$0xf]
                %484 = vst [vmem:[%s360 + $0x2dc] sm:$0xf] %v483
                %v485 = vld [vmem:[%s359 + $0x5d0] sm:$0xf]
                %486 = vst [vmem:[%s360 + $0x2e8] sm:$0xf] %v485
                %v487 = vld [vmem:[%s359 + $0x5e8] sm:$0xf]
                %488 = vst [vmem:[%s360 + $0x2f4] sm:$0xf] %v487
                %v489 = vld [vmem:[%s359 + $0x600] sm:$0xf]
                %490 = vst [vmem:[%s360 + $0x300] sm:$0xf] %v489
                %v491 = vld [vmem:[%s359 + $0x618] sm:$0xf]
                %492 = vst [vmem:[%s360 + $0x30c] sm:$0xf] %v491
                %v493 = vld [vmem:[%s359 + $0x630] sm:$0xf]
                %494 = vst [vmem:[%s360 + $0x318] sm:$0xf] %v493
                %v495 = vld [vmem:[%s359 + $0x648] sm:$0xf]
                %496 = vst [vmem:[%s360 + $0x324] sm:$0xf] %v495
                %v497 = vld [vmem:[%s359 + $0x660] sm:$0xf]
                %498 = vst [vmem:[%s360 + $0x330] sm:$0xf] %v497
                %v499 = vld [vmem:[%s359 + $0x678] sm:$0xf]
                %500 = vst [vmem:[%s360 + $0x33c] sm:$0xf] %v499
                %v501 = vld [vmem:[%s359 + $0x690] sm:$0xf]
                %502 = vst [vmem:[%s360 + $0x348] sm:$0xf] %v501
                %v503 = vld [vmem:[%s359 + $0x6a8] sm:$0xf]
                %504 = vst [vmem:[%s360 + $0x354] sm:$0xf] %v503
                %v505 = vld [vmem:[%s359 + $0x6c0] sm:$0xf]
                %506 = vst [vmem:[%s360 + $0x360] sm:$0xf] %v505
                %v507 = vld [vmem:[%s359 + $0x6d8] sm:$0xf]
                %508 = vst [vmem:[%s360 + $0x36c] sm:$0xf] %v507
                %v509 = vld [vmem:[%s359 + $0x6f0] sm:$0xf]
                %510 = vst [vmem:[%s360 + $0x378] sm:$0xf] %v509
                %v511 = vld [vmem:[%s359 + $0x708] sm:$0xf]
                %512 = vst [vmem:[%s360 + $0x384] sm:$0xf] %v511
                %v513 = vld [vmem:[%s359 + $0x720] sm:$0xf]
                %514 = vst [vmem:[%s360 + $0x390] sm:$0xf] %v513
                %v515 = vld [vmem:[%s359 + $0x738] sm:$0xf]
                %516 = vst [vmem:[%s360 + $0x39c] sm:$0xf] %v515
                %v517 = vld [vmem:[%s359 + $0x750] sm:$0xf]
                %518 = vst [vmem:[%s360 + $0x3a8] sm:$0xf] %v517
                %v519 = vld [vmem:[%s359 + $0x768] sm:$0xf]
                %520 = vst [vmem:[%s360 + $0x3b4] sm:$0xf] %v519
                %v521 = vld [vmem:[%s359 + $0x780] sm:$0xf]
                %522 = vst [vmem:[%s360 + $0x3c0] sm:$0xf] %v521
                %v523 = vld [vmem:[%s359 + $0x798] sm:$0xf]
                %524 = vst [vmem:[%s360 + $0x3cc] sm:$0xf] %v523
                %v525 = vld [vmem:[%s359 + $0x7b0] sm:$0xf]
                %526 = vst [vmem:[%s360 + $0x3d8] sm:$0xf] %v525
                %v527 = vld [vmem:[%s359 + $0x7c8] sm:$0xf]
                %528 = vst [vmem:[%s360 + $0x3e4] sm:$0xf] %v527
                %v529 = vld [vmem:[%s359 + $0x7e0] sm:$0xf]
                %530 = vst [vmem:[%s360 + $0x3f0] sm:$0xf] %v529
                %v531 = vld [vmem:[%s359 + $0x7f8] sm:$0xf]
                %532 = vst [vmem:[%s360 + $0x3fc] sm:$0xf] %v531
                %v533 = vld [vmem:[%s359 + $0x810] sm:$0xf]
                %534 = vst [vmem:[%s360 + $0x408] sm:$0xf] %v533
                %v535 = vld [vmem:[%s359 + $0x828] sm:$0xf]
                %536 = vst [vmem:[%s360 + $0x414] sm:$0xf] %v535
                %v537 = vld [vmem:[%s359 + $0x840] sm:$0xf]
                %538 = vst [vmem:[%s360 + $0x420] sm:$0xf] %v537
                %v539 = vld [vmem:[%s359 + $0x858] sm:$0xf]
                %540 = vst [vmem:[%s360 + $0x42c] sm:$0xf] %v539
                %v541 = vld [vmem:[%s359 + $0x870] sm:$0xf]
                %542 = vst [vmem:[%s360 + $0x438] sm:$0xf] %v541
                %v543 = vld [vmem:[%s359 + $0x888] sm:$0xf]
                %544 = vst [vmem:[%s360 + $0x444] sm:$0xf] %v543
                %v545 = vld [vmem:[%s359 + $0x8a0] sm:$0xf]
                %546 = vst [vmem:[%s360 + $0x450] sm:$0xf] %v545
                %v547 = vld [vmem:[%s359 + $0x8b8] sm:$0xf]
                %548 = vst [vmem:[%s360 + $0x45c] sm:$0xf] %v547
                %v549 = vld [vmem:[%s359 + $0x8d0] sm:$0xf]
                %550 = vst [vmem:[%s360 + $0x468] sm:$0xf] %v549
                %v551 = vld [vmem:[%s359 + $0x8e8] sm:$0xf]
                %552 = vst [vmem:[%s360 + $0x474] sm:$0xf] %v551
                %v553 = vld [vmem:[%s359 + $0x900] sm:$0xf]
                %554 = vst [vmem:[%s360 + $0x480] sm:$0xf] %v553
                %v555 = vld [vmem:[%s359 + $0x918] sm:$0xf]
                %556 = vst [vmem:[%s360 + $0x48c] sm:$0xf] %v555
                %v557 = vld [vmem:[%s359 + $0x930] sm:$0xf]
                %558 = vst [vmem:[%s360 + $0x498] sm:$0xf] %v557
                %v559 = vld [vmem:[%s359 + $0x948] sm:$0xf]
                %560 = vst [vmem:[%s360 + $0x4a4] sm:$0xf] %v559
              $region48: #{shallow_net_forward.4} parent=35 // loop_footer
                %s358 = sadd.s32 1, %s354
              $region49: #{shallow_net_forward.4} parent=35 // loop_footer_branch
                %353 = sbr.rel target = $region45
              $region50: #{shallow_net_forward.4} parent=35 // loop_exit
                _
            $region36: #{shallow_net_forward.4} parent=31 // pred_fallthru
              _
          $region32: #{shallow_net_forward.4} parent=27 // pred_fallthru
            _
          %561 = vnop
        $region28: #{shallow_net_forward.4} parent=23 // pred_fallthru
          _
      $region24: #{shallow_net_forward.4} parent=5 // pred_fallthru
        _
      %p562 = scmp.le.s32.totalorder 1, %s9
      %p563 = scmp.lt.s32.totalorder %s9, 3
      %p564 = pnand %p562, %p563
      %p565 = pneg %p564
      // Predicated region
      $region51: #{shallow_net_forward.4} parent=5 // pred_check
        _
      $region52: #{shallow_net_forward.4} parent=5 // pred_check_branch
        %567 = sbr.rel (%p564) target = $region54
      $region53: #{shallow_net_forward.4} parent=5 // pred_region
        %s568 = ssub.s32 %s9, 1
        %s569 = sand.u32 %s43, 1
        %s570 = sand.u32 %s43, 1
        %s571 = smul.addr %s570, 1200
        %s572 = scalar_lea.vmem [#allocation2], %s571
        // Predicated region
        $region55: #{shallow_net_forward.4} parent=53 // pred_check
          %p573 = pneg %p56
        $region56: #{shallow_net_forward.4} parent=53 // pred_check_branch
          %575 = sbr.rel (%p573) target = $region58
        $region57: #{shallow_net_forward.4} parent=53 // pred_region
          _
        $region58: #{shallow_net_forward.4} parent=53 // pred_fallthru
          _
        %p576 = pneg %p30
        %p577 = pneg %p27
        %s578 = sand.u32 %s43, 1
        %s579 = sand.u32 %s43, 1
        %s580 = smul.addr %s579, 1200
        %s581 = scalar_lea.vmem [#allocation2], %s580
        %p582 = pneg %p56
        %p583 = pneg %p53
        %p584 = pneg %p77
        %p585 = pneg %p74
        %p586 = pneg %p103
        %p587 = pneg %p100
        %s588 = sand.u32 %s90, 1
        %s589 = sand.u32 %s90, 1
        %s590 = smul.addr %s589, 48
        %s591 = scalar_lea.vmem [#allocation3], %s590
        %s592 = smul.u32 3, %s14
        %s593 = smul.u32 3, %s14
        %v595 = vld [vmem:[%s0] sm:$0xff]
        %v596 = vld [vmem:[%s0 + $0x8] sm:$0xff]
        %v597 = vld [vmem:[%s0 + $0x10] sm:$0xff]
        %v598 = vld [vmem:[%s0 + $0x18] sm:$0xf]
        %v599 = vld [vmem:[%s0 + $0x1c] sm:$0xff]
        %v600 = vld [vmem:[%s0 + $0x24] sm:$0xff]
        %v601 = vld [vmem:[%s0 + $0x2c] sm:$0xff]
        %v602 = vld [vmem:[%s0 + $0x34] sm:$0xf]
        %v603 = vld [vmem:[%s0 + $0x38] sm:$0xff]
        %v604 = vld [vmem:[%s0 + $0x40] sm:$0xff]
        %v605 = vld [vmem:[%s0 + $0x48] sm:$0xff]
        %v606 = vld [vmem:[%s0 + $0x50] sm:$0xf]
        %v607 = vld [vmem:[%s0 + $0x54] sm:$0xff]
        %v608 = vld [vmem:[%s0 + $0x5c] sm:$0xff]
        %v609 = vld [vmem:[%s0 + $0x64] sm:$0xff]
        %v610 = vld [vmem:[%s0 + $0x6c] sm:$0xf]
        %v611 = vld [vmem:[%s0 + $0x70] sm:$0xff]
        %v612 = vld [vmem:[%s0 + $0x78] sm:$0xff]
        %v613 = vld [vmem:[%s0 + $0x80] sm:$0xff]
        %v614 = vld [vmem:[%s0 + $0x88] sm:$0xf]
        %v615 = vld [vmem:[%s0 + $0x8c] sm:$0xff]
        %v616 = vld [vmem:[%s0 + $0x94] sm:$0xff]
        %v617 = vld [vmem:[%s0 + $0x9c] sm:$0xff]
        %v618 = vld [vmem:[%s0 + $0xa4] sm:$0xf]
        %v619 = vld [vmem:[%s0 + $0xa8] sm:$0xff]
        %v620 = vld [vmem:[%s0 + $0xb0] sm:$0xff]
        %v621 = vld [vmem:[%s0 + $0xb8] sm:$0xff]
        %v622 = vld [vmem:[%s0 + $0xc0] sm:$0xf]
        %v623 = vld [vmem:[%s0 + $0xc4] sm:$0xff]
        %v624 = vld [vmem:[%s0 + $0xcc] sm:$0xff]
        %v625 = vld [vmem:[%s0 + $0xd4] sm:$0xff]
        %v626 = vld [vmem:[%s0 + $0xdc] sm:$0xf]
        %v627 = vld [vmem:[%s0 + $0xe0] sm:$0xff]
        %v628 = vld [vmem:[%s0 + $0xe8] sm:$0xff]
        %v629 = vld [vmem:[%s0 + $0xf0] sm:$0xff]
        %v630 = vld [vmem:[%s0 + $0xf8] sm:$0xf]
        %v631 = vld [vmem:[%s0 + $0xfc] sm:$0xff]
        %v632 = vld [vmem:[%s0 + $0x104] sm:$0xff]
        %v633 = vld [vmem:[%s0 + $0x10c] sm:$0xff]
        %v634 = vld [vmem:[%s0 + $0x114] sm:$0xf]
        %v635 = vld [vmem:[%s0 + $0x118] sm:$0xff]
        %v636 = vld [vmem:[%s0 + $0x120] sm:$0xff]
        %v637 = vld [vmem:[%s0 + $0x128] sm:$0xff]
        %v638 = vld [vmem:[%s0 + $0x130] sm:$0xf]
        %v639 = vld [vmem:[%s0 + $0x134] sm:$0xff]
        %v640 = vld [vmem:[%s0 + $0x13c] sm:$0xff]
        %v641 = vld [vmem:[%s0 + $0x144] sm:$0xff]
        %v642 = vld [vmem:[%s0 + $0x14c] sm:$0xf]
        %v643 = vld [vmem:[%s0 + $0x150] sm:$0xff]
        %v644 = vld [vmem:[%s0 + $0x158] sm:$0xff]
        %v645 = vld [vmem:[%s0 + $0x160] sm:$0xff]
        %v646 = vld [vmem:[%s0 + $0x168] sm:$0xf]
        %v647 = vld [vmem:[%s0 + $0x16c] sm:$0xff]
        %v648 = vld [vmem:[%s0 + $0x174] sm:$0xff]
        %v649 = vld [vmem:[%s0 + $0x17c] sm:$0xff]
        %v650 = vld [vmem:[%s0 + $0x184] sm:$0xf]
        %v651 = vld [vmem:[%s0 + $0x188] sm:$0xff]
        %v652 = vld [vmem:[%s0 + $0x190] sm:$0xff]
        %v653 = vld [vmem:[%s0 + $0x198] sm:$0xff]
        %v654 = vld [vmem:[%s0 + $0x1a0] sm:$0xf]
        %v655 = vld [vmem:[%s0 + $0x1a4] sm:$0xff]
        %v656 = vld [vmem:[%s0 + $0x1ac] sm:$0xff]
        %v657 = vld [vmem:[%s0 + $0x1b4] sm:$0xff]
        %v658 = vld [vmem:[%s0 + $0x1bc] sm:$0xf]
        %v659 = vld [vmem:[%s0 + $0x1c0] sm:$0xff]
        %v660 = vld [vmem:[%s0 + $0x1c8] sm:$0xff]
        %v661 = vld [vmem:[%s0 + $0x1d0] sm:$0xff]
        %v662 = vld [vmem:[%s0 + $0x1d8] sm:$0xf]
        %v663 = vld [vmem:[%s0 + $0x1dc] sm:$0xff]
        %v664 = vld [vmem:[%s0 + $0x1e4] sm:$0xff]
        %v665 = vld [vmem:[%s0 + $0x1ec] sm:$0xff]
        %v666 = vld [vmem:[%s0 + $0x1f4] sm:$0xf]
        %v667 = vld [vmem:[%s0 + $0x1f8] sm:$0xff]
        %v668 = vld [vmem:[%s0 + $0x200] sm:$0xff]
        %v669 = vld [vmem:[%s0 + $0x208] sm:$0xff]
        %v670 = vld [vmem:[%s0 + $0x210] sm:$0xf]
        %v671 = vld [vmem:[%s0 + $0x214] sm:$0xff]
        %v672 = vld [vmem:[%s0 + $0x21c] sm:$0xff]
        %v673 = vld [vmem:[%s0 + $0x224] sm:$0xff]
        %v674 = vld [vmem:[%s0 + $0x22c] sm:$0xf]
        %v675 = vld [vmem:[%s0 + $0x230] sm:$0xff]
        %v676 = vld [vmem:[%s0 + $0x238] sm:$0xff]
        %v677 = vld [vmem:[%s0 + $0x240] sm:$0xff]
        %v678 = vld [vmem:[%s0 + $0x248] sm:$0xf]
        %v679 = vld [vmem:[%s0 + $0x24c] sm:$0xff]
        %v680 = vld [vmem:[%s0 + $0x254] sm:$0xff]
        %v681 = vld [vmem:[%s0 + $0x25c] sm:$0xff]
        %v682 = vld [vmem:[%s0 + $0x264] sm:$0xf]
        %v683 = vld [vmem:[%s0 + $0x268] sm:$0xff]
        %v684 = vld [vmem:[%s0 + $0x270] sm:$0xff]
        %v685 = vld [vmem:[%s0 + $0x278] sm:$0xff]
        %v686 = vld [vmem:[%s0 + $0x280] sm:$0xf]
        %v687 = vld [vmem:[%s0 + $0x284] sm:$0xff]
        %v688 = vld [vmem:[%s0 + $0x28c] sm:$0xff]
        %v689 = vld [vmem:[%s0 + $0x294] sm:$0xff]
        %v690 = vld [vmem:[%s0 + $0x29c] sm:$0xf]
        %v691 = vld [vmem:[%s0 + $0x2a0] sm:$0xff]
        %v692 = vld [vmem:[%s0 + $0x2a8] sm:$0xff]
        %v693 = vld [vmem:[%s0 + $0x2b0] sm:$0xff]
        %v694 = vld [vmem:[%s0 + $0x2b8] sm:$0xf]
        %v695 = vld [vmem:[%s0 + $0x2bc] sm:$0xff]
        %v696 = vld [vmem:[%s0 + $0x2c4] sm:$0xff]
        %v697 = vld [vmem:[%s0 + $0x2cc] sm:$0xff]
        %v698 = vld [vmem:[%s0 + $0x2d4] sm:$0xf]
        %v699 = vld [vmem:[%s0 + $0x2d8] sm:$0xff]
        %v700 = vld [vmem:[%s0 + $0x2e0] sm:$0xff]
        %v701 = vld [vmem:[%s0 + $0x2e8] sm:$0xff]
        %v702 = vld [vmem:[%s0 + $0x2f0] sm:$0xf]
        %v703 = vld [vmem:[%s0 + $0x2f4] sm:$0xff]
        %v704 = vld [vmem:[%s0 + $0x2fc] sm:$0xff]
        %v705 = vld [vmem:[%s0 + $0x304] sm:$0xff]
        %v706 = vld [vmem:[%s0 + $0x30c] sm:$0xf]
        %v707 = vld [vmem:[%s0 + $0x310] sm:$0xff]
        %v708 = vld [vmem:[%s0 + $0x318] sm:$0xff]
        %v709 = vld [vmem:[%s0 + $0x320] sm:$0xff]
        %v710 = vld [vmem:[%s0 + $0x328] sm:$0xf]
        %v711 = vld [vmem:[%s0 + $0x32c] sm:$0xff]
        %v712 = vld [vmem:[%s0 + $0x334] sm:$0xff]
        %v713 = vld [vmem:[%s0 + $0x33c] sm:$0xff]
        %v714 = vld [vmem:[%s0 + $0x344] sm:$0xf]
        %v715 = vld [vmem:[%s0 + $0x348] sm:$0xff]
        %v716 = vld [vmem:[%s0 + $0x350] sm:$0xff]
        %v717 = vld [vmem:[%s0 + $0x358] sm:$0xff]
        %v718 = vld [vmem:[%s0 + $0x360] sm:$0xf]
        %v719 = vld [vmem:[%s0 + $0x364] sm:$0xff]
        %v720 = vld [vmem:[%s0 + $0x36c] sm:$0xff]
        %v721 = vld [vmem:[%s0 + $0x374] sm:$0xff]
        %v722 = vld [vmem:[%s0 + $0x37c] sm:$0xf]
        %v723 = vld [vmem:[%s0 + $0x380] sm:$0xff]
        %v724 = vld [vmem:[%s0 + $0x388] sm:$0xff]
        %v725 = vld [vmem:[%s0 + $0x390] sm:$0xff]
        %v726 = vld [vmem:[%s0 + $0x398] sm:$0xf]
        %v727 = vld [vmem:[%s0 + $0x39c] sm:$0xff]
        %v728 = vld [vmem:[%s0 + $0x3a4] sm:$0xff]
        %v729 = vld [vmem:[%s0 + $0x3ac] sm:$0xff]
        %v730 = vld [vmem:[%s0 + $0x3b4] sm:$0xf]
        %v731 = vld [vmem:[%s0 + $0x3b8] sm:$0xff]
        %v732 = vld [vmem:[%s0 + $0x3c0] sm:$0xff]
        %v733 = vld [vmem:[%s0 + $0x3c8] sm:$0xff]
        %v734 = vld [vmem:[%s0 + $0x3d0] sm:$0xf]
        %v735 = vld [vmem:[%s0 + $0x3d4] sm:$0xff]
        %v736 = vld [vmem:[%s0 + $0x3dc] sm:$0xff]
        %v737 = vld [vmem:[%s0 + $0x3e4] sm:$0xff]
        %v738 = vld [vmem:[%s0 + $0x3ec] sm:$0xf]
        %v739 = vld [vmem:[%s0 + $0x3f0] sm:$0xff]
        %v740 = vld [vmem:[%s0 + $0x3f8] sm:$0xff]
        %v741 = vld [vmem:[%s0 + $0x400] sm:$0xff]
        %v742 = vld [vmem:[%s0 + $0x408] sm:$0xf]
        %v743 = vld [vmem:[%s0 + $0x40c] sm:$0xff]
        %v744 = vld [vmem:[%s0 + $0x414] sm:$0xff]
        %v745 = vld [vmem:[%s0 + $0x41c] sm:$0xff]
        %v746 = vld [vmem:[%s0 + $0x424] sm:$0xf]
        %v747 = vld [vmem:[%s0 + $0x428] sm:$0xff]
        %v748 = vld [vmem:[%s0 + $0x430] sm:$0xff]
        %v749 = vld [vmem:[%s0 + $0x438] sm:$0xff]
        %v750 = vld [vmem:[%s0 + $0x440] sm:$0xf]
        %v751 = vld [vmem:[%s0 + $0x444] sm:$0xff]
        %v752 = vld [vmem:[%s0 + $0x44c] sm:$0xff]
        %v753 = vld [vmem:[%s0 + $0x454] sm:$0xff]
        %v754 = vld [vmem:[%s0 + $0x45c] sm:$0xf]
        %v755 = vld [vmem:[%s572] sm:$0xff]
        %v756 = vld [vmem:[%s572 + $0x8] sm:$0xf]
        %v757 = vld [vmem:[%s572 + $0xc] sm:$0xff]
        %v758 = vld [vmem:[%s572 + $0x14] sm:$0xf]
        %v759 = vld [vmem:[%s572 + $0x18] sm:$0xff]
        %v760 = vld [vmem:[%s572 + $0x20] sm:$0xf]
        %v761 = vld [vmem:[%s572 + $0x24] sm:$0xff]
        %v762 = vld [vmem:[%s572 + $0x2c] sm:$0xf]
        %v763 = vld [vmem:[%s572 + $0x30] sm:$0xff]
        %v764 = vld [vmem:[%s572 + $0x38] sm:$0xf]
        %v765 = vld [vmem:[%s572 + $0x3c] sm:$0xff]
        %v766 = vld [vmem:[%s572 + $0x44] sm:$0xf]
        %v767 = vld [vmem:[%s572 + $0x48] sm:$0xff]
        %v768 = vld [vmem:[%s572 + $0x50] sm:$0xf]
        %v769 = vld [vmem:[%s572 + $0x54] sm:$0xff]
        %v770 = vld [vmem:[%s572 + $0x5c] sm:$0xf]
        %v771 = vld [vmem:[%s572 + $0x60] sm:$0xff]
        %v772 = vld [vmem:[%s572 + $0x68] sm:$0xf]
        %v773 = vld [vmem:[%s572 + $0x6c] sm:$0xff]
        %v774 = vld [vmem:[%s572 + $0x74] sm:$0xf]
        %v775 = vld [vmem:[%s572 + $0x78] sm:$0xff]
        %v776 = vld [vmem:[%s572 + $0x80] sm:$0xf]
        %v777 = vld [vmem:[%s572 + $0x84] sm:$0xff]
        %v778 = vld [vmem:[%s572 + $0x8c] sm:$0xf]
        %v779 = vld [vmem:[%s572 + $0x90] sm:$0xff]
        %v780 = vld [vmem:[%s572 + $0x98] sm:$0xf]
        %v781 = vld [vmem:[%s572 + $0x9c] sm:$0xff]
        %v782 = vld [vmem:[%s572 + $0xa4] sm:$0xf]
        %v783 = vld [vmem:[%s572 + $0xa8] sm:$0xff]
        %v784 = vld [vmem:[%s572 + $0xb0] sm:$0xf]
        %v785 = vld [vmem:[%s572 + $0xb4] sm:$0xff]
        %v786 = vld [vmem:[%s572 + $0xbc] sm:$0xf]
        %v787 = vld [vmem:[%s572 + $0xc0] sm:$0xff]
        %v788 = vld [vmem:[%s572 + $0xc8] sm:$0xf]
        %v789 = vld [vmem:[%s572 + $0xcc] sm:$0xff]
        %v790 = vld [vmem:[%s572 + $0xd4] sm:$0xf]
        %v791 = vld [vmem:[%s572 + $0xd8] sm:$0xff]
        %v792 = vld [vmem:[%s572 + $0xe0] sm:$0xf]
        %v793 = vld [vmem:[%s572 + $0xe4] sm:$0xff]
        %v794 = vld [vmem:[%s572 + $0xec] sm:$0xf]
        %v795 = vld [vmem:[%s572 + $0xf0] sm:$0xff]
        %v796 = vld [vmem:[%s572 + $0xf8] sm:$0xf]
        %v797 = vld [vmem:[%s572 + $0xfc] sm:$0xff]
        %v798 = vld [vmem:[%s572 + $0x104] sm:$0xf]
        %v799 = vld [vmem:[%s572 + $0x108] sm:$0xff]
        %v800 = vld [vmem:[%s572 + $0x110] sm:$0xf]
        %v801 = vld [vmem:[%s572 + $0x114] sm:$0xff]
        %v802 = vld [vmem:[%s572 + $0x11c] sm:$0xf]
        %v803 = vld [vmem:[%s572 + $0x120] sm:$0xff]
        %v804 = vld [vmem:[%s572 + $0x128] sm:$0xf]
        %v805 = vld [vmem:[%s572 + $0x12c] sm:$0xff]
        %v806 = vld [vmem:[%s572 + $0x134] sm:$0xf]
        %v807 = vld [vmem:[%s572 + $0x138] sm:$0xff]
        %v808 = vld [vmem:[%s572 + $0x140] sm:$0xf]
        %v809 = vld [vmem:[%s572 + $0x144] sm:$0xff]
        %v810 = vld [vmem:[%s572 + $0x14c] sm:$0xf]
        %v811 = vld [vmem:[%s572 + $0x150] sm:$0xff]
        %v812 = vld [vmem:[%s572 + $0x158] sm:$0xf]
        %v813 = vld [vmem:[%s572 + $0x15c] sm:$0xff]
        %v814 = vld [vmem:[%s572 + $0x164] sm:$0xf]
        %v815 = vld [vmem:[%s572 + $0x168] sm:$0xff]
        %v816 = vld [vmem:[%s572 + $0x170] sm:$0xf]
        %v817 = vld [vmem:[%s572 + $0x174] sm:$0xff]
        %v818 = vld [vmem:[%s572 + $0x17c] sm:$0xf]
        %v819 = vld [vmem:[%s572 + $0x180] sm:$0xff]
        %v820 = vld [vmem:[%s572 + $0x188] sm:$0xf]
        %v821 = vld [vmem:[%s572 + $0x18c] sm:$0xff]
        %v822 = vld [vmem:[%s572 + $0x194] sm:$0xf]
        %v823 = vld [vmem:[%s572 + $0x198] sm:$0xff]
        %v824 = vld [vmem:[%s572 + $0x1a0] sm:$0xf]
        %v825 = vld [vmem:[%s572 + $0x1a4] sm:$0xff]
        %v826 = vld [vmem:[%s572 + $0x1ac] sm:$0xf]
        %v827 = vld [vmem:[%s572 + $0x1b0] sm:$0xff]
        %v828 = vld [vmem:[%s572 + $0x1b8] sm:$0xf]
        %v829 = vld [vmem:[%s572 + $0x1bc] sm:$0xff]
        %v830 = vld [vmem:[%s572 + $0x1c4] sm:$0xf]
        %v831 = vld [vmem:[%s572 + $0x1c8] sm:$0xff]
        %v832 = vld [vmem:[%s572 + $0x1d0] sm:$0xf]
        %v833 = vld [vmem:[%s572 + $0x1d4] sm:$0xff]
        %v834 = vld [vmem:[%s572 + $0x1dc] sm:$0xf]
        %v835 = vld [vmem:[%s572 + $0x1e0] sm:$0xff]
        %v836 = vld [vmem:[%s572 + $0x1e8] sm:$0xf]
        %v837 = vld [vmem:[%s572 + $0x1ec] sm:$0xff]
        %v838 = vld [vmem:[%s572 + $0x1f4] sm:$0xf]
        %v839 = vld [vmem:[%s572 + $0x1f8] sm:$0xff]
        %v840 = vld [vmem:[%s572 + $0x200] sm:$0xf]
        %v841 = vld [vmem:[%s572 + $0x204] sm:$0xff]
        %v842 = vld [vmem:[%s572 + $0x20c] sm:$0xf]
        %v843 = vld [vmem:[%s572 + $0x210] sm:$0xff]
        %v844 = vld [vmem:[%s572 + $0x218] sm:$0xf]
        %v845 = vld [vmem:[%s572 + $0x21c] sm:$0xff]
        %v846 = vld [vmem:[%s572 + $0x224] sm:$0xf]
        %v847 = vld [vmem:[%s572 + $0x228] sm:$0xff]
        %v848 = vld [vmem:[%s572 + $0x230] sm:$0xf]
        %v849 = vld [vmem:[%s572 + $0x234] sm:$0xff]
        %v850 = vld [vmem:[%s572 + $0x23c] sm:$0xf]
        %v851 = vld [vmem:[%s572 + $0x240] sm:$0xff]
        %v852 = vld [vmem:[%s572 + $0x248] sm:$0xf]
        %v853 = vld [vmem:[%s572 + $0x24c] sm:$0xff]
        %v854 = vld [vmem:[%s572 + $0x254] sm:$0xf]
        %v855 = vld [vmem:[%s572 + $0x258] sm:$0xff]
        %v856 = vld [vmem:[%s572 + $0x260] sm:$0xf]
        %v857 = vld [vmem:[%s572 + $0x264] sm:$0xff]
        %v858 = vld [vmem:[%s572 + $0x26c] sm:$0xf]
        %v859 = vld [vmem:[%s572 + $0x270] sm:$0xff]
        %v860 = vld [vmem:[%s572 + $0x278] sm:$0xf]
        %v861 = vld [vmem:[%s572 + $0x27c] sm:$0xff]
        %v862 = vld [vmem:[%s572 + $0x284] sm:$0xf]
        %v863 = vld [vmem:[%s572 + $0x288] sm:$0xff]
        %v864 = vld [vmem:[%s572 + $0x290] sm:$0xf]
        %v865 = vld [vmem:[%s572 + $0x294] sm:$0xff]
        %v866 = vld [vmem:[%s572 + $0x29c] sm:$0xf]
        %v867 = vld [vmem:[%s572 + $0x2a0] sm:$0xff]
        %v868 = vld [vmem:[%s572 + $0x2a8] sm:$0xf]
        %v869 = vld [vmem:[%s572 + $0x2ac] sm:$0xff]
        %v870 = vld [vmem:[%s572 + $0x2b4] sm:$0xf]
        %v871 = vld [vmem:[%s572 + $0x2b8] sm:$0xff]
        %v872 = vld [vmem:[%s572 + $0x2c0] sm:$0xf]
        %v873 = vld [vmem:[%s572 + $0x2c4] sm:$0xff]
        %v874 = vld [vmem:[%s572 + $0x2cc] sm:$0xf]
        %v875 = vld [vmem:[%s572 + $0x2d0] sm:$0xff]
        %v876 = vld [vmem:[%s572 + $0x2d8] sm:$0xf]
        %v877 = vld [vmem:[%s572 + $0x2dc] sm:$0xff]
        %v878 = vld [vmem:[%s572 + $0x2e4] sm:$0xf]
        %v879 = vld [vmem:[%s572 + $0x2e8] sm:$0xff]
        %v880 = vld [vmem:[%s572 + $0x2f0] sm:$0xf]
        %v881 = vld [vmem:[%s572 + $0x2f4] sm:$0xff]
        %v882 = vld [vmem:[%s572 + $0x2fc] sm:$0xf]
        %v883 = vld [vmem:[%s572 + $0x300] sm:$0xff]
        %v884 = vld [vmem:[%s572 + $0x308] sm:$0xf]
        %v885 = vld [vmem:[%s572 + $0x30c] sm:$0xff]
        %v886 = vld [vmem:[%s572 + $0x314] sm:$0xf]
        %v887 = vld [vmem:[%s572 + $0x318] sm:$0xff]
        %v888 = vld [vmem:[%s572 + $0x320] sm:$0xf]
        %v889 = vld [vmem:[%s572 + $0x324] sm:$0xff]
        %v890 = vld [vmem:[%s572 + $0x32c] sm:$0xf]
        %v891 = vld [vmem:[%s572 + $0x330] sm:$0xff]
        %v892 = vld [vmem:[%s572 + $0x338] sm:$0xf]
        %v893 = vld [vmem:[%s572 + $0x33c] sm:$0xff]
        %v894 = vld [vmem:[%s572 + $0x344] sm:$0xf]
        %v895 = vld [vmem:[%s572 + $0x348] sm:$0xff]
        %v896 = vld [vmem:[%s572 + $0x350] sm:$0xf]
        %v897 = vld [vmem:[%s572 + $0x354] sm:$0xff]
        %v898 = vld [vmem:[%s572 + $0x35c] sm:$0xf]
        %v899 = vld [vmem:[%s572 + $0x360] sm:$0xff]
        %v900 = vld [vmem:[%s572 + $0x368] sm:$0xf]
        %v901 = vld [vmem:[%s572 + $0x36c] sm:$0xff]
        %v902 = vld [vmem:[%s572 + $0x374] sm:$0xf]
        %v903 = vld [vmem:[%s572 + $0x378] sm:$0xff]
        %v904 = vld [vmem:[%s572 + $0x380] sm:$0xf]
        %v905 = vld [vmem:[%s572 + $0x384] sm:$0xff]
        %v906 = vld [vmem:[%s572 + $0x38c] sm:$0xf]
        %v907 = vld [vmem:[%s572 + $0x390] sm:$0xff]
        %v908 = vld [vmem:[%s572 + $0x398] sm:$0xf]
        %v909 = vld [vmem:[%s572 + $0x39c] sm:$0xff]
        %v910 = vld [vmem:[%s572 + $0x3a4] sm:$0xf]
        %v911 = vld [vmem:[%s572 + $0x3a8] sm:$0xff]
        %v912 = vld [vmem:[%s572 + $0x3b0] sm:$0xf]
        %v913 = vld [vmem:[%s572 + $0x3b4] sm:$0xff]
        %v914 = vld [vmem:[%s572 + $0x3bc] sm:$0xf]
        %v915 = vld [vmem:[%s572 + $0x3c0] sm:$0xff]
        %v916 = vld [vmem:[%s572 + $0x3c8] sm:$0xf]
        %v917 = vld [vmem:[%s572 + $0x3cc] sm:$0xff]
        %v918 = vld [vmem:[%s572 + $0x3d4] sm:$0xf]
        %v919 = vld [vmem:[%s572 + $0x3d8] sm:$0xff]
        %v920 = vld [vmem:[%s572 + $0x3e0] sm:$0xf]
        %v921 = vld [vmem:[%s572 + $0x3e4] sm:$0xff]
        %v922 = vld [vmem:[%s572 + $0x3ec] sm:$0xf]
        %v923 = vld [vmem:[%s572 + $0x3f0] sm:$0xff]
        %v924 = vld [vmem:[%s572 + $0x3f8] sm:$0xf]
        %v925 = vld [vmem:[%s572 + $0x3fc] sm:$0xff]
        %v926 = vld [vmem:[%s572 + $0x404] sm:$0xf]
        %v927 = vld [vmem:[%s572 + $0x408] sm:$0xff]
        %v928 = vld [vmem:[%s572 + $0x410] sm:$0xf]
        %v929 = vld [vmem:[%s572 + $0x414] sm:$0xff]
        %v930 = vld [vmem:[%s572 + $0x41c] sm:$0xf]
        %v931 = vld [vmem:[%s572 + $0x420] sm:$0xff]
        %v932 = vld [vmem:[%s572 + $0x428] sm:$0xf]
        %v933 = vld [vmem:[%s572 + $0x42c] sm:$0xff]
        %v934 = vld [vmem:[%s572 + $0x434] sm:$0xf]
        %v935 = vld [vmem:[%s572 + $0x438] sm:$0xff]
        %v936 = vld [vmem:[%s572 + $0x440] sm:$0xf]
        %v937 = vld [vmem:[%s572 + $0x444] sm:$0xff]
        %v938 = vld [vmem:[%s572 + $0x44c] sm:$0xf]
        %v939 = vld [vmem:[%s572 + $0x450] sm:$0xff]
        %v940 = vld [vmem:[%s572 + $0x458] sm:$0xf]
        %v941 = vld [vmem:[%s572 + $0x45c] sm:$0xff]
        %v942 = vld [vmem:[%s572 + $0x464] sm:$0xf]
        %v943 = vld [vmem:[%s572 + $0x468] sm:$0xff]
        %v944 = vld [vmem:[%s572 + $0x470] sm:$0xf]
        %v945 = vld [vmem:[%s572 + $0x474] sm:$0xff]
        %v946 = vld [vmem:[%s572 + $0x47c] sm:$0xf]
        %v947 = vld [vmem:[%s572 + $0x480] sm:$0xff]
        %v948 = vld [vmem:[%s572 + $0x488] sm:$0xf]
        %v949 = vld [vmem:[%s572 + $0x48c] sm:$0xff]
        %v950 = vld [vmem:[%s572 + $0x494] sm:$0xf]
        %v951 = vld [vmem:[%s572 + $0x498] sm:$0xff]
        %v952 = vld [vmem:[%s572 + $0x4a0] sm:$0xf]
        %v953 = vld [vmem:[%s572 + $0x4a4] sm:$0xff]
        %v954 = vld [vmem:[%s572 + $0x4ac] sm:$0xf]
        %v1115 = vunpack.c.l.b16 %v595
        %v1116 = vunpack.c.h.b16 %v595
        %v1117 = vunpack.c.l.b16 %v596
        %v1118 = vunpack.c.h.b16 %v596
        %v1119 = vunpack.c.l.b16 %v597
        %v1120 = vunpack.c.h.b16 %v597
        %v1121 = vunpack.c.l.b16 %v598
        %v1122 = vunpack.c.l.b16 %v599
        %v1123 = vunpack.c.h.b16 %v599
        %v1124 = vunpack.c.l.b16 %v600
        %v1125 = vunpack.c.h.b16 %v600
        %v1126 = vunpack.c.l.b16 %v601
        %v1127 = vunpack.c.h.b16 %v601
        %v1128 = vunpack.c.l.b16 %v602
        %v1129 = vunpack.c.l.b16 %v603
        %v1130 = vunpack.c.h.b16 %v603
        %v1131 = vunpack.c.l.b16 %v604
        %v1132 = vunpack.c.h.b16 %v604
        %v1133 = vunpack.c.l.b16 %v605
        %v1134 = vunpack.c.h.b16 %v605
        %v1135 = vunpack.c.l.b16 %v606
        %v1136 = vunpack.c.l.b16 %v607
        %v1137 = vunpack.c.h.b16 %v607
        %v1138 = vunpack.c.l.b16 %v608
        %v1139 = vunpack.c.h.b16 %v608
        %v1140 = vunpack.c.l.b16 %v609
        %v1141 = vunpack.c.h.b16 %v609
        %v1142 = vunpack.c.l.b16 %v610
        %v1143 = vunpack.c.l.b16 %v611
        %v1144 = vunpack.c.h.b16 %v611
        %v1145 = vunpack.c.l.b16 %v612
        %v1146 = vunpack.c.h.b16 %v612
        %v1147 = vunpack.c.l.b16 %v613
        %v1148 = vunpack.c.h.b16 %v613
        %v1149 = vunpack.c.l.b16 %v614
        %v1150 = vunpack.c.l.b16 %v615
        %v1151 = vunpack.c.h.b16 %v615
        %v1152 = vunpack.c.l.b16 %v616
        %v1153 = vunpack.c.h.b16 %v616
        %v1154 = vunpack.c.l.b16 %v617
        %v1155 = vunpack.c.h.b16 %v617
        %v1156 = vunpack.c.l.b16 %v618
        %v1157 = vunpack.c.l.b16 %v619
        %v1158 = vunpack.c.h.b16 %v619
        %v1159 = vunpack.c.l.b16 %v620
        %v1160 = vunpack.c.h.b16 %v620
        %v1161 = vunpack.c.l.b16 %v621
        %v1162 = vunpack.c.h.b16 %v621
        %v1163 = vunpack.c.l.b16 %v622
        %v1164 = vunpack.c.l.b16 %v623
        %v1165 = vunpack.c.h.b16 %v623
        %v1166 = vunpack.c.l.b16 %v624
        %v1167 = vunpack.c.h.b16 %v624
        %v1168 = vunpack.c.l.b16 %v625
        %v1169 = vunpack.c.h.b16 %v625
        %v1170 = vunpack.c.l.b16 %v626
        %v1171 = vunpack.c.l.b16 %v627
        %v1172 = vunpack.c.h.b16 %v627
        %v1173 = vunpack.c.l.b16 %v628
        %v1174 = vunpack.c.h.b16 %v628
        %v1175 = vunpack.c.l.b16 %v629
        %v1176 = vunpack.c.h.b16 %v629
        %v1177 = vunpack.c.l.b16 %v630
        %v1178 = vunpack.c.l.b16 %v631
        %v1179 = vunpack.c.h.b16 %v631
        %v1180 = vunpack.c.l.b16 %v632
        %v1181 = vunpack.c.h.b16 %v632
        %v1182 = vunpack.c.l.b16 %v633
        %v1183 = vunpack.c.h.b16 %v633
        %v1184 = vunpack.c.l.b16 %v634
        %v1185 = vunpack.c.l.b16 %v635
        %v1186 = vunpack.c.h.b16 %v635
        %v1187 = vunpack.c.l.b16 %v636
        %v1188 = vunpack.c.h.b16 %v636
        %v1189 = vunpack.c.l.b16 %v637
        %v1190 = vunpack.c.h.b16 %v637
        %v1191 = vunpack.c.l.b16 %v638
        %v1192 = vunpack.c.l.b16 %v639
        %v1193 = vunpack.c.h.b16 %v639
        %v1194 = vunpack.c.l.b16 %v640
        %v1195 = vunpack.c.h.b16 %v640
        %v1196 = vunpack.c.l.b16 %v641
        %v1197 = vunpack.c.h.b16 %v641
        %v1198 = vunpack.c.l.b16 %v642
        %v1199 = vunpack.c.l.b16 %v643
        %v1200 = vunpack.c.h.b16 %v643
        %v1201 = vunpack.c.l.b16 %v644
        %v1202 = vunpack.c.h.b16 %v644
        %v1203 = vunpack.c.l.b16 %v645
        %v1204 = vunpack.c.h.b16 %v645
        %v1205 = vunpack.c.l.b16 %v646
        %v1206 = vunpack.c.l.b16 %v647
        %v1207 = vunpack.c.h.b16 %v647
        %v1208 = vunpack.c.l.b16 %v648
        %v1209 = vunpack.c.h.b16 %v648
        %v1210 = vunpack.c.l.b16 %v649
        %v1211 = vunpack.c.h.b16 %v649
        %v1212 = vunpack.c.l.b16 %v650
        %v1213 = vunpack.c.l.b16 %v651
        %v1214 = vunpack.c.h.b16 %v651
        %v1215 = vunpack.c.l.b16 %v652
        %v1216 = vunpack.c.h.b16 %v652
        %v1217 = vunpack.c.l.b16 %v653
        %v1218 = vunpack.c.h.b16 %v653
        %v1219 = vunpack.c.l.b16 %v654
        %v1220 = vunpack.c.l.b16 %v655
        %v1221 = vunpack.c.h.b16 %v655
        %v1222 = vunpack.c.l.b16 %v656
        %v1223 = vunpack.c.h.b16 %v656
        %v1224 = vunpack.c.l.b16 %v657
        %v1225 = vunpack.c.h.b16 %v657
        %v1226 = vunpack.c.l.b16 %v658
        %v1227 = vunpack.c.l.b16 %v659
        %v1228 = vunpack.c.h.b16 %v659
        %v1229 = vunpack.c.l.b16 %v660
        %v1230 = vunpack.c.h.b16 %v660
        %v1231 = vunpack.c.l.b16 %v661
        %v1232 = vunpack.c.h.b16 %v661
        %v1233 = vunpack.c.l.b16 %v662
        %v1234 = vunpack.c.l.b16 %v663
        %v1235 = vunpack.c.h.b16 %v663
        %v1236 = vunpack.c.l.b16 %v664
        %v1237 = vunpack.c.h.b16 %v664
        %v1238 = vunpack.c.l.b16 %v665
        %v1239 = vunpack.c.h.b16 %v665
        %v1240 = vunpack.c.l.b16 %v666
        %v1241 = vunpack.c.l.b16 %v667
        %v1242 = vunpack.c.h.b16 %v667
        %v1243 = vunpack.c.l.b16 %v668
        %v1244 = vunpack.c.h.b16 %v668
        %v1245 = vunpack.c.l.b16 %v669
        %v1246 = vunpack.c.h.b16 %v669
        %v1247 = vunpack.c.l.b16 %v670
        %v1248 = vunpack.c.l.b16 %v671
        %v1249 = vunpack.c.h.b16 %v671
        %v1250 = vunpack.c.l.b16 %v672
        %v1251 = vunpack.c.h.b16 %v672
        %v1252 = vunpack.c.l.b16 %v673
        %v1253 = vunpack.c.h.b16 %v673
        %v1254 = vunpack.c.l.b16 %v674
        %v1255 = vunpack.c.l.b16 %v675
        %v1256 = vunpack.c.h.b16 %v675
        %v1257 = vunpack.c.l.b16 %v676
        %v1258 = vunpack.c.h.b16 %v676
        %v1259 = vunpack.c.l.b16 %v677
        %v1260 = vunpack.c.h.b16 %v677
        %v1261 = vunpack.c.l.b16 %v678
        %v1262 = vunpack.c.l.b16 %v679
        %v1263 = vunpack.c.h.b16 %v679
        %v1264 = vunpack.c.l.b16 %v680
        %v1265 = vunpack.c.h.b16 %v680
        %v1266 = vunpack.c.l.b16 %v681
        %v1267 = vunpack.c.h.b16 %v681
        %v1268 = vunpack.c.l.b16 %v682
        %v1269 = vunpack.c.l.b16 %v683
        %v1270 = vunpack.c.h.b16 %v683
        %v1271 = vunpack.c.l.b16 %v684
        %v1272 = vunpack.c.h.b16 %v684
        %v1273 = vunpack.c.l.b16 %v685
        %v1274 = vunpack.c.h.b16 %v685
        %v1275 = vunpack.c.l.b16 %v686
        %v1276 = vunpack.c.l.b16 %v687
        %v1277 = vunpack.c.h.b16 %v687
        %v1278 = vunpack.c.l.b16 %v688
        %v1279 = vunpack.c.h.b16 %v688
        %v1280 = vunpack.c.l.b16 %v689
        %v1281 = vunpack.c.h.b16 %v689
        %v1282 = vunpack.c.l.b16 %v690
        %v1283 = vunpack.c.l.b16 %v691
        %v1284 = vunpack.c.h.b16 %v691
        %v1285 = vunpack.c.l.b16 %v692
        %v1286 = vunpack.c.h.b16 %v692
        %v1287 = vunpack.c.l.b16 %v693
        %v1288 = vunpack.c.h.b16 %v693
        %v1289 = vunpack.c.l.b16 %v694
        %v1290 = vunpack.c.l.b16 %v695
        %v1291 = vunpack.c.h.b16 %v695
        %v1292 = vunpack.c.l.b16 %v696
        %v1293 = vunpack.c.h.b16 %v696
        %v1294 = vunpack.c.l.b16 %v697
        %v1295 = vunpack.c.h.b16 %v697
        %v1296 = vunpack.c.l.b16 %v698
        %v1297 = vunpack.c.l.b16 %v699
        %v1298 = vunpack.c.h.b16 %v699
        %v1299 = vunpack.c.l.b16 %v700
        %v1300 = vunpack.c.h.b16 %v700
        %v1301 = vunpack.c.l.b16 %v701
        %v1302 = vunpack.c.h.b16 %v701
        %v1303 = vunpack.c.l.b16 %v702
        %v1304 = vunpack.c.l.b16 %v703
        %v1305 = vunpack.c.h.b16 %v703
        %v1306 = vunpack.c.l.b16 %v704
        %v1307 = vunpack.c.h.b16 %v704
        %v1308 = vunpack.c.l.b16 %v705
        %v1309 = vunpack.c.h.b16 %v705
        %v1310 = vunpack.c.l.b16 %v706
        %v1311 = vunpack.c.l.b16 %v707
        %v1312 = vunpack.c.h.b16 %v707
        %v1313 = vunpack.c.l.b16 %v708
        %v1314 = vunpack.c.h.b16 %v708
        %v1315 = vunpack.c.l.b16 %v709
        %v1316 = vunpack.c.h.b16 %v709
        %v1317 = vunpack.c.l.b16 %v710
        %v1318 = vunpack.c.l.b16 %v711
        %v1319 = vunpack.c.h.b16 %v711
        %v1320 = vunpack.c.l.b16 %v712
        %v1321 = vunpack.c.h.b16 %v712
        %v1322 = vunpack.c.l.b16 %v713
        %v1323 = vunpack.c.h.b16 %v713
        %v1324 = vunpack.c.l.b16 %v714
        %v1325 = vunpack.c.l.b16 %v715
        %v1326 = vunpack.c.h.b16 %v715
        %v1327 = vunpack.c.l.b16 %v716
        %v1328 = vunpack.c.h.b16 %v716
        %v1329 = vunpack.c.l.b16 %v717
        %v1330 = vunpack.c.h.b16 %v717
        %v1331 = vunpack.c.l.b16 %v718
        %v1332 = vunpack.c.l.b16 %v719
        %v1333 = vunpack.c.h.b16 %v719
        %v1334 = vunpack.c.l.b16 %v720
        %v1335 = vunpack.c.h.b16 %v720
        %v1336 = vunpack.c.l.b16 %v721
        %v1337 = vunpack.c.h.b16 %v721
        %v1338 = vunpack.c.l.b16 %v722
        %v1339 = vunpack.c.l.b16 %v723
        %v1340 = vunpack.c.h.b16 %v723
        %v1341 = vunpack.c.l.b16 %v724
        %v1342 = vunpack.c.h.b16 %v724
        %v1343 = vunpack.c.l.b16 %v725
        %v1344 = vunpack.c.h.b16 %v725
        %v1345 = vunpack.c.l.b16 %v726
        %v1346 = vunpack.c.l.b16 %v727
        %v1347 = vunpack.c.h.b16 %v727
        %v1348 = vunpack.c.l.b16 %v728
        %v1349 = vunpack.c.h.b16 %v728
        %v1350 = vunpack.c.l.b16 %v729
        %v1351 = vunpack.c.h.b16 %v729
        %v1352 = vunpack.c.l.b16 %v730
        %v1353 = vunpack.c.l.b16 %v731
        %v1354 = vunpack.c.h.b16 %v731
        %v1355 = vunpack.c.l.b16 %v732
        %v1356 = vunpack.c.h.b16 %v732
        %v1357 = vunpack.c.l.b16 %v733
        %v1358 = vunpack.c.h.b16 %v733
        %v1359 = vunpack.c.l.b16 %v734
        %v1360 = vunpack.c.l.b16 %v735
        %v1361 = vunpack.c.h.b16 %v735
        %v1362 = vunpack.c.l.b16 %v736
        %v1363 = vunpack.c.h.b16 %v736
        %v1364 = vunpack.c.l.b16 %v737
        %v1365 = vunpack.c.h.b16 %v737
        %v1366 = vunpack.c.l.b16 %v738
        %v1367 = vunpack.c.l.b16 %v739
        %v1368 = vunpack.c.h.b16 %v739
        %v1369 = vunpack.c.l.b16 %v740
        %v1370 = vunpack.c.h.b16 %v740
        %v1371 = vunpack.c.l.b16 %v741
        %v1372 = vunpack.c.h.b16 %v741
        %v1373 = vunpack.c.l.b16 %v742
        %v1374 = vunpack.c.l.b16 %v743
        %v1375 = vunpack.c.h.b16 %v743
        %v1376 = vunpack.c.l.b16 %v744
        %v1377 = vunpack.c.h.b16 %v744
        %v1378 = vunpack.c.l.b16 %v745
        %v1379 = vunpack.c.h.b16 %v745
        %v1380 = vunpack.c.l.b16 %v746
        %v1381 = vunpack.c.l.b16 %v747
        %v1382 = vunpack.c.h.b16 %v747
        %v1383 = vunpack.c.l.b16 %v748
        %v1384 = vunpack.c.h.b16 %v748
        %v1385 = vunpack.c.l.b16 %v749
        %v1386 = vunpack.c.h.b16 %v749
        %v1387 = vunpack.c.l.b16 %v750
        %v1388 = vunpack.c.l.b16 %v751
        %v1389 = vunpack.c.h.b16 %v751
        %v1390 = vunpack.c.l.b16 %v752
        %v1391 = vunpack.c.h.b16 %v752
        %v1392 = vunpack.c.l.b16 %v753
        %v1393 = vunpack.c.h.b16 %v753
        %v1394 = vunpack.c.l.b16 %v754
        %v1395 = vpack.c.b16 %v1122, %v1115
        %v1396 = vpack.c.b16 %v1123, %v1116
        %v1397 = vpack.c.b16 %v1124, %v1117
        %v1398 = vpack.c.b16 %v1125, %v1118
        %v1399 = vpack.c.b16 %v1126, %v1119
        %v1400 = vpack.c.b16 %v1127, %v1120
        %v1401 = vpack.c.b16 %v1128, %v1121
        %v1402 = vpack.c.b16 %v1136, %v1129
        %v1403 = vpack.c.b16 %v1137, %v1130
        %v1404 = vpack.c.b16 %v1138, %v1131
        %v1405 = vpack.c.b16 %v1139, %v1132
        %v1406 = vpack.c.b16 %v1140, %v1133
        %v1407 = vpack.c.b16 %v1141, %v1134
        %v1408 = vpack.c.b16 %v1142, %v1135
        %v1409 = vpack.c.b16 %v1150, %v1143
        %v1410 = vpack.c.b16 %v1151, %v1144
        %v1411 = vpack.c.b16 %v1152, %v1145
        %v1412 = vpack.c.b16 %v1153, %v1146
        %v1413 = vpack.c.b16 %v1154, %v1147
        %v1414 = vpack.c.b16 %v1155, %v1148
        %v1415 = vpack.c.b16 %v1156, %v1149
        %v1416 = vpack.c.b16 %v1164, %v1157
        %v1417 = vpack.c.b16 %v1165, %v1158
        %v1418 = vpack.c.b16 %v1166, %v1159
        %v1419 = vpack.c.b16 %v1167, %v1160
        %v1420 = vpack.c.b16 %v1168, %v1161
        %v1421 = vpack.c.b16 %v1169, %v1162
        %v1422 = vpack.c.b16 %v1170, %v1163
        %v1423 = vpack.c.b16 %v1178, %v1171
        %v1424 = vpack.c.b16 %v1179, %v1172
        %v1425 = vpack.c.b16 %v1180, %v1173
        %v1426 = vpack.c.b16 %v1181, %v1174
        %v1427 = vpack.c.b16 %v1182, %v1175
        %v1428 = vpack.c.b16 %v1183, %v1176
        %v1429 = vpack.c.b16 %v1184, %v1177
        %v1430 = vpack.c.b16 %v1192, %v1185
        %v1431 = vpack.c.b16 %v1193, %v1186
        %v1432 = vpack.c.b16 %v1194, %v1187
        %v1433 = vpack.c.b16 %v1195, %v1188
        %v1434 = vpack.c.b16 %v1196, %v1189
        %v1435 = vpack.c.b16 %v1197, %v1190
        %v1436 = vpack.c.b16 %v1198, %v1191
        %v1437 = vpack.c.b16 %v1206, %v1199
        %v1438 = vpack.c.b16 %v1207, %v1200
        %v1439 = vpack.c.b16 %v1208, %v1201
        %v1440 = vpack.c.b16 %v1209, %v1202
        %v1441 = vpack.c.b16 %v1210, %v1203
        %v1442 = vpack.c.b16 %v1211, %v1204
        %v1443 = vpack.c.b16 %v1212, %v1205
        %v1444 = vpack.c.b16 %v1220, %v1213
        %v1445 = vpack.c.b16 %v1221, %v1214
        %v1446 = vpack.c.b16 %v1222, %v1215
        %v1447 = vpack.c.b16 %v1223, %v1216
        %v1448 = vpack.c.b16 %v1224, %v1217
        %v1449 = vpack.c.b16 %v1225, %v1218
        %v1450 = vpack.c.b16 %v1226, %v1219
        %v1451 = vpack.c.b16 %v1234, %v1227
        %v1452 = vpack.c.b16 %v1235, %v1228
        %v1453 = vpack.c.b16 %v1236, %v1229
        %v1454 = vpack.c.b16 %v1237, %v1230
        %v1455 = vpack.c.b16 %v1238, %v1231
        %v1456 = vpack.c.b16 %v1239, %v1232
        %v1457 = vpack.c.b16 %v1240, %v1233
        %v1458 = vpack.c.b16 %v1248, %v1241
        %v1459 = vpack.c.b16 %v1249, %v1242
        %v1460 = vpack.c.b16 %v1250, %v1243
        %v1461 = vpack.c.b16 %v1251, %v1244
        %v1462 = vpack.c.b16 %v1252, %v1245
        %v1463 = vpack.c.b16 %v1253, %v1246
        %v1464 = vpack.c.b16 %v1254, %v1247
        %v1465 = vpack.c.b16 %v1262, %v1255
        %v1466 = vpack.c.b16 %v1263, %v1256
        %v1467 = vpack.c.b16 %v1264, %v1257
        %v1468 = vpack.c.b16 %v1265, %v1258
        %v1469 = vpack.c.b16 %v1266, %v1259
        %v1470 = vpack.c.b16 %v1267, %v1260
        %v1471 = vpack.c.b16 %v1268, %v1261
        %v1472 = vpack.c.b16 %v1276, %v1269
        %v1473 = vpack.c.b16 %v1277, %v1270
        %v1474 = vpack.c.b16 %v1278, %v1271
        %v1475 = vpack.c.b16 %v1279, %v1272
        %v1476 = vpack.c.b16 %v1280, %v1273
        %v1477 = vpack.c.b16 %v1281, %v1274
        %v1478 = vpack.c.b16 %v1282, %v1275
        %v1479 = vpack.c.b16 %v1290, %v1283
        %v1480 = vpack.c.b16 %v1291, %v1284
        %v1481 = vpack.c.b16 %v1292, %v1285
        %v1482 = vpack.c.b16 %v1293, %v1286
        %v1483 = vpack.c.b16 %v1294, %v1287
        %v1484 = vpack.c.b16 %v1295, %v1288
        %v1485 = vpack.c.b16 %v1296, %v1289
        %v1486 = vpack.c.b16 %v1304, %v1297
        %v1487 = vpack.c.b16 %v1305, %v1298
        %v1488 = vpack.c.b16 %v1306, %v1299
        %v1489 = vpack.c.b16 %v1307, %v1300
        %v1490 = vpack.c.b16 %v1308, %v1301
        %v1491 = vpack.c.b16 %v1309, %v1302
        %v1492 = vpack.c.b16 %v1310, %v1303
        %v1493 = vpack.c.b16 %v1318, %v1311
        %v1494 = vpack.c.b16 %v1319, %v1312
        %v1495 = vpack.c.b16 %v1320, %v1313
        %v1496 = vpack.c.b16 %v1321, %v1314
        %v1497 = vpack.c.b16 %v1322, %v1315
        %v1498 = vpack.c.b16 %v1323, %v1316
        %v1499 = vpack.c.b16 %v1324, %v1317
        %v1500 = vpack.c.b16 %v1332, %v1325
        %v1501 = vpack.c.b16 %v1333, %v1326
        %v1502 = vpack.c.b16 %v1334, %v1327
        %v1503 = vpack.c.b16 %v1335, %v1328
        %v1504 = vpack.c.b16 %v1336, %v1329
        %v1505 = vpack.c.b16 %v1337, %v1330
        %v1506 = vpack.c.b16 %v1338, %v1331
        %v1507 = vpack.c.b16 %v1346, %v1339
        %v1508 = vpack.c.b16 %v1347, %v1340
        %v1509 = vpack.c.b16 %v1348, %v1341
        %v1510 = vpack.c.b16 %v1349, %v1342
        %v1511 = vpack.c.b16 %v1350, %v1343
        %v1512 = vpack.c.b16 %v1351, %v1344
        %v1513 = vpack.c.b16 %v1352, %v1345
        %v1514 = vpack.c.b16 %v1360, %v1353
        %v1515 = vpack.c.b16 %v1361, %v1354
        %v1516 = vpack.c.b16 %v1362, %v1355
        %v1517 = vpack.c.b16 %v1363, %v1356
        %v1518 = vpack.c.b16 %v1364, %v1357
        %v1519 = vpack.c.b16 %v1365, %v1358
        %v1520 = vpack.c.b16 %v1366, %v1359
        %v1521 = vpack.c.b16 %v1374, %v1367
        %v1522 = vpack.c.b16 %v1375, %v1368
        %v1523 = vpack.c.b16 %v1376, %v1369
        %v1524 = vpack.c.b16 %v1377, %v1370
        %v1525 = vpack.c.b16 %v1378, %v1371
        %v1526 = vpack.c.b16 %v1379, %v1372
        %v1527 = vpack.c.b16 %v1380, %v1373
        %v1528 = vpack.c.b16 %v1388, %v1381
        %v1529 = vpack.c.b16 %v1389, %v1382
        %v1530 = vpack.c.b16 %v1390, %v1383
        %v1531 = vpack.c.b16 %v1391, %v1384
        %v1532 = vpack.c.b16 %v1392, %v1385
        %v1533 = vpack.c.b16 %v1393, %v1386
        %v1534 = vpack.c.b16 %v1394, %v1387
        %v1855 = vunpack.c.l.b16 %v755
        %v1856 = vunpack.c.h.b16 %v755
        %v1857 = vunpack.c.l.b16 %v756
        %v1858 = vunpack.c.l.b16 %v757
        %v1859 = vunpack.c.h.b16 %v757
        %v1860 = vunpack.c.l.b16 %v758
        %v1861 = vunpack.c.l.b16 %v759
        %v1862 = vunpack.c.h.b16 %v759
        %v1863 = vunpack.c.l.b16 %v760
        %v1864 = vunpack.c.l.b16 %v761
        %v1865 = vunpack.c.h.b16 %v761
        %v1866 = vunpack.c.l.b16 %v762
        %v1867 = vunpack.c.l.b16 %v763
        %v1868 = vunpack.c.h.b16 %v763
        %v1869 = vunpack.c.l.b16 %v764
        %v1870 = vunpack.c.l.b16 %v765
        %v1871 = vunpack.c.h.b16 %v765
        %v1872 = vunpack.c.l.b16 %v766
        %v1873 = vunpack.c.l.b16 %v767
        %v1874 = vunpack.c.h.b16 %v767
        %v1875 = vunpack.c.l.b16 %v768
        %v1876 = vunpack.c.l.b16 %v769
        %v1877 = vunpack.c.h.b16 %v769
        %v1878 = vunpack.c.l.b16 %v770
        %v1879 = vunpack.c.l.b16 %v771
        %v1880 = vunpack.c.h.b16 %v771
        %v1881 = vunpack.c.l.b16 %v772
        %v1882 = vunpack.c.l.b16 %v773
        %v1883 = vunpack.c.h.b16 %v773
        %v1884 = vunpack.c.l.b16 %v774
        %v1885 = vunpack.c.l.b16 %v775
        %v1886 = vunpack.c.h.b16 %v775
        %v1887 = vunpack.c.l.b16 %v776
        %v1888 = vunpack.c.l.b16 %v777
        %v1889 = vunpack.c.h.b16 %v777
        %v1890 = vunpack.c.l.b16 %v778
        %v1891 = vunpack.c.l.b16 %v779
        %v1892 = vunpack.c.h.b16 %v779
        %v1893 = vunpack.c.l.b16 %v780
        %v1894 = vunpack.c.l.b16 %v781
        %v1895 = vunpack.c.h.b16 %v781
        %v1896 = vunpack.c.l.b16 %v782
        %v1897 = vunpack.c.l.b16 %v783
        %v1898 = vunpack.c.h.b16 %v783
        %v1899 = vunpack.c.l.b16 %v784
        %v1900 = vunpack.c.l.b16 %v785
        %v1901 = vunpack.c.h.b16 %v785
        %v1902 = vunpack.c.l.b16 %v786
        %v1903 = vunpack.c.l.b16 %v787
        %v1904 = vunpack.c.h.b16 %v787
        %v1905 = vunpack.c.l.b16 %v788
        %v1906 = vunpack.c.l.b16 %v789
        %v1907 = vunpack.c.h.b16 %v789
        %v1908 = vunpack.c.l.b16 %v790
        %v1909 = vunpack.c.l.b16 %v791
        %v1910 = vunpack.c.h.b16 %v791
        %v1911 = vunpack.c.l.b16 %v792
        %v1912 = vunpack.c.l.b16 %v793
        %v1913 = vunpack.c.h.b16 %v793
        %v1914 = vunpack.c.l.b16 %v794
        %v1915 = vunpack.c.l.b16 %v795
        %v1916 = vunpack.c.h.b16 %v795
        %v1917 = vunpack.c.l.b16 %v796
        %v1918 = vunpack.c.l.b16 %v797
        %v1919 = vunpack.c.h.b16 %v797
        %v1920 = vunpack.c.l.b16 %v798
        %v1921 = vunpack.c.l.b16 %v799
        %v1922 = vunpack.c.h.b16 %v799
        %v1923 = vunpack.c.l.b16 %v800
        %v1924 = vunpack.c.l.b16 %v801
        %v1925 = vunpack.c.h.b16 %v801
        %v1926 = vunpack.c.l.b16 %v802
        %v1927 = vunpack.c.l.b16 %v803
        %v1928 = vunpack.c.h.b16 %v803
        %v1929 = vunpack.c.l.b16 %v804
        %v1930 = vunpack.c.l.b16 %v805
        %v1931 = vunpack.c.h.b16 %v805
        %v1932 = vunpack.c.l.b16 %v806
        %v1933 = vunpack.c.l.b16 %v807
        %v1934 = vunpack.c.h.b16 %v807
        %v1935 = vunpack.c.l.b16 %v808
        %v1936 = vunpack.c.l.b16 %v809
        %v1937 = vunpack.c.h.b16 %v809
        %v1938 = vunpack.c.l.b16 %v810
        %v1939 = vunpack.c.l.b16 %v811
        %v1940 = vunpack.c.h.b16 %v811
        %v1941 = vunpack.c.l.b16 %v812
        %v1942 = vunpack.c.l.b16 %v813
        %v1943 = vunpack.c.h.b16 %v813
        %v1944 = vunpack.c.l.b16 %v814
        %v1945 = vunpack.c.l.b16 %v815
        %v1946 = vunpack.c.h.b16 %v815
        %v1947 = vunpack.c.l.b16 %v816
        %v1948 = vunpack.c.l.b16 %v817
        %v1949 = vunpack.c.h.b16 %v817
        %v1950 = vunpack.c.l.b16 %v818
        %v1951 = vunpack.c.l.b16 %v819
        %v1952 = vunpack.c.h.b16 %v819
        %v1953 = vunpack.c.l.b16 %v820
        %v1954 = vunpack.c.l.b16 %v821
        %v1955 = vunpack.c.h.b16 %v821
        %v1956 = vunpack.c.l.b16 %v822
        %v1957 = vunpack.c.l.b16 %v823
        %v1958 = vunpack.c.h.b16 %v823
        %v1959 = vunpack.c.l.b16 %v824
        %v1960 = vunpack.c.l.b16 %v825
        %v1961 = vunpack.c.h.b16 %v825
        %v1962 = vunpack.c.l.b16 %v826
        %v1963 = vunpack.c.l.b16 %v827
        %v1964 = vunpack.c.h.b16 %v827
        %v1965 = vunpack.c.l.b16 %v828
        %v1966 = vunpack.c.l.b16 %v829
        %v1967 = vunpack.c.h.b16 %v829
        %v1968 = vunpack.c.l.b16 %v830
        %v1969 = vunpack.c.l.b16 %v831
        %v1970 = vunpack.c.h.b16 %v831
        %v1971 = vunpack.c.l.b16 %v832
        %v1972 = vunpack.c.l.b16 %v833
        %v1973 = vunpack.c.h.b16 %v833
        %v1974 = vunpack.c.l.b16 %v834
        %v1975 = vunpack.c.l.b16 %v835
        %v1976 = vunpack.c.h.b16 %v835
        %v1977 = vunpack.c.l.b16 %v836
        %v1978 = vunpack.c.l.b16 %v837
        %v1979 = vunpack.c.h.b16 %v837
        %v1980 = vunpack.c.l.b16 %v838
        %v1981 = vunpack.c.l.b16 %v839
        %v1982 = vunpack.c.h.b16 %v839
        %v1983 = vunpack.c.l.b16 %v840
        %v1984 = vunpack.c.l.b16 %v841
        %v1985 = vunpack.c.h.b16 %v841
        %v1986 = vunpack.c.l.b16 %v842
        %v1987 = vunpack.c.l.b16 %v843
        %v1988 = vunpack.c.h.b16 %v843
        %v1989 = vunpack.c.l.b16 %v844
        %v1990 = vunpack.c.l.b16 %v845
        %v1991 = vunpack.c.h.b16 %v845
        %v1992 = vunpack.c.l.b16 %v846
        %v1993 = vunpack.c.l.b16 %v847
        %v1994 = vunpack.c.h.b16 %v847
        %v1995 = vunpack.c.l.b16 %v848
        %v1996 = vunpack.c.l.b16 %v849
        %v1997 = vunpack.c.h.b16 %v849
        %v1998 = vunpack.c.l.b16 %v850
        %v1999 = vunpack.c.l.b16 %v851
        %v2000 = vunpack.c.h.b16 %v851
        %v2001 = vunpack.c.l.b16 %v852
        %v2002 = vunpack.c.l.b16 %v853
        %v2003 = vunpack.c.h.b16 %v853
        %v2004 = vunpack.c.l.b16 %v854
        %v2005 = vunpack.c.l.b16 %v855
        %v2006 = vunpack.c.h.b16 %v855
        %v2007 = vunpack.c.l.b16 %v856
        %v2008 = vunpack.c.l.b16 %v857
        %v2009 = vunpack.c.h.b16 %v857
        %v2010 = vunpack.c.l.b16 %v858
        %v2011 = vunpack.c.l.b16 %v859
        %v2012 = vunpack.c.h.b16 %v859
        %v2013 = vunpack.c.l.b16 %v860
        %v2014 = vunpack.c.l.b16 %v861
        %v2015 = vunpack.c.h.b16 %v861
        %v2016 = vunpack.c.l.b16 %v862
        %v2017 = vunpack.c.l.b16 %v863
        %v2018 = vunpack.c.h.b16 %v863
        %v2019 = vunpack.c.l.b16 %v864
        %v2020 = vunpack.c.l.b16 %v865
        %v2021 = vunpack.c.h.b16 %v865
        %v2022 = vunpack.c.l.b16 %v866
        %v2023 = vunpack.c.l.b16 %v867
        %v2024 = vunpack.c.h.b16 %v867
        %v2025 = vunpack.c.l.b16 %v868
        %v2026 = vunpack.c.l.b16 %v869
        %v2027 = vunpack.c.h.b16 %v869
        %v2028 = vunpack.c.l.b16 %v870
        %v2029 = vunpack.c.l.b16 %v871
        %v2030 = vunpack.c.h.b16 %v871
        %v2031 = vunpack.c.l.b16 %v872
        %v2032 = vunpack.c.l.b16 %v873
        %v2033 = vunpack.c.h.b16 %v873
        %v2034 = vunpack.c.l.b16 %v874
        %v2035 = vunpack.c.l.b16 %v875
        %v2036 = vunpack.c.h.b16 %v875
        %v2037 = vunpack.c.l.b16 %v876
        %v2038 = vunpack.c.l.b16 %v877
        %v2039 = vunpack.c.h.b16 %v877
        %v2040 = vunpack.c.l.b16 %v878
        %v2041 = vunpack.c.l.b16 %v879
        %v2042 = vunpack.c.h.b16 %v879
        %v2043 = vunpack.c.l.b16 %v880
        %v2044 = vunpack.c.l.b16 %v881
        %v2045 = vunpack.c.h.b16 %v881
        %v2046 = vunpack.c.l.b16 %v882
        %v2047 = vunpack.c.l.b16 %v883
        %v2048 = vunpack.c.h.b16 %v883
        %v2049 = vunpack.c.l.b16 %v884
        %v2050 = vunpack.c.l.b16 %v885
        %v2051 = vunpack.c.h.b16 %v885
        %v2052 = vunpack.c.l.b16 %v886
        %v2053 = vunpack.c.l.b16 %v887
        %v2054 = vunpack.c.h.b16 %v887
        %v2055 = vunpack.c.l.b16 %v888
        %v2056 = vunpack.c.l.b16 %v889
        %v2057 = vunpack.c.h.b16 %v889
        %v2058 = vunpack.c.l.b16 %v890
        %v2059 = vunpack.c.l.b16 %v891
        %v2060 = vunpack.c.h.b16 %v891
        %v2061 = vunpack.c.l.b16 %v892
        %v2062 = vunpack.c.l.b16 %v893
        %v2063 = vunpack.c.h.b16 %v893
        %v2064 = vunpack.c.l.b16 %v894
        %v2065 = vunpack.c.l.b16 %v895
        %v2066 = vunpack.c.h.b16 %v895
        %v2067 = vunpack.c.l.b16 %v896
        %v2068 = vunpack.c.l.b16 %v897
        %v2069 = vunpack.c.h.b16 %v897
        %v2070 = vunpack.c.l.b16 %v898
        %v2071 = vunpack.c.l.b16 %v899
        %v2072 = vunpack.c.h.b16 %v899
        %v2073 = vunpack.c.l.b16 %v900
        %v2074 = vunpack.c.l.b16 %v901
        %v2075 = vunpack.c.h.b16 %v901
        %v2076 = vunpack.c.l.b16 %v902
        %v2077 = vunpack.c.l.b16 %v903
        %v2078 = vunpack.c.h.b16 %v903
        %v2079 = vunpack.c.l.b16 %v904
        %v2080 = vunpack.c.l.b16 %v905
        %v2081 = vunpack.c.h.b16 %v905
        %v2082 = vunpack.c.l.b16 %v906
        %v2083 = vunpack.c.l.b16 %v907
        %v2084 = vunpack.c.h.b16 %v907
        %v2085 = vunpack.c.l.b16 %v908
        %v2086 = vunpack.c.l.b16 %v909
        %v2087 = vunpack.c.h.b16 %v909
        %v2088 = vunpack.c.l.b16 %v910
        %v2089 = vunpack.c.l.b16 %v911
        %v2090 = vunpack.c.h.b16 %v911
        %v2091 = vunpack.c.l.b16 %v912
        %v2092 = vunpack.c.l.b16 %v913
        %v2093 = vunpack.c.h.b16 %v913
        %v2094 = vunpack.c.l.b16 %v914
        %v2095 = vunpack.c.l.b16 %v915
        %v2096 = vunpack.c.h.b16 %v915
        %v2097 = vunpack.c.l.b16 %v916
        %v2098 = vunpack.c.l.b16 %v917
        %v2099 = vunpack.c.h.b16 %v917
        %v2100 = vunpack.c.l.b16 %v918
        %v2101 = vunpack.c.l.b16 %v919
        %v2102 = vunpack.c.h.b16 %v919
        %v2103 = vunpack.c.l.b16 %v920
        %v2104 = vunpack.c.l.b16 %v921
        %v2105 = vunpack.c.h.b16 %v921
        %v2106 = vunpack.c.l.b16 %v922
        %v2107 = vunpack.c.l.b16 %v923
        %v2108 = vunpack.c.h.b16 %v923
        %v2109 = vunpack.c.l.b16 %v924
        %v2110 = vunpack.c.l.b16 %v925
        %v2111 = vunpack.c.h.b16 %v925
        %v2112 = vunpack.c.l.b16 %v926
        %v2113 = vunpack.c.l.b16 %v927
        %v2114 = vunpack.c.h.b16 %v927
        %v2115 = vunpack.c.l.b16 %v928
        %v2116 = vunpack.c.l.b16 %v929
        %v2117 = vunpack.c.h.b16 %v929
        %v2118 = vunpack.c.l.b16 %v930
        %v2119 = vunpack.c.l.b16 %v931
        %v2120 = vunpack.c.h.b16 %v931
        %v2121 = vunpack.c.l.b16 %v932
        %v2122 = vunpack.c.l.b16 %v933
        %v2123 = vunpack.c.h.b16 %v933
        %v2124 = vunpack.c.l.b16 %v934
        %v2125 = vunpack.c.l.b16 %v935
        %v2126 = vunpack.c.h.b16 %v935
        %v2127 = vunpack.c.l.b16 %v936
        %v2128 = vunpack.c.l.b16 %v937
        %v2129 = vunpack.c.h.b16 %v937
        %v2130 = vunpack.c.l.b16 %v938
        %v2131 = vunpack.c.l.b16 %v939
        %v2132 = vunpack.c.h.b16 %v939
        %v2133 = vunpack.c.l.b16 %v940
        %v2134 = vunpack.c.l.b16 %v941
        %v2135 = vunpack.c.h.b16 %v941
        %v2136 = vunpack.c.l.b16 %v942
        %v2137 = vunpack.c.l.b16 %v943
        %v2138 = vunpack.c.h.b16 %v943
        %v2139 = vunpack.c.l.b16 %v944
        %v2140 = vunpack.c.l.b16 %v945
        %v2141 = vunpack.c.h.b16 %v945
        %v2142 = vunpack.c.l.b16 %v946
        %v2143 = vunpack.c.l.b16 %v947
        %v2144 = vunpack.c.h.b16 %v947
        %v2145 = vunpack.c.l.b16 %v948
        %v2146 = vunpack.c.l.b16 %v949
        %v2147 = vunpack.c.h.b16 %v949
        %v2148 = vunpack.c.l.b16 %v950
        %v2149 = vunpack.c.l.b16 %v951
        %v2150 = vunpack.c.h.b16 %v951
        %v2151 = vunpack.c.l.b16 %v952
        %v2152 = vunpack.c.l.b16 %v953
        %v2153 = vunpack.c.h.b16 %v953
        %v2154 = vunpack.c.l.b16 %v954
        %v2155 = vpack.c.b16 %v1858, %v1855
        %v2156 = vpack.c.b16 %v1859, %v1856
        %v2157 = vpack.c.b16 %v1860, %v1857
        %v2158 = vpack.c.b16 %v1864, %v1861
        %v2159 = vpack.c.b16 %v1865, %v1862
        %v2160 = vpack.c.b16 %v1866, %v1863
        %v2161 = vpack.c.b16 %v1870, %v1867
        %v2162 = vpack.c.b16 %v1871, %v1868
        %v2163 = vpack.c.b16 %v1872, %v1869
        %v2164 = vpack.c.b16 %v1876, %v1873
        %v2165 = vpack.c.b16 %v1877, %v1874
        %v2166 = vpack.c.b16 %v1878, %v1875
        %v2167 = vpack.c.b16 %v1882, %v1879
        %v2168 = vpack.c.b16 %v1883, %v1880
        %v2169 = vpack.c.b16 %v1884, %v1881
        %v2170 = vpack.c.b16 %v1888, %v1885
        %v2171 = vpack.c.b16 %v1889, %v1886
        %v2172 = vpack.c.b16 %v1890, %v1887
        %v2173 = vpack.c.b16 %v1894, %v1891
        %v2174 = vpack.c.b16 %v1895, %v1892
        %v2175 = vpack.c.b16 %v1896, %v1893
        %v2176 = vpack.c.b16 %v1900, %v1897
        %v2177 = vpack.c.b16 %v1901, %v1898
        %v2178 = vpack.c.b16 %v1902, %v1899
        %v2179 = vpack.c.b16 %v1906, %v1903
        %v2180 = vpack.c.b16 %v1907, %v1904
        %v2181 = vpack.c.b16 %v1908, %v1905
        %v2182 = vpack.c.b16 %v1912, %v1909
        %v2183 = vpack.c.b16 %v1913, %v1910
        %v2184 = vpack.c.b16 %v1914, %v1911
        %v2185 = vpack.c.b16 %v1918, %v1915
        %v2186 = vpack.c.b16 %v1919, %v1916
        %v2187 = vpack.c.b16 %v1920, %v1917
        %v2188 = vpack.c.b16 %v1924, %v1921
        %v2189 = vpack.c.b16 %v1925, %v1922
        %v2190 = vpack.c.b16 %v1926, %v1923
        %v2191 = vpack.c.b16 %v1930, %v1927
        %v2192 = vpack.c.b16 %v1931, %v1928
        %v2193 = vpack.c.b16 %v1932, %v1929
        %v2194 = vpack.c.b16 %v1936, %v1933
        %v2195 = vpack.c.b16 %v1937, %v1934
        %v2196 = vpack.c.b16 %v1938, %v1935
        %v2197 = vpack.c.b16 %v1942, %v1939
        %v2198 = vpack.c.b16 %v1943, %v1940
        %v2199 = vpack.c.b16 %v1944, %v1941
        %v2200 = vpack.c.b16 %v1948, %v1945
        %v2201 = vpack.c.b16 %v1949, %v1946
        %v2202 = vpack.c.b16 %v1950, %v1947
        %v2203 = vpack.c.b16 %v1954, %v1951
        %v2204 = vpack.c.b16 %v1955, %v1952
        %v2205 = vpack.c.b16 %v1956, %v1953
        %v2206 = vpack.c.b16 %v1960, %v1957
        %v2207 = vpack.c.b16 %v1961, %v1958
        %v2208 = vpack.c.b16 %v1962, %v1959
        %v2209 = vpack.c.b16 %v1966, %v1963
        %v2210 = vpack.c.b16 %v1967, %v1964
        %v2211 = vpack.c.b16 %v1968, %v1965
        %v2212 = vpack.c.b16 %v1972, %v1969
        %v2213 = vpack.c.b16 %v1973, %v1970
        %v2214 = vpack.c.b16 %v1974, %v1971
        %v2215 = vpack.c.b16 %v1978, %v1975
        %v2216 = vpack.c.b16 %v1979, %v1976
        %v2217 = vpack.c.b16 %v1980, %v1977
        %v2218 = vpack.c.b16 %v1984, %v1981
        %v2219 = vpack.c.b16 %v1985, %v1982
        %v2220 = vpack.c.b16 %v1986, %v1983
        %v2221 = vpack.c.b16 %v1990, %v1987
        %v2222 = vpack.c.b16 %v1991, %v1988
        %v2223 = vpack.c.b16 %v1992, %v1989
        %v2224 = vpack.c.b16 %v1996, %v1993
        %v2225 = vpack.c.b16 %v1997, %v1994
        %v2226 = vpack.c.b16 %v1998, %v1995
        %v2227 = vpack.c.b16 %v2002, %v1999
        %v2228 = vpack.c.b16 %v2003, %v2000
        %v2229 = vpack.c.b16 %v2004, %v2001
        %v2230 = vpack.c.b16 %v2008, %v2005
        %v2231 = vpack.c.b16 %v2009, %v2006
        %v2232 = vpack.c.b16 %v2010, %v2007
        %v2233 = vpack.c.b16 %v2014, %v2011
        %v2234 = vpack.c.b16 %v2015, %v2012
        %v2235 = vpack.c.b16 %v2016, %v2013
        %v2236 = vpack.c.b16 %v2020, %v2017
        %v2237 = vpack.c.b16 %v2021, %v2018
        %v2238 = vpack.c.b16 %v2022, %v2019
        %v2239 = vpack.c.b16 %v2026, %v2023
        %v2240 = vpack.c.b16 %v2027, %v2024
        %v2241 = vpack.c.b16 %v2028, %v2025
        %v2242 = vpack.c.b16 %v2032, %v2029
        %v2243 = vpack.c.b16 %v2033, %v2030
        %v2244 = vpack.c.b16 %v2034, %v2031
        %v2245 = vpack.c.b16 %v2038, %v2035
        %v2246 = vpack.c.b16 %v2039, %v2036
        %v2247 = vpack.c.b16 %v2040, %v2037
        %v2248 = vpack.c.b16 %v2044, %v2041
        %v2249 = vpack.c.b16 %v2045, %v2042
        %v2250 = vpack.c.b16 %v2046, %v2043
        %v2251 = vpack.c.b16 %v2050, %v2047
        %v2252 = vpack.c.b16 %v2051, %v2048
        %v2253 = vpack.c.b16 %v2052, %v2049
        %v2254 = vpack.c.b16 %v2056, %v2053
        %v2255 = vpack.c.b16 %v2057, %v2054
        %v2256 = vpack.c.b16 %v2058, %v2055
        %v2257 = vpack.c.b16 %v2062, %v2059
        %v2258 = vpack.c.b16 %v2063, %v2060
        %v2259 = vpack.c.b16 %v2064, %v2061
        %v2260 = vpack.c.b16 %v2068, %v2065
        %v2261 = vpack.c.b16 %v2069, %v2066
        %v2262 = vpack.c.b16 %v2070, %v2067
        %v2263 = vpack.c.b16 %v2074, %v2071
        %v2264 = vpack.c.b16 %v2075, %v2072
        %v2265 = vpack.c.b16 %v2076, %v2073
        %v2266 = vpack.c.b16 %v2080, %v2077
        %v2267 = vpack.c.b16 %v2081, %v2078
        %v2268 = vpack.c.b16 %v2082, %v2079
        %v2269 = vpack.c.b16 %v2086, %v2083
        %v2270 = vpack.c.b16 %v2087, %v2084
        %v2271 = vpack.c.b16 %v2088, %v2085
        %v2272 = vpack.c.b16 %v2092, %v2089
        %v2273 = vpack.c.b16 %v2093, %v2090
        %v2274 = vpack.c.b16 %v2094, %v2091
        %v2275 = vpack.c.b16 %v2098, %v2095
        %v2276 = vpack.c.b16 %v2099, %v2096
        %v2277 = vpack.c.b16 %v2100, %v2097
        %v2278 = vpack.c.b16 %v2104, %v2101
        %v2279 = vpack.c.b16 %v2105, %v2102
        %v2280 = vpack.c.b16 %v2106, %v2103
        %v2281 = vpack.c.b16 %v2110, %v2107
        %v2282 = vpack.c.b16 %v2111, %v2108
        %v2283 = vpack.c.b16 %v2112, %v2109
        %v2284 = vpack.c.b16 %v2116, %v2113
        %v2285 = vpack.c.b16 %v2117, %v2114
        %v2286 = vpack.c.b16 %v2118, %v2115
        %v2287 = vpack.c.b16 %v2122, %v2119
        %v2288 = vpack.c.b16 %v2123, %v2120
        %v2289 = vpack.c.b16 %v2124, %v2121
        %v2290 = vpack.c.b16 %v2128, %v2125
        %v2291 = vpack.c.b16 %v2129, %v2126
        %v2292 = vpack.c.b16 %v2130, %v2127
        %v2293 = vpack.c.b16 %v2134, %v2131
        %v2294 = vpack.c.b16 %v2135, %v2132
        %v2295 = vpack.c.b16 %v2136, %v2133
        %v2296 = vpack.c.b16 %v2140, %v2137
        %v2297 = vpack.c.b16 %v2141, %v2138
        %v2298 = vpack.c.b16 %v2142, %v2139
        %v2299 = vpack.c.b16 %v2146, %v2143
        %v2300 = vpack.c.b16 %v2147, %v2144
        %v2301 = vpack.c.b16 %v2148, %v2145
        %v2302 = vpack.c.b16 %v2152, %v2149
        %v2303 = vpack.c.b16 %v2153, %v2150
        %v2304 = vpack.c.b16 %v2154, %v2151
        %vm2455 = vcmask 261120
        %v2457 = vsel %vm2455, %v1401, 0
        %v2460 = vsel %vm2455, %v1408, 0
        %v2463 = vsel %vm2455, %v1415, 0
        %v2466 = vsel %vm2455, %v1422, 0
        %v2469 = vsel %vm2455, %v1429, 0
        %v2472 = vsel %vm2455, %v1436, 0
        %v2475 = vsel %vm2455, %v1443, 0
        %v2478 = vsel %vm2455, %v1450, 0
        %v2481 = vsel %vm2455, %v1457, 0
        %v2484 = vsel %vm2455, %v1464, 0
        %v2487 = vsel %vm2455, %v1471, 0
        %v2490 = vsel %vm2455, %v1478, 0
        %v2493 = vsel %vm2455, %v1485, 0
        %v2496 = vsel %vm2455, %v1492, 0
        %v2499 = vsel %vm2455, %v1499, 0
        %v2502 = vsel %vm2455, %v1506, 0
        %v2505 = vsel %vm2455, %v1513, 0
        %v2508 = vsel %vm2455, %v1520, 0
        %v2511 = vsel %vm2455, %v1527, 0
        %v2514 = vsel %vm2455, %v1534, 0
        %2516 = vmatprep.subr.bf16.mxu0 %v2156
        %2517 = vmatpush1.bf16.msra.mxu0 %v2155
        %2518 = vmatprep.subr.bf16.mxu0 %v2159
        %2519 = vmatpush1.bf16.msra.mxu0 %v2158
        %2520 = vmatprep.subr.bf16.mxu0 %v2162
        %2521 = vmatpush1.bf16.msra.mxu0 %v2161
        %2522 = vmatprep.subr.bf16.mxu0 %v2165
        %2523 = vmatpush1.bf16.msra.mxu0 %v2164
        %2524 = vmatprep.subr.bf16.mxu0 %v2168
        %2525 = vmatpush1.bf16.msra.mxu0 %v2167
        %2526 = vmatprep.subr.bf16.mxu0 %v2171
        %2527 = vmatpush1.bf16.msra.mxu0 %v2170
        %2528 = vmatprep.subr.bf16.mxu0 %v2174
        %2529 = vmatpush1.bf16.msra.mxu0 %v2173
        %2530 = vmatprep.subr.bf16.mxu0 %v2177
        %2531 = vmatpush1.bf16.msra.mxu0 %v2176
        %2532 = vmatprep.subr.bf16.mxu0 %v2180
        %2533 = vmatpush1.bf16.msra.mxu0 %v2179
        %2534 = vmatprep.subr.bf16.mxu0 %v2183
        %2535 = vmatpush1.bf16.msra.mxu0 %v2182
        %2536 = vmatprep.subr.bf16.mxu0 %v2186
        %2537 = vmatpush1.bf16.msra.mxu0 %v2185
        %2538 = vmatprep.subr.bf16.mxu0 %v2189
        %2539 = vmatpush1.bf16.msra.mxu0 %v2188
        %2540 = vmatprep.subr.bf16.mxu0 %v2192
        %2541 = vmatpush1.bf16.msra.mxu0 %v2191
        %2542 = vmatprep.subr.bf16.mxu0 %v2195
        %2543 = vmatpush1.bf16.msra.mxu0 %v2194
        %2544 = vmatprep.subr.bf16.mxu0 %v2198
        %2545 = vmatpush1.bf16.msra.mxu0 %v2197
        %2546 = vmatprep.subr.bf16.mxu0 %v2201
        %2547 = vmatpush1.bf16.msra.mxu0 %v2200
        %2548 = vmatprep.mubr.bf16.mxu0 %v1396
        %2549 = vmatmul.mubr.bf16.gmra.mrb[0].mxu0 %v1395
        %v2550 = vpop.f32.mrb[0].mxu0
        %v2551 = vadd.f32 0.0, %v2550
        %v2552 = vpop.f32.mrb[0].mxu0
        %v2553 = vadd.f32 0.0, %v2552
        %v2554 = vpop.f32.mrb[0].mxu0
        %v2555 = vadd.f32 0.0, %v2554
        %v2556 = vpop.f32.mrb[0].mxu0
        %v2557 = vadd.f32 0.0, %v2556
        %2558 = vmatprep.mubr.bf16.mxu0 %v1403
        %2559 = vmatmul.mubr.bf16.gmra.mrb[0].mxu0 %v1402
        %v2560 = vpop.f32.mrb[0].mxu0
        %v2561 = vadd.f32 0.0, %v2560
        %v2562 = vpop.f32.mrb[0].mxu0
        %v2563 = vadd.f32 0.0, %v2562
        %v2564 = vpop.f32.mrb[0].mxu0
        %v2565 = vadd.f32 0.0, %v2564
        %v2566 = vpop.f32.mrb[0].mxu0
        %v2567 = vadd.f32 0.0, %v2566
        %2568 = vmatprep.mubr.bf16.mxu0 %v1410
        %2569 = vmatmul.mubr.bf16.gmra.mrb[0].mxu0 %v1409
        %v2570 = vpop.f32.mrb[0].mxu0
        %v2571 = vadd.f32 0.0, %v2570
        %v2572 = vpop.f32.mrb[0].mxu0
        %v2573 = vadd.f32 0.0, %v2572
        %v2574 = vpop.f32.mrb[0].mxu0
        %v2575 = vadd.f32 0.0, %v2574
        %v2576 = vpop.f32.mrb[0].mxu0
        %v2577 = vadd.f32 0.0, %v2576
        %2578 = vmatprep.mubr.bf16.mxu0 %v1417
        %2579 = vmatmul.mubr.bf16.gmra.mrb[0].mxu0 %v1416
        %v2580 = vpop.f32.mrb[0].mxu0
        %v2581 = vadd.f32 0.0, %v2580
        %v2582 = vpop.f32.mrb[0].mxu0
        %v2583 = vadd.f32 0.0, %v2582
        %v2584 = vpop.f32.mrb[0].mxu0
        %v2585 = vadd.f32 0.0, %v2584
        %v2586 = vpop.f32.mrb[0].mxu0
        %v2587 = vadd.f32 0.0, %v2586
        %2588 = vmatprep.mubr.bf16.mxu0 %v1424
        %2589 = vmatmul.mubr.bf16.gmra.mrb[0].mxu0 %v1423
        %v2590 = vpop.f32.mrb[0].mxu0
        %v2591 = vadd.f32 0.0, %v2590
        %v2592 = vpop.f32.mrb[0].mxu0
        %v2593 = vadd.f32 0.0, %v2592
        %v2594 = vpop.f32.mrb[0].mxu0
        %v2595 = vadd.f32 0.0, %v2594
        %v2596 = vpop.f32.mrb[0].mxu0
        %v2597 = vadd.f32 0.0, %v2596
        %2598 = vmatprep.mubr.bf16.mxu0 %v1431
        %2599 = vmatmul.mubr.bf16.gmra.mrb[0].mxu0 %v1430
        %v2600 = vpop.f32.mrb[0].mxu0
        %v2601 = vadd.f32 0.0, %v2600
        %v2602 = vpop.f32.mrb[0].mxu0
        %v2603 = vadd.f32 0.0, %v2602
        %v2604 = vpop.f32.mrb[0].mxu0
        %v2605 = vadd.f32 0.0, %v2604
        %v2606 = vpop.f32.mrb[0].mxu0
        %v2607 = vadd.f32 0.0, %v2606
        %2608 = vmatprep.mubr.bf16.mxu0 %v1438
        %2609 = vmatmul.mubr.bf16.gmra.mrb[0].mxu0 %v1437
        %v2610 = vpop.f32.mrb[0].mxu0
        %v2611 = vadd.f32 0.0, %v2610
        %v2612 = vpop.f32.mrb[0].mxu0
        %v2613 = vadd.f32 0.0, %v2612
        %v2614 = vpop.f32.mrb[0].mxu0
        %v2615 = vadd.f32 0.0, %v2614
        %v2616 = vpop.f32.mrb[0].mxu0
        %v2617 = vadd.f32 0.0, %v2616
        %2618 = vmatprep.mubr.bf16.mxu0 %v1445
        %2619 = vmatmul.mubr.bf16.gmra.mrb[0].mxu0 %v1444
        %v2620 = vpop.f32.mrb[0].mxu0
        %v2621 = vadd.f32 0.0, %v2620
        %v2622 = vpop.f32.mrb[0].mxu0
        %v2623 = vadd.f32 0.0, %v2622
        %v2624 = vpop.f32.mrb[0].mxu0
        %v2625 = vadd.f32 0.0, %v2624
        %v2626 = vpop.f32.mrb[0].mxu0
        %v2627 = vadd.f32 0.0, %v2626
        %2628 = vmatprep.mubr.bf16.mxu0 %v1452
        %2629 = vmatmul.mubr.bf16.gmra.mrb[0].mxu0 %v1451
        %v2630 = vpop.f32.mrb[0].mxu0
        %v2631 = vadd.f32 0.0, %v2630
        %v2632 = vpop.f32.mrb[0].mxu0
        %v2633 = vadd.f32 0.0, %v2632
        %v2634 = vpop.f32.mrb[0].mxu0
        %v2635 = vadd.f32 0.0, %v2634
        %v2636 = vpop.f32.mrb[0].mxu0
        %v2637 = vadd.f32 0.0, %v2636
        %2638 = vmatprep.mubr.bf16.mxu0 %v1459
        %2639 = vmatmul.mubr.bf16.gmra.mrb[0].mxu0 %v1458
        %v2640 = vpop.f32.mrb[0].mxu0
        %v2641 = vadd.f32 0.0, %v2640
        %v2642 = vpop.f32.mrb[0].mxu0
        %v2643 = vadd.f32 0.0, %v2642
        %v2644 = vpop.f32.mrb[0].mxu0
        %v2645 = vadd.f32 0.0, %v2644
        %v2646 = vpop.f32.mrb[0].mxu0
        %v2647 = vadd.f32 0.0, %v2646
        %2648 = vmatprep.mubr.bf16.mxu0 %v1466
        %2649 = vmatmul.mubr.bf16.gmra.mrb[0].mxu0 %v1465
        %v2650 = vpop.f32.mrb[0].mxu0
        %v2651 = vadd.f32 0.0, %v2650
        %v2652 = vpop.f32.mrb[0].mxu0
        %v2653 = vadd.f32 0.0, %v2652
        %v2654 = vpop.f32.mrb[0].mxu0
        %v2655 = vadd.f32 0.0, %v2654
        %v2656 = vpop.f32.mrb[0].mxu0
        %v2657 = vadd.f32 0.0, %v2656
        %2658 = vmatprep.mubr.bf16.mxu0 %v1473
        %2659 = vmatmul.mubr.bf16.gmra.mrb[0].mxu0 %v1472
        %v2660 = vpop.f32.mrb[0].mxu0
        %v2661 = vadd.f32 0.0, %v2660
        %v2662 = vpop.f32.mrb[0].mxu0
        %v2663 = vadd.f32 0.0, %v2662
        %v2664 = vpop.f32.mrb[0].mxu0
        %v2665 = vadd.f32 0.0, %v2664
        %v2666 = vpop.f32.mrb[0].mxu0
        %v2667 = vadd.f32 0.0, %v2666
        %2668 = vmatprep.mubr.bf16.mxu0 %v1480
        %2669 = vmatmul.mubr.bf16.gmra.mrb[0].mxu0 %v1479
        %v2670 = vpop.f32.mrb[0].mxu0
        %v2671 = vadd.f32 0.0, %v2670
        %v2672 = vpop.f32.mrb[0].mxu0
        %v2673 = vadd.f32 0.0, %v2672
        %v2674 = vpop.f32.mrb[0].mxu0
        %v2675 = vadd.f32 0.0, %v2674
        %v2676 = vpop.f32.mrb[0].mxu0
        %v2677 = vadd.f32 0.0, %v2676
        %2678 = vmatprep.mubr.bf16.mxu0 %v1487
        %2679 = vmatmul.mubr.bf16.gmra.mrb[0].mxu0 %v1486
        %v2680 = vpop.f32.mrb[0].mxu0
        %v2681 = vadd.f32 0.0, %v2680
        %v2682 = vpop.f32.mrb[0].mxu0
        %v2683 = vadd.f32 0.0, %v2682
        %v2684 = vpop.f32.mrb[0].mxu0
        %v2685 = vadd.f32 0.0, %v2684
        %v2686 = vpop.f32.mrb[0].mxu0
        %v2687 = vadd.f32 0.0, %v2686
        %2688 = vmatprep.mubr.bf16.mxu0 %v1494
        %2689 = vmatmul.mubr.bf16.gmra.mrb[0].mxu0 %v1493
        %v2690 = vpop.f32.mrb[0].mxu0
        %v2691 = vadd.f32 0.0, %v2690
        %v2692 = vpop.f32.mrb[0].mxu0
        %v2693 = vadd.f32 0.0, %v2692
        %v2694 = vpop.f32.mrb[0].mxu0
        %v2695 = vadd.f32 0.0, %v2694
        %v2696 = vpop.f32.mrb[0].mxu0
        %v2697 = vadd.f32 0.0, %v2696
        %2698 = vmatprep.mubr.bf16.mxu0 %v1501
        %2699 = vmatmul.mubr.bf16.gmra.mrb[0].mxu0 %v1500
        %v2700 = vpop.f32.mrb[0].mxu0
        %v2701 = vadd.f32 0.0, %v2700
        %v2702 = vpop.f32.mrb[0].mxu0
        %v2703 = vadd.f32 0.0, %v2702
        %v2704 = vpop.f32.mrb[0].mxu0
        %v2705 = vadd.f32 0.0, %v2704
        %v2706 = vpop.f32.mrb[0].mxu0
        %v2707 = vadd.f32 0.0, %v2706
        %2708 = vmatprep.mubr.bf16.mxu0 %v1508
        %2709 = vmatmul.mubr.bf16.gmra.mrb[0].mxu0 %v1507
        %v2710 = vpop.f32.mrb[0].mxu0
        %v2711 = vadd.f32 0.0, %v2710
        %v2712 = vpop.f32.mrb[0].mxu0
        %v2713 = vadd.f32 0.0, %v2712
        %v2714 = vpop.f32.mrb[0].mxu0
        %v2715 = vadd.f32 0.0, %v2714
        %v2716 = vpop.f32.mrb[0].mxu0
        %v2717 = vadd.f32 0.0, %v2716
        %2718 = vmatprep.mubr.bf16.mxu0 %v1515
        %2719 = vmatmul.mubr.bf16.gmra.mrb[0].mxu0 %v1514
        %v2720 = vpop.f32.mrb[0].mxu0
        %v2721 = vadd.f32 0.0, %v2720
        %v2722 = vpop.f32.mrb[0].mxu0
        %v2723 = vadd.f32 0.0, %v2722
        %v2724 = vpop.f32.mrb[0].mxu0
        %v2725 = vadd.f32 0.0, %v2724
        %v2726 = vpop.f32.mrb[0].mxu0
        %v2727 = vadd.f32 0.0, %v2726
        %2728 = vmatprep.mubr.bf16.mxu0 %v1522
        %2729 = vmatmul.mubr.bf16.gmra.mrb[0].mxu0 %v1521
        %v2730 = vpop.f32.mrb[0].mxu0
        %v2731 = vadd.f32 0.0, %v2730
        %v2732 = vpop.f32.mrb[0].mxu0
        %v2733 = vadd.f32 0.0, %v2732
        %v2734 = vpop.f32.mrb[0].mxu0
        %v2735 = vadd.f32 0.0, %v2734
        %v2736 = vpop.f32.mrb[0].mxu0
        %v2737 = vadd.f32 0.0, %v2736
        %2738 = vmatprep.mubr.bf16.mxu0 %v1529
        %2739 = vmatmul.mubr.bf16.gmra.mrb[0].mxu0 %v1528
        %v2740 = vpop.f32.mrb[0].mxu0
        %v2741 = vadd.f32 0.0, %v2740
        %v2742 = vpop.f32.mrb[0].mxu0
        %v2743 = vadd.f32 0.0, %v2742
        %v2744 = vpop.f32.mrb[0].mxu0
        %v2745 = vadd.f32 0.0, %v2744
        %v2746 = vpop.f32.mrb[0].mxu0
        %v2747 = vadd.f32 0.0, %v2746
        %2748 = vdwg.mxu0
        %2749 = vmatprep.subr.bf16.mxu0 %v2204
        %2750 = vmatpush1.bf16.msra.mxu0 %v2203
        %2751 = vmatprep.subr.bf16.mxu0 %v2207
        %2752 = vmatpush1.bf16.msra.mxu0 %v2206
        %2753 = vmatprep.subr.bf16.mxu0 %v2210
        %2754 = vmatpush1.bf16.msra.mxu0 %v2209
        %2755 = vmatprep.subr.bf16.mxu0 %v2213
        %2756 = vmatpush1.bf16.msra.mxu0 %v2212
        %2757 = vmatprep.subr.bf16.mxu0 %v2216
        %2758 = vmatpush1.bf16.msra.mxu0 %v2215
        %2759 = vmatprep.subr.bf16.mxu0 %v2219
        %2760 = vmatpush1.bf16.msra.mxu0 %v2218
        %2761 = vmatprep.subr.bf16.mxu0 %v2222
        %2762 = vmatpush1.bf16.msra.mxu0 %v2221
        %2763 = vmatprep.subr.bf16.mxu0 %v2225
        %2764 = vmatpush1.bf16.msra.mxu0 %v2224
        %2765 = vmatprep.subr.bf16.mxu0 %v2228
        %2766 = vmatpush1.bf16.msra.mxu0 %v2227
        %2767 = vmatprep.subr.bf16.mxu0 %v2231
        %2768 = vmatpush1.bf16.msra.mxu0 %v2230
        %2769 = vmatprep.subr.bf16.mxu0 %v2234
        %2770 = vmatpush1.bf16.msra.mxu0 %v2233
        %2771 = vmatprep.subr.bf16.mxu0 %v2237
        %2772 = vmatpush1.bf16.msra.mxu0 %v2236
        %2773 = vmatprep.subr.bf16.mxu0 %v2240
        %2774 = vmatpush1.bf16.msra.mxu0 %v2239
        %2775 = vmatprep.subr.bf16.mxu0 %v2243
        %2776 = vmatpush1.bf16.msra.mxu0 %v2242
        %2777 = vmatprep.subr.bf16.mxu0 %v2246
        %2778 = vmatpush1.bf16.msra.mxu0 %v2245
        %2779 = vmatprep.subr.bf16.mxu0 %v2249
        %2780 = vmatpush1.bf16.msra.mxu0 %v2248
        %2781 = vmatprep.mubr.bf16.mxu0 %v1398
        %2782 = vmatmul.mubr.bf16.gmra.mrb[0].mxu0 %v1397
        %v2783 = vpop.f32.mrb[0].mxu0
        %v2784 = vadd.f32 %v2551, %v2783
        %v2785 = vpop.f32.mrb[0].mxu0
        %v2786 = vadd.f32 %v2553, %v2785
        %v2787 = vpop.f32.mrb[0].mxu0
        %v2788 = vadd.f32 %v2555, %v2787
        %v2789 = vpop.f32.mrb[0].mxu0
        %v2790 = vadd.f32 %v2557, %v2789
        %2791 = vmatprep.mubr.bf16.mxu0 %v1405
        %2792 = vmatmul.mubr.bf16.gmra.mrb[0].mxu0 %v1404
        %v2793 = vpop.f32.mrb[0].mxu0
        %v2794 = vadd.f32 %v2561, %v2793
        %v2795 = vpop.f32.mrb[0].mxu0
        %v2796 = vadd.f32 %v2563, %v2795
        %v2797 = vpop.f32.mrb[0].mxu0
        %v2798 = vadd.f32 %v2565, %v2797
        %v2799 = vpop.f32.mrb[0].mxu0
        %v2800 = vadd.f32 %v2567, %v2799
        %2801 = vmatprep.mubr.bf16.mxu0 %v1412
        %2802 = vmatmul.mubr.bf16.gmra.mrb[0].mxu0 %v1411
        %v2803 = vpop.f32.mrb[0].mxu0
        %v2804 = vadd.f32 %v2571, %v2803
        %v2805 = vpop.f32.mrb[0].mxu0
        %v2806 = vadd.f32 %v2573, %v2805
        %v2807 = vpop.f32.mrb[0].mxu0
        %v2808 = vadd.f32 %v2575, %v2807
        %v2809 = vpop.f32.mrb[0].mxu0
        %v2810 = vadd.f32 %v2577, %v2809
        %2811 = vmatprep.mubr.bf16.mxu0 %v1419
        %2812 = vmatmul.mubr.bf16.gmra.mrb[0].mxu0 %v1418
        %v2813 = vpop.f32.mrb[0].mxu0
        %v2814 = vadd.f32 %v2581, %v2813
        %v2815 = vpop.f32.mrb[0].mxu0
        %v2816 = vadd.f32 %v2583, %v2815
        %v2817 = vpop.f32.mrb[0].mxu0
        %v2818 = vadd.f32 %v2585, %v2817
        %v2819 = vpop.f32.mrb[0].mxu0
        %v2820 = vadd.f32 %v2587, %v2819
        %2821 = vmatprep.mubr.bf16.mxu0 %v1426
        %2822 = vmatmul.mubr.bf16.gmra.mrb[0].mxu0 %v1425
        %v2823 = vpop.f32.mrb[0].mxu0
        %v2824 = vadd.f32 %v2591, %v2823
        %v2825 = vpop.f32.mrb[0].mxu0
        %v2826 = vadd.f32 %v2593, %v2825
        %v2827 = vpop.f32.mrb[0].mxu0
        %v2828 = vadd.f32 %v2595, %v2827
        %v2829 = vpop.f32.mrb[0].mxu0
        %v2830 = vadd.f32 %v2597, %v2829
        %2831 = vmatprep.mubr.bf16.mxu0 %v1433
        %2832 = vmatmul.mubr.bf16.gmra.mrb[0].mxu0 %v1432
        %v2833 = vpop.f32.mrb[0].mxu0
        %v2834 = vadd.f32 %v2601, %v2833
        %v2835 = vpop.f32.mrb[0].mxu0
        %v2836 = vadd.f32 %v2603, %v2835
        %v2837 = vpop.f32.mrb[0].mxu0
        %v2838 = vadd.f32 %v2605, %v2837
        %v2839 = vpop.f32.mrb[0].mxu0
        %v2840 = vadd.f32 %v2607, %v2839
        %2841 = vmatprep.mubr.bf16.mxu0 %v1440
        %2842 = vmatmul.mubr.bf16.gmra.mrb[0].mxu0 %v1439
        %v2843 = vpop.f32.mrb[0].mxu0
        %v2844 = vadd.f32 %v2611, %v2843
        %v2845 = vpop.f32.mrb[0].mxu0
        %v2846 = vadd.f32 %v2613, %v2845
        %v2847 = vpop.f32.mrb[0].mxu0
        %v2848 = vadd.f32 %v2615, %v2847
        %v2849 = vpop.f32.mrb[0].mxu0
        %v2850 = vadd.f32 %v2617, %v2849
        %2851 = vmatprep.mubr.bf16.mxu0 %v1447
        %2852 = vmatmul.mubr.bf16.gmra.mrb[0].mxu0 %v1446
        %v2853 = vpop.f32.mrb[0].mxu0
        %v2854 = vadd.f32 %v2621, %v2853
        %v2855 = vpop.f32.mrb[0].mxu0
        %v2856 = vadd.f32 %v2623, %v2855
        %v2857 = vpop.f32.mrb[0].mxu0
        %v2858 = vadd.f32 %v2625, %v2857
        %v2859 = vpop.f32.mrb[0].mxu0
        %v2860 = vadd.f32 %v2627, %v2859
        %2861 = vmatprep.mubr.bf16.mxu0 %v1454
        %2862 = vmatmul.mubr.bf16.gmra.mrb[0].mxu0 %v1453
        %v2863 = vpop.f32.mrb[0].mxu0
        %v2864 = vadd.f32 %v2631, %v2863
        %v2865 = vpop.f32.mrb[0].mxu0
        %v2866 = vadd.f32 %v2633, %v2865
        %v2867 = vpop.f32.mrb[0].mxu0
        %v2868 = vadd.f32 %v2635, %v2867
        %v2869 = vpop.f32.mrb[0].mxu0
        %v2870 = vadd.f32 %v2637, %v2869
        %2871 = vmatprep.mubr.bf16.mxu0 %v1461
        %2872 = vmatmul.mubr.bf16.gmra.mrb[0].mxu0 %v1460
        %v2873 = vpop.f32.mrb[0].mxu0
        %v2874 = vadd.f32 %v2641, %v2873
        %v2875 = vpop.f32.mrb[0].mxu0
        %v2876 = vadd.f32 %v2643, %v2875
        %v2877 = vpop.f32.mrb[0].mxu0
        %v2878 = vadd.f32 %v2645, %v2877
        %v2879 = vpop.f32.mrb[0].mxu0
        %v2880 = vadd.f32 %v2647, %v2879
        %2881 = vmatprep.mubr.bf16.mxu0 %v1468
        %2882 = vmatmul.mubr.bf16.gmra.mrb[0].mxu0 %v1467
        %v2883 = vpop.f32.mrb[0].mxu0
        %v2884 = vadd.f32 %v2651, %v2883
        %v2885 = vpop.f32.mrb[0].mxu0
        %v2886 = vadd.f32 %v2653, %v2885
        %v2887 = vpop.f32.mrb[0].mxu0
        %v2888 = vadd.f32 %v2655, %v2887
        %v2889 = vpop.f32.mrb[0].mxu0
        %v2890 = vadd.f32 %v2657, %v2889
        %2891 = vmatprep.mubr.bf16.mxu0 %v1475
        %2892 = vmatmul.mubr.bf16.gmra.mrb[0].mxu0 %v1474
        %v2893 = vpop.f32.mrb[0].mxu0
        %v2894 = vadd.f32 %v2661, %v2893
        %v2895 = vpop.f32.mrb[0].mxu0
        %v2896 = vadd.f32 %v2663, %v2895
        %v2897 = vpop.f32.mrb[0].mxu0
        %v2898 = vadd.f32 %v2665, %v2897
        %v2899 = vpop.f32.mrb[0].mxu0
        %v2900 = vadd.f32 %v2667, %v2899
        %2901 = vmatprep.mubr.bf16.mxu0 %v1482
        %2902 = vmatmul.mubr.bf16.gmra.mrb[0].mxu0 %v1481
        %v2903 = vpop.f32.mrb[0].mxu0
        %v2904 = vadd.f32 %v2671, %v2903
        %v2905 = vpop.f32.mrb[0].mxu0
        %v2906 = vadd.f32 %v2673, %v2905
        %v2907 = vpop.f32.mrb[0].mxu0
        %v2908 = vadd.f32 %v2675, %v2907
        %v2909 = vpop.f32.mrb[0].mxu0
        %v2910 = vadd.f32 %v2677, %v2909
        %2911 = vmatprep.mubr.bf16.mxu0 %v1489
        %2912 = vmatmul.mubr.bf16.gmra.mrb[0].mxu0 %v1488
        %v2913 = vpop.f32.mrb[0].mxu0
        %v2914 = vadd.f32 %v2681, %v2913
        %v2915 = vpop.f32.mrb[0].mxu0
        %v2916 = vadd.f32 %v2683, %v2915
        %v2917 = vpop.f32.mrb[0].mxu0
        %v2918 = vadd.f32 %v2685, %v2917
        %v2919 = vpop.f32.mrb[0].mxu0
        %v2920 = vadd.f32 %v2687, %v2919
        %2921 = vmatprep.mubr.bf16.mxu0 %v1496
        %2922 = vmatmul.mubr.bf16.gmra.mrb[0].mxu0 %v1495
        %v2923 = vpop.f32.mrb[0].mxu0
        %v2924 = vadd.f32 %v2691, %v2923
        %v2925 = vpop.f32.mrb[0].mxu0
        %v2926 = vadd.f32 %v2693, %v2925
        %v2927 = vpop.f32.mrb[0].mxu0
        %v2928 = vadd.f32 %v2695, %v2927
        %v2929 = vpop.f32.mrb[0].mxu0
        %v2930 = vadd.f32 %v2697, %v2929
        %2931 = vmatprep.mubr.bf16.mxu0 %v1503
        %2932 = vmatmul.mubr.bf16.gmra.mrb[0].mxu0 %v1502
        %v2933 = vpop.f32.mrb[0].mxu0
        %v2934 = vadd.f32 %v2701, %v2933
        %v2935 = vpop.f32.mrb[0].mxu0
        %v2936 = vadd.f32 %v2703, %v2935
        %v2937 = vpop.f32.mrb[0].mxu0
        %v2938 = vadd.f32 %v2705, %v2937
        %v2939 = vpop.f32.mrb[0].mxu0
        %v2940 = vadd.f32 %v2707, %v2939
        %2941 = vmatprep.mubr.bf16.mxu0 %v1510
        %2942 = vmatmul.mubr.bf16.gmra.mrb[0].mxu0 %v1509
        %v2943 = vpop.f32.mrb[0].mxu0
        %v2944 = vadd.f32 %v2711, %v2943
        %v2945 = vpop.f32.mrb[0].mxu0
        %v2946 = vadd.f32 %v2713, %v2945
        %v2947 = vpop.f32.mrb[0].mxu0
        %v2948 = vadd.f32 %v2715, %v2947
        %v2949 = vpop.f32.mrb[0].mxu0
        %v2950 = vadd.f32 %v2717, %v2949
        %2951 = vmatprep.mubr.bf16.mxu0 %v1517
        %2952 = vmatmul.mubr.bf16.gmra.mrb[0].mxu0 %v1516
        %v2953 = vpop.f32.mrb[0].mxu0
        %v2954 = vadd.f32 %v2721, %v2953
        %v2955 = vpop.f32.mrb[0].mxu0
        %v2956 = vadd.f32 %v2723, %v2955
        %v2957 = vpop.f32.mrb[0].mxu0
        %v2958 = vadd.f32 %v2725, %v2957
        %v2959 = vpop.f32.mrb[0].mxu0
        %v2960 = vadd.f32 %v2727, %v2959
        %2961 = vmatprep.mubr.bf16.mxu0 %v1524
        %2962 = vmatmul.mubr.bf16.gmra.mrb[0].mxu0 %v1523
        %v2963 = vpop.f32.mrb[0].mxu0
        %v2964 = vadd.f32 %v2731, %v2963
        %v2965 = vpop.f32.mrb[0].mxu0
        %v2966 = vadd.f32 %v2733, %v2965
        %v2967 = vpop.f32.mrb[0].mxu0
        %v2968 = vadd.f32 %v2735, %v2967
        %v2969 = vpop.f32.mrb[0].mxu0
        %v2970 = vadd.f32 %v2737, %v2969
        %2971 = vmatprep.mubr.bf16.mxu0 %v1531
        %2972 = vmatmul.mubr.bf16.gmra.mrb[0].mxu0 %v1530
        %v2973 = vpop.f32.mrb[0].mxu0
        %v2974 = vadd.f32 %v2741, %v2973
        %v2975 = vpop.f32.mrb[0].mxu0
        %v2976 = vadd.f32 %v2743, %v2975
        %v2977 = vpop.f32.mrb[0].mxu0
        %v2978 = vadd.f32 %v2745, %v2977
        %v2979 = vpop.f32.mrb[0].mxu0
        %v2980 = vadd.f32 %v2747, %v2979
        %2981 = vdwg.mxu0
        %2982 = vmatprep.subr.bf16.mxu0 %v2252
        %2983 = vmatpush1.bf16.msra.mxu0 %v2251
        %2984 = vmatprep.subr.bf16.mxu0 %v2255
        %2985 = vmatpush1.bf16.msra.mxu0 %v2254
        %2986 = vmatprep.subr.bf16.mxu0 %v2258
        %2987 = vmatpush1.bf16.msra.mxu0 %v2257
        %2988 = vmatprep.subr.bf16.mxu0 %v2261
        %2989 = vmatpush1.bf16.msra.mxu0 %v2260
        %2990 = vmatprep.subr.bf16.mxu0 %v2264
        %2991 = vmatpush1.bf16.msra.mxu0 %v2263
        %2992 = vmatprep.subr.bf16.mxu0 %v2267
        %2993 = vmatpush1.bf16.msra.mxu0 %v2266
        %2994 = vmatprep.subr.bf16.mxu0 %v2270
        %2995 = vmatpush1.bf16.msra.mxu0 %v2269
        %2996 = vmatprep.subr.bf16.mxu0 %v2273
        %2997 = vmatpush1.bf16.msra.mxu0 %v2272
        %2998 = vmatprep.subr.bf16.mxu0 %v2276
        %2999 = vmatpush1.bf16.msra.mxu0 %v2275
        %3000 = vmatprep.subr.bf16.mxu0 %v2279
        %3001 = vmatpush1.bf16.msra.mxu0 %v2278
        %3002 = vmatprep.subr.bf16.mxu0 %v2282
        %3003 = vmatpush1.bf16.msra.mxu0 %v2281
        %3004 = vmatprep.subr.bf16.mxu0 %v2285
        %3005 = vmatpush1.bf16.msra.mxu0 %v2284
        %3006 = vmatprep.subr.bf16.mxu0 %v2288
        %3007 = vmatpush1.bf16.msra.mxu0 %v2287
        %3008 = vmatprep.subr.bf16.mxu0 %v2291
        %3009 = vmatpush1.bf16.msra.mxu0 %v2290
        %3010 = vmatprep.subr.bf16.mxu0 %v2294
        %3011 = vmatpush1.bf16.msra.mxu0 %v2293
        %3012 = vmatprep.subr.bf16.mxu0 %v2297
        %3013 = vmatpush1.bf16.msra.mxu0 %v2296
        %3014 = vmatprep.mubr.bf16.mxu0 %v1400
        %3015 = vmatmul.mubr.bf16.gmra.mrb[0].mxu0 %v1399
        %v3016 = vpop.f32.mrb[0].mxu0
        %v3017 = vadd.f32 %v2784, %v3016
        %v3018 = vpop.f32.mrb[0].mxu0
        %v3019 = vadd.f32 %v2786, %v3018
        %v3020 = vpop.f32.mrb[0].mxu0
        %v3021 = vadd.f32 %v2788, %v3020
        %v3022 = vpop.f32.mrb[0].mxu0
        %v3023 = vadd.f32 %v2790, %v3022
        %3024 = vmatprep.mubr.bf16.mxu0 %v1407
        %3025 = vmatmul.mubr.bf16.gmra.mrb[0].mxu0 %v1406
        %v3026 = vpop.f32.mrb[0].mxu0
        %v3027 = vadd.f32 %v2794, %v3026
        %v3028 = vpop.f32.mrb[0].mxu0
        %v3029 = vadd.f32 %v2796, %v3028
        %v3030 = vpop.f32.mrb[0].mxu0
        %v3031 = vadd.f32 %v2798, %v3030
        %v3032 = vpop.f32.mrb[0].mxu0
        %v3033 = vadd.f32 %v2800, %v3032
        %3034 = vmatprep.mubr.bf16.mxu0 %v1414
        %3035 = vmatmul.mubr.bf16.gmra.mrb[0].mxu0 %v1413
        %v3036 = vpop.f32.mrb[0].mxu0
        %v3037 = vadd.f32 %v2804, %v3036
        %v3038 = vpop.f32.mrb[0].mxu0
        %v3039 = vadd.f32 %v2806, %v3038
        %v3040 = vpop.f32.mrb[0].mxu0
        %v3041 = vadd.f32 %v2808, %v3040
        %v3042 = vpop.f32.mrb[0].mxu0
        %v3043 = vadd.f32 %v2810, %v3042
        %3044 = vmatprep.mubr.bf16.mxu0 %v1421
        %3045 = vmatmul.mubr.bf16.gmra.mrb[0].mxu0 %v1420
        %v3046 = vpop.f32.mrb[0].mxu0
        %v3047 = vadd.f32 %v2814, %v3046
        %v3048 = vpop.f32.mrb[0].mxu0
        %v3049 = vadd.f32 %v2816, %v3048
        %v3050 = vpop.f32.mrb[0].mxu0
        %v3051 = vadd.f32 %v2818, %v3050
        %v3052 = vpop.f32.mrb[0].mxu0
        %v3053 = vadd.f32 %v2820, %v3052
        %3054 = vmatprep.mubr.bf16.mxu0 %v1428
        %3055 = vmatmul.mubr.bf16.gmra.mrb[0].mxu0 %v1427
        %v3056 = vpop.f32.mrb[0].mxu0
        %v3057 = vadd.f32 %v2824, %v3056
        %v3058 = vpop.f32.mrb[0].mxu0
        %v3059 = vadd.f32 %v2826, %v3058
        %v3060 = vpop.f32.mrb[0].mxu0
        %v3061 = vadd.f32 %v2828, %v3060
        %v3062 = vpop.f32.mrb[0].mxu0
        %v3063 = vadd.f32 %v2830, %v3062
        %3064 = vmatprep.mubr.bf16.mxu0 %v1435
        %3065 = vmatmul.mubr.bf16.gmra.mrb[0].mxu0 %v1434
        %v3066 = vpop.f32.mrb[0].mxu0
        %v3067 = vadd.f32 %v2834, %v3066
        %v3068 = vpop.f32.mrb[0].mxu0
        %v3069 = vadd.f32 %v2836, %v3068
        %v3070 = vpop.f32.mrb[0].mxu0
        %v3071 = vadd.f32 %v2838, %v3070
        %v3072 = vpop.f32.mrb[0].mxu0
        %v3073 = vadd.f32 %v2840, %v3072
        %3074 = vmatprep.mubr.bf16.mxu0 %v1442
        %3075 = vmatmul.mubr.bf16.gmra.mrb[0].mxu0 %v1441
        %v3076 = vpop.f32.mrb[0].mxu0
        %v3077 = vadd.f32 %v2844, %v3076
        %v3078 = vpop.f32.mrb[0].mxu0
        %v3079 = vadd.f32 %v2846, %v3078
        %v3080 = vpop.f32.mrb[0].mxu0
        %v3081 = vadd.f32 %v2848, %v3080
        %v3082 = vpop.f32.mrb[0].mxu0
        %v3083 = vadd.f32 %v2850, %v3082
        %3084 = vmatprep.mubr.bf16.mxu0 %v1449
        %3085 = vmatmul.mubr.bf16.gmra.mrb[0].mxu0 %v1448
        %v3086 = vpop.f32.mrb[0].mxu0
        %v3087 = vadd.f32 %v2854, %v3086
        %v3088 = vpop.f32.mrb[0].mxu0
        %v3089 = vadd.f32 %v2856, %v3088
        %v3090 = vpop.f32.mrb[0].mxu0
        %v3091 = vadd.f32 %v2858, %v3090
        %v3092 = vpop.f32.mrb[0].mxu0
        %v3093 = vadd.f32 %v2860, %v3092
        %3094 = vmatprep.mubr.bf16.mxu0 %v1456
        %3095 = vmatmul.mubr.bf16.gmra.mrb[0].mxu0 %v1455
        %v3096 = vpop.f32.mrb[0].mxu0
        %v3097 = vadd.f32 %v2864, %v3096
        %v3098 = vpop.f32.mrb[0].mxu0
        %v3099 = vadd.f32 %v2866, %v3098
        %v3100 = vpop.f32.mrb[0].mxu0
        %v3101 = vadd.f32 %v2868, %v3100
        %v3102 = vpop.f32.mrb[0].mxu0
        %v3103 = vadd.f32 %v2870, %v3102
        %3104 = vmatprep.mubr.bf16.mxu0 %v1463
        %3105 = vmatmul.mubr.bf16.gmra.mrb[0].mxu0 %v1462
        %v3106 = vpop.f32.mrb[0].mxu0
        %v3107 = vadd.f32 %v2874, %v3106
        %v3108 = vpop.f32.mrb[0].mxu0
        %v3109 = vadd.f32 %v2876, %v3108
        %v3110 = vpop.f32.mrb[0].mxu0
        %v3111 = vadd.f32 %v2878, %v3110
        %v3112 = vpop.f32.mrb[0].mxu0
        %v3113 = vadd.f32 %v2880, %v3112
        %3114 = vmatprep.mubr.bf16.mxu0 %v1470
        %3115 = vmatmul.mubr.bf16.gmra.mrb[0].mxu0 %v1469
        %v3116 = vpop.f32.mrb[0].mxu0
        %v3117 = vadd.f32 %v2884, %v3116
        %v3118 = vpop.f32.mrb[0].mxu0
        %v3119 = vadd.f32 %v2886, %v3118
        %v3120 = vpop.f32.mrb[0].mxu0
        %v3121 = vadd.f32 %v2888, %v3120
        %v3122 = vpop.f32.mrb[0].mxu0
        %v3123 = vadd.f32 %v2890, %v3122
        %3124 = vmatprep.mubr.bf16.mxu0 %v1477
        %3125 = vmatmul.mubr.bf16.gmra.mrb[0].mxu0 %v1476
        %v3126 = vpop.f32.mrb[0].mxu0
        %v3127 = vadd.f32 %v2894, %v3126
        %v3128 = vpop.f32.mrb[0].mxu0
        %v3129 = vadd.f32 %v2896, %v3128
        %v3130 = vpop.f32.mrb[0].mxu0
        %v3131 = vadd.f32 %v2898, %v3130
        %v3132 = vpop.f32.mrb[0].mxu0
        %v3133 = vadd.f32 %v2900, %v3132
        %3134 = vmatprep.mubr.bf16.mxu0 %v1484
        %3135 = vmatmul.mubr.bf16.gmra.mrb[0].mxu0 %v1483
        %v3136 = vpop.f32.mrb[0].mxu0
        %v3137 = vadd.f32 %v2904, %v3136
        %v3138 = vpop.f32.mrb[0].mxu0
        %v3139 = vadd.f32 %v2906, %v3138
        %v3140 = vpop.f32.mrb[0].mxu0
        %v3141 = vadd.f32 %v2908, %v3140
        %v3142 = vpop.f32.mrb[0].mxu0
        %v3143 = vadd.f32 %v2910, %v3142
        %3144 = vmatprep.mubr.bf16.mxu0 %v1491
        %3145 = vmatmul.mubr.bf16.gmra.mrb[0].mxu0 %v1490
        %v3146 = vpop.f32.mrb[0].mxu0
        %v3147 = vadd.f32 %v2914, %v3146
        %v3148 = vpop.f32.mrb[0].mxu0
        %v3149 = vadd.f32 %v2916, %v3148
        %v3150 = vpop.f32.mrb[0].mxu0
        %v3151 = vadd.f32 %v2918, %v3150
        %v3152 = vpop.f32.mrb[0].mxu0
        %v3153 = vadd.f32 %v2920, %v3152
        %3154 = vmatprep.mubr.bf16.mxu0 %v1498
        %3155 = vmatmul.mubr.bf16.gmra.mrb[0].mxu0 %v1497
        %v3156 = vpop.f32.mrb[0].mxu0
        %v3157 = vadd.f32 %v2924, %v3156
        %v3158 = vpop.f32.mrb[0].mxu0
        %v3159 = vadd.f32 %v2926, %v3158
        %v3160 = vpop.f32.mrb[0].mxu0
        %v3161 = vadd.f32 %v2928, %v3160
        %v3162 = vpop.f32.mrb[0].mxu0
        %v3163 = vadd.f32 %v2930, %v3162
        %3164 = vmatprep.mubr.bf16.mxu0 %v1505
        %3165 = vmatmul.mubr.bf16.gmra.mrb[0].mxu0 %v1504
        %v3166 = vpop.f32.mrb[0].mxu0
        %v3167 = vadd.f32 %v2934, %v3166
        %v3168 = vpop.f32.mrb[0].mxu0
        %v3169 = vadd.f32 %v2936, %v3168
        %v3170 = vpop.f32.mrb[0].mxu0
        %v3171 = vadd.f32 %v2938, %v3170
        %v3172 = vpop.f32.mrb[0].mxu0
        %v3173 = vadd.f32 %v2940, %v3172
        %3174 = vmatprep.mubr.bf16.mxu0 %v1512
        %3175 = vmatmul.mubr.bf16.gmra.mrb[0].mxu0 %v1511
        %v3176 = vpop.f32.mrb[0].mxu0
        %v3177 = vadd.f32 %v2944, %v3176
        %v3178 = vpop.f32.mrb[0].mxu0
        %v3179 = vadd.f32 %v2946, %v3178
        %v3180 = vpop.f32.mrb[0].mxu0
        %v3181 = vadd.f32 %v2948, %v3180
        %v3182 = vpop.f32.mrb[0].mxu0
        %v3183 = vadd.f32 %v2950, %v3182
        %3184 = vmatprep.mubr.bf16.mxu0 %v1519
        %3185 = vmatmul.mubr.bf16.gmra.mrb[0].mxu0 %v1518
        %v3186 = vpop.f32.mrb[0].mxu0
        %v3187 = vadd.f32 %v2954, %v3186
        %v3188 = vpop.f32.mrb[0].mxu0
        %v3189 = vadd.f32 %v2956, %v3188
        %v3190 = vpop.f32.mrb[0].mxu0
        %v3191 = vadd.f32 %v2958, %v3190
        %v3192 = vpop.f32.mrb[0].mxu0
        %v3193 = vadd.f32 %v2960, %v3192
        %3194 = vmatprep.mubr.bf16.mxu0 %v1526
        %3195 = vmatmul.mubr.bf16.gmra.mrb[0].mxu0 %v1525
        %v3196 = vpop.f32.mrb[0].mxu0
        %v3197 = vadd.f32 %v2964, %v3196
        %v3198 = vpop.f32.mrb[0].mxu0
        %v3199 = vadd.f32 %v2966, %v3198
        %v3200 = vpop.f32.mrb[0].mxu0
        %v3201 = vadd.f32 %v2968, %v3200
        %v3202 = vpop.f32.mrb[0].mxu0
        %v3203 = vadd.f32 %v2970, %v3202
        %3204 = vmatprep.mubr.bf16.mxu0 %v1533
        %3205 = vmatmul.mubr.bf16.gmra.mrb[0].mxu0 %v1532
        %v3206 = vpop.f32.mrb[0].mxu0
        %v3207 = vadd.f32 %v2974, %v3206
        %v3208 = vpop.f32.mrb[0].mxu0
        %v3209 = vadd.f32 %v2976, %v3208
        %v3210 = vpop.f32.mrb[0].mxu0
        %v3211 = vadd.f32 %v2978, %v3210
        %v3212 = vpop.f32.mrb[0].mxu0
        %v3213 = vadd.f32 %v2980, %v3212
        %3214 = vdwg.mxu0
        %3215 = vmatprep.subr.bf16.mxu0 %v2300
        %3216 = vmatpush1.bf16.msra.mxu0 %v2299
        %3217 = vmatprep.subr.bf16.mxu0 %v2303
        %3218 = vmatpush1.bf16.msra.mxu0 %v2302
        %3219 = vmatprep.subr.bf16.mxu0 0
        %3220 = vmatpush1.bf16.msra.mxu0 0
        %3221 = vmatprep.subr.bf16.mxu0 0
        %3222 = vmatpush1.bf16.msra.mxu0 0
        %3223 = vmatprep.subr.bf16.mxu0 0
        %3224 = vmatpush1.bf16.msra.mxu0 0
        %3225 = vmatprep.subr.bf16.mxu0 0
        %3226 = vmatpush1.bf16.msra.mxu0 0
        %3227 = vmatprep.subr.bf16.mxu0 0
        %3228 = vmatpush1.bf16.msra.mxu0 0
        %3229 = vmatprep.subr.bf16.mxu0 0
        %3230 = vmatpush1.bf16.msra.mxu0 0
        %3231 = vmatprep.subr.bf16.mxu0 0
        %3232 = vmatpush1.bf16.msra.mxu0 0
        %3233 = vmatprep.subr.bf16.mxu0 0
        %3234 = vmatpush1.bf16.msra.mxu0 0
        %3235 = vmatprep.subr.bf16.mxu0 0
        %3236 = vmatpush1.bf16.msra.mxu0 0
        %3237 = vmatprep.subr.bf16.mxu0 0
        %3238 = vmatpush1.bf16.msra.mxu0 0
        %3239 = vmatprep.subr.bf16.mxu0 0
        %3240 = vmatpush1.bf16.msra.mxu0 0
        %3241 = vmatprep.subr.bf16.mxu0 0
        %3242 = vmatpush1.bf16.msra.mxu0 0
        %3243 = vmatprep.subr.bf16.mxu0 0
        %3244 = vmatpush1.bf16.msra.mxu0 0
        %3245 = vmatprep.subr.bf16.mxu0 0
        %3246 = vmatpush1.bf16.msra.mxu0 0
        %3247 = vmatprep.mubr.bf16.mxu0 0
        %3248 = vmatmul.mubr.bf16.gmra.mrb[0].mxu0 %v2457
        %v3249 = vpop.f32.mrb[0].mxu0
        %v3250 = vadd.f32 %v3017, %v3249
        %v3251 = vpop.f32.mrb[0].mxu0
        %v3252 = vadd.f32 %v3019, %v3251
        %v3253 = vpop.f32.mrb[0].mxu0
        %v3254 = vadd.f32 %v3021, %v3253
        %v3255 = vpop.f32.mrb[0].mxu0
        %v3256 = vadd.f32 %v3023, %v3255
        %3257 = vmatprep.mubr.bf16.mxu0 0
        %3258 = vmatmul.mubr.bf16.gmra.mrb[0].mxu0 %v2460
        %v3259 = vpop.f32.mrb[0].mxu0
        %v3260 = vadd.f32 %v3027, %v3259
        %v3261 = vpop.f32.mrb[0].mxu0
        %v3262 = vadd.f32 %v3029, %v3261
        %v3263 = vpop.f32.mrb[0].mxu0
        %v3264 = vadd.f32 %v3031, %v3263
        %v3265 = vpop.f32.mrb[0].mxu0
        %v3266 = vadd.f32 %v3033, %v3265
        %3267 = vmatprep.mubr.bf16.mxu0 0
        %3268 = vmatmul.mubr.bf16.gmra.mrb[0].mxu0 %v2463
        %v3269 = vpop.f32.mrb[0].mxu0
        %v3270 = vadd.f32 %v3037, %v3269
        %v3271 = vpop.f32.mrb[0].mxu0
        %v3272 = vadd.f32 %v3039, %v3271
        %v3273 = vpop.f32.mrb[0].mxu0
        %v3274 = vadd.f32 %v3041, %v3273
        %v3275 = vpop.f32.mrb[0].mxu0
        %v3276 = vadd.f32 %v3043, %v3275
        %3277 = vmatprep.mubr.bf16.mxu0 0
        %3278 = vmatmul.mubr.bf16.gmra.mrb[0].mxu0 %v2466
        %v3279 = vpop.f32.mrb[0].mxu0
        %v3280 = vadd.f32 %v3047, %v3279
        %v3281 = vpop.f32.mrb[0].mxu0
        %v3282 = vadd.f32 %v3049, %v3281
        %v3283 = vpop.f32.mrb[0].mxu0
        %v3284 = vadd.f32 %v3051, %v3283
        %v3285 = vpop.f32.mrb[0].mxu0
        %v3286 = vadd.f32 %v3053, %v3285
        %3287 = vmatprep.mubr.bf16.mxu0 0
        %3288 = vmatmul.mubr.bf16.gmra.mrb[0].mxu0 %v2469
        %v3289 = vpop.f32.mrb[0].mxu0
        %v3290 = vadd.f32 %v3057, %v3289
        %v3291 = vpop.f32.mrb[0].mxu0
        %v3292 = vadd.f32 %v3059, %v3291
        %v3293 = vpop.f32.mrb[0].mxu0
        %v3294 = vadd.f32 %v3061, %v3293
        %v3295 = vpop.f32.mrb[0].mxu0
        %v3296 = vadd.f32 %v3063, %v3295
        %3297 = vmatprep.mubr.bf16.mxu0 0
        %3298 = vmatmul.mubr.bf16.gmra.mrb[0].mxu0 %v2472
        %v3299 = vpop.f32.mrb[0].mxu0
        %v3300 = vadd.f32 %v3067, %v3299
        %v3301 = vpop.f32.mrb[0].mxu0
        %v3302 = vadd.f32 %v3069, %v3301
        %v3303 = vpop.f32.mrb[0].mxu0
        %v3304 = vadd.f32 %v3071, %v3303
        %v3305 = vpop.f32.mrb[0].mxu0
        %v3306 = vadd.f32 %v3073, %v3305
        %3307 = vmatprep.mubr.bf16.mxu0 0
        %3308 = vmatmul.mubr.bf16.gmra.mrb[0].mxu0 %v2475
        %v3309 = vpop.f32.mrb[0].mxu0
        %v3310 = vadd.f32 %v3077, %v3309
        %v3311 = vpop.f32.mrb[0].mxu0
        %v3312 = vadd.f32 %v3079, %v3311
        %v3313 = vpop.f32.mrb[0].mxu0
        %v3314 = vadd.f32 %v3081, %v3313
        %v3315 = vpop.f32.mrb[0].mxu0
        %v3316 = vadd.f32 %v3083, %v3315
        %3317 = vmatprep.mubr.bf16.mxu0 0
        %3318 = vmatmul.mubr.bf16.gmra.mrb[0].mxu0 %v2478
        %v3319 = vpop.f32.mrb[0].mxu0
        %v3320 = vadd.f32 %v3087, %v3319
        %v3321 = vpop.f32.mrb[0].mxu0
        %v3322 = vadd.f32 %v3089, %v3321
        %v3323 = vpop.f32.mrb[0].mxu0
        %v3324 = vadd.f32 %v3091, %v3323
        %v3325 = vpop.f32.mrb[0].mxu0
        %v3326 = vadd.f32 %v3093, %v3325
        %3327 = vmatprep.mubr.bf16.mxu0 0
        %3328 = vmatmul.mubr.bf16.gmra.mrb[0].mxu0 %v2481
        %v3329 = vpop.f32.mrb[0].mxu0
        %v3330 = vadd.f32 %v3097, %v3329
        %v3331 = vpop.f32.mrb[0].mxu0
        %v3332 = vadd.f32 %v3099, %v3331
        %v3333 = vpop.f32.mrb[0].mxu0
        %v3334 = vadd.f32 %v3101, %v3333
        %v3335 = vpop.f32.mrb[0].mxu0
        %v3336 = vadd.f32 %v3103, %v3335
        %3337 = vmatprep.mubr.bf16.mxu0 0
        %3338 = vmatmul.mubr.bf16.gmra.mrb[0].mxu0 %v2484
        %v3339 = vpop.f32.mrb[0].mxu0
        %v3340 = vadd.f32 %v3107, %v3339
        %v3341 = vpop.f32.mrb[0].mxu0
        %v3342 = vadd.f32 %v3109, %v3341
        %v3343 = vpop.f32.mrb[0].mxu0
        %v3344 = vadd.f32 %v3111, %v3343
        %v3345 = vpop.f32.mrb[0].mxu0
        %v3346 = vadd.f32 %v3113, %v3345
        %3347 = vmatprep.mubr.bf16.mxu0 0
        %3348 = vmatmul.mubr.bf16.gmra.mrb[0].mxu0 %v2487
        %v3349 = vpop.f32.mrb[0].mxu0
        %v3350 = vadd.f32 %v3117, %v3349
        %v3351 = vpop.f32.mrb[0].mxu0
        %v3352 = vadd.f32 %v3119, %v3351
        %v3353 = vpop.f32.mrb[0].mxu0
        %v3354 = vadd.f32 %v3121, %v3353
        %v3355 = vpop.f32.mrb[0].mxu0
        %v3356 = vadd.f32 %v3123, %v3355
        %3357 = vmatprep.mubr.bf16.mxu0 0
        %3358 = vmatmul.mubr.bf16.gmra.mrb[0].mxu0 %v2490
        %v3359 = vpop.f32.mrb[0].mxu0
        %v3360 = vadd.f32 %v3127, %v3359
        %v3361 = vpop.f32.mrb[0].mxu0
        %v3362 = vadd.f32 %v3129, %v3361
        %v3363 = vpop.f32.mrb[0].mxu0
        %v3364 = vadd.f32 %v3131, %v3363
        %v3365 = vpop.f32.mrb[0].mxu0
        %v3366 = vadd.f32 %v3133, %v3365
        %3367 = vmatprep.mubr.bf16.mxu0 0
        %3368 = vmatmul.mubr.bf16.gmra.mrb[0].mxu0 %v2493
        %v3369 = vpop.f32.mrb[0].mxu0
        %v3370 = vadd.f32 %v3137, %v3369
        %v3371 = vpop.f32.mrb[0].mxu0
        %v3372 = vadd.f32 %v3139, %v3371
        %v3373 = vpop.f32.mrb[0].mxu0
        %v3374 = vadd.f32 %v3141, %v3373
        %v3375 = vpop.f32.mrb[0].mxu0
        %v3376 = vadd.f32 %v3143, %v3375
        %3377 = vmatprep.mubr.bf16.mxu0 0
        %3378 = vmatmul.mubr.bf16.gmra.mrb[0].mxu0 %v2496
        %v3379 = vpop.f32.mrb[0].mxu0
        %v3380 = vadd.f32 %v3147, %v3379
        %v3381 = vpop.f32.mrb[0].mxu0
        %v3382 = vadd.f32 %v3149, %v3381
        %v3383 = vpop.f32.mrb[0].mxu0
        %v3384 = vadd.f32 %v3151, %v3383
        %v3385 = vpop.f32.mrb[0].mxu0
        %v3386 = vadd.f32 %v3153, %v3385
        %3387 = vmatprep.mubr.bf16.mxu0 0
        %3388 = vmatmul.mubr.bf16.gmra.mrb[0].mxu0 %v2499
        %v3389 = vpop.f32.mrb[0].mxu0
        %v3390 = vadd.f32 %v3157, %v3389
        %v3391 = vpop.f32.mrb[0].mxu0
        %v3392 = vadd.f32 %v3159, %v3391
        %v3393 = vpop.f32.mrb[0].mxu0
        %v3394 = vadd.f32 %v3161, %v3393
        %v3395 = vpop.f32.mrb[0].mxu0
        %v3396 = vadd.f32 %v3163, %v3395
        %3397 = vmatprep.mubr.bf16.mxu0 0
        %3398 = vmatmul.mubr.bf16.gmra.mrb[0].mxu0 %v2502
        %v3399 = vpop.f32.mrb[0].mxu0
        %v3400 = vadd.f32 %v3167, %v3399
        %v3401 = vpop.f32.mrb[0].mxu0
        %v3402 = vadd.f32 %v3169, %v3401
        %v3403 = vpop.f32.mrb[0].mxu0
        %v3404 = vadd.f32 %v3171, %v3403
        %v3405 = vpop.f32.mrb[0].mxu0
        %v3406 = vadd.f32 %v3173, %v3405
        %3407 = vmatprep.mubr.bf16.mxu0 0
        %3408 = vmatmul.mubr.bf16.gmra.mrb[0].mxu0 %v2505
        %v3409 = vpop.f32.mrb[0].mxu0
        %v3410 = vadd.f32 %v3177, %v3409
        %v3411 = vpop.f32.mrb[0].mxu0
        %v3412 = vadd.f32 %v3179, %v3411
        %v3413 = vpop.f32.mrb[0].mxu0
        %v3414 = vadd.f32 %v3181, %v3413
        %v3415 = vpop.f32.mrb[0].mxu0
        %v3416 = vadd.f32 %v3183, %v3415
        %3417 = vmatprep.mubr.bf16.mxu0 0
        %3418 = vmatmul.mubr.bf16.gmra.mrb[0].mxu0 %v2508
        %v3419 = vpop.f32.mrb[0].mxu0
        %v3420 = vadd.f32 %v3187, %v3419
        %v3421 = vpop.f32.mrb[0].mxu0
        %v3422 = vadd.f32 %v3189, %v3421
        %v3423 = vpop.f32.mrb[0].mxu0
        %v3424 = vadd.f32 %v3191, %v3423
        %v3425 = vpop.f32.mrb[0].mxu0
        %v3426 = vadd.f32 %v3193, %v3425
        %3427 = vmatprep.mubr.bf16.mxu0 0
        %3428 = vmatmul.mubr.bf16.gmra.mrb[0].mxu0 %v2511
        %v3429 = vpop.f32.mrb[0].mxu0
        %v3430 = vadd.f32 %v3197, %v3429
        %v3431 = vpop.f32.mrb[0].mxu0
        %v3432 = vadd.f32 %v3199, %v3431
        %v3433 = vpop.f32.mrb[0].mxu0
        %v3434 = vadd.f32 %v3201, %v3433
        %v3435 = vpop.f32.mrb[0].mxu0
        %v3436 = vadd.f32 %v3203, %v3435
        %3437 = vmatprep.mubr.bf16.mxu0 0
        %3438 = vmatmul.mubr.bf16.gmra.mrb[0].mxu0 %v2514
        %v3439 = vpop.f32.mrb[0].mxu0
        %v3440 = vadd.f32 %v3207, %v3439
        %v3441 = vpop.f32.mrb[0].mxu0
        %v3442 = vadd.f32 %v3209, %v3441
        %v3443 = vpop.f32.mrb[0].mxu0
        %v3444 = vadd.f32 %v3211, %v3443
        %v3445 = vpop.f32.mrb[0].mxu0
        %v3446 = vadd.f32 %v3213, %v3445
        %3447 = vdwg.mxu0
        %3448 = vmatprep.subr.bf16.mxu0 0
        %3449 = vmatpush1.bf16.msra.mxu0 %v2157
        %3450 = vmatprep.subr.bf16.mxu0 0
        %3451 = vmatpush1.bf16.msra.mxu0 %v2160
        %3452 = vmatprep.subr.bf16.mxu0 0
        %3453 = vmatpush1.bf16.msra.mxu0 %v2163
        %3454 = vmatprep.subr.bf16.mxu0 0
        %3455 = vmatpush1.bf16.msra.mxu0 %v2166
        %3456 = vmatprep.subr.bf16.mxu0 0
        %3457 = vmatpush1.bf16.msra.mxu0 %v2169
        %3458 = vmatprep.subr.bf16.mxu0 0
        %3459 = vmatpush1.bf16.msra.mxu0 %v2172
        %3460 = vmatprep.subr.bf16.mxu0 0
        %3461 = vmatpush1.bf16.msra.mxu0 %v2175
        %3462 = vmatprep.subr.bf16.mxu0 0
        %3463 = vmatpush1.bf16.msra.mxu0 %v2178
        %3464 = vmatprep.subr.bf16.mxu0 0
        %3465 = vmatpush1.bf16.msra.mxu0 %v2181
        %3466 = vmatprep.subr.bf16.mxu0 0
        %3467 = vmatpush1.bf16.msra.mxu0 %v2184
        %3468 = vmatprep.subr.bf16.mxu0 0
        %3469 = vmatpush1.bf16.msra.mxu0 %v2187
        %3470 = vmatprep.subr.bf16.mxu0 0
        %3471 = vmatpush1.bf16.msra.mxu0 %v2190
        %3472 = vmatprep.subr.bf16.mxu0 0
        %3473 = vmatpush1.bf16.msra.mxu0 %v2193
        %3474 = vmatprep.subr.bf16.mxu0 0
        %3475 = vmatpush1.bf16.msra.mxu0 %v2196
        %3476 = vmatprep.subr.bf16.mxu0 0
        %3477 = vmatpush1.bf16.msra.mxu0 %v2199
        %3478 = vmatprep.subr.bf16.mxu0 0
        %3479 = vmatpush1.bf16.msra.mxu0 %v2202
        %3480 = vmatprep.mubr.bf16.mxu0 %v1396
        %3481 = vmatmul.mubr.bf16.gmra.mrb[0].mxu0 %v1395
        %v3482 = vpop.f32.mrb[0].mxu0
        %v3483 = vadd.f32 0.0, %v3482
        %v3484 = vpop.f32.mrb[0].mxu0
        %v3485 = vpop.f32.mrb[0].mxu0
        %v3486 = vadd.f32 0.0, %v3485
        %v3487 = vpop.f32.mrb[0].mxu0
        %3488 = vmatprep.mubr.bf16.mxu0 %v1403
        %3489 = vmatmul.mubr.bf16.gmra.mrb[0].mxu0 %v1402
        %v3490 = vpop.f32.mrb[0].mxu0
        %v3491 = vadd.f32 0.0, %v3490
        %v3492 = vpop.f32.mrb[0].mxu0
        %v3493 = vpop.f32.mrb[0].mxu0
        %v3494 = vadd.f32 0.0, %v3493
        %v3495 = vpop.f32.mrb[0].mxu0
        %3496 = vmatprep.mubr.bf16.mxu0 %v1410
        %3497 = vmatmul.mubr.bf16.gmra.mrb[0].mxu0 %v1409
        %v3498 = vpop.f32.mrb[0].mxu0
        %v3499 = vadd.f32 0.0, %v3498
        %v3500 = vpop.f32.mrb[0].mxu0
        %v3501 = vpop.f32.mrb[0].mxu0
        %v3502 = vadd.f32 0.0, %v3501
        %v3503 = vpop.f32.mrb[0].mxu0
        %3504 = vmatprep.mubr.bf16.mxu0 %v1417
        %3505 = vmatmul.mubr.bf16.gmra.mrb[0].mxu0 %v1416
        %v3506 = vpop.f32.mrb[0].mxu0
        %v3507 = vadd.f32 0.0, %v3506
        %v3508 = vpop.f32.mrb[0].mxu0
        %v3509 = vpop.f32.mrb[0].mxu0
        %v3510 = vadd.f32 0.0, %v3509
        %v3511 = vpop.f32.mrb[0].mxu0
        %3512 = vmatprep.mubr.bf16.mxu0 %v1424
        %3513 = vmatmul.mubr.bf16.gmra.mrb[0].mxu0 %v1423
        %v3514 = vpop.f32.mrb[0].mxu0
        %v3515 = vadd.f32 0.0, %v3514
        %v3516 = vpop.f32.mrb[0].mxu0
        %v3517 = vpop.f32.mrb[0].mxu0
        %v3518 = vadd.f32 0.0, %v3517
        %v3519 = vpop.f32.mrb[0].mxu0
        %3520 = vmatprep.mubr.bf16.mxu0 %v1431
        %3521 = vmatmul.mubr.bf16.gmra.mrb[0].mxu0 %v1430
        %v3522 = vpop.f32.mrb[0].mxu0
        %v3523 = vadd.f32 0.0, %v3522
        %v3524 = vpop.f32.mrb[0].mxu0
        %v3525 = vpop.f32.mrb[0].mxu0
        %v3526 = vadd.f32 0.0, %v3525
        %v3527 = vpop.f32.mrb[0].mxu0
        %3528 = vmatprep.mubr.bf16.mxu0 %v1438
        %3529 = vmatmul.mubr.bf16.gmra.mrb[0].mxu0 %v1437
        %v3530 = vpop.f32.mrb[0].mxu0
        %v3531 = vadd.f32 0.0, %v3530
        %v3532 = vpop.f32.mrb[0].mxu0
        %v3533 = vpop.f32.mrb[0].mxu0
        %v3534 = vadd.f32 0.0, %v3533
        %v3535 = vpop.f32.mrb[0].mxu0
        %3536 = vmatprep.mubr.bf16.mxu0 %v1445
        %3537 = vmatmul.mubr.bf16.gmra.mrb[0].mxu0 %v1444
        %v3538 = vpop.f32.mrb[0].mxu0
        %v3539 = vadd.f32 0.0, %v3538
        %v3540 = vpop.f32.mrb[0].mxu0
        %v3541 = vpop.f32.mrb[0].mxu0
        %v3542 = vadd.f32 0.0, %v3541
        %v3543 = vpop.f32.mrb[0].mxu0
        %3544 = vmatprep.mubr.bf16.mxu0 %v1452
        %3545 = vmatmul.mubr.bf16.gmra.mrb[0].mxu0 %v1451
        %v3546 = vpop.f32.mrb[0].mxu0
        %v3547 = vadd.f32 0.0, %v3546
        %v3548 = vpop.f32.mrb[0].mxu0
        %v3549 = vpop.f32.mrb[0].mxu0
        %v3550 = vadd.f32 0.0, %v3549
        %v3551 = vpop.f32.mrb[0].mxu0
        %3552 = vmatprep.mubr.bf16.mxu0 %v1459
        %3553 = vmatmul.mubr.bf16.gmra.mrb[0].mxu0 %v1458
        %v3554 = vpop.f32.mrb[0].mxu0
        %v3555 = vadd.f32 0.0, %v3554
        %v3556 = vpop.f32.mrb[0].mxu0
        %v3557 = vpop.f32.mrb[0].mxu0
        %v3558 = vadd.f32 0.0, %v3557
        %v3559 = vpop.f32.mrb[0].mxu0
        %3560 = vmatprep.mubr.bf16.mxu0 %v1466
        %3561 = vmatmul.mubr.bf16.gmra.mrb[0].mxu0 %v1465
        %v3562 = vpop.f32.mrb[0].mxu0
        %v3563 = vadd.f32 0.0, %v3562
        %v3564 = vpop.f32.mrb[0].mxu0
        %v3565 = vpop.f32.mrb[0].mxu0
        %v3566 = vadd.f32 0.0, %v3565
        %v3567 = vpop.f32.mrb[0].mxu0
        %3568 = vmatprep.mubr.bf16.mxu0 %v1473
        %3569 = vmatmul.mubr.bf16.gmra.mrb[0].mxu0 %v1472
        %v3570 = vpop.f32.mrb[0].mxu0
        %v3571 = vadd.f32 0.0, %v3570
        %v3572 = vpop.f32.mrb[0].mxu0
        %v3573 = vpop.f32.mrb[0].mxu0
        %v3574 = vadd.f32 0.0, %v3573
        %v3575 = vpop.f32.mrb[0].mxu0
        %3576 = vmatprep.mubr.bf16.mxu0 %v1480
        %3577 = vmatmul.mubr.bf16.gmra.mrb[0].mxu0 %v1479
        %v3578 = vpop.f32.mrb[0].mxu0
        %v3579 = vadd.f32 0.0, %v3578
        %v3580 = vpop.f32.mrb[0].mxu0
        %v3581 = vpop.f32.mrb[0].mxu0
        %v3582 = vadd.f32 0.0, %v3581
        %v3583 = vpop.f32.mrb[0].mxu0
        %3584 = vmatprep.mubr.bf16.mxu0 %v1487
        %3585 = vmatmul.mubr.bf16.gmra.mrb[0].mxu0 %v1486
        %v3586 = vpop.f32.mrb[0].mxu0
        %v3587 = vadd.f32 0.0, %v3586
        %v3588 = vpop.f32.mrb[0].mxu0
        %v3589 = vpop.f32.mrb[0].mxu0
        %v3590 = vadd.f32 0.0, %v3589
        %v3591 = vpop.f32.mrb[0].mxu0
        %3592 = vmatprep.mubr.bf16.mxu0 %v1494
        %3593 = vmatmul.mubr.bf16.gmra.mrb[0].mxu0 %v1493
        %v3594 = vpop.f32.mrb[0].mxu0
        %v3595 = vadd.f32 0.0, %v3594
        %v3596 = vpop.f32.mrb[0].mxu0
        %v3597 = vpop.f32.mrb[0].mxu0
        %v3598 = vadd.f32 0.0, %v3597
        %v3599 = vpop.f32.mrb[0].mxu0
        %3600 = vmatprep.mubr.bf16.mxu0 %v1501
        %3601 = vmatmul.mubr.bf16.gmra.mrb[0].mxu0 %v1500
        %v3602 = vpop.f32.mrb[0].mxu0
        %v3603 = vadd.f32 0.0, %v3602
        %v3604 = vpop.f32.mrb[0].mxu0
        %v3605 = vpop.f32.mrb[0].mxu0
        %v3606 = vadd.f32 0.0, %v3605
        %v3607 = vpop.f32.mrb[0].mxu0
        %3608 = vmatprep.mubr.bf16.mxu0 %v1508
        %3609 = vmatmul.mubr.bf16.gmra.mrb[0].mxu0 %v1507
        %v3610 = vpop.f32.mrb[0].mxu0
        %v3611 = vadd.f32 0.0, %v3610
        %v3612 = vpop.f32.mrb[0].mxu0
        %v3613 = vpop.f32.mrb[0].mxu0
        %v3614 = vadd.f32 0.0, %v3613
        %v3615 = vpop.f32.mrb[0].mxu0
        %3616 = vmatprep.mubr.bf16.mxu0 %v1515
        %3617 = vmatmul.mubr.bf16.gmra.mrb[0].mxu0 %v1514
        %v3618 = vpop.f32.mrb[0].mxu0
        %v3619 = vadd.f32 0.0, %v3618
        %v3620 = vpop.f32.mrb[0].mxu0
        %v3621 = vpop.f32.mrb[0].mxu0
        %v3622 = vadd.f32 0.0, %v3621
        %v3623 = vpop.f32.mrb[0].mxu0
        %3624 = vmatprep.mubr.bf16.mxu0 %v1522
        %3625 = vmatmul.mubr.bf16.gmra.mrb[0].mxu0 %v1521
        %v3626 = vpop.f32.mrb[0].mxu0
        %v3627 = vadd.f32 0.0, %v3626
        %v3628 = vpop.f32.mrb[0].mxu0
        %v3629 = vpop.f32.mrb[0].mxu0
        %v3630 = vadd.f32 0.0, %v3629
        %v3631 = vpop.f32.mrb[0].mxu0
        %3632 = vmatprep.mubr.bf16.mxu0 %v1529
        %3633 = vmatmul.mubr.bf16.gmra.mrb[0].mxu0 %v1528
        %v3634 = vpop.f32.mrb[0].mxu0
        %v3635 = vadd.f32 0.0, %v3634
        %v3636 = vpop.f32.mrb[0].mxu0
        %v3637 = vpop.f32.mrb[0].mxu0
        %v3638 = vadd.f32 0.0, %v3637
        %v3639 = vpop.f32.mrb[0].mxu0
        %3640 = vdwg.mxu0
        %3641 = vmatprep.subr.bf16.mxu0 0
        %3642 = vmatpush1.bf16.msra.mxu0 %v2205
        %3643 = vmatprep.subr.bf16.mxu0 0
        %3644 = vmatpush1.bf16.msra.mxu0 %v2208
        %3645 = vmatprep.subr.bf16.mxu0 0
        %3646 = vmatpush1.bf16.msra.mxu0 %v2211
        %3647 = vmatprep.subr.bf16.mxu0 0
        %3648 = vmatpush1.bf16.msra.mxu0 %v2214
        %3649 = vmatprep.subr.bf16.mxu0 0
        %3650 = vmatpush1.bf16.msra.mxu0 %v2217
        %3651 = vmatprep.subr.bf16.mxu0 0
        %3652 = vmatpush1.bf16.msra.mxu0 %v2220
        %3653 = vmatprep.subr.bf16.mxu0 0
        %3654 = vmatpush1.bf16.msra.mxu0 %v2223
        %3655 = vmatprep.subr.bf16.mxu0 0
        %3656 = vmatpush1.bf16.msra.mxu0 %v2226
        %3657 = vmatprep.subr.bf16.mxu0 0
        %3658 = vmatpush1.bf16.msra.mxu0 %v2229
        %3659 = vmatprep.subr.bf16.mxu0 0
        %3660 = vmatpush1.bf16.msra.mxu0 %v2232
        %3661 = vmatprep.subr.bf16.mxu0 0
        %3662 = vmatpush1.bf16.msra.mxu0 %v2235
        %3663 = vmatprep.subr.bf16.mxu0 0
        %3664 = vmatpush1.bf16.msra.mxu0 %v2238
        %3665 = vmatprep.subr.bf16.mxu0 0
        %3666 = vmatpush1.bf16.msra.mxu0 %v2241
        %3667 = vmatprep.subr.bf16.mxu0 0
        %3668 = vmatpush1.bf16.msra.mxu0 %v2244
        %3669 = vmatprep.subr.bf16.mxu0 0
        %3670 = vmatpush1.bf16.msra.mxu0 %v2247
        %3671 = vmatprep.subr.bf16.mxu0 0
        %3672 = vmatpush1.bf16.msra.mxu0 %v2250
        %3673 = vmatprep.mubr.bf16.mxu0 %v1398
        %3674 = vmatmul.mubr.bf16.gmra.mrb[0].mxu0 %v1397
        %v3675 = vpop.f32.mrb[0].mxu0
        %v3676 = vadd.f32 %v3483, %v3675
        %v3677 = vpop.f32.mrb[0].mxu0
        %v3678 = vpop.f32.mrb[0].mxu0
        %v3679 = vadd.f32 %v3486, %v3678
        %v3680 = vpop.f32.mrb[0].mxu0
        %3681 = vmatprep.mubr.bf16.mxu0 %v1405
        %3682 = vmatmul.mubr.bf16.gmra.mrb[0].mxu0 %v1404
        %v3683 = vpop.f32.mrb[0].mxu0
        %v3684 = vadd.f32 %v3491, %v3683
        %v3685 = vpop.f32.mrb[0].mxu0
        %v3686 = vpop.f32.mrb[0].mxu0
        %v3687 = vadd.f32 %v3494, %v3686
        %v3688 = vpop.f32.mrb[0].mxu0
        %3689 = vmatprep.mubr.bf16.mxu0 %v1412
        %3690 = vmatmul.mubr.bf16.gmra.mrb[0].mxu0 %v1411
        %v3691 = vpop.f32.mrb[0].mxu0
        %v3692 = vadd.f32 %v3499, %v3691
        %v3693 = vpop.f32.mrb[0].mxu0
        %v3694 = vpop.f32.mrb[0].mxu0
        %v3695 = vadd.f32 %v3502, %v3694
        %v3696 = vpop.f32.mrb[0].mxu0
        %3697 = vmatprep.mubr.bf16.mxu0 %v1419
        %3698 = vmatmul.mubr.bf16.gmra.mrb[0].mxu0 %v1418
        %v3699 = vpop.f32.mrb[0].mxu0
        %v3700 = vadd.f32 %v3507, %v3699
        %v3701 = vpop.f32.mrb[0].mxu0
        %v3702 = vpop.f32.mrb[0].mxu0
        %v3703 = vadd.f32 %v3510, %v3702
        %v3704 = vpop.f32.mrb[0].mxu0
        %3705 = vmatprep.mubr.bf16.mxu0 %v1426
        %3706 = vmatmul.mubr.bf16.gmra.mrb[0].mxu0 %v1425
        %v3707 = vpop.f32.mrb[0].mxu0
        %v3708 = vadd.f32 %v3515, %v3707
        %v3709 = vpop.f32.mrb[0].mxu0
        %v3710 = vpop.f32.mrb[0].mxu0
        %v3711 = vadd.f32 %v3518, %v3710
        %v3712 = vpop.f32.mrb[0].mxu0
        %3713 = vmatprep.mubr.bf16.mxu0 %v1433
        %3714 = vmatmul.mubr.bf16.gmra.mrb[0].mxu0 %v1432
        %v3715 = vpop.f32.mrb[0].mxu0
        %v3716 = vadd.f32 %v3523, %v3715
        %v3717 = vpop.f32.mrb[0].mxu0
        %v3718 = vpop.f32.mrb[0].mxu0
        %v3719 = vadd.f32 %v3526, %v3718
        %v3720 = vpop.f32.mrb[0].mxu0
        %3721 = vmatprep.mubr.bf16.mxu0 %v1440
        %3722 = vmatmul.mubr.bf16.gmra.mrb[0].mxu0 %v1439
        %v3723 = vpop.f32.mrb[0].mxu0
        %v3724 = vadd.f32 %v3531, %v3723
        %v3725 = vpop.f32.mrb[0].mxu0
        %v3726 = vpop.f32.mrb[0].mxu0
        %v3727 = vadd.f32 %v3534, %v3726
        %v3728 = vpop.f32.mrb[0].mxu0
        %3729 = vmatprep.mubr.bf16.mxu0 %v1447
        %3730 = vmatmul.mubr.bf16.gmra.mrb[0].mxu0 %v1446
        %v3731 = vpop.f32.mrb[0].mxu0
        %v3732 = vadd.f32 %v3539, %v3731
        %v3733 = vpop.f32.mrb[0].mxu0
        %v3734 = vpop.f32.mrb[0].mxu0
        %v3735 = vadd.f32 %v3542, %v3734
        %v3736 = vpop.f32.mrb[0].mxu0
        %3737 = vmatprep.mubr.bf16.mxu0 %v1454
        %3738 = vmatmul.mubr.bf16.gmra.mrb[0].mxu0 %v1453
        %v3739 = vpop.f32.mrb[0].mxu0
        %v3740 = vadd.f32 %v3547, %v3739
        %v3741 = vpop.f32.mrb[0].mxu0
        %v3742 = vpop.f32.mrb[0].mxu0
        %v3743 = vadd.f32 %v3550, %v3742
        %v3744 = vpop.f32.mrb[0].mxu0
        %3745 = vmatprep.mubr.bf16.mxu0 %v1461
        %3746 = vmatmul.mubr.bf16.gmra.mrb[0].mxu0 %v1460
        %v3747 = vpop.f32.mrb[0].mxu0
        %v3748 = vadd.f32 %v3555, %v3747
        %v3749 = vpop.f32.mrb[0].mxu0
        %v3750 = vpop.f32.mrb[0].mxu0
        %v3751 = vadd.f32 %v3558, %v3750
        %v3752 = vpop.f32.mrb[0].mxu0
        %3753 = vmatprep.mubr.bf16.mxu0 %v1468
        %3754 = vmatmul.mubr.bf16.gmra.mrb[0].mxu0 %v1467
        %v3755 = vpop.f32.mrb[0].mxu0
        %v3756 = vadd.f32 %v3563, %v3755
        %v3757 = vpop.f32.mrb[0].mxu0
        %v3758 = vpop.f32.mrb[0].mxu0
        %v3759 = vadd.f32 %v3566, %v3758
        %v3760 = vpop.f32.mrb[0].mxu0
        %3761 = vmatprep.mubr.bf16.mxu0 %v1475
        %3762 = vmatmul.mubr.bf16.gmra.mrb[0].mxu0 %v1474
        %v3763 = vpop.f32.mrb[0].mxu0
        %v3764 = vadd.f32 %v3571, %v3763
        %v3765 = vpop.f32.mrb[0].mxu0
        %v3766 = vpop.f32.mrb[0].mxu0
        %v3767 = vadd.f32 %v3574, %v3766
        %v3768 = vpop.f32.mrb[0].mxu0
        %3769 = vmatprep.mubr.bf16.mxu0 %v1482
        %3770 = vmatmul.mubr.bf16.gmra.mrb[0].mxu0 %v1481
        %v3771 = vpop.f32.mrb[0].mxu0
        %v3772 = vadd.f32 %v3579, %v3771
        %v3773 = vpop.f32.mrb[0].mxu0
        %v3774 = vpop.f32.mrb[0].mxu0
        %v3775 = vadd.f32 %v3582, %v3774
        %v3776 = vpop.f32.mrb[0].mxu0
        %3777 = vmatprep.mubr.bf16.mxu0 %v1489
        %3778 = vmatmul.mubr.bf16.gmra.mrb[0].mxu0 %v1488
        %v3779 = vpop.f32.mrb[0].mxu0
        %v3780 = vadd.f32 %v3587, %v3779
        %v3781 = vpop.f32.mrb[0].mxu0
        %v3782 = vpop.f32.mrb[0].mxu0
        %v3783 = vadd.f32 %v3590, %v3782
        %v3784 = vpop.f32.mrb[0].mxu0
        %3785 = vmatprep.mubr.bf16.mxu0 %v1496
        %3786 = vmatmul.mubr.bf16.gmra.mrb[0].mxu0 %v1495
        %v3787 = vpop.f32.mrb[0].mxu0
        %v3788 = vadd.f32 %v3595, %v3787
        %v3789 = vpop.f32.mrb[0].mxu0
        %v3790 = vpop.f32.mrb[0].mxu0
        %v3791 = vadd.f32 %v3598, %v3790
        %v3792 = vpop.f32.mrb[0].mxu0
        %3793 = vmatprep.mubr.bf16.mxu0 %v1503
        %3794 = vmatmul.mubr.bf16.gmra.mrb[0].mxu0 %v1502
        %v3795 = vpop.f32.mrb[0].mxu0
        %v3796 = vadd.f32 %v3603, %v3795
        %v3797 = vpop.f32.mrb[0].mxu0
        %v3798 = vpop.f32.mrb[0].mxu0
        %v3799 = vadd.f32 %v3606, %v3798
        %v3800 = vpop.f32.mrb[0].mxu0
        %3801 = vmatprep.mubr.bf16.mxu0 %v1510
        %3802 = vmatmul.mubr.bf16.gmra.mrb[0].mxu0 %v1509
        %v3803 = vpop.f32.mrb[0].mxu0
        %v3804 = vadd.f32 %v3611, %v3803
        %v3805 = vpop.f32.mrb[0].mxu0
        %v3806 = vpop.f32.mrb[0].mxu0
        %v3807 = vadd.f32 %v3614, %v3806
        %v3808 = vpop.f32.mrb[0].mxu0
        %3809 = vmatprep.mubr.bf16.mxu0 %v1517
        %3810 = vmatmul.mubr.bf16.gmra.mrb[0].mxu0 %v1516
        %v3811 = vpop.f32.mrb[0].mxu0
        %v3812 = vadd.f32 %v3619, %v3811
        %v3813 = vpop.f32.mrb[0].mxu0
        %v3814 = vpop.f32.mrb[0].mxu0
        %v3815 = vadd.f32 %v3622, %v3814
        %v3816 = vpop.f32.mrb[0].mxu0
        %3817 = vmatprep.mubr.bf16.mxu0 %v1524
        %3818 = vmatmul.mubr.bf16.gmra.mrb[0].mxu0 %v1523
        %v3819 = vpop.f32.mrb[0].mxu0
        %v3820 = vadd.f32 %v3627, %v3819
        %v3821 = vpop.f32.mrb[0].mxu0
        %v3822 = vpop.f32.mrb[0].mxu0
        %v3823 = vadd.f32 %v3630, %v3822
        %v3824 = vpop.f32.mrb[0].mxu0
        %3825 = vmatprep.mubr.bf16.mxu0 %v1531
        %3826 = vmatmul.mubr.bf16.gmra.mrb[0].mxu0 %v1530
        %v3827 = vpop.f32.mrb[0].mxu0
        %v3828 = vadd.f32 %v3635, %v3827
        %v3829 = vpop.f32.mrb[0].mxu0
        %v3830 = vpop.f32.mrb[0].mxu0
        %v3831 = vadd.f32 %v3638, %v3830
        %v3832 = vpop.f32.mrb[0].mxu0
        %3833 = vdwg.mxu0
        %3834 = vmatprep.subr.bf16.mxu0 0
        %3835 = vmatpush1.bf16.msra.mxu0 %v2253
        %3836 = vmatprep.subr.bf16.mxu0 0
        %3837 = vmatpush1.bf16.msra.mxu0 %v2256
        %3838 = vmatprep.subr.bf16.mxu0 0
        %3839 = vmatpush1.bf16.msra.mxu0 %v2259
        %3840 = vmatprep.subr.bf16.mxu0 0
        %3841 = vmatpush1.bf16.msra.mxu0 %v2262
        %3842 = vmatprep.subr.bf16.mxu0 0
        %3843 = vmatpush1.bf16.msra.mxu0 %v2265
        %3844 = vmatprep.subr.bf16.mxu0 0
        %3845 = vmatpush1.bf16.msra.mxu0 %v2268
        %3846 = vmatprep.subr.bf16.mxu0 0
        %3847 = vmatpush1.bf16.msra.mxu0 %v2271
        %3848 = vmatprep.subr.bf16.mxu0 0
        %3849 = vmatpush1.bf16.msra.mxu0 %v2274
        %3850 = vmatprep.subr.bf16.mxu0 0
        %3851 = vmatpush1.bf16.msra.mxu0 %v2277
        %3852 = vmatprep.subr.bf16.mxu0 0
        %3853 = vmatpush1.bf16.msra.mxu0 %v2280
        %3854 = vmatprep.subr.bf16.mxu0 0
        %3855 = vmatpush1.bf16.msra.mxu0 %v2283
        %3856 = vmatprep.subr.bf16.mxu0 0
        %3857 = vmatpush1.bf16.msra.mxu0 %v2286
        %3858 = vmatprep.subr.bf16.mxu0 0
        %3859 = vmatpush1.bf16.msra.mxu0 %v2289
        %3860 = vmatprep.subr.bf16.mxu0 0
        %3861 = vmatpush1.bf16.msra.mxu0 %v2292
        %3862 = vmatprep.subr.bf16.mxu0 0
        %3863 = vmatpush1.bf16.msra.mxu0 %v2295
        %3864 = vmatprep.subr.bf16.mxu0 0
        %3865 = vmatpush1.bf16.msra.mxu0 %v2298
        %3866 = vmatprep.mubr.bf16.mxu0 %v1400
        %3867 = vmatmul.mubr.bf16.gmra.mrb[0].mxu0 %v1399
        %v3868 = vpop.f32.mrb[0].mxu0
        %v3869 = vadd.f32 %v3676, %v3868
        %v3870 = vpop.f32.mrb[0].mxu0
        %v3871 = vpop.f32.mrb[0].mxu0
        %v3872 = vadd.f32 %v3679, %v3871
        %v3873 = vpop.f32.mrb[0].mxu0
        %3874 = vmatprep.mubr.bf16.mxu0 %v1407
        %3875 = vmatmul.mubr.bf16.gmra.mrb[0].mxu0 %v1406
        %v3876 = vpop.f32.mrb[0].mxu0
        %v3877 = vadd.f32 %v3684, %v3876
        %v3878 = vpop.f32.mrb[0].mxu0
        %v3879 = vpop.f32.mrb[0].mxu0
        %v3880 = vadd.f32 %v3687, %v3879
        %v3881 = vpop.f32.mrb[0].mxu0
        %3882 = vmatprep.mubr.bf16.mxu0 %v1414
        %3883 = vmatmul.mubr.bf16.gmra.mrb[0].mxu0 %v1413
        %v3884 = vpop.f32.mrb[0].mxu0
        %v3885 = vadd.f32 %v3692, %v3884
        %v3886 = vpop.f32.mrb[0].mxu0
        %v3887 = vpop.f32.mrb[0].mxu0
        %v3888 = vadd.f32 %v3695, %v3887
        %v3889 = vpop.f32.mrb[0].mxu0
        %3890 = vmatprep.mubr.bf16.mxu0 %v1421
        %3891 = vmatmul.mubr.bf16.gmra.mrb[0].mxu0 %v1420
        %v3892 = vpop.f32.mrb[0].mxu0
        %v3893 = vadd.f32 %v3700, %v3892
        %v3894 = vpop.f32.mrb[0].mxu0
        %v3895 = vpop.f32.mrb[0].mxu0
        %v3896 = vadd.f32 %v3703, %v3895
        %v3897 = vpop.f32.mrb[0].mxu0
        %3898 = vmatprep.mubr.bf16.mxu0 %v1428
        %3899 = vmatmul.mubr.bf16.gmra.mrb[0].mxu0 %v1427
        %v3900 = vpop.f32.mrb[0].mxu0
        %v3901 = vadd.f32 %v3708, %v3900
        %v3902 = vpop.f32.mrb[0].mxu0
        %v3903 = vpop.f32.mrb[0].mxu0
        %v3904 = vadd.f32 %v3711, %v3903
        %v3905 = vpop.f32.mrb[0].mxu0
        %3906 = vmatprep.mubr.bf16.mxu0 %v1435
        %3907 = vmatmul.mubr.bf16.gmra.mrb[0].mxu0 %v1434
        %v3908 = vpop.f32.mrb[0].mxu0
        %v3909 = vadd.f32 %v3716, %v3908
        %v3910 = vpop.f32.mrb[0].mxu0
        %v3911 = vpop.f32.mrb[0].mxu0
        %v3912 = vadd.f32 %v3719, %v3911
        %v3913 = vpop.f32.mrb[0].mxu0
        %3914 = vmatprep.mubr.bf16.mxu0 %v1442
        %3915 = vmatmul.mubr.bf16.gmra.mrb[0].mxu0 %v1441
        %v3916 = vpop.f32.mrb[0].mxu0
        %v3917 = vadd.f32 %v3724, %v3916
        %v3918 = vpop.f32.mrb[0].mxu0
        %v3919 = vpop.f32.mrb[0].mxu0
        %v3920 = vadd.f32 %v3727, %v3919
        %v3921 = vpop.f32.mrb[0].mxu0
        %3922 = vmatprep.mubr.bf16.mxu0 %v1449
        %3923 = vmatmul.mubr.bf16.gmra.mrb[0].mxu0 %v1448
        %v3924 = vpop.f32.mrb[0].mxu0
        %v3925 = vadd.f32 %v3732, %v3924
        %v3926 = vpop.f32.mrb[0].mxu0
        %v3927 = vpop.f32.mrb[0].mxu0
        %v3928 = vadd.f32 %v3735, %v3927
        %v3929 = vpop.f32.mrb[0].mxu0
        %3930 = vmatprep.mubr.bf16.mxu0 %v1456
        %3931 = vmatmul.mubr.bf16.gmra.mrb[0].mxu0 %v1455
        %v3932 = vpop.f32.mrb[0].mxu0
        %v3933 = vadd.f32 %v3740, %v3932
        %v3934 = vpop.f32.mrb[0].mxu0
        %v3935 = vpop.f32.mrb[0].mxu0
        %v3936 = vadd.f32 %v3743, %v3935
        %v3937 = vpop.f32.mrb[0].mxu0
        %3938 = vmatprep.mubr.bf16.mxu0 %v1463
        %3939 = vmatmul.mubr.bf16.gmra.mrb[0].mxu0 %v1462
        %v3940 = vpop.f32.mrb[0].mxu0
        %v3941 = vadd.f32 %v3748, %v3940
        %v3942 = vpop.f32.mrb[0].mxu0
        %v3943 = vpop.f32.mrb[0].mxu0
        %v3944 = vadd.f32 %v3751, %v3943
        %v3945 = vpop.f32.mrb[0].mxu0
        %3946 = vmatprep.mubr.bf16.mxu0 %v1470
        %3947 = vmatmul.mubr.bf16.gmra.mrb[0].mxu0 %v1469
        %v3948 = vpop.f32.mrb[0].mxu0
        %v3949 = vadd.f32 %v3756, %v3948
        %v3950 = vpop.f32.mrb[0].mxu0
        %v3951 = vpop.f32.mrb[0].mxu0
        %v3952 = vadd.f32 %v3759, %v3951
        %v3953 = vpop.f32.mrb[0].mxu0
        %3954 = vmatprep.mubr.bf16.mxu0 %v1477
        %3955 = vmatmul.mubr.bf16.gmra.mrb[0].mxu0 %v1476
        %v3956 = vpop.f32.mrb[0].mxu0
        %v3957 = vadd.f32 %v3764, %v3956
        %v3958 = vpop.f32.mrb[0].mxu0
        %v3959 = vpop.f32.mrb[0].mxu0
        %v3960 = vadd.f32 %v3767, %v3959
        %v3961 = vpop.f32.mrb[0].mxu0
        %3962 = vmatprep.mubr.bf16.mxu0 %v1484
        %3963 = vmatmul.mubr.bf16.gmra.mrb[0].mxu0 %v1483
        %v3964 = vpop.f32.mrb[0].mxu0
        %v3965 = vadd.f32 %v3772, %v3964
        %v3966 = vpop.f32.mrb[0].mxu0
        %v3967 = vpop.f32.mrb[0].mxu0
        %v3968 = vadd.f32 %v3775, %v3967
        %v3969 = vpop.f32.mrb[0].mxu0
        %3970 = vmatprep.mubr.bf16.mxu0 %v1491
        %3971 = vmatmul.mubr.bf16.gmra.mrb[0].mxu0 %v1490
        %v3972 = vpop.f32.mrb[0].mxu0
        %v3973 = vadd.f32 %v3780, %v3972
        %v3974 = vpop.f32.mrb[0].mxu0
        %v3975 = vpop.f32.mrb[0].mxu0
        %v3976 = vadd.f32 %v3783, %v3975
        %v3977 = vpop.f32.mrb[0].mxu0
        %3978 = vmatprep.mubr.bf16.mxu0 %v1498
        %3979 = vmatmul.mubr.bf16.gmra.mrb[0].mxu0 %v1497
        %v3980 = vpop.f32.mrb[0].mxu0
        %v3981 = vadd.f32 %v3788, %v3980
        %v3982 = vpop.f32.mrb[0].mxu0
        %v3983 = vpop.f32.mrb[0].mxu0
        %v3984 = vadd.f32 %v3791, %v3983
        %v3985 = vpop.f32.mrb[0].mxu0
        %3986 = vmatprep.mubr.bf16.mxu0 %v1505
        %3987 = vmatmul.mubr.bf16.gmra.mrb[0].mxu0 %v1504
        %v3988 = vpop.f32.mrb[0].mxu0
        %v3989 = vadd.f32 %v3796, %v3988
        %v3990 = vpop.f32.mrb[0].mxu0
        %v3991 = vpop.f32.mrb[0].mxu0
        %v3992 = vadd.f32 %v3799, %v3991
        %v3993 = vpop.f32.mrb[0].mxu0
        %3994 = vmatprep.mubr.bf16.mxu0 %v1512
        %3995 = vmatmul.mubr.bf16.gmra.mrb[0].mxu0 %v1511
        %v3996 = vpop.f32.mrb[0].mxu0
        %v3997 = vadd.f32 %v3804, %v3996
        %v3998 = vpop.f32.mrb[0].mxu0
        %v3999 = vpop.f32.mrb[0].mxu0
        %v4000 = vadd.f32 %v3807, %v3999
        %v4001 = vpop.f32.mrb[0].mxu0
        %4002 = vmatprep.mubr.bf16.mxu0 %v1519
        %4003 = vmatmul.mubr.bf16.gmra.mrb[0].mxu0 %v1518
        %v4004 = vpop.f32.mrb[0].mxu0
        %v4005 = vadd.f32 %v3812, %v4004
        %v4006 = vpop.f32.mrb[0].mxu0
        %v4007 = vpop.f32.mrb[0].mxu0
        %v4008 = vadd.f32 %v3815, %v4007
        %v4009 = vpop.f32.mrb[0].mxu0
        %4010 = vmatprep.mubr.bf16.mxu0 %v1526
        %4011 = vmatmul.mubr.bf16.gmra.mrb[0].mxu0 %v1525
        %v4012 = vpop.f32.mrb[0].mxu0
        %v4013 = vadd.f32 %v3820, %v4012
        %v4014 = vpop.f32.mrb[0].mxu0
        %v4015 = vpop.f32.mrb[0].mxu0
        %v4016 = vadd.f32 %v3823, %v4015
        %v4017 = vpop.f32.mrb[0].mxu0
        %4018 = vmatprep.mubr.bf16.mxu0 %v1533
        %4019 = vmatmul.mubr.bf16.gmra.mrb[0].mxu0 %v1532
        %v4020 = vpop.f32.mrb[0].mxu0
        %v4021 = vadd.f32 %v3828, %v4020
        %v4022 = vpop.f32.mrb[0].mxu0
        %v4023 = vpop.f32.mrb[0].mxu0
        %v4024 = vadd.f32 %v3831, %v4023
        %v4025 = vpop.f32.mrb[0].mxu0
        %4026 = vdwg.mxu0
        %4027 = vmatprep.subr.bf16.mxu0 0
        %4028 = vmatpush1.bf16.msra.mxu0 %v2301
        %4029 = vmatprep.subr.bf16.mxu0 0
        %4030 = vmatpush1.bf16.msra.mxu0 %v2304
        %4031 = vmatprep.subr.bf16.mxu0 0
        %4032 = vmatpush1.bf16.msra.mxu0 0
        %4033 = vmatprep.subr.bf16.mxu0 0
        %4034 = vmatpush1.bf16.msra.mxu0 0
        %4035 = vmatprep.subr.bf16.mxu0 0
        %4036 = vmatpush1.bf16.msra.mxu0 0
        %4037 = vmatprep.subr.bf16.mxu0 0
        %4038 = vmatpush1.bf16.msra.mxu0 0
        %4039 = vmatprep.subr.bf16.mxu0 0
        %4040 = vmatpush1.bf16.msra.mxu0 0
        %4041 = vmatprep.subr.bf16.mxu0 0
        %4042 = vmatpush1.bf16.msra.mxu0 0
        %4043 = vmatprep.subr.bf16.mxu0 0
        %4044 = vmatpush1.bf16.msra.mxu0 0
        %4045 = vmatprep.subr.bf16.mxu0 0
        %4046 = vmatpush1.bf16.msra.mxu0 0
        %4047 = vmatprep.subr.bf16.mxu0 0
        %4048 = vmatpush1.bf16.msra.mxu0 0
        %4049 = vmatprep.subr.bf16.mxu0 0
        %4050 = vmatpush1.bf16.msra.mxu0 0
        %4051 = vmatprep.subr.bf16.mxu0 0
        %4052 = vmatpush1.bf16.msra.mxu0 0
        %4053 = vmatprep.subr.bf16.mxu0 0
        %4054 = vmatpush1.bf16.msra.mxu0 0
        %4055 = vmatprep.subr.bf16.mxu0 0
        %4056 = vmatpush1.bf16.msra.mxu0 0
        %4057 = vmatprep.subr.bf16.mxu0 0
        %4058 = vmatpush1.bf16.msra.mxu0 0
        %4059 = vmatprep.mubr.bf16.mxu0 0
        %4060 = vmatmul.mubr.bf16.gmra.mrb[0].mxu0 %v2457
        %v4061 = vpop.f32.mrb[0].mxu0
        %v4062 = vadd.f32 %v3869, %v4061
        %v4063 = vpop.f32.mrb[0].mxu0
        %v4064 = vpop.f32.mrb[0].mxu0
        %v4065 = vadd.f32 %v3872, %v4064
        %v4066 = vpop.f32.mrb[0].mxu0
        %4067 = vmatprep.mubr.bf16.mxu0 0
        %4068 = vmatmul.mubr.bf16.gmra.mrb[0].mxu0 %v2460
        %v4069 = vpop.f32.mrb[0].mxu0
        %v4070 = vadd.f32 %v3877, %v4069
        %v4071 = vpop.f32.mrb[0].mxu0
        %v4072 = vpop.f32.mrb[0].mxu0
        %v4073 = vadd.f32 %v3880, %v4072
        %v4074 = vpop.f32.mrb[0].mxu0
        %4075 = vmatprep.mubr.bf16.mxu0 0
        %4076 = vmatmul.mubr.bf16.gmra.mrb[0].mxu0 %v2463
        %v4077 = vpop.f32.mrb[0].mxu0
        %v4078 = vadd.f32 %v3885, %v4077
        %v4079 = vpop.f32.mrb[0].mxu0
        %v4080 = vpop.f32.mrb[0].mxu0
        %v4081 = vadd.f32 %v3888, %v4080
        %v4082 = vpop.f32.mrb[0].mxu0
        %4083 = vmatprep.mubr.bf16.mxu0 0
        %4084 = vmatmul.mubr.bf16.gmra.mrb[0].mxu0 %v2466
        %v4085 = vpop.f32.mrb[0].mxu0
        %v4086 = vadd.f32 %v3893, %v4085
        %v4087 = vpop.f32.mrb[0].mxu0
        %v4088 = vpop.f32.mrb[0].mxu0
        %v4089 = vadd.f32 %v3896, %v4088
        %v4090 = vpop.f32.mrb[0].mxu0
        %4091 = vmatprep.mubr.bf16.mxu0 0
        %4092 = vmatmul.mubr.bf16.gmra.mrb[0].mxu0 %v2469
        %v4093 = vpop.f32.mrb[0].mxu0
        %v4094 = vadd.f32 %v3901, %v4093
        %v4095 = vpop.f32.mrb[0].mxu0
        %v4096 = vpop.f32.mrb[0].mxu0
        %v4097 = vadd.f32 %v3904, %v4096
        %v4098 = vpop.f32.mrb[0].mxu0
        %4099 = vmatprep.mubr.bf16.mxu0 0
        %4100 = vmatmul.mubr.bf16.gmra.mrb[0].mxu0 %v2472
        %v4101 = vpop.f32.mrb[0].mxu0
        %v4102 = vadd.f32 %v3909, %v4101
        %v4103 = vpop.f32.mrb[0].mxu0
        %v4104 = vpop.f32.mrb[0].mxu0
        %v4105 = vadd.f32 %v3912, %v4104
        %v4106 = vpop.f32.mrb[0].mxu0
        %4107 = vmatprep.mubr.bf16.mxu0 0
        %4108 = vmatmul.mubr.bf16.gmra.mrb[0].mxu0 %v2475
        %v4109 = vpop.f32.mrb[0].mxu0
        %v4110 = vadd.f32 %v3917, %v4109
        %v4111 = vpop.f32.mrb[0].mxu0
        %v4112 = vpop.f32.mrb[0].mxu0
        %v4113 = vadd.f32 %v3920, %v4112
        %v4114 = vpop.f32.mrb[0].mxu0
        %4115 = vmatprep.mubr.bf16.mxu0 0
        %4116 = vmatmul.mubr.bf16.gmra.mrb[0].mxu0 %v2478
        %v4117 = vpop.f32.mrb[0].mxu0
        %v4118 = vadd.f32 %v3925, %v4117
        %v4119 = vpop.f32.mrb[0].mxu0
        %v4120 = vpop.f32.mrb[0].mxu0
        %v4121 = vadd.f32 %v3928, %v4120
        %v4122 = vpop.f32.mrb[0].mxu0
        %4123 = vmatprep.mubr.bf16.mxu0 0
        %4124 = vmatmul.mubr.bf16.gmra.mrb[0].mxu0 %v2481
        %v4125 = vpop.f32.mrb[0].mxu0
        %v4126 = vadd.f32 %v3933, %v4125
        %v4127 = vpop.f32.mrb[0].mxu0
        %v4128 = vpop.f32.mrb[0].mxu0
        %v4129 = vadd.f32 %v3936, %v4128
        %v4130 = vpop.f32.mrb[0].mxu0
        %4131 = vmatprep.mubr.bf16.mxu0 0
        %4132 = vmatmul.mubr.bf16.gmra.mrb[0].mxu0 %v2484
        %v4133 = vpop.f32.mrb[0].mxu0
        %v4134 = vadd.f32 %v3941, %v4133
        %v4135 = vpop.f32.mrb[0].mxu0
        %v4136 = vpop.f32.mrb[0].mxu0
        %v4137 = vadd.f32 %v3944, %v4136
        %v4138 = vpop.f32.mrb[0].mxu0
        %4139 = vmatprep.mubr.bf16.mxu0 0
        %4140 = vmatmul.mubr.bf16.gmra.mrb[0].mxu0 %v2487
        %v4141 = vpop.f32.mrb[0].mxu0
        %v4142 = vadd.f32 %v3949, %v4141
        %v4143 = vpop.f32.mrb[0].mxu0
        %v4144 = vpop.f32.mrb[0].mxu0
        %v4145 = vadd.f32 %v3952, %v4144
        %v4146 = vpop.f32.mrb[0].mxu0
        %4147 = vmatprep.mubr.bf16.mxu0 0
        %4148 = vmatmul.mubr.bf16.gmra.mrb[0].mxu0 %v2490
        %v4149 = vpop.f32.mrb[0].mxu0
        %v4150 = vadd.f32 %v3957, %v4149
        %v4151 = vpop.f32.mrb[0].mxu0
        %v4152 = vpop.f32.mrb[0].mxu0
        %v4153 = vadd.f32 %v3960, %v4152
        %v4154 = vpop.f32.mrb[0].mxu0
        %4155 = vmatprep.mubr.bf16.mxu0 0
        %4156 = vmatmul.mubr.bf16.gmra.mrb[0].mxu0 %v2493
        %v4157 = vpop.f32.mrb[0].mxu0
        %v4158 = vadd.f32 %v3965, %v4157
        %v4159 = vpop.f32.mrb[0].mxu0
        %v4160 = vpop.f32.mrb[0].mxu0
        %v4161 = vadd.f32 %v3968, %v4160
        %v4162 = vpop.f32.mrb[0].mxu0
        %4163 = vmatprep.mubr.bf16.mxu0 0
        %4164 = vmatmul.mubr.bf16.gmra.mrb[0].mxu0 %v2496
        %v4165 = vpop.f32.mrb[0].mxu0
        %v4166 = vadd.f32 %v3973, %v4165
        %v4167 = vpop.f32.mrb[0].mxu0
        %v4168 = vpop.f32.mrb[0].mxu0
        %v4169 = vadd.f32 %v3976, %v4168
        %v4170 = vpop.f32.mrb[0].mxu0
        %4171 = vmatprep.mubr.bf16.mxu0 0
        %4172 = vmatmul.mubr.bf16.gmra.mrb[0].mxu0 %v2499
        %v4173 = vpop.f32.mrb[0].mxu0
        %v4174 = vadd.f32 %v3981, %v4173
        %v4175 = vpop.f32.mrb[0].mxu0
        %v4176 = vpop.f32.mrb[0].mxu0
        %v4177 = vadd.f32 %v3984, %v4176
        %v4178 = vpop.f32.mrb[0].mxu0
        %4179 = vmatprep.mubr.bf16.mxu0 0
        %4180 = vmatmul.mubr.bf16.gmra.mrb[0].mxu0 %v2502
        %v4181 = vpop.f32.mrb[0].mxu0
        %v4182 = vadd.f32 %v3989, %v4181
        %v4183 = vpop.f32.mrb[0].mxu0
        %v4184 = vpop.f32.mrb[0].mxu0
        %v4185 = vadd.f32 %v3992, %v4184
        %v4186 = vpop.f32.mrb[0].mxu0
        %4187 = vmatprep.mubr.bf16.mxu0 0
        %4188 = vmatmul.mubr.bf16.gmra.mrb[0].mxu0 %v2505
        %v4189 = vpop.f32.mrb[0].mxu0
        %v4190 = vadd.f32 %v3997, %v4189
        %v4191 = vpop.f32.mrb[0].mxu0
        %v4192 = vpop.f32.mrb[0].mxu0
        %v4193 = vadd.f32 %v4000, %v4192
        %v4194 = vpop.f32.mrb[0].mxu0
        %4195 = vmatprep.mubr.bf16.mxu0 0
        %4196 = vmatmul.mubr.bf16.gmra.mrb[0].mxu0 %v2508
        %v4197 = vpop.f32.mrb[0].mxu0
        %v4198 = vadd.f32 %v4005, %v4197
        %v4199 = vpop.f32.mrb[0].mxu0
        %v4200 = vpop.f32.mrb[0].mxu0
        %v4201 = vadd.f32 %v4008, %v4200
        %v4202 = vpop.f32.mrb[0].mxu0
        %4203 = vmatprep.mubr.bf16.mxu0 0
        %4204 = vmatmul.mubr.bf16.gmra.mrb[0].mxu0 %v2511
        %v4205 = vpop.f32.mrb[0].mxu0
        %v4206 = vadd.f32 %v4013, %v4205
        %v4207 = vpop.f32.mrb[0].mxu0
        %v4208 = vpop.f32.mrb[0].mxu0
        %v4209 = vadd.f32 %v4016, %v4208
        %v4210 = vpop.f32.mrb[0].mxu0
        %4211 = vmatprep.mubr.bf16.mxu0 0
        %4212 = vmatmul.mubr.bf16.gmra.mrb[0].mxu0 %v2514
        %v4213 = vpop.f32.mrb[0].mxu0
        %v4214 = vadd.f32 %v4021, %v4213
        %v4215 = vpop.f32.mrb[0].mxu0
        %v4216 = vpop.f32.mrb[0].mxu0
        %v4217 = vadd.f32 %v4024, %v4216
        %v4218 = vpop.f32.mrb[0].mxu0
        %4219 = vdwg.mxu0
        %v4220 = vmax.f32 %v3250, %v3260
        %v4221 = vmax.f32 %v3252, %v3262
        %v4222 = vmax.f32 %v4062, %v4070
        %v4223 = vmax.f32 %v3254, %v3264
        %v4224 = vmax.f32 %v3256, %v3266
        %v4225 = vmax.f32 %v4065, %v4073
        %v4226 = vmax.f32 %v4220, %v3270
        %v4227 = vmax.f32 %v4221, %v3272
        %v4228 = vmax.f32 %v4222, %v4078
        %v4229 = vmax.f32 %v4223, %v3274
        %v4230 = vmax.f32 %v4224, %v3276
        %v4231 = vmax.f32 %v4225, %v4081
        %v4232 = vmax.f32 %v4226, %v3280
        %v4233 = vmax.f32 %v4227, %v3282
        %v4234 = vmax.f32 %v4228, %v4086
        %v4235 = vmax.f32 %v4229, %v3284
        %v4236 = vmax.f32 %v4230, %v3286
        %v4237 = vmax.f32 %v4231, %v4089
        %v4238 = vmax.f32 %v4232, %v3290
        %v4239 = vmax.f32 %v4233, %v3292
        %v4240 = vmax.f32 %v4234, %v4094
        %v4241 = vmax.f32 %v4235, %v3294
        %v4242 = vmax.f32 %v4236, %v3296
        %v4243 = vmax.f32 %v4237, %v4097
        %v4244 = vmax.f32 %v4238, %v3300
        %v4245 = vmax.f32 %v4239, %v3302
        %v4246 = vmax.f32 %v4240, %v4102
        %v4247 = vmax.f32 %v4241, %v3304
        %v4248 = vmax.f32 %v4242, %v3306
        %v4249 = vmax.f32 %v4243, %v4105
        %v4250 = vmax.f32 %v4244, %v3310
        %v4251 = vmax.f32 %v4245, %v3312
        %v4252 = vmax.f32 %v4246, %v4110
        %v4253 = vmax.f32 %v4247, %v3314
        %v4254 = vmax.f32 %v4248, %v3316
        %v4255 = vmax.f32 %v4249, %v4113
        %v4256 = vmax.f32 %v4250, %v3320
        %v4257 = vmax.f32 %v4251, %v3322
        %v4258 = vmax.f32 %v4252, %v4118
        %v4259 = vmax.f32 %v4253, %v3324
        %v4260 = vmax.f32 %v4254, %v3326
        %v4261 = vmax.f32 %v4255, %v4121
        %v4262 = vmax.f32 %v4256, %v3330
        %v4263 = vmax.f32 %v4257, %v3332
        %v4264 = vmax.f32 %v4258, %v4126
        %v4265 = vmax.f32 %v4259, %v3334
        %v4266 = vmax.f32 %v4260, %v3336
        %v4267 = vmax.f32 %v4261, %v4129
        %v4268 = vmax.f32 %v4262, %v3340
        %v4269 = vmax.f32 %v4263, %v3342
        %v4270 = vmax.f32 %v4264, %v4134
        %v4271 = vmax.f32 %v4265, %v3344
        %v4272 = vmax.f32 %v4266, %v3346
        %v4273 = vmax.f32 %v4267, %v4137
        %v4274 = vmax.f32 %v4268, %v3350
        %v4275 = vmax.f32 %v4269, %v3352
        %v4276 = vmax.f32 %v4270, %v4142
        %v4277 = vmax.f32 %v4271, %v3354
        %v4278 = vmax.f32 %v4272, %v3356
        %v4279 = vmax.f32 %v4273, %v4145
        %v4280 = vmax.f32 %v4274, %v3360
        %v4281 = vmax.f32 %v4275, %v3362
        %v4282 = vmax.f32 %v4276, %v4150
        %v4283 = vmax.f32 %v4277, %v3364
        %v4284 = vmax.f32 %v4278, %v3366
        %v4285 = vmax.f32 %v4279, %v4153
        %v4286 = vmax.f32 %v4280, %v3370
        %v4287 = vmax.f32 %v4281, %v3372
        %v4288 = vmax.f32 %v4282, %v4158
        %v4289 = vmax.f32 %v4283, %v3374
        %v4290 = vmax.f32 %v4284, %v3376
        %v4291 = vmax.f32 %v4285, %v4161
        %v4292 = vmax.f32 %v4286, %v3380
        %v4293 = vmax.f32 %v4287, %v3382
        %v4294 = vmax.f32 %v4288, %v4166
        %v4295 = vmax.f32 %v4289, %v3384
        %v4296 = vmax.f32 %v4290, %v3386
        %v4297 = vmax.f32 %v4291, %v4169
        %v4298 = vmax.f32 %v4292, %v3390
        %v4299 = vmax.f32 %v4293, %v3392
        %v4300 = vmax.f32 %v4294, %v4174
        %v4301 = vmax.f32 %v4295, %v3394
        %v4302 = vmax.f32 %v4296, %v3396
        %v4303 = vmax.f32 %v4297, %v4177
        %v4304 = vmax.f32 %v4298, %v3400
        %v4305 = vmax.f32 %v4299, %v3402
        %v4306 = vmax.f32 %v4300, %v4182
        %v4307 = vmax.f32 %v4301, %v3404
        %v4308 = vmax.f32 %v4302, %v3406
        %v4309 = vmax.f32 %v4303, %v4185
        %v4310 = vmax.f32 %v4304, %v3410
        %v4311 = vmax.f32 %v4305, %v3412
        %v4312 = vmax.f32 %v4306, %v4190
        %v4313 = vmax.f32 %v4307, %v3414
        %v4314 = vmax.f32 %v4308, %v3416
        %v4315 = vmax.f32 %v4309, %v4193
        %v4316 = vmax.f32 %v4310, %v3420
        %v4317 = vmax.f32 %v4311, %v3422
        %v4318 = vmax.f32 %v4312, %v4198
        %v4319 = vmax.f32 %v4313, %v3424
        %v4320 = vmax.f32 %v4314, %v3426
        %v4321 = vmax.f32 %v4315, %v4201
        %v4322 = vmax.f32 %v4316, %v3430
        %v4323 = vmax.f32 %v4317, %v3432
        %v4324 = vmax.f32 %v4318, %v4206
        %v4325 = vmax.f32 %v4319, %v3434
        %v4326 = vmax.f32 %v4320, %v3436
        %v4327 = vmax.f32 %v4321, %v4209
        %v4328 = vmax.f32 %v4322, %v3440
        %v4329 = vmax.f32 %v4323, %v3442
        %v4330 = vmax.f32 %v4324, %v4214
        %v4331 = vmax.f32 %v4325, %v3444
        %v4332 = vmax.f32 %v4326, %v3446
        %v4333 = vmax.f32 %v4327, %v4217
        %v4334 = vld [vmem:[%s2] sm:$0xff]
        %v4335 = vld [vmem:[%s2 + $0x8] sm:$0xff]
        %4337 = vset.pattern.permute.xlu0 0
        %4338 = vperm.xlu0 %4337, %v4334
        %v4339 = vpop.permute.xlu0 %4338
        %4342 = vset.pattern.permute.xlu0 0
        %4343 = vperm.xlu0 %4342, %v4335
        %v4344 = vpop.permute.xlu0 %4343
        %v4346 = vadd.f32 %v4328, %v4339
        %v4347 = vadd.f32 %v4329, %v4339
        %v4348 = vadd.f32 %v4330, %v4339
        %v4349 = vadd.f32 %v4331, %v4344
        %v4350 = vadd.f32 %v4332, %v4344
        %v4351 = vadd.f32 %v4333, %v4344
        %vm4352 = vcmp.ge.f32.partialorder %v4346, 0.0
        %vm4353 = vcmp.ge.f32.partialorder %v4347, 0.0
        %vm4354 = vcmp.ge.f32.partialorder %v4348, 0.0
        %vm4355 = vcmp.ge.f32.partialorder %v4349, 0.0
        %vm4356 = vcmp.ge.f32.partialorder %v4350, 0.0
        %vm4357 = vcmp.ge.f32.partialorder %v4351, 0.0
        %v4358 = vmul.f32 %v4346, 0.3
        %v4359 = vmul.f32 %v4347, 0.3
        %v4360 = vmul.f32 %v4348, 0.3
        %v4361 = vmul.f32 %v4349, 0.3
        %v4362 = vmul.f32 %v4350, 0.3
        %v4363 = vmul.f32 %v4351, 0.3
        %v4364 = vsel %vm4352, %v4346, %v4358
        %v4365 = vsel %vm4353, %v4347, %v4359
        %v4366 = vsel %vm4354, %v4348, %v4360
        %v4367 = vsel %vm4355, %v4349, %v4361
        %v4368 = vsel %vm4356, %v4350, %v4362
        %v4369 = vsel %vm4357, %v4351, %v4363
        %4370 = vst [vmem:[%s591] sm:$0xff] %v4364
        %4371 = vst [vmem:[%s591 + $0x8] sm:$0xff] %v4365
        %4372 = vst [vmem:[%s591 + $0x10] sm:$0xff] %v4366
        %4373 = vst [vmem:[%s591 + $0x18] sm:$0xff] %v4367
        %4374 = vst [vmem:[%s591 + $0x20] sm:$0xff] %v4368
        %4375 = vst [vmem:[%s591 + $0x28] sm:$0xff] %v4369
        %s4376 = sand.u32 %s90, 1
        %s4377 = sand.u32 %s90, 1
        %s4378 = smul.addr %s4377, 48
        %s4379 = scalar_lea.vmem [#allocation3], %s4378
        // Predicated region
        $region59: #{shallow_net_forward.4} parent=53 // pred_check
          %p4380 = pneg %p100
        $region60: #{shallow_net_forward.4} parent=53 // pred_check_branch
          %4382 = sbr.rel (%p4380) target = $region62
        $region61: #{shallow_net_forward.4} parent=53 // pred_region
          %s4383 = smul.u32 3, %s14
          %s4384 = smul.addr %s4383, 8
          %s4385 = scalar_lea.vmem %s3, %s4384
          // Predicated region
          $region63: #{shallow_net_forward.4} parent=61 // pred_check
            _
          $region64: #{shallow_net_forward.4} parent=61 // pred_check_branch
            %4387 = sbr.rel (0) target = $region66
          $region65: #{shallow_net_forward.4} parent=61 // pred_region
            // Predicated region
            $region67: #{shallow_net_forward.4} parent=65 // pred_check
              _
            $region68: #{shallow_net_forward.4} parent=65 // pred_check_branch
              %4389 = sbr.rel (0) target = $region70
            $region69: #{shallow_net_forward.4} parent=65 // pred_region
              loop: start=0, step=1, limit=1
              $region71: #{shallow_net_forward.4} parent=69 // loop_pre_header
                _
              $region72: #{shallow_net_forward.4} parent=69 // loop_header
                %s4391 = sphi 0, %s4395
                %p4392 = scmp.ge.s32.totalorder %s4391, 1
                %s4396 = sphi %s4379, %s4379
                %s4397 = sphi %s4385, %s4385
              $region73: #{shallow_net_forward.4} parent=69 // loop_header_branch
                %4394 = sbr.rel (%p4392) target = $region77
              $region74: #{shallow_net_forward.4} parent=69 // loop_body
                %v4398 = vld [vmem:[%s4396] sm:$0xff]
                %4399 = vst [vmem:[%s4397] sm:$0xff] %v4398
                %v4400 = vld [vmem:[%s4396 + $0x8] sm:$0xff]
                %4401 = vst [vmem:[%s4397 + $0x8] sm:$0xff] %v4400
                %v4402 = vld [vmem:[%s4396 + $0x10] sm:$0xff]
                %4403 = vst [vmem:[%s4397 + $0x10] sm:$0xff] %v4402
                %v4404 = vld [vmem:[%s4396 + $0x18] sm:$0xff]
                %4405 = vst [vmem:[%s4397 + $0x30] sm:$0xff] %v4404
                %v4406 = vld [vmem:[%s4396 + $0x20] sm:$0xff]
                %4407 = vst [vmem:[%s4397 + $0x38] sm:$0xff] %v4406
                %v4408 = vld [vmem:[%s4396 + $0x28] sm:$0xff]
                %4409 = vst [vmem:[%s4397 + $0x40] sm:$0xff] %v4408
              $region75: #{shallow_net_forward.4} parent=69 // loop_footer
                %s4395 = sadd.s32 1, %s4391
              $region76: #{shallow_net_forward.4} parent=69 // loop_footer_branch
                %4390 = sbr.rel target = $region72
              $region77: #{shallow_net_forward.4} parent=69 // loop_exit
                _
            $region70: #{shallow_net_forward.4} parent=65 // pred_fallthru
              _
            // Predicated region
            $region78: #{shallow_net_forward.4} parent=65 // pred_check
              _
            $region79: #{shallow_net_forward.4} parent=65 // pred_check_branch
              %4411 = sbr.rel target = $region81
            $region80: #{shallow_net_forward.4} parent=65 // pred_region
              _
            $region81: #{shallow_net_forward.4} parent=65 // pred_fallthru
              _
          $region66: #{shallow_net_forward.4} parent=61 // pred_fallthru
            _
          %4412 = vnop
        $region62: #{shallow_net_forward.4} parent=53 // pred_fallthru
          _
      $region54: #{shallow_net_forward.4} parent=5 // pred_fallthru
        _
      %p4413 = scmp.le.s32.totalorder 2, %s9
      // Predicated region
      $region82: #{shallow_net_forward.4} parent=5 // pred_check
        %p4414 = pneg %p4413
      $region83: #{shallow_net_forward.4} parent=5 // pred_check_branch
        %4416 = sbr.rel (%p4414) target = $region85
      $region84: #{shallow_net_forward.4} parent=5 // pred_region
        %s4417 = ssub.s32 %s9, 2
        // Predicated region
        $region86: #{shallow_net_forward.4} parent=84 // pred_check
          %p4418 = pneg %p106
        $region87: #{shallow_net_forward.4} parent=84 // pred_check_branch
          %4420 = sbr.rel (%p4418) target = $region89
        $region88: #{shallow_net_forward.4} parent=84 // pred_region
          %s4421 = sand.u32 %s91, 1
          %s4422 = sand.u32 %s91, 1
          %s4423 = smul.addr %s4422, 48
          %s4424 = scalar_lea.vmem [#allocation3], %s4423
        $region89: #{shallow_net_forward.4} parent=84 // pred_fallthru
          _
      $region85: #{shallow_net_forward.4} parent=5 // pred_fallthru
        _
    $region6: #{shallow_net_forward.4} parent=1 // loop_footer
      %s13 = sadd.s32 1, %s9
    $region7: #{shallow_net_forward.4} parent=1 // loop_footer_branch
      %8 = sbr.rel target = $region3
    $region8: #{shallow_net_forward.4} parent=1 // loop_exit
      _

// kernel: shallow_net_forward.5
$region0: #{shallow_net_forward.5}
  #allocation0 [shape = 'u32[]', space=smem, size = 0x4, offset = 0x4, fixed_abs, tag = 'smem constant byte address 0x4 - core index']
  #allocation1 [shape = 'u32[144,128]{1,0:T(1,128)}', space=vmem, size = 0x12000, scoped, tag = 'internal scratch']
  #allocation2 [shape = 'f32[2,200]{1,0:T(2,128)}', space=vmem, size = 0x800, scoped, tag = 'scratch operand']
  %s0 = inlined_call_operand.vmem [shape: bf16[2,10240], index: 0, kind: input, shape index: {}]
  %s1 = inlined_call_operand.vmem [shape: bf16[10240,200], index: 1, kind: input, shape index: {}]
  %s2 = inlined_call_operand.vmem [shape: f32[1,200], index: 2, kind: input, shape index: {}]
  %s3 = inlined_call_operand.vmem [shape: f32[200,10], index: 3, kind: input, shape index: {}]
  %s4 = inlined_call_operand.vmem [shape: f32[1,10], index: 4, kind: input, shape index: {}]
  %s5 = inlined_call_operand.hbm [shape: f32[2,10], index: 5, kind: output, shape index: {}]
  %s6 = sld [smem:[#allocation0]]
  $region61: #{shallow_net_forward.5} parent=0
    _
  %s8 = ssub.s32 1, %s6
  %s9 = scalar_select 0, %s8, %s6
  $region1: #{shallow_net_forward.5} parent=0
    #allocation3 [shape = 'u8[1024]{0}', space=vmem, size = 0x400, scoped, tag = 'output window, operand 0, single buffered']
    #allocation4 [shape = 's32[2]{0}', space=sflag, size = 0x8, scoped, tag = 'scoped memory for shallow_net_forward.5']
    %10 = vsyncpa [#allocation4], 0
    loop: start=0, step=1, limit=4
    $region2: #{shallow_net_forward.5} parent=1 // loop_pre_header
      _
    $region3: #{shallow_net_forward.5} parent=1 // loop_header
      %s12 = sphi 0, %s16
      %p13 = scmp.ge.s32.totalorder %s12, 4
      %s22 = sphi 0, %s24
      %s25 = sphi 0, %s22
      %s26 = sphi 0, %s25
      %s42 = sphi 0, %s26
      %s48 = sphi 0, %s50
      %s51 = sphi 0, %s48
      %s52 = sphi 0, %s51
      %s68 = sphi 0, %s52
      %s72 = sphi 0, %s72
      %s74 = sphi 0, %s72
      %s75 = sphi 0, %s74
      %s89 = sphi 0, %s75
      %s93 = sphi 0, %s93
      %s95 = sphi 0, %s93
      %s96 = sphi 0, %s95
      %s110 = sphi 0, %s96
      %s114 = sphi 0, %s114
      %s116 = sphi 0, %s114
      %s117 = sphi 0, %s116
      %s131 = sphi 0, %s117
      %s135 = sphi 0, %s135
      %s137 = sphi 0, %s135
      %s138 = sphi 0, %s137
      %s152 = sphi 0, %s138
    $region4: #{shallow_net_forward.5} parent=1 // loop_header_branch
      %15 = sbr.rel (%p13) target = $region8
    $region5: #{shallow_net_forward.5} parent=1 // loop_body
      %s17 = ssub.s32 %s12, 1
      %s18 = ssub.s32 %s12, 2
      %s19 = sadd.s32 %s12, 1
      %s20 = ssub.s32 %s12, %s19
      %p21 = scmp.eq.s32.totalorder %s20, 0
      %s23 = sadd.s32 %s22, 1
      %s24 = scalar_select %p21, %s22, %s23
      %p27 = pneg %p21
      %p28 = scmp.eq.s32.totalorder %s12, 1
      %p29 = por %p27, %p28
      %p30 = scmp.ne.s32.totalorder %s22, %s25
      %p31 = scmp.eq.s32.totalorder %s12, 0
      %p32 = por %p30, %p31
      %p33 = scmp.ne.s32.totalorder %s22, %s25
      %p34 = scmp.eq.s32.totalorder %s17, 1
      %p35 = por %p33, %p34
      %p36 = scmp.ne.s32.totalorder %s25, %s26
      %p37 = scmp.eq.s32.totalorder %s17, 0
      %p38 = por %p36, %p37
      %p39 = scmp.ne.s32.totalorder %s25, %s26
      %p40 = scmp.eq.s32.totalorder %s18, 1
      %p41 = por %p39, %p40
      %p43 = scmp.ne.s32.totalorder %s26, %s42
      %p44 = scmp.eq.s32.totalorder %s18, 0
      %p45 = por %p43, %p44
      %s46 = ssub.s32 %s12, %s19
      %p47 = scmp.eq.s32.totalorder %s46, 0
      %s49 = sadd.s32 %s48, 1
      %s50 = scalar_select %p47, %s48, %s49
      %p53 = pneg %p47
      %p54 = scmp.eq.s32.totalorder %s12, 1
      %p55 = por %p53, %p54
      %p56 = scmp.ne.s32.totalorder %s48, %s51
      %p57 = scmp.eq.s32.totalorder %s12, 0
      %p58 = por %p56, %p57
      %p59 = scmp.ne.s32.totalorder %s48, %s51
      %p60 = scmp.eq.s32.totalorder %s17, 1
      %p61 = por %p59, %p60
      %p62 = scmp.ne.s32.totalorder %s51, %s52
      %p63 = scmp.eq.s32.totalorder %s17, 0
      %p64 = por %p62, %p63
      %p65 = scmp.ne.s32.totalorder %s51, %s52
      %p66 = scmp.eq.s32.totalorder %s18, 1
      %p67 = por %p65, %p66
      %p69 = scmp.ne.s32.totalorder %s52, %s68
      %p70 = scmp.eq.s32.totalorder %s18, 0
      %p71 = por %p69, %p70
      %s73 = sadd.s32 %s72, 1
      %p76 = scmp.eq.s32.totalorder %s12, 1
      %p77 = scmp.ne.s32.totalorder %s72, %s74
      %p78 = scmp.eq.s32.totalorder %s12, 0
      %p79 = por %p77, %p78
      %p80 = scmp.ne.s32.totalorder %s72, %s74
      %p81 = scmp.eq.s32.totalorder %s17, 1
      %p82 = por %p80, %p81
      %p83 = scmp.ne.s32.totalorder %s74, %s75
      %p84 = scmp.eq.s32.totalorder %s17, 0
      %p85 = por %p83, %p84
      %p86 = scmp.ne.s32.totalorder %s74, %s75
      %p87 = scmp.eq.s32.totalorder %s18, 1
      %p88 = por %p86, %p87
      %p90 = scmp.ne.s32.totalorder %s75, %s89
      %p91 = scmp.eq.s32.totalorder %s18, 0
      %p92 = por %p90, %p91
      %s94 = sadd.s32 %s93, 1
      %p97 = scmp.eq.s32.totalorder %s12, 1
      %p98 = scmp.ne.s32.totalorder %s93, %s95
      %p99 = scmp.eq.s32.totalorder %s12, 0
      %p100 = por %p98, %p99
      %p101 = scmp.ne.s32.totalorder %s93, %s95
      %p102 = scmp.eq.s32.totalorder %s17, 1
      %p103 = por %p101, %p102
      %p104 = scmp.ne.s32.totalorder %s95, %s96
      %p105 = scmp.eq.s32.totalorder %s17, 0
      %p106 = por %p104, %p105
      %p107 = scmp.ne.s32.totalorder %s95, %s96
      %p108 = scmp.eq.s32.totalorder %s18, 1
      %p109 = por %p107, %p108
      %p111 = scmp.ne.s32.totalorder %s96, %s110
      %p112 = scmp.eq.s32.totalorder %s18, 0
      %p113 = por %p111, %p112
      %s115 = sadd.s32 %s114, 1
      %p118 = scmp.eq.s32.totalorder %s12, 1
      %p119 = scmp.ne.s32.totalorder %s114, %s116
      %p120 = scmp.eq.s32.totalorder %s12, 0
      %p121 = por %p119, %p120
      %p122 = scmp.ne.s32.totalorder %s114, %s116
      %p123 = scmp.eq.s32.totalorder %s17, 1
      %p124 = por %p122, %p123
      %p125 = scmp.ne.s32.totalorder %s116, %s117
      %p126 = scmp.eq.s32.totalorder %s17, 0
      %p127 = por %p125, %p126
      %p128 = scmp.ne.s32.totalorder %s116, %s117
      %p129 = scmp.eq.s32.totalorder %s18, 1
      %p130 = por %p128, %p129
      %p132 = scmp.ne.s32.totalorder %s117, %s131
      %p133 = scmp.eq.s32.totalorder %s18, 0
      %p134 = por %p132, %p133
      %s136 = sadd.s32 %s135, 1
      %p139 = scmp.eq.s32.totalorder %s12, 1
      %p140 = scmp.ne.s32.totalorder %s135, %s137
      %p141 = scmp.eq.s32.totalorder %s12, 0
      %p142 = por %p140, %p141
      %p143 = scmp.ne.s32.totalorder %s135, %s137
      %p144 = scmp.eq.s32.totalorder %s17, 1
      %p145 = por %p143, %p144
      %p146 = scmp.ne.s32.totalorder %s137, %s138
      %p147 = scmp.eq.s32.totalorder %s17, 0
      %p148 = por %p146, %p147
      %p149 = scmp.ne.s32.totalorder %s137, %s138
      %p150 = scmp.eq.s32.totalorder %s18, 1
      %p151 = por %p149, %p150
      %p153 = scmp.ne.s32.totalorder %s138, %s152
      %p154 = scmp.eq.s32.totalorder %s18, 0
      %p155 = por %p153, %p154
      %p156 = scmp.le.s32.totalorder 1, %s12
      %p157 = scmp.lt.s32.totalorder %s12, 3
      %p158 = pnand %p156, %p157
      %p159 = pneg %p158
      // Predicated region
      $region9: #{shallow_net_forward.5} parent=5 // pred_check
        _
      $region10: #{shallow_net_forward.5} parent=5 // pred_check_branch
        %161 = sbr.rel (%p158) target = $region12
      $region11: #{shallow_net_forward.5} parent=5 // pred_region
        %s162 = ssub.s32 %s12, 1
        // Predicated region
        $region13: #{shallow_net_forward.5} parent=11 // pred_check
          %p163 = pneg %p85
        $region14: #{shallow_net_forward.5} parent=11 // pred_check_branch
          %165 = sbr.rel (%p163) target = $region16
        $region15: #{shallow_net_forward.5} parent=11 // pred_region
          _
        $region16: #{shallow_net_forward.5} parent=11 // pred_fallthru
          _
        // Predicated region
        $region17: #{shallow_net_forward.5} parent=11 // pred_check
          %p166 = pneg %p106
        $region18: #{shallow_net_forward.5} parent=11 // pred_check_branch
          %168 = sbr.rel (%p166) target = $region20
        $region19: #{shallow_net_forward.5} parent=11 // pred_region
          _
        $region20: #{shallow_net_forward.5} parent=11 // pred_fallthru
          _
        // Predicated region
        $region21: #{shallow_net_forward.5} parent=11 // pred_check
          %p169 = pneg %p127
        $region22: #{shallow_net_forward.5} parent=11 // pred_check_branch
          %171 = sbr.rel (%p169) target = $region24
        $region23: #{shallow_net_forward.5} parent=11 // pred_region
          _
        $region24: #{shallow_net_forward.5} parent=11 // pred_fallthru
          _
      $region12: #{shallow_net_forward.5} parent=5 // pred_fallthru
        _
      %p172 = scmp.lt.s32.totalorder %s12, 2
      // Predicated region
      $region25: #{shallow_net_forward.5} parent=5 // pred_check
        %p173 = pneg %p172
      $region26: #{shallow_net_forward.5} parent=5 // pred_check_branch
        %175 = sbr.rel (%p173) target = $region28
      $region27: #{shallow_net_forward.5} parent=5 // pred_region
        // Predicated region
        $region29: #{shallow_net_forward.5} parent=27 // pred_check
          %p176 = pneg %p32
        $region30: #{shallow_net_forward.5} parent=27 // pred_check_branch
          %178 = sbr.rel (%p176) target = $region32
        $region31: #{shallow_net_forward.5} parent=27 // pred_region
          %s179 = smul.u32 40, %s12
          %p180 = scmp.lt.s32.totalorder %s179, 79
          %s181 = scalar_select %p180, %s179, 79
          %s182 = scalar_lea.vmem %s0, %s181
          %s183 = smul.u32 40, %s12
        $region32: #{shallow_net_forward.5} parent=27 // pred_fallthru
          _
        // Predicated region
        $region33: #{shallow_net_forward.5} parent=27 // pred_check
          %p184 = pneg %p58
        $region34: #{shallow_net_forward.5} parent=27 // pred_check_branch
          %186 = sbr.rel (%p184) target = $region36
        $region35: #{shallow_net_forward.5} parent=27 // pred_region
          %s187 = smul.u32 640, %s12
          %p188 = scmp.lt.s32.totalorder %s187, 1279
          %s189 = scalar_select %p188, %s187, 1279
          %s190 = smul.addr %s189, 2
          %s191 = smul.addr %s190, 4
          %s192 = scalar_lea.vmem %s1, %s191
          %s193 = smul.u32 640, %s12
        $region36: #{shallow_net_forward.5} parent=27 // pred_fallthru
          _
      $region28: #{shallow_net_forward.5} parent=5 // pred_fallthru
        _
      %p194 = scmp.le.s32.totalorder 1, %s12
      %p195 = scmp.lt.s32.totalorder %s12, 3
      %p196 = pnand %p194, %p195
      %p197 = pneg %p196
      // Predicated region
      $region37: #{shallow_net_forward.5} parent=5 // pred_check
        _
      $region38: #{shallow_net_forward.5} parent=5 // pred_check_branch
        %199 = sbr.rel (%p196) target = $region40
      $region39: #{shallow_net_forward.5} parent=5 // pred_region
        %s200 = ssub.s32 %s12, 1
        %s201 = smul.u32 40, %s17
        %p202 = scmp.lt.s32.totalorder %s201, 79
        %s203 = scalar_select %p202, %s201, 79
        %s204 = scalar_lea.vmem %s0, %s203
        %p205 = pneg %p38
        %p206 = pneg %p35
        %s207 = smul.u32 640, %s17
        %p208 = scmp.lt.s32.totalorder %s207, 1279
        %s209 = scalar_select %p208, %s207, 1279
        %s210 = smul.addr %s209, 2
        %s211 = smul.addr %s210, 4
        %s212 = scalar_lea.vmem %s1, %s211
        %p213 = pneg %p64
        %p214 = pneg %p61
        %p215 = pneg %p85
        %p216 = pneg %p82
        %p217 = pneg %p106
        %p218 = pneg %p103
        %p219 = pneg %p127
        %p220 = pneg %p124
        %p221 = pneg %p148
        %p222 = pneg %p145
        %s223 = smul.u32 40, %s17
        %p224 = scmp.lt.s32.totalorder %s223, 79
        %s225 = scalar_select %p224, %s223, 79
        %s226 = scalar_lea.vmem %s0, %s225
        %s227 = smul.u32 40, %s17
        %s228 = smul.u32 640, %s17
        %p229 = scmp.lt.s32.totalorder %s228, 1279
        %s230 = scalar_select %p229, %s228, 1279
        %s231 = smul.addr %s230, 2
        %s232 = smul.addr %s231, 4
        %s233 = scalar_lea.vmem %s1, %s232
        %s234 = smul.u32 640, %s17
        %p235 = scmp.eq.s32.totalorder %s17, 0
        // Predicated region
        $region41: #{shallow_net_forward.5} parent=39 // pred_check
          %p236 = pneg %p235
        $region42: #{shallow_net_forward.5} parent=39 // pred_check_branch
          %238 = sbr.rel (%p236) target = $region44
        $region43: #{shallow_net_forward.5} parent=39 // pred_region
          %vm239 = vcmask 1041408
          %vm240 = vcmask 584706
          %vm241 = vmor %vm240, %vm239
          %242 = vst.msk [vmem:[#allocation2] sm:$0xf] %vm241, 0.0
        $region44: #{shallow_net_forward.5} parent=39 // pred_fallthru
          _
        %v243 = vld [vmem:[#allocation2] sm:$0xf]
        %v244 = vld [vmem:[%s226] sm:$0xff]
        %v245 = vld [vmem:[%s226 + $0x8] sm:$0xff]
        %v246 = vld [vmem:[%s226 + $0x10] sm:$0xff]
        %v247 = vld [vmem:[%s226 + $0x18] sm:$0xff]
        %v248 = vld [vmem:[%s226 + $0x20] sm:$0xff]
        %v249 = vld [vmem:[%s233] sm:$0xff]
        %v250 = vld [vmem:[%s233 + $0x8] sm:$0xff]
        %v251 = vld [vmem:[%s233 + $0x10] sm:$0xff]
        %v252 = vld [vmem:[%s233 + $0x18] sm:$0xff]
        %v253 = vld [vmem:[%s233 + $0x20] sm:$0xff]
        %v254 = vld [vmem:[%s233 + $0x28] sm:$0xff]
        %v255 = vld [vmem:[%s233 + $0x30] sm:$0xff]
        %v256 = vld [vmem:[%s233 + $0x38] sm:$0xff]
        %v257 = vld [vmem:[%s233 + $0x40] sm:$0xff]
        %v258 = vld [vmem:[%s233 + $0x48] sm:$0xff]
        %v259 = vld [vmem:[%s233 + $0x50] sm:$0xff]
        %v260 = vld [vmem:[%s233 + $0x58] sm:$0xff]
        %v261 = vld [vmem:[%s233 + $0x60] sm:$0xff]
        %v262 = vld [vmem:[%s233 + $0x68] sm:$0xff]
        %v263 = vld [vmem:[%s233 + $0x70] sm:$0xff]
        %v264 = vld [vmem:[%s233 + $0x78] sm:$0xff]
        %v265 = vld [vmem:[%s233 + $0x80] sm:$0xff]
        %v266 = vld [vmem:[%s233 + $0x88] sm:$0xff]
        %v267 = vld [vmem:[%s233 + $0x90] sm:$0xff]
        %v268 = vld [vmem:[%s233 + $0x98] sm:$0xff]
        %v269 = vld [vmem:[%s233 + $0xa0] sm:$0xff]
        %v270 = vld [vmem:[%s233 + $0xa8] sm:$0xff]
        %v271 = vld [vmem:[%s233 + $0xb0] sm:$0xff]
        %v272 = vld [vmem:[%s233 + $0xb8] sm:$0xff]
        %v273 = vld [vmem:[%s233 + $0xc0] sm:$0xff]
        %v274 = vld [vmem:[%s233 + $0xc8] sm:$0xff]
        %v275 = vld [vmem:[%s233 + $0xd0] sm:$0xff]
        %v276 = vld [vmem:[%s233 + $0xd8] sm:$0xff]
        %v277 = vld [vmem:[%s233 + $0xe0] sm:$0xff]
        %v278 = vld [vmem:[%s233 + $0xe8] sm:$0xff]
        %v279 = vld [vmem:[%s233 + $0xf0] sm:$0xff]
        %v280 = vld [vmem:[%s233 + $0xf8] sm:$0xff]
        %v281 = vld [vmem:[%s233 + $0x100] sm:$0xff]
        %v282 = vld [vmem:[%s233 + $0x108] sm:$0xff]
        %v283 = vld [vmem:[%s233 + $0x110] sm:$0xff]
        %v284 = vld [vmem:[%s233 + $0x118] sm:$0xff]
        %v285 = vld [vmem:[%s233 + $0x120] sm:$0xff]
        %v286 = vld [vmem:[%s233 + $0x128] sm:$0xff]
        %v287 = vld [vmem:[%s233 + $0x130] sm:$0xff]
        %v288 = vld [vmem:[%s233 + $0x138] sm:$0xff]
        %v289 = vld [vmem:[%s233 + $0x140] sm:$0xff]
        %v290 = vld [vmem:[%s233 + $0x148] sm:$0xff]
        %v291 = vld [vmem:[%s233 + $0x150] sm:$0xff]
        %v292 = vld [vmem:[%s233 + $0x158] sm:$0xff]
        %v293 = vld [vmem:[%s233 + $0x160] sm:$0xff]
        %v294 = vld [vmem:[%s233 + $0x168] sm:$0xff]
        %v295 = vld [vmem:[%s233 + $0x170] sm:$0xff]
        %v296 = vld [vmem:[%s233 + $0x178] sm:$0xff]
        %v297 = vld [vmem:[%s233 + $0x180] sm:$0xff]
        %v298 = vld [vmem:[%s233 + $0x188] sm:$0xff]
        %v299 = vld [vmem:[%s233 + $0x190] sm:$0xff]
        %v300 = vld [vmem:[%s233 + $0x198] sm:$0xff]
        %v301 = vld [vmem:[%s233 + $0x1a0] sm:$0xff]
        %v302 = vld [vmem:[%s233 + $0x1a8] sm:$0xff]
        %v303 = vld [vmem:[%s233 + $0x1b0] sm:$0xff]
        %v304 = vld [vmem:[%s233 + $0x1b8] sm:$0xff]
        %v305 = vld [vmem:[%s233 + $0x1c0] sm:$0xff]
        %v306 = vld [vmem:[%s233 + $0x1c8] sm:$0xff]
        %v307 = vld [vmem:[%s233 + $0x1d0] sm:$0xff]
        %v308 = vld [vmem:[%s233 + $0x1d8] sm:$0xff]
        %v309 = vld [vmem:[%s233 + $0x1e0] sm:$0xff]
        %v310 = vld [vmem:[%s233 + $0x1e8] sm:$0xff]
        %v311 = vld [vmem:[%s233 + $0x1f0] sm:$0xff]
        %v312 = vld [vmem:[%s233 + $0x1f8] sm:$0xff]
        %v313 = vld [vmem:[%s233 + $0x200] sm:$0xff]
        %v314 = vld [vmem:[%s233 + $0x208] sm:$0xff]
        %v315 = vld [vmem:[%s233 + $0x210] sm:$0xff]
        %v316 = vld [vmem:[%s233 + $0x218] sm:$0xff]
        %v317 = vld [vmem:[%s233 + $0x220] sm:$0xff]
        %v318 = vld [vmem:[%s233 + $0x228] sm:$0xff]
        %v319 = vld [vmem:[%s233 + $0x230] sm:$0xff]
        %v320 = vld [vmem:[%s233 + $0x238] sm:$0xff]
        %v321 = vld [vmem:[%s233 + $0x240] sm:$0xff]
        %v322 = vld [vmem:[%s233 + $0x248] sm:$0xff]
        %v323 = vld [vmem:[%s233 + $0x250] sm:$0xff]
        %v324 = vld [vmem:[%s233 + $0x258] sm:$0xff]
        %v325 = vld [vmem:[%s233 + $0x260] sm:$0xff]
        %v326 = vld [vmem:[%s233 + $0x268] sm:$0xff]
        %v327 = vld [vmem:[%s233 + $0x270] sm:$0xff]
        %v328 = vld [vmem:[%s233 + $0x278] sm:$0xff]
        %v329 = vld [vmem:[%s233 + $0x280] sm:$0xff]
        %v330 = vld [vmem:[%s233 + $0x288] sm:$0xff]
        %v331 = vld [vmem:[%s233 + $0x290] sm:$0xff]
        %v332 = vld [vmem:[%s233 + $0x298] sm:$0xff]
        %v333 = vld [vmem:[%s233 + $0x2a0] sm:$0xff]
        %v334 = vld [vmem:[%s233 + $0x2a8] sm:$0xff]
        %v335 = vld [vmem:[%s233 + $0x2b0] sm:$0xff]
        %v336 = vld [vmem:[%s233 + $0x2b8] sm:$0xff]
        %v337 = vld [vmem:[%s233 + $0x2c0] sm:$0xff]
        %v338 = vld [vmem:[%s233 + $0x2c8] sm:$0xff]
        %v339 = vld [vmem:[%s233 + $0x2d0] sm:$0xff]
        %v340 = vld [vmem:[%s233 + $0x2d8] sm:$0xff]
        %v341 = vld [vmem:[%s233 + $0x2e0] sm:$0xff]
        %v342 = vld [vmem:[%s233 + $0x2e8] sm:$0xff]
        %v343 = vld [vmem:[%s233 + $0x2f0] sm:$0xff]
        %v344 = vld [vmem:[%s233 + $0x2f8] sm:$0xff]
        %v345 = vld [vmem:[%s233 + $0x300] sm:$0xff]
        %v346 = vld [vmem:[%s233 + $0x308] sm:$0xff]
        %v347 = vld [vmem:[%s233 + $0x310] sm:$0xff]
        %v348 = vld [vmem:[%s233 + $0x318] sm:$0xff]
        %v349 = vld [vmem:[%s233 + $0x320] sm:$0xff]
        %v350 = vld [vmem:[%s233 + $0x328] sm:$0xff]
        %v351 = vld [vmem:[%s233 + $0x330] sm:$0xff]
        %v352 = vld [vmem:[%s233 + $0x338] sm:$0xff]
        %v353 = vld [vmem:[%s233 + $0x340] sm:$0xff]
        %v354 = vld [vmem:[%s233 + $0x348] sm:$0xff]
        %v355 = vld [vmem:[%s233 + $0x350] sm:$0xff]
        %v356 = vld [vmem:[%s233 + $0x358] sm:$0xff]
        %v357 = vld [vmem:[%s233 + $0x360] sm:$0xff]
        %v358 = vld [vmem:[%s233 + $0x368] sm:$0xff]
        %v359 = vld [vmem:[%s233 + $0x370] sm:$0xff]
        %v360 = vld [vmem:[%s233 + $0x378] sm:$0xff]
        %v361 = vld [vmem:[%s233 + $0x380] sm:$0xff]
        %v362 = vld [vmem:[%s233 + $0x388] sm:$0xff]
        %v363 = vld [vmem:[%s233 + $0x390] sm:$0xff]
        %v364 = vld [vmem:[%s233 + $0x398] sm:$0xff]
        %v365 = vld [vmem:[%s233 + $0x3a0] sm:$0xff]
        %v366 = vld [vmem:[%s233 + $0x3a8] sm:$0xff]
        %v367 = vld [vmem:[%s233 + $0x3b0] sm:$0xff]
        %v368 = vld [vmem:[%s233 + $0x3b8] sm:$0xff]
        %v369 = vld [vmem:[%s233 + $0x3c0] sm:$0xff]
        %v370 = vld [vmem:[%s233 + $0x3c8] sm:$0xff]
        %v371 = vld [vmem:[%s233 + $0x3d0] sm:$0xff]
        %v372 = vld [vmem:[%s233 + $0x3d8] sm:$0xff]
        %v373 = vld [vmem:[%s233 + $0x3e0] sm:$0xff]
        %v374 = vld [vmem:[%s233 + $0x3e8] sm:$0xff]
        %v375 = vld [vmem:[%s233 + $0x3f0] sm:$0xff]
        %v376 = vld [vmem:[%s233 + $0x3f8] sm:$0xff]
        %v377 = vld [vmem:[%s233 + $0x400] sm:$0xff]
        %v378 = vld [vmem:[%s233 + $0x408] sm:$0xff]
        %v379 = vld [vmem:[%s233 + $0x410] sm:$0xff]
        %v380 = vld [vmem:[%s233 + $0x418] sm:$0xff]
        %v381 = vld [vmem:[%s233 + $0x420] sm:$0xff]
        %v382 = vld [vmem:[%s233 + $0x428] sm:$0xff]
        %v383 = vld [vmem:[%s233 + $0x430] sm:$0xff]
        %v384 = vld [vmem:[%s233 + $0x438] sm:$0xff]
        %v385 = vld [vmem:[%s233 + $0x440] sm:$0xff]
        %v386 = vld [vmem:[%s233 + $0x448] sm:$0xff]
        %v387 = vld [vmem:[%s233 + $0x450] sm:$0xff]
        %v388 = vld [vmem:[%s233 + $0x458] sm:$0xff]
        %v389 = vld [vmem:[%s233 + $0x460] sm:$0xff]
        %v390 = vld [vmem:[%s233 + $0x468] sm:$0xff]
        %v391 = vld [vmem:[%s233 + $0x470] sm:$0xff]
        %v392 = vld [vmem:[%s233 + $0x478] sm:$0xff]
        %v393 = vld [vmem:[%s233 + $0x480] sm:$0xff]
        %v394 = vld [vmem:[%s233 + $0x488] sm:$0xff]
        %v395 = vld [vmem:[%s233 + $0x490] sm:$0xff]
        %v396 = vld [vmem:[%s233 + $0x498] sm:$0xff]
        %v397 = vld [vmem:[%s233 + $0x4a0] sm:$0xff]
        %v398 = vld [vmem:[%s233 + $0x4a8] sm:$0xff]
        %v399 = vld [vmem:[%s233 + $0x4b0] sm:$0xff]
        %v400 = vld [vmem:[%s233 + $0x4b8] sm:$0xff]
        %v401 = vld [vmem:[%s233 + $0x4c0] sm:$0xff]
        %v402 = vld [vmem:[%s233 + $0x4c8] sm:$0xff]
        %v403 = vld [vmem:[%s233 + $0x4d0] sm:$0xff]
        %v404 = vld [vmem:[%s233 + $0x4d8] sm:$0xff]
        %v405 = vld [vmem:[%s233 + $0x4e0] sm:$0xff]
        %v406 = vld [vmem:[%s233 + $0x4e8] sm:$0xff]
        %v407 = vld [vmem:[%s233 + $0x4f0] sm:$0xff]
        %v408 = vld [vmem:[%s233 + $0x4f8] sm:$0xff]
        %v409 = vld [vmem:[%s233 + $0x500] sm:$0xff]
        %v410 = vld [vmem:[%s233 + $0x508] sm:$0xff]
        %v411 = vld [vmem:[%s233 + $0x510] sm:$0xff]
        %v412 = vld [vmem:[%s233 + $0x518] sm:$0xff]
        %v413 = vld [vmem:[%s233 + $0x520] sm:$0xff]
        %v414 = vld [vmem:[%s233 + $0x528] sm:$0xff]
        %v415 = vld [vmem:[%s233 + $0x530] sm:$0xff]
        %v416 = vld [vmem:[%s233 + $0x538] sm:$0xff]
        %v417 = vld [vmem:[%s233 + $0x540] sm:$0xff]
        %v418 = vld [vmem:[%s233 + $0x548] sm:$0xff]
        %v419 = vld [vmem:[%s233 + $0x550] sm:$0xff]
        %v420 = vld [vmem:[%s233 + $0x558] sm:$0xff]
        %v421 = vld [vmem:[%s233 + $0x560] sm:$0xff]
        %v422 = vld [vmem:[%s233 + $0x568] sm:$0xff]
        %v423 = vld [vmem:[%s233 + $0x570] sm:$0xff]
        %v424 = vld [vmem:[%s233 + $0x578] sm:$0xff]
        %v425 = vld [vmem:[%s233 + $0x580] sm:$0xff]
        %v426 = vld [vmem:[%s233 + $0x588] sm:$0xff]
        %v427 = vld [vmem:[%s233 + $0x590] sm:$0xff]
        %v428 = vld [vmem:[%s233 + $0x598] sm:$0xff]
        %v429 = vld [vmem:[%s233 + $0x5a0] sm:$0xff]
        %v430 = vld [vmem:[%s233 + $0x5a8] sm:$0xff]
        %v431 = vld [vmem:[%s233 + $0x5b0] sm:$0xff]
        %v432 = vld [vmem:[%s233 + $0x5b8] sm:$0xff]
        %v433 = vld [vmem:[%s233 + $0x5c0] sm:$0xff]
        %v434 = vld [vmem:[%s233 + $0x5c8] sm:$0xff]
        %v435 = vld [vmem:[%s233 + $0x5d0] sm:$0xff]
        %v436 = vld [vmem:[%s233 + $0x5d8] sm:$0xff]
        %v437 = vld [vmem:[%s233 + $0x5e0] sm:$0xff]
        %v438 = vld [vmem:[%s233 + $0x5e8] sm:$0xff]
        %v439 = vld [vmem:[%s233 + $0x5f0] sm:$0xff]
        %v440 = vld [vmem:[%s233 + $0x5f8] sm:$0xff]
        %v441 = vld [vmem:[%s233 + $0x600] sm:$0xff]
        %v442 = vld [vmem:[%s233 + $0x608] sm:$0xff]
        %v443 = vld [vmem:[%s233 + $0x610] sm:$0xff]
        %v444 = vld [vmem:[%s233 + $0x618] sm:$0xff]
        %v445 = vld [vmem:[%s233 + $0x620] sm:$0xff]
        %v446 = vld [vmem:[%s233 + $0x628] sm:$0xff]
        %v447 = vld [vmem:[%s233 + $0x630] sm:$0xff]
        %v448 = vld [vmem:[%s233 + $0x638] sm:$0xff]
        %v449 = vld [vmem:[%s233 + $0x640] sm:$0xff]
        %v450 = vld [vmem:[%s233 + $0x648] sm:$0xff]
        %v451 = vld [vmem:[%s233 + $0x650] sm:$0xff]
        %v452 = vld [vmem:[%s233 + $0x658] sm:$0xff]
        %v453 = vld [vmem:[%s233 + $0x660] sm:$0xff]
        %v454 = vld [vmem:[%s233 + $0x668] sm:$0xff]
        %v455 = vld [vmem:[%s233 + $0x670] sm:$0xff]
        %v456 = vld [vmem:[%s233 + $0x678] sm:$0xff]
        %v457 = vld [vmem:[%s233 + $0x680] sm:$0xff]
        %v458 = vld [vmem:[%s233 + $0x688] sm:$0xff]
        %v459 = vld [vmem:[%s233 + $0x690] sm:$0xff]
        %v460 = vld [vmem:[%s233 + $0x698] sm:$0xff]
        %v461 = vld [vmem:[%s233 + $0x6a0] sm:$0xff]
        %v462 = vld [vmem:[%s233 + $0x6a8] sm:$0xff]
        %v463 = vld [vmem:[%s233 + $0x6b0] sm:$0xff]
        %v464 = vld [vmem:[%s233 + $0x6b8] sm:$0xff]
        %v465 = vld [vmem:[%s233 + $0x6c0] sm:$0xff]
        %v466 = vld [vmem:[%s233 + $0x6c8] sm:$0xff]
        %v467 = vld [vmem:[%s233 + $0x6d0] sm:$0xff]
        %v468 = vld [vmem:[%s233 + $0x6d8] sm:$0xff]
        %v469 = vld [vmem:[%s233 + $0x6e0] sm:$0xff]
        %v470 = vld [vmem:[%s233 + $0x6e8] sm:$0xff]
        %v471 = vld [vmem:[%s233 + $0x6f0] sm:$0xff]
        %v472 = vld [vmem:[%s233 + $0x6f8] sm:$0xff]
        %v473 = vld [vmem:[%s233 + $0x700] sm:$0xff]
        %v474 = vld [vmem:[%s233 + $0x708] sm:$0xff]
        %v475 = vld [vmem:[%s233 + $0x710] sm:$0xff]
        %v476 = vld [vmem:[%s233 + $0x718] sm:$0xff]
        %v477 = vld [vmem:[%s233 + $0x720] sm:$0xff]
        %v478 = vld [vmem:[%s233 + $0x728] sm:$0xff]
        %v479 = vld [vmem:[%s233 + $0x730] sm:$0xff]
        %v480 = vld [vmem:[%s233 + $0x738] sm:$0xff]
        %v481 = vld [vmem:[%s233 + $0x740] sm:$0xff]
        %v482 = vld [vmem:[%s233 + $0x748] sm:$0xff]
        %v483 = vld [vmem:[%s233 + $0x750] sm:$0xff]
        %v484 = vld [vmem:[%s233 + $0x758] sm:$0xff]
        %v485 = vld [vmem:[%s233 + $0x760] sm:$0xff]
        %v486 = vld [vmem:[%s233 + $0x768] sm:$0xff]
        %v487 = vld [vmem:[%s233 + $0x770] sm:$0xff]
        %v488 = vld [vmem:[%s233 + $0x778] sm:$0xff]
        %v489 = vld [vmem:[%s233 + $0x780] sm:$0xff]
        %v490 = vld [vmem:[%s233 + $0x788] sm:$0xff]
        %v491 = vld [vmem:[%s233 + $0x790] sm:$0xff]
        %v492 = vld [vmem:[%s233 + $0x798] sm:$0xff]
        %v493 = vld [vmem:[%s233 + $0x7a0] sm:$0xff]
        %v494 = vld [vmem:[%s233 + $0x7a8] sm:$0xff]
        %v495 = vld [vmem:[%s233 + $0x7b0] sm:$0xff]
        %v496 = vld [vmem:[%s233 + $0x7b8] sm:$0xff]
        %v497 = vld [vmem:[%s233 + $0x7c0] sm:$0xff]
        %v498 = vld [vmem:[%s233 + $0x7c8] sm:$0xff]
        %v499 = vld [vmem:[%s233 + $0x7d0] sm:$0xff]
        %v500 = vld [vmem:[%s233 + $0x7d8] sm:$0xff]
        %v501 = vld [vmem:[%s233 + $0x7e0] sm:$0xff]
        %v502 = vld [vmem:[%s233 + $0x7e8] sm:$0xff]
        %v503 = vld [vmem:[%s233 + $0x7f0] sm:$0xff]
        %v504 = vld [vmem:[%s233 + $0x7f8] sm:$0xff]
        %v505 = vld [vmem:[%s233 + $0x800] sm:$0xff]
        %v506 = vld [vmem:[%s233 + $0x808] sm:$0xff]
        %v507 = vld [vmem:[%s233 + $0x810] sm:$0xff]
        %v508 = vld [vmem:[%s233 + $0x818] sm:$0xff]
        %v509 = vld [vmem:[%s233 + $0x820] sm:$0xff]
        %v510 = vld [vmem:[%s233 + $0x828] sm:$0xff]
        %v511 = vld [vmem:[%s233 + $0x830] sm:$0xff]
        %v512 = vld [vmem:[%s233 + $0x838] sm:$0xff]
        %v513 = vld [vmem:[%s233 + $0x840] sm:$0xff]
        %v514 = vld [vmem:[%s233 + $0x848] sm:$0xff]
        %v515 = vld [vmem:[%s233 + $0x850] sm:$0xff]
        %v516 = vld [vmem:[%s233 + $0x858] sm:$0xff]
        %v517 = vld [vmem:[%s233 + $0x860] sm:$0xff]
        %v518 = vld [vmem:[%s233 + $0x868] sm:$0xff]
        %v519 = vld [vmem:[%s233 + $0x870] sm:$0xff]
        %v520 = vld [vmem:[%s233 + $0x878] sm:$0xff]
        %v521 = vld [vmem:[%s233 + $0x880] sm:$0xff]
        %v522 = vld [vmem:[%s233 + $0x888] sm:$0xff]
        %v523 = vld [vmem:[%s233 + $0x890] sm:$0xff]
        %v524 = vld [vmem:[%s233 + $0x898] sm:$0xff]
        %v525 = vld [vmem:[%s233 + $0x8a0] sm:$0xff]
        %v526 = vld [vmem:[%s233 + $0x8a8] sm:$0xff]
        %v527 = vld [vmem:[%s233 + $0x8b0] sm:$0xff]
        %v528 = vld [vmem:[%s233 + $0x8b8] sm:$0xff]
        %v529 = vld [vmem:[%s233 + $0x8c0] sm:$0xff]
        %v530 = vld [vmem:[%s233 + $0x8c8] sm:$0xff]
        %v531 = vld [vmem:[%s233 + $0x8d0] sm:$0xff]
        %v532 = vld [vmem:[%s233 + $0x8d8] sm:$0xff]
        %v533 = vld [vmem:[%s233 + $0x8e0] sm:$0xff]
        %v534 = vld [vmem:[%s233 + $0x8e8] sm:$0xff]
        %v535 = vld [vmem:[%s233 + $0x8f0] sm:$0xff]
        %v536 = vld [vmem:[%s233 + $0x8f8] sm:$0xff]
        %v537 = vld [vmem:[%s233 + $0x900] sm:$0xff]
        %v538 = vld [vmem:[%s233 + $0x908] sm:$0xff]
        %v539 = vld [vmem:[%s233 + $0x910] sm:$0xff]
        %v540 = vld [vmem:[%s233 + $0x918] sm:$0xff]
        %v541 = vld [vmem:[%s233 + $0x920] sm:$0xff]
        %v542 = vld [vmem:[%s233 + $0x928] sm:$0xff]
        %v543 = vld [vmem:[%s233 + $0x930] sm:$0xff]
        %v544 = vld [vmem:[%s233 + $0x938] sm:$0xff]
        %v545 = vld [vmem:[%s233 + $0x940] sm:$0xff]
        %v546 = vld [vmem:[%s233 + $0x948] sm:$0xff]
        %v547 = vld [vmem:[%s233 + $0x950] sm:$0xff]
        %v548 = vld [vmem:[%s233 + $0x958] sm:$0xff]
        %v549 = vld [vmem:[%s233 + $0x960] sm:$0xff]
        %v550 = vld [vmem:[%s233 + $0x968] sm:$0xff]
        %v551 = vld [vmem:[%s233 + $0x970] sm:$0xff]
        %v552 = vld [vmem:[%s233 + $0x978] sm:$0xff]
        %v553 = vld [vmem:[%s233 + $0x980] sm:$0xff]
        %v554 = vld [vmem:[%s233 + $0x988] sm:$0xff]
        %v555 = vld [vmem:[%s233 + $0x990] sm:$0xff]
        %v556 = vld [vmem:[%s233 + $0x998] sm:$0xff]
        %v557 = vld [vmem:[%s233 + $0x9a0] sm:$0xff]
        %v558 = vld [vmem:[%s233 + $0x9a8] sm:$0xff]
        %v559 = vld [vmem:[%s233 + $0x9b0] sm:$0xff]
        %v560 = vld [vmem:[%s233 + $0x9b8] sm:$0xff]
        %v561 = vld [vmem:[%s233 + $0x9c0] sm:$0xff]
        %v562 = vld [vmem:[%s233 + $0x9c8] sm:$0xff]
        %v563 = vld [vmem:[%s233 + $0x9d0] sm:$0xff]
        %v564 = vld [vmem:[%s233 + $0x9d8] sm:$0xff]
        %v565 = vld [vmem:[%s233 + $0x9e0] sm:$0xff]
        %v566 = vld [vmem:[%s233 + $0x9e8] sm:$0xff]
        %v567 = vld [vmem:[%s233 + $0x9f0] sm:$0xff]
        %v568 = vld [vmem:[%s233 + $0x9f8] sm:$0xff]
        %v569 = vld [vmem:[%s233 + $0xa00] sm:$0xff]
        %v570 = vld [vmem:[%s233 + $0xa08] sm:$0xff]
        %v571 = vld [vmem:[%s233 + $0xa10] sm:$0xff]
        %v572 = vld [vmem:[%s233 + $0xa18] sm:$0xff]
        %v573 = vld [vmem:[%s233 + $0xa20] sm:$0xff]
        %v574 = vld [vmem:[%s233 + $0xa28] sm:$0xff]
        %v575 = vld [vmem:[%s233 + $0xa30] sm:$0xff]
        %v576 = vld [vmem:[%s233 + $0xa38] sm:$0xff]
        %v577 = vld [vmem:[%s233 + $0xa40] sm:$0xff]
        %v578 = vld [vmem:[%s233 + $0xa48] sm:$0xff]
        %v579 = vld [vmem:[%s233 + $0xa50] sm:$0xff]
        %v580 = vld [vmem:[%s233 + $0xa58] sm:$0xff]
        %v581 = vld [vmem:[%s233 + $0xa60] sm:$0xff]
        %v582 = vld [vmem:[%s233 + $0xa68] sm:$0xff]
        %v583 = vld [vmem:[%s233 + $0xa70] sm:$0xff]
        %v584 = vld [vmem:[%s233 + $0xa78] sm:$0xff]
        %v585 = vld [vmem:[%s233 + $0xa80] sm:$0xff]
        %v586 = vld [vmem:[%s233 + $0xa88] sm:$0xff]
        %v587 = vld [vmem:[%s233 + $0xa90] sm:$0xff]
        %v588 = vld [vmem:[%s233 + $0xa98] sm:$0xff]
        %v589 = vld [vmem:[%s233 + $0xaa0] sm:$0xff]
        %v590 = vld [vmem:[%s233 + $0xaa8] sm:$0xff]
        %v591 = vld [vmem:[%s233 + $0xab0] sm:$0xff]
        %v592 = vld [vmem:[%s233 + $0xab8] sm:$0xff]
        %v593 = vld [vmem:[%s233 + $0xac0] sm:$0xff]
        %v594 = vld [vmem:[%s233 + $0xac8] sm:$0xff]
        %v595 = vld [vmem:[%s233 + $0xad0] sm:$0xff]
        %v596 = vld [vmem:[%s233 + $0xad8] sm:$0xff]
        %v597 = vld [vmem:[%s233 + $0xae0] sm:$0xff]
        %v598 = vld [vmem:[%s233 + $0xae8] sm:$0xff]
        %v599 = vld [vmem:[%s233 + $0xaf0] sm:$0xff]
        %v600 = vld [vmem:[%s233 + $0xaf8] sm:$0xff]
        %v601 = vld [vmem:[%s233 + $0xb00] sm:$0xff]
        %v602 = vld [vmem:[%s233 + $0xb08] sm:$0xff]
        %v603 = vld [vmem:[%s233 + $0xb10] sm:$0xff]
        %v604 = vld [vmem:[%s233 + $0xb18] sm:$0xff]
        %v605 = vld [vmem:[%s233 + $0xb20] sm:$0xff]
        %v606 = vld [vmem:[%s233 + $0xb28] sm:$0xff]
        %v607 = vld [vmem:[%s233 + $0xb30] sm:$0xff]
        %v608 = vld [vmem:[%s233 + $0xb38] sm:$0xff]
        %v609 = vld [vmem:[%s233 + $0xb40] sm:$0xff]
        %v610 = vld [vmem:[%s233 + $0xb48] sm:$0xff]
        %v611 = vld [vmem:[%s233 + $0xb50] sm:$0xff]
        %v612 = vld [vmem:[%s233 + $0xb58] sm:$0xff]
        %v613 = vld [vmem:[%s233 + $0xb60] sm:$0xff]
        %v614 = vld [vmem:[%s233 + $0xb68] sm:$0xff]
        %v615 = vld [vmem:[%s233 + $0xb70] sm:$0xff]
        %v616 = vld [vmem:[%s233 + $0xb78] sm:$0xff]
        %v617 = vld [vmem:[%s233 + $0xb80] sm:$0xff]
        %v618 = vld [vmem:[%s233 + $0xb88] sm:$0xff]
        %v619 = vld [vmem:[%s233 + $0xb90] sm:$0xff]
        %v620 = vld [vmem:[%s233 + $0xb98] sm:$0xff]
        %v621 = vld [vmem:[%s233 + $0xba0] sm:$0xff]
        %v622 = vld [vmem:[%s233 + $0xba8] sm:$0xff]
        %v623 = vld [vmem:[%s233 + $0xbb0] sm:$0xff]
        %v624 = vld [vmem:[%s233 + $0xbb8] sm:$0xff]
        %v625 = vld [vmem:[%s233 + $0xbc0] sm:$0xff]
        %v626 = vld [vmem:[%s233 + $0xbc8] sm:$0xff]
        %v627 = vld [vmem:[%s233 + $0xbd0] sm:$0xff]
        %v628 = vld [vmem:[%s233 + $0xbd8] sm:$0xff]
        %v629 = vld [vmem:[%s233 + $0xbe0] sm:$0xff]
        %v630 = vld [vmem:[%s233 + $0xbe8] sm:$0xff]
        %v631 = vld [vmem:[%s233 + $0xbf0] sm:$0xff]
        %v632 = vld [vmem:[%s233 + $0xbf8] sm:$0xff]
        %v633 = vld [vmem:[%s233 + $0xc00] sm:$0xff]
        %v634 = vld [vmem:[%s233 + $0xc08] sm:$0xff]
        %v635 = vld [vmem:[%s233 + $0xc10] sm:$0xff]
        %v636 = vld [vmem:[%s233 + $0xc18] sm:$0xff]
        %v637 = vld [vmem:[%s233 + $0xc20] sm:$0xff]
        %v638 = vld [vmem:[%s233 + $0xc28] sm:$0xff]
        %v639 = vld [vmem:[%s233 + $0xc30] sm:$0xff]
        %v640 = vld [vmem:[%s233 + $0xc38] sm:$0xff]
        %v641 = vld [vmem:[%s233 + $0xc40] sm:$0xff]
        %v642 = vld [vmem:[%s233 + $0xc48] sm:$0xff]
        %v643 = vld [vmem:[%s233 + $0xc50] sm:$0xff]
        %v644 = vld [vmem:[%s233 + $0xc58] sm:$0xff]
        %v645 = vld [vmem:[%s233 + $0xc60] sm:$0xff]
        %v646 = vld [vmem:[%s233 + $0xc68] sm:$0xff]
        %v647 = vld [vmem:[%s233 + $0xc70] sm:$0xff]
        %v648 = vld [vmem:[%s233 + $0xc78] sm:$0xff]
        %v649 = vld [vmem:[%s233 + $0xc80] sm:$0xff]
        %v650 = vld [vmem:[%s233 + $0xc88] sm:$0xff]
        %v651 = vld [vmem:[%s233 + $0xc90] sm:$0xff]
        %v652 = vld [vmem:[%s233 + $0xc98] sm:$0xff]
        %v653 = vld [vmem:[%s233 + $0xca0] sm:$0xff]
        %v654 = vld [vmem:[%s233 + $0xca8] sm:$0xff]
        %v655 = vld [vmem:[%s233 + $0xcb0] sm:$0xff]
        %v656 = vld [vmem:[%s233 + $0xcb8] sm:$0xff]
        %v657 = vld [vmem:[%s233 + $0xcc0] sm:$0xff]
        %v658 = vld [vmem:[%s233 + $0xcc8] sm:$0xff]
        %v659 = vld [vmem:[%s233 + $0xcd0] sm:$0xff]
        %v660 = vld [vmem:[%s233 + $0xcd8] sm:$0xff]
        %v661 = vld [vmem:[%s233 + $0xce0] sm:$0xff]
        %v662 = vld [vmem:[%s233 + $0xce8] sm:$0xff]
        %v663 = vld [vmem:[%s233 + $0xcf0] sm:$0xff]
        %v664 = vld [vmem:[%s233 + $0xcf8] sm:$0xff]
        %v665 = vld [vmem:[%s233 + $0xd00] sm:$0xff]
        %v666 = vld [vmem:[%s233 + $0xd08] sm:$0xff]
        %v667 = vld [vmem:[%s233 + $0xd10] sm:$0xff]
        %v668 = vld [vmem:[%s233 + $0xd18] sm:$0xff]
        %v669 = vld [vmem:[%s233 + $0xd20] sm:$0xff]
        %v670 = vld [vmem:[%s233 + $0xd28] sm:$0xff]
        %v671 = vld [vmem:[%s233 + $0xd30] sm:$0xff]
        %v672 = vld [vmem:[%s233 + $0xd38] sm:$0xff]
        %v673 = vld [vmem:[%s233 + $0xd40] sm:$0xff]
        %v674 = vld [vmem:[%s233 + $0xd48] sm:$0xff]
        %v675 = vld [vmem:[%s233 + $0xd50] sm:$0xff]
        %v676 = vld [vmem:[%s233 + $0xd58] sm:$0xff]
        %v677 = vld [vmem:[%s233 + $0xd60] sm:$0xff]
        %v678 = vld [vmem:[%s233 + $0xd68] sm:$0xff]
        %v679 = vld [vmem:[%s233 + $0xd70] sm:$0xff]
        %v680 = vld [vmem:[%s233 + $0xd78] sm:$0xff]
        %v681 = vld [vmem:[%s233 + $0xd80] sm:$0xff]
        %v682 = vld [vmem:[%s233 + $0xd88] sm:$0xff]
        %v683 = vld [vmem:[%s233 + $0xd90] sm:$0xff]
        %v684 = vld [vmem:[%s233 + $0xd98] sm:$0xff]
        %v685 = vld [vmem:[%s233 + $0xda0] sm:$0xff]
        %v686 = vld [vmem:[%s233 + $0xda8] sm:$0xff]
        %v687 = vld [vmem:[%s233 + $0xdb0] sm:$0xff]
        %v688 = vld [vmem:[%s233 + $0xdb8] sm:$0xff]
        %v689 = vld [vmem:[%s233 + $0xdc0] sm:$0xff]
        %v690 = vld [vmem:[%s233 + $0xdc8] sm:$0xff]
        %v691 = vld [vmem:[%s233 + $0xdd0] sm:$0xff]
        %v692 = vld [vmem:[%s233 + $0xdd8] sm:$0xff]
        %v693 = vld [vmem:[%s233 + $0xde0] sm:$0xff]
        %v694 = vld [vmem:[%s233 + $0xde8] sm:$0xff]
        %v695 = vld [vmem:[%s233 + $0xdf0] sm:$0xff]
        %v696 = vld [vmem:[%s233 + $0xdf8] sm:$0xff]
        %v697 = vld [vmem:[%s233 + $0xe00] sm:$0xff]
        %v698 = vld [vmem:[%s233 + $0xe08] sm:$0xff]
        %v699 = vld [vmem:[%s233 + $0xe10] sm:$0xff]
        %v700 = vld [vmem:[%s233 + $0xe18] sm:$0xff]
        %v701 = vld [vmem:[%s233 + $0xe20] sm:$0xff]
        %v702 = vld [vmem:[%s233 + $0xe28] sm:$0xff]
        %v703 = vld [vmem:[%s233 + $0xe30] sm:$0xff]
        %v704 = vld [vmem:[%s233 + $0xe38] sm:$0xff]
        %v705 = vld [vmem:[%s233 + $0xe40] sm:$0xff]
        %v706 = vld [vmem:[%s233 + $0xe48] sm:$0xff]
        %v707 = vld [vmem:[%s233 + $0xe50] sm:$0xff]
        %v708 = vld [vmem:[%s233 + $0xe58] sm:$0xff]
        %v709 = vld [vmem:[%s233 + $0xe60] sm:$0xff]
        %v710 = vld [vmem:[%s233 + $0xe68] sm:$0xff]
        %v711 = vld [vmem:[%s233 + $0xe70] sm:$0xff]
        %v712 = vld [vmem:[%s233 + $0xe78] sm:$0xff]
        %v713 = vld [vmem:[%s233 + $0xe80] sm:$0xff]
        %v714 = vld [vmem:[%s233 + $0xe88] sm:$0xff]
        %v715 = vld [vmem:[%s233 + $0xe90] sm:$0xff]
        %v716 = vld [vmem:[%s233 + $0xe98] sm:$0xff]
        %v717 = vld [vmem:[%s233 + $0xea0] sm:$0xff]
        %v718 = vld [vmem:[%s233 + $0xea8] sm:$0xff]
        %v719 = vld [vmem:[%s233 + $0xeb0] sm:$0xff]
        %v720 = vld [vmem:[%s233 + $0xeb8] sm:$0xff]
        %v721 = vld [vmem:[%s233 + $0xec0] sm:$0xff]
        %v722 = vld [vmem:[%s233 + $0xec8] sm:$0xff]
        %v723 = vld [vmem:[%s233 + $0xed0] sm:$0xff]
        %v724 = vld [vmem:[%s233 + $0xed8] sm:$0xff]
        %v725 = vld [vmem:[%s233 + $0xee0] sm:$0xff]
        %v726 = vld [vmem:[%s233 + $0xee8] sm:$0xff]
        %v727 = vld [vmem:[%s233 + $0xef0] sm:$0xff]
        %v728 = vld [vmem:[%s233 + $0xef8] sm:$0xff]
        %v729 = vld [vmem:[%s233 + $0xf00] sm:$0xff]
        %v730 = vld [vmem:[%s233 + $0xf08] sm:$0xff]
        %v731 = vld [vmem:[%s233 + $0xf10] sm:$0xff]
        %v732 = vld [vmem:[%s233 + $0xf18] sm:$0xff]
        %v733 = vld [vmem:[%s233 + $0xf20] sm:$0xff]
        %v734 = vld [vmem:[%s233 + $0xf28] sm:$0xff]
        %v735 = vld [vmem:[%s233 + $0xf30] sm:$0xff]
        %v736 = vld [vmem:[%s233 + $0xf38] sm:$0xff]
        %v737 = vld [vmem:[%s233 + $0xf40] sm:$0xff]
        %v738 = vld [vmem:[%s233 + $0xf48] sm:$0xff]
        %v739 = vld [vmem:[%s233 + $0xf50] sm:$0xff]
        %v740 = vld [vmem:[%s233 + $0xf58] sm:$0xff]
        %v741 = vld [vmem:[%s233 + $0xf60] sm:$0xff]
        %v742 = vld [vmem:[%s233 + $0xf68] sm:$0xff]
        %v743 = vld [vmem:[%s233 + $0xf70] sm:$0xff]
        %v744 = vld [vmem:[%s233 + $0xf78] sm:$0xff]
        %v745 = vld [vmem:[%s233 + $0xf80] sm:$0xff]
        %v746 = vld [vmem:[%s233 + $0xf88] sm:$0xff]
        %v747 = vld [vmem:[%s233 + $0xf90] sm:$0xff]
        %v748 = vld [vmem:[%s233 + $0xf98] sm:$0xff]
        %v749 = vld [vmem:[%s233 + $0xfa0] sm:$0xff]
        %v750 = vld [vmem:[%s233 + $0xfa8] sm:$0xff]
        %v751 = vld [vmem:[%s233 + $0xfb0] sm:$0xff]
        %v752 = vld [vmem:[%s233 + $0xfb8] sm:$0xff]
        %v753 = vld [vmem:[%s233 + $0xfc0] sm:$0xff]
        %v754 = vld [vmem:[%s233 + $0xfc8] sm:$0xff]
        %v755 = vld [vmem:[%s233 + $0xfd0] sm:$0xff]
        %v756 = vld [vmem:[%s233 + $0xfd8] sm:$0xff]
        %v757 = vld [vmem:[%s233 + $0xfe0] sm:$0xff]
        %v758 = vld [vmem:[%s233 + $0xfe8] sm:$0xff]
        %v759 = vld [vmem:[%s233 + $0xff0] sm:$0xff]
        %v760 = vld [vmem:[%s233 + $0xff8] sm:$0xff]
        %v761 = vld [vmem:[%s233 + $0x1000] sm:$0xff]
        %v762 = vld [vmem:[%s233 + $0x1008] sm:$0xff]
        %v763 = vld [vmem:[%s233 + $0x1010] sm:$0xff]
        %v764 = vld [vmem:[%s233 + $0x1018] sm:$0xff]
        %v765 = vld [vmem:[%s233 + $0x1020] sm:$0xff]
        %v766 = vld [vmem:[%s233 + $0x1028] sm:$0xff]
        %v767 = vld [vmem:[%s233 + $0x1030] sm:$0xff]
        %v768 = vld [vmem:[%s233 + $0x1038] sm:$0xff]
        %v769 = vld [vmem:[%s233 + $0x1040] sm:$0xff]
        %v770 = vld [vmem:[%s233 + $0x1048] sm:$0xff]
        %v771 = vld [vmem:[%s233 + $0x1050] sm:$0xff]
        %v772 = vld [vmem:[%s233 + $0x1058] sm:$0xff]
        %v773 = vld [vmem:[%s233 + $0x1060] sm:$0xff]
        %v774 = vld [vmem:[%s233 + $0x1068] sm:$0xff]
        %v775 = vld [vmem:[%s233 + $0x1070] sm:$0xff]
        %v776 = vld [vmem:[%s233 + $0x1078] sm:$0xff]
        %v777 = vld [vmem:[%s233 + $0x1080] sm:$0xff]
        %v778 = vld [vmem:[%s233 + $0x1088] sm:$0xff]
        %v779 = vld [vmem:[%s233 + $0x1090] sm:$0xff]
        %v780 = vld [vmem:[%s233 + $0x1098] sm:$0xff]
        %v781 = vld [vmem:[%s233 + $0x10a0] sm:$0xff]
        %v782 = vld [vmem:[%s233 + $0x10a8] sm:$0xff]
        %v783 = vld [vmem:[%s233 + $0x10b0] sm:$0xff]
        %v784 = vld [vmem:[%s233 + $0x10b8] sm:$0xff]
        %v785 = vld [vmem:[%s233 + $0x10c0] sm:$0xff]
        %v786 = vld [vmem:[%s233 + $0x10c8] sm:$0xff]
        %v787 = vld [vmem:[%s233 + $0x10d0] sm:$0xff]
        %v788 = vld [vmem:[%s233 + $0x10d8] sm:$0xff]
        %v789 = vld [vmem:[%s233 + $0x10e0] sm:$0xff]
        %v790 = vld [vmem:[%s233 + $0x10e8] sm:$0xff]
        %v791 = vld [vmem:[%s233 + $0x10f0] sm:$0xff]
        %v792 = vld [vmem:[%s233 + $0x10f8] sm:$0xff]
        %v793 = vld [vmem:[%s233 + $0x1100] sm:$0xff]
        %v794 = vld [vmem:[%s233 + $0x1108] sm:$0xff]
        %v795 = vld [vmem:[%s233 + $0x1110] sm:$0xff]
        %v796 = vld [vmem:[%s233 + $0x1118] sm:$0xff]
        %v797 = vld [vmem:[%s233 + $0x1120] sm:$0xff]
        %v798 = vld [vmem:[%s233 + $0x1128] sm:$0xff]
        %v799 = vld [vmem:[%s233 + $0x1130] sm:$0xff]
        %v800 = vld [vmem:[%s233 + $0x1138] sm:$0xff]
        %v801 = vld [vmem:[%s233 + $0x1140] sm:$0xff]
        %v802 = vld [vmem:[%s233 + $0x1148] sm:$0xff]
        %v803 = vld [vmem:[%s233 + $0x1150] sm:$0xff]
        %v804 = vld [vmem:[%s233 + $0x1158] sm:$0xff]
        %v805 = vld [vmem:[%s233 + $0x1160] sm:$0xff]
        %v806 = vld [vmem:[%s233 + $0x1168] sm:$0xff]
        %v807 = vld [vmem:[%s233 + $0x1170] sm:$0xff]
        %v808 = vld [vmem:[%s233 + $0x1178] sm:$0xff]
        %v809 = vld [vmem:[%s233 + $0x1180] sm:$0xff]
        %v810 = vld [vmem:[%s233 + $0x1188] sm:$0xff]
        %v811 = vld [vmem:[%s233 + $0x1190] sm:$0xff]
        %v812 = vld [vmem:[%s233 + $0x1198] sm:$0xff]
        %v813 = vld [vmem:[%s233 + $0x11a0] sm:$0xff]
        %v814 = vld [vmem:[%s233 + $0x11a8] sm:$0xff]
        %v815 = vld [vmem:[%s233 + $0x11b0] sm:$0xff]
        %v816 = vld [vmem:[%s233 + $0x11b8] sm:$0xff]
        %v817 = vld [vmem:[%s233 + $0x11c0] sm:$0xff]
        %v818 = vld [vmem:[%s233 + $0x11c8] sm:$0xff]
        %v819 = vld [vmem:[%s233 + $0x11d0] sm:$0xff]
        %v820 = vld [vmem:[%s233 + $0x11d8] sm:$0xff]
        %v821 = vld [vmem:[%s233 + $0x11e0] sm:$0xff]
        %v822 = vld [vmem:[%s233 + $0x11e8] sm:$0xff]
        %v823 = vld [vmem:[%s233 + $0x11f0] sm:$0xff]
        %v824 = vld [vmem:[%s233 + $0x11f8] sm:$0xff]
        %v825 = vld [vmem:[%s233 + $0x1200] sm:$0xff]
        %v826 = vld [vmem:[%s233 + $0x1208] sm:$0xff]
        %v827 = vld [vmem:[%s233 + $0x1210] sm:$0xff]
        %v828 = vld [vmem:[%s233 + $0x1218] sm:$0xff]
        %v829 = vld [vmem:[%s233 + $0x1220] sm:$0xff]
        %v830 = vld [vmem:[%s233 + $0x1228] sm:$0xff]
        %v831 = vld [vmem:[%s233 + $0x1230] sm:$0xff]
        %v832 = vld [vmem:[%s233 + $0x1238] sm:$0xff]
        %v833 = vld [vmem:[%s233 + $0x1240] sm:$0xff]
        %v834 = vld [vmem:[%s233 + $0x1248] sm:$0xff]
        %v835 = vld [vmem:[%s233 + $0x1250] sm:$0xff]
        %v836 = vld [vmem:[%s233 + $0x1258] sm:$0xff]
        %v837 = vld [vmem:[%s233 + $0x1260] sm:$0xff]
        %v838 = vld [vmem:[%s233 + $0x1268] sm:$0xff]
        %v839 = vld [vmem:[%s233 + $0x1270] sm:$0xff]
        %v840 = vld [vmem:[%s233 + $0x1278] sm:$0xff]
        %v841 = vld [vmem:[%s233 + $0x1280] sm:$0xff]
        %v842 = vld [vmem:[%s233 + $0x1288] sm:$0xff]
        %v843 = vld [vmem:[%s233 + $0x1290] sm:$0xff]
        %v844 = vld [vmem:[%s233 + $0x1298] sm:$0xff]
        %v845 = vld [vmem:[%s233 + $0x12a0] sm:$0xff]
        %v846 = vld [vmem:[%s233 + $0x12a8] sm:$0xff]
        %v847 = vld [vmem:[%s233 + $0x12b0] sm:$0xff]
        %v848 = vld [vmem:[%s233 + $0x12b8] sm:$0xff]
        %v849 = vld [vmem:[%s233 + $0x12c0] sm:$0xff]
        %v850 = vld [vmem:[%s233 + $0x12c8] sm:$0xff]
        %v851 = vld [vmem:[%s233 + $0x12d0] sm:$0xff]
        %v852 = vld [vmem:[%s233 + $0x12d8] sm:$0xff]
        %v853 = vld [vmem:[%s233 + $0x12e0] sm:$0xff]
        %v854 = vld [vmem:[%s233 + $0x12e8] sm:$0xff]
        %v855 = vld [vmem:[%s233 + $0x12f0] sm:$0xff]
        %v856 = vld [vmem:[%s233 + $0x12f8] sm:$0xff]
        %v857 = vld [vmem:[%s233 + $0x1300] sm:$0xff]
        %v858 = vld [vmem:[%s233 + $0x1308] sm:$0xff]
        %v859 = vld [vmem:[%s233 + $0x1310] sm:$0xff]
        %v860 = vld [vmem:[%s233 + $0x1318] sm:$0xff]
        %v861 = vld [vmem:[%s233 + $0x1320] sm:$0xff]
        %v862 = vld [vmem:[%s233 + $0x1328] sm:$0xff]
        %v863 = vld [vmem:[%s233 + $0x1330] sm:$0xff]
        %v864 = vld [vmem:[%s233 + $0x1338] sm:$0xff]
        %v865 = vld [vmem:[%s233 + $0x1340] sm:$0xff]
        %v866 = vld [vmem:[%s233 + $0x1348] sm:$0xff]
        %v867 = vld [vmem:[%s233 + $0x1350] sm:$0xff]
        %v868 = vld [vmem:[%s233 + $0x1358] sm:$0xff]
        %v869 = vld [vmem:[%s233 + $0x1360] sm:$0xff]
        %v870 = vld [vmem:[%s233 + $0x1368] sm:$0xff]
        %v871 = vld [vmem:[%s233 + $0x1370] sm:$0xff]
        %v872 = vld [vmem:[%s233 + $0x1378] sm:$0xff]
        %v873 = vld [vmem:[%s233 + $0x1380] sm:$0xff]
        %v874 = vld [vmem:[%s233 + $0x1388] sm:$0xff]
        %v875 = vld [vmem:[%s233 + $0x1390] sm:$0xff]
        %v876 = vld [vmem:[%s233 + $0x1398] sm:$0xff]
        %v877 = vld [vmem:[%s233 + $0x13a0] sm:$0xff]
        %v878 = vld [vmem:[%s233 + $0x13a8] sm:$0xff]
        %v879 = vld [vmem:[%s233 + $0x13b0] sm:$0xff]
        %v880 = vld [vmem:[%s233 + $0x13b8] sm:$0xff]
        %v881 = vld [vmem:[%s233 + $0x13c0] sm:$0xff]
        %v882 = vld [vmem:[%s233 + $0x13c8] sm:$0xff]
        %v883 = vld [vmem:[%s233 + $0x13d0] sm:$0xff]
        %v884 = vld [vmem:[%s233 + $0x13d8] sm:$0xff]
        %v885 = vld [vmem:[%s233 + $0x13e0] sm:$0xff]
        %v886 = vld [vmem:[%s233 + $0x13e8] sm:$0xff]
        %v887 = vld [vmem:[%s233 + $0x13f0] sm:$0xff]
        %v888 = vld [vmem:[%s233 + $0x13f8] sm:$0xff]
        %v894 = vcombine.high %v244, %v244
        %v896 = vunpack.c.l.s4 1966171168
        %v897 = vunpack.c.0.s8 %v896
        %v898 = vlaneseq
        %v899 = vshrl.u32 %v898, 7
        %v900 = vsub.s32 %v897, %v899
        %v901 = vrot.slane %v244, %v900
        %v903 = vunpack.c.l.s4 1966171168
        %v904 = vunpack.c.0.s8 %v903
        %v905 = vlaneseq
        %v906 = vshrl.u32 %v905, 7
        %v907 = vsub.s32 %v904, %v906
        %v908 = vrot.slane %v894, %v907
        %v909 = vcombine.high %v901, %v901
        %v910 = vcombine.high %v908, %v908
        %v912 = vunpack.c.l.s4 1966171168
        %v913 = vunpack.c.0.s8 %v912
        %v914 = vlaneseq
        %v915 = vshrl.u32 %v914, 7
        %v916 = vsub.s32 %v913, %v915
        %v917 = vrot.slane %v901, %v916
        %v919 = vunpack.c.l.s4 1966171168
        %v920 = vunpack.c.0.s8 %v919
        %v921 = vlaneseq
        %v922 = vshrl.u32 %v921, 7
        %v923 = vsub.s32 %v920, %v922
        %v924 = vrot.slane %v908, %v923
        %v926 = vunpack.c.l.s4 1966171168
        %v927 = vunpack.c.0.s8 %v926
        %v928 = vlaneseq
        %v929 = vshrl.u32 %v928, 7
        %v930 = vsub.s32 %v927, %v929
        %v931 = vrot.slane %v909, %v930
        %v933 = vunpack.c.l.s4 1966171168
        %v934 = vunpack.c.0.s8 %v933
        %v935 = vlaneseq
        %v936 = vshrl.u32 %v935, 7
        %v937 = vsub.s32 %v934, %v936
        %v938 = vrot.slane %v910, %v937
        %v939 = vcombine.high %v917, %v917
        %v940 = vcombine.high %v924, %v924
        %v941 = vcombine.high %v931, %v931
        %v942 = vcombine.high %v938, %v938
        %v943 = vcombine.high %v245, %v245
        %v945 = vunpack.c.l.s4 1966171168
        %v946 = vunpack.c.0.s8 %v945
        %v947 = vlaneseq
        %v948 = vshrl.u32 %v947, 7
        %v949 = vsub.s32 %v946, %v948
        %v950 = vrot.slane %v245, %v949
        %v952 = vunpack.c.l.s4 1966171168
        %v953 = vunpack.c.0.s8 %v952
        %v954 = vlaneseq
        %v955 = vshrl.u32 %v954, 7
        %v956 = vsub.s32 %v953, %v955
        %v957 = vrot.slane %v943, %v956
        %v958 = vcombine.high %v950, %v950
        %v959 = vcombine.high %v957, %v957
        %v961 = vunpack.c.l.s4 1966171168
        %v962 = vunpack.c.0.s8 %v961
        %v963 = vlaneseq
        %v964 = vshrl.u32 %v963, 7
        %v965 = vsub.s32 %v962, %v964
        %v966 = vrot.slane %v950, %v965
        %v968 = vunpack.c.l.s4 1966171168
        %v969 = vunpack.c.0.s8 %v968
        %v970 = vlaneseq
        %v971 = vshrl.u32 %v970, 7
        %v972 = vsub.s32 %v969, %v971
        %v973 = vrot.slane %v957, %v972
        %v975 = vunpack.c.l.s4 1966171168
        %v976 = vunpack.c.0.s8 %v975
        %v977 = vlaneseq
        %v978 = vshrl.u32 %v977, 7
        %v979 = vsub.s32 %v976, %v978
        %v980 = vrot.slane %v958, %v979
        %v982 = vunpack.c.l.s4 1966171168
        %v983 = vunpack.c.0.s8 %v982
        %v984 = vlaneseq
        %v985 = vshrl.u32 %v984, 7
        %v986 = vsub.s32 %v983, %v985
        %v987 = vrot.slane %v959, %v986
        %v988 = vcombine.high %v966, %v966
        %v989 = vcombine.high %v973, %v973
        %v990 = vcombine.high %v980, %v980
        %v991 = vcombine.high %v987, %v987
        %v992 = vcombine.high %v246, %v246
        %v994 = vunpack.c.l.s4 1966171168
        %v995 = vunpack.c.0.s8 %v994
        %v996 = vlaneseq
        %v997 = vshrl.u32 %v996, 7
        %v998 = vsub.s32 %v995, %v997
        %v999 = vrot.slane %v246, %v998
        %v1001 = vunpack.c.l.s4 1966171168
        %v1002 = vunpack.c.0.s8 %v1001
        %v1003 = vlaneseq
        %v1004 = vshrl.u32 %v1003, 7
        %v1005 = vsub.s32 %v1002, %v1004
        %v1006 = vrot.slane %v992, %v1005
        %v1007 = vcombine.high %v999, %v999
        %v1008 = vcombine.high %v1006, %v1006
        %v1010 = vunpack.c.l.s4 1966171168
        %v1011 = vunpack.c.0.s8 %v1010
        %v1012 = vlaneseq
        %v1013 = vshrl.u32 %v1012, 7
        %v1014 = vsub.s32 %v1011, %v1013
        %v1015 = vrot.slane %v999, %v1014
        %v1017 = vunpack.c.l.s4 1966171168
        %v1018 = vunpack.c.0.s8 %v1017
        %v1019 = vlaneseq
        %v1020 = vshrl.u32 %v1019, 7
        %v1021 = vsub.s32 %v1018, %v1020
        %v1022 = vrot.slane %v1006, %v1021
        %v1024 = vunpack.c.l.s4 1966171168
        %v1025 = vunpack.c.0.s8 %v1024
        %v1026 = vlaneseq
        %v1027 = vshrl.u32 %v1026, 7
        %v1028 = vsub.s32 %v1025, %v1027
        %v1029 = vrot.slane %v1007, %v1028
        %v1031 = vunpack.c.l.s4 1966171168
        %v1032 = vunpack.c.0.s8 %v1031
        %v1033 = vlaneseq
        %v1034 = vshrl.u32 %v1033, 7
        %v1035 = vsub.s32 %v1032, %v1034
        %v1036 = vrot.slane %v1008, %v1035
        %v1037 = vcombine.high %v1015, %v1015
        %v1038 = vcombine.high %v1022, %v1022
        %v1039 = vcombine.high %v1029, %v1029
        %v1040 = vcombine.high %v1036, %v1036
        %v1041 = vcombine.high %v247, %v247
        %v1043 = vunpack.c.l.s4 1966171168
        %v1044 = vunpack.c.0.s8 %v1043
        %v1045 = vlaneseq
        %v1046 = vshrl.u32 %v1045, 7
        %v1047 = vsub.s32 %v1044, %v1046
        %v1048 = vrot.slane %v247, %v1047
        %v1050 = vunpack.c.l.s4 1966171168
        %v1051 = vunpack.c.0.s8 %v1050
        %v1052 = vlaneseq
        %v1053 = vshrl.u32 %v1052, 7
        %v1054 = vsub.s32 %v1051, %v1053
        %v1055 = vrot.slane %v1041, %v1054
        %v1056 = vcombine.high %v1048, %v1048
        %v1057 = vcombine.high %v1055, %v1055
        %v1059 = vunpack.c.l.s4 1966171168
        %v1060 = vunpack.c.0.s8 %v1059
        %v1061 = vlaneseq
        %v1062 = vshrl.u32 %v1061, 7
        %v1063 = vsub.s32 %v1060, %v1062
        %v1064 = vrot.slane %v1048, %v1063
        %v1066 = vunpack.c.l.s4 1966171168
        %v1067 = vunpack.c.0.s8 %v1066
        %v1068 = vlaneseq
        %v1069 = vshrl.u32 %v1068, 7
        %v1070 = vsub.s32 %v1067, %v1069
        %v1071 = vrot.slane %v1055, %v1070
        %v1073 = vunpack.c.l.s4 1966171168
        %v1074 = vunpack.c.0.s8 %v1073
        %v1075 = vlaneseq
        %v1076 = vshrl.u32 %v1075, 7
        %v1077 = vsub.s32 %v1074, %v1076
        %v1078 = vrot.slane %v1056, %v1077
        %v1080 = vunpack.c.l.s4 1966171168
        %v1081 = vunpack.c.0.s8 %v1080
        %v1082 = vlaneseq
        %v1083 = vshrl.u32 %v1082, 7
        %v1084 = vsub.s32 %v1081, %v1083
        %v1085 = vrot.slane %v1057, %v1084
        %v1086 = vcombine.high %v1064, %v1064
        %v1087 = vcombine.high %v1071, %v1071
        %v1088 = vcombine.high %v1078, %v1078
        %v1089 = vcombine.high %v1085, %v1085
        %v1090 = vcombine.high %v248, %v248
        %v1092 = vunpack.c.l.s4 1966171168
        %v1093 = vunpack.c.0.s8 %v1092
        %v1094 = vlaneseq
        %v1095 = vshrl.u32 %v1094, 7
        %v1096 = vsub.s32 %v1093, %v1095
        %v1097 = vrot.slane %v248, %v1096
        %v1099 = vunpack.c.l.s4 1966171168
        %v1100 = vunpack.c.0.s8 %v1099
        %v1101 = vlaneseq
        %v1102 = vshrl.u32 %v1101, 7
        %v1103 = vsub.s32 %v1100, %v1102
        %v1104 = vrot.slane %v1090, %v1103
        %v1105 = vcombine.high %v1097, %v1097
        %v1106 = vcombine.high %v1104, %v1104
        %v1108 = vunpack.c.l.s4 1966171168
        %v1109 = vunpack.c.0.s8 %v1108
        %v1110 = vlaneseq
        %v1111 = vshrl.u32 %v1110, 7
        %v1112 = vsub.s32 %v1109, %v1111
        %v1113 = vrot.slane %v1097, %v1112
        %v1115 = vunpack.c.l.s4 1966171168
        %v1116 = vunpack.c.0.s8 %v1115
        %v1117 = vlaneseq
        %v1118 = vshrl.u32 %v1117, 7
        %v1119 = vsub.s32 %v1116, %v1118
        %v1120 = vrot.slane %v1104, %v1119
        %v1122 = vunpack.c.l.s4 1966171168
        %v1123 = vunpack.c.0.s8 %v1122
        %v1124 = vlaneseq
        %v1125 = vshrl.u32 %v1124, 7
        %v1126 = vsub.s32 %v1123, %v1125
        %v1127 = vrot.slane %v1105, %v1126
        %v1129 = vunpack.c.l.s4 1966171168
        %v1130 = vunpack.c.0.s8 %v1129
        %v1131 = vlaneseq
        %v1132 = vshrl.u32 %v1131, 7
        %v1133 = vsub.s32 %v1130, %v1132
        %v1134 = vrot.slane %v1106, %v1133
        %v1135 = vcombine.high %v1113, %v1113
        %v1136 = vcombine.high %v1120, %v1120
        %v1137 = vcombine.high %v1127, %v1127
        %v1138 = vcombine.high %v1134, %v1134
        %v1819 = vunpack.c.l.b16 %v249
        %v1820 = vunpack.c.h.b16 %v249
        %v1821 = vunpack.c.l.b16 %v250
        %v1822 = vunpack.c.h.b16 %v250
        %v1823 = vunpack.c.l.b16 %v251
        %v1824 = vunpack.c.h.b16 %v251
        %v1825 = vunpack.c.l.b16 %v252
        %v1826 = vunpack.c.h.b16 %v252
        %v1827 = vunpack.c.l.b16 %v253
        %v1828 = vunpack.c.h.b16 %v253
        %v1829 = vunpack.c.l.b16 %v254
        %v1830 = vunpack.c.h.b16 %v254
        %v1831 = vunpack.c.l.b16 %v255
        %v1832 = vunpack.c.h.b16 %v255
        %v1833 = vunpack.c.l.b16 %v256
        %v1834 = vunpack.c.h.b16 %v256
        %v1835 = vunpack.c.l.b16 %v257
        %v1836 = vunpack.c.h.b16 %v257
        %v1837 = vunpack.c.l.b16 %v258
        %v1838 = vunpack.c.h.b16 %v258
        %v1839 = vunpack.c.l.b16 %v259
        %v1840 = vunpack.c.h.b16 %v259
        %v1841 = vunpack.c.l.b16 %v260
        %v1842 = vunpack.c.h.b16 %v260
        %v1843 = vunpack.c.l.b16 %v261
        %v1844 = vunpack.c.h.b16 %v261
        %v1845 = vunpack.c.l.b16 %v262
        %v1846 = vunpack.c.h.b16 %v262
        %v1847 = vunpack.c.l.b16 %v263
        %v1848 = vunpack.c.h.b16 %v263
        %v1849 = vunpack.c.l.b16 %v264
        %v1850 = vunpack.c.h.b16 %v264
        %v1851 = vunpack.c.l.b16 %v265
        %v1852 = vunpack.c.h.b16 %v265
        %v1853 = vunpack.c.l.b16 %v266
        %v1854 = vunpack.c.h.b16 %v266
        %v1855 = vunpack.c.l.b16 %v267
        %v1856 = vunpack.c.h.b16 %v267
        %v1857 = vunpack.c.l.b16 %v268
        %v1858 = vunpack.c.h.b16 %v268
        %v1859 = vunpack.c.l.b16 %v269
        %v1860 = vunpack.c.h.b16 %v269
        %v1861 = vunpack.c.l.b16 %v270
        %v1862 = vunpack.c.h.b16 %v270
        %v1863 = vunpack.c.l.b16 %v271
        %v1864 = vunpack.c.h.b16 %v271
        %v1865 = vunpack.c.l.b16 %v272
        %v1866 = vunpack.c.h.b16 %v272
        %v1867 = vunpack.c.l.b16 %v273
        %v1868 = vunpack.c.h.b16 %v273
        %v1869 = vunpack.c.l.b16 %v274
        %v1870 = vunpack.c.h.b16 %v274
        %v1871 = vunpack.c.l.b16 %v275
        %v1872 = vunpack.c.h.b16 %v275
        %v1873 = vunpack.c.l.b16 %v276
        %v1874 = vunpack.c.h.b16 %v276
        %v1875 = vunpack.c.l.b16 %v277
        %v1876 = vunpack.c.h.b16 %v277
        %v1877 = vunpack.c.l.b16 %v278
        %v1878 = vunpack.c.h.b16 %v278
        %v1879 = vunpack.c.l.b16 %v279
        %v1880 = vunpack.c.h.b16 %v279
        %v1881 = vunpack.c.l.b16 %v280
        %v1882 = vunpack.c.h.b16 %v280
        %v1883 = vunpack.c.l.b16 %v281
        %v1884 = vunpack.c.h.b16 %v281
        %v1885 = vunpack.c.l.b16 %v282
        %v1886 = vunpack.c.h.b16 %v282
        %v1887 = vunpack.c.l.b16 %v283
        %v1888 = vunpack.c.h.b16 %v283
        %v1889 = vunpack.c.l.b16 %v284
        %v1890 = vunpack.c.h.b16 %v284
        %v1891 = vunpack.c.l.b16 %v285
        %v1892 = vunpack.c.h.b16 %v285
        %v1893 = vunpack.c.l.b16 %v286
        %v1894 = vunpack.c.h.b16 %v286
        %v1895 = vunpack.c.l.b16 %v287
        %v1896 = vunpack.c.h.b16 %v287
        %v1897 = vunpack.c.l.b16 %v288
        %v1898 = vunpack.c.h.b16 %v288
        %v1899 = vunpack.c.l.b16 %v289
        %v1900 = vunpack.c.h.b16 %v289
        %v1901 = vunpack.c.l.b16 %v290
        %v1902 = vunpack.c.h.b16 %v290
        %v1903 = vunpack.c.l.b16 %v291
        %v1904 = vunpack.c.h.b16 %v291
        %v1905 = vunpack.c.l.b16 %v292
        %v1906 = vunpack.c.h.b16 %v292
        %v1907 = vunpack.c.l.b16 %v293
        %v1908 = vunpack.c.h.b16 %v293
        %v1909 = vunpack.c.l.b16 %v294
        %v1910 = vunpack.c.h.b16 %v294
        %v1911 = vunpack.c.l.b16 %v295
        %v1912 = vunpack.c.h.b16 %v295
        %v1913 = vunpack.c.l.b16 %v296
        %v1914 = vunpack.c.h.b16 %v296
        %v1915 = vunpack.c.l.b16 %v297
        %v1916 = vunpack.c.h.b16 %v297
        %v1917 = vunpack.c.l.b16 %v298
        %v1918 = vunpack.c.h.b16 %v298
        %v1919 = vunpack.c.l.b16 %v299
        %v1920 = vunpack.c.h.b16 %v299
        %v1921 = vunpack.c.l.b16 %v300
        %v1922 = vunpack.c.h.b16 %v300
        %v1923 = vunpack.c.l.b16 %v301
        %v1924 = vunpack.c.h.b16 %v301
        %v1925 = vunpack.c.l.b16 %v302
        %v1926 = vunpack.c.h.b16 %v302
        %v1927 = vunpack.c.l.b16 %v303
        %v1928 = vunpack.c.h.b16 %v303
        %v1929 = vunpack.c.l.b16 %v304
        %v1930 = vunpack.c.h.b16 %v304
        %v1931 = vunpack.c.l.b16 %v305
        %v1932 = vunpack.c.h.b16 %v305
        %v1933 = vunpack.c.l.b16 %v306
        %v1934 = vunpack.c.h.b16 %v306
        %v1935 = vunpack.c.l.b16 %v307
        %v1936 = vunpack.c.h.b16 %v307
        %v1937 = vunpack.c.l.b16 %v308
        %v1938 = vunpack.c.h.b16 %v308
        %v1939 = vunpack.c.l.b16 %v309
        %v1940 = vunpack.c.h.b16 %v309
        %v1941 = vunpack.c.l.b16 %v310
        %v1942 = vunpack.c.h.b16 %v310
        %v1943 = vunpack.c.l.b16 %v311
        %v1944 = vunpack.c.h.b16 %v311
        %v1945 = vunpack.c.l.b16 %v312
        %v1946 = vunpack.c.h.b16 %v312
        %v1947 = vunpack.c.l.b16 %v313
        %v1948 = vunpack.c.h.b16 %v313
        %v1949 = vunpack.c.l.b16 %v314
        %v1950 = vunpack.c.h.b16 %v314
        %v1951 = vunpack.c.l.b16 %v315
        %v1952 = vunpack.c.h.b16 %v315
        %v1953 = vunpack.c.l.b16 %v316
        %v1954 = vunpack.c.h.b16 %v316
        %v1955 = vunpack.c.l.b16 %v317
        %v1956 = vunpack.c.h.b16 %v317
        %v1957 = vunpack.c.l.b16 %v318
        %v1958 = vunpack.c.h.b16 %v318
        %v1959 = vunpack.c.l.b16 %v319
        %v1960 = vunpack.c.h.b16 %v319
        %v1961 = vunpack.c.l.b16 %v320
        %v1962 = vunpack.c.h.b16 %v320
        %v1963 = vunpack.c.l.b16 %v321
        %v1964 = vunpack.c.h.b16 %v321
        %v1965 = vunpack.c.l.b16 %v322
        %v1966 = vunpack.c.h.b16 %v322
        %v1967 = vunpack.c.l.b16 %v323
        %v1968 = vunpack.c.h.b16 %v323
        %v1969 = vunpack.c.l.b16 %v324
        %v1970 = vunpack.c.h.b16 %v324
        %v1971 = vunpack.c.l.b16 %v325
        %v1972 = vunpack.c.h.b16 %v325
        %v1973 = vunpack.c.l.b16 %v326
        %v1974 = vunpack.c.h.b16 %v326
        %v1975 = vunpack.c.l.b16 %v327
        %v1976 = vunpack.c.h.b16 %v327
        %v1977 = vunpack.c.l.b16 %v328
        %v1978 = vunpack.c.h.b16 %v328
        %v1979 = vunpack.c.l.b16 %v329
        %v1980 = vunpack.c.h.b16 %v329
        %v1981 = vunpack.c.l.b16 %v330
        %v1982 = vunpack.c.h.b16 %v330
        %v1983 = vunpack.c.l.b16 %v331
        %v1984 = vunpack.c.h.b16 %v331
        %v1985 = vunpack.c.l.b16 %v332
        %v1986 = vunpack.c.h.b16 %v332
        %v1987 = vunpack.c.l.b16 %v333
        %v1988 = vunpack.c.h.b16 %v333
        %v1989 = vunpack.c.l.b16 %v334
        %v1990 = vunpack.c.h.b16 %v334
        %v1991 = vunpack.c.l.b16 %v335
        %v1992 = vunpack.c.h.b16 %v335
        %v1993 = vunpack.c.l.b16 %v336
        %v1994 = vunpack.c.h.b16 %v336
        %v1995 = vunpack.c.l.b16 %v337
        %v1996 = vunpack.c.h.b16 %v337
        %v1997 = vunpack.c.l.b16 %v338
        %v1998 = vunpack.c.h.b16 %v338
        %v1999 = vunpack.c.l.b16 %v339
        %v2000 = vunpack.c.h.b16 %v339
        %v2001 = vunpack.c.l.b16 %v340
        %v2002 = vunpack.c.h.b16 %v340
        %v2003 = vunpack.c.l.b16 %v341
        %v2004 = vunpack.c.h.b16 %v341
        %v2005 = vunpack.c.l.b16 %v342
        %v2006 = vunpack.c.h.b16 %v342
        %v2007 = vunpack.c.l.b16 %v343
        %v2008 = vunpack.c.h.b16 %v343
        %v2009 = vunpack.c.l.b16 %v344
        %v2010 = vunpack.c.h.b16 %v344
        %v2011 = vunpack.c.l.b16 %v345
        %v2012 = vunpack.c.h.b16 %v345
        %v2013 = vunpack.c.l.b16 %v346
        %v2014 = vunpack.c.h.b16 %v346
        %v2015 = vunpack.c.l.b16 %v347
        %v2016 = vunpack.c.h.b16 %v347
        %v2017 = vunpack.c.l.b16 %v348
        %v2018 = vunpack.c.h.b16 %v348
        %v2019 = vunpack.c.l.b16 %v349
        %v2020 = vunpack.c.h.b16 %v349
        %v2021 = vunpack.c.l.b16 %v350
        %v2022 = vunpack.c.h.b16 %v350
        %v2023 = vunpack.c.l.b16 %v351
        %v2024 = vunpack.c.h.b16 %v351
        %v2025 = vunpack.c.l.b16 %v352
        %v2026 = vunpack.c.h.b16 %v352
        %v2027 = vunpack.c.l.b16 %v353
        %v2028 = vunpack.c.h.b16 %v353
        %v2029 = vunpack.c.l.b16 %v354
        %v2030 = vunpack.c.h.b16 %v354
        %v2031 = vunpack.c.l.b16 %v355
        %v2032 = vunpack.c.h.b16 %v355
        %v2033 = vunpack.c.l.b16 %v356
        %v2034 = vunpack.c.h.b16 %v356
        %v2035 = vunpack.c.l.b16 %v357
        %v2036 = vunpack.c.h.b16 %v357
        %v2037 = vunpack.c.l.b16 %v358
        %v2038 = vunpack.c.h.b16 %v358
        %v2039 = vunpack.c.l.b16 %v359
        %v2040 = vunpack.c.h.b16 %v359
        %v2041 = vunpack.c.l.b16 %v360
        %v2042 = vunpack.c.h.b16 %v360
        %v2043 = vunpack.c.l.b16 %v361
        %v2044 = vunpack.c.h.b16 %v361
        %v2045 = vunpack.c.l.b16 %v362
        %v2046 = vunpack.c.h.b16 %v362
        %v2047 = vunpack.c.l.b16 %v363
        %v2048 = vunpack.c.h.b16 %v363
        %v2049 = vunpack.c.l.b16 %v364
        %v2050 = vunpack.c.h.b16 %v364
        %v2051 = vunpack.c.l.b16 %v365
        %v2052 = vunpack.c.h.b16 %v365
        %v2053 = vunpack.c.l.b16 %v366
        %v2054 = vunpack.c.h.b16 %v366
        %v2055 = vunpack.c.l.b16 %v367
        %v2056 = vunpack.c.h.b16 %v367
        %v2057 = vunpack.c.l.b16 %v368
        %v2058 = vunpack.c.h.b16 %v368
        %v2059 = vunpack.c.l.b16 %v369
        %v2060 = vunpack.c.h.b16 %v369
        %v2061 = vunpack.c.l.b16 %v370
        %v2062 = vunpack.c.h.b16 %v370
        %v2063 = vunpack.c.l.b16 %v371
        %v2064 = vunpack.c.h.b16 %v371
        %v2065 = vunpack.c.l.b16 %v372
        %v2066 = vunpack.c.h.b16 %v372
        %v2067 = vunpack.c.l.b16 %v373
        %v2068 = vunpack.c.h.b16 %v373
        %v2069 = vunpack.c.l.b16 %v374
        %v2070 = vunpack.c.h.b16 %v374
        %v2071 = vunpack.c.l.b16 %v375
        %v2072 = vunpack.c.h.b16 %v375
        %v2073 = vunpack.c.l.b16 %v376
        %v2074 = vunpack.c.h.b16 %v376
        %v2075 = vunpack.c.l.b16 %v377
        %v2076 = vunpack.c.h.b16 %v377
        %v2077 = vunpack.c.l.b16 %v378
        %v2078 = vunpack.c.h.b16 %v378
        %v2079 = vunpack.c.l.b16 %v379
        %v2080 = vunpack.c.h.b16 %v379
        %v2081 = vunpack.c.l.b16 %v380
        %v2082 = vunpack.c.h.b16 %v380
        %v2083 = vunpack.c.l.b16 %v381
        %v2084 = vunpack.c.h.b16 %v381
        %v2085 = vunpack.c.l.b16 %v382
        %v2086 = vunpack.c.h.b16 %v382
        %v2087 = vunpack.c.l.b16 %v383
        %v2088 = vunpack.c.h.b16 %v383
        %v2089 = vunpack.c.l.b16 %v384
        %v2090 = vunpack.c.h.b16 %v384
        %v2091 = vunpack.c.l.b16 %v385
        %v2092 = vunpack.c.h.b16 %v385
        %v2093 = vunpack.c.l.b16 %v386
        %v2094 = vunpack.c.h.b16 %v386
        %v2095 = vunpack.c.l.b16 %v387
        %v2096 = vunpack.c.h.b16 %v387
        %v2097 = vunpack.c.l.b16 %v388
        %v2098 = vunpack.c.h.b16 %v388
        %v2099 = vunpack.c.l.b16 %v389
        %v2100 = vunpack.c.h.b16 %v389
        %v2101 = vunpack.c.l.b16 %v390
        %v2102 = vunpack.c.h.b16 %v390
        %v2103 = vunpack.c.l.b16 %v391
        %v2104 = vunpack.c.h.b16 %v391
        %v2105 = vunpack.c.l.b16 %v392
        %v2106 = vunpack.c.h.b16 %v392
        %v2107 = vunpack.c.l.b16 %v393
        %v2108 = vunpack.c.h.b16 %v393
        %v2109 = vunpack.c.l.b16 %v394
        %v2110 = vunpack.c.h.b16 %v394
        %v2111 = vunpack.c.l.b16 %v395
        %v2112 = vunpack.c.h.b16 %v395
        %v2113 = vunpack.c.l.b16 %v396
        %v2114 = vunpack.c.h.b16 %v396
        %v2115 = vunpack.c.l.b16 %v397
        %v2116 = vunpack.c.h.b16 %v397
        %v2117 = vunpack.c.l.b16 %v398
        %v2118 = vunpack.c.h.b16 %v398
        %v2119 = vunpack.c.l.b16 %v399
        %v2120 = vunpack.c.h.b16 %v399
        %v2121 = vunpack.c.l.b16 %v400
        %v2122 = vunpack.c.h.b16 %v400
        %v2123 = vunpack.c.l.b16 %v401
        %v2124 = vunpack.c.h.b16 %v401
        %v2125 = vunpack.c.l.b16 %v402
        %v2126 = vunpack.c.h.b16 %v402
        %v2127 = vunpack.c.l.b16 %v403
        %v2128 = vunpack.c.h.b16 %v403
        %v2129 = vunpack.c.l.b16 %v404
        %v2130 = vunpack.c.h.b16 %v404
        %v2131 = vunpack.c.l.b16 %v405
        %v2132 = vunpack.c.h.b16 %v405
        %v2133 = vunpack.c.l.b16 %v406
        %v2134 = vunpack.c.h.b16 %v406
        %v2135 = vunpack.c.l.b16 %v407
        %v2136 = vunpack.c.h.b16 %v407
        %v2137 = vunpack.c.l.b16 %v408
        %v2138 = vunpack.c.h.b16 %v408
        %v2139 = vunpack.c.l.b16 %v409
        %v2140 = vunpack.c.h.b16 %v409
        %v2141 = vunpack.c.l.b16 %v410
        %v2142 = vunpack.c.h.b16 %v410
        %v2143 = vunpack.c.l.b16 %v411
        %v2144 = vunpack.c.h.b16 %v411
        %v2145 = vunpack.c.l.b16 %v412
        %v2146 = vunpack.c.h.b16 %v412
        %v2147 = vunpack.c.l.b16 %v413
        %v2148 = vunpack.c.h.b16 %v413
        %v2149 = vunpack.c.l.b16 %v414
        %v2150 = vunpack.c.h.b16 %v414
        %v2151 = vunpack.c.l.b16 %v415
        %v2152 = vunpack.c.h.b16 %v415
        %v2153 = vunpack.c.l.b16 %v416
        %v2154 = vunpack.c.h.b16 %v416
        %v2155 = vunpack.c.l.b16 %v417
        %v2156 = vunpack.c.h.b16 %v417
        %v2157 = vunpack.c.l.b16 %v418
        %v2158 = vunpack.c.h.b16 %v418
        %v2159 = vunpack.c.l.b16 %v419
        %v2160 = vunpack.c.h.b16 %v419
        %v2161 = vunpack.c.l.b16 %v420
        %v2162 = vunpack.c.h.b16 %v420
        %v2163 = vunpack.c.l.b16 %v421
        %v2164 = vunpack.c.h.b16 %v421
        %v2165 = vunpack.c.l.b16 %v422
        %v2166 = vunpack.c.h.b16 %v422
        %v2167 = vunpack.c.l.b16 %v423
        %v2168 = vunpack.c.h.b16 %v423
        %v2169 = vunpack.c.l.b16 %v424
        %v2170 = vunpack.c.h.b16 %v424
        %v2171 = vunpack.c.l.b16 %v425
        %v2172 = vunpack.c.h.b16 %v425
        %v2173 = vunpack.c.l.b16 %v426
        %v2174 = vunpack.c.h.b16 %v426
        %v2175 = vunpack.c.l.b16 %v427
        %v2176 = vunpack.c.h.b16 %v427
        %v2177 = vunpack.c.l.b16 %v428
        %v2178 = vunpack.c.h.b16 %v428
        %v2179 = vunpack.c.l.b16 %v429
        %v2180 = vunpack.c.h.b16 %v429
        %v2181 = vunpack.c.l.b16 %v430
        %v2182 = vunpack.c.h.b16 %v430
        %v2183 = vunpack.c.l.b16 %v431
        %v2184 = vunpack.c.h.b16 %v431
        %v2185 = vunpack.c.l.b16 %v432
        %v2186 = vunpack.c.h.b16 %v432
        %v2187 = vunpack.c.l.b16 %v433
        %v2188 = vunpack.c.h.b16 %v433
        %v2189 = vunpack.c.l.b16 %v434
        %v2190 = vunpack.c.h.b16 %v434
        %v2191 = vunpack.c.l.b16 %v435
        %v2192 = vunpack.c.h.b16 %v435
        %v2193 = vunpack.c.l.b16 %v436
        %v2194 = vunpack.c.h.b16 %v436
        %v2195 = vunpack.c.l.b16 %v437
        %v2196 = vunpack.c.h.b16 %v437
        %v2197 = vunpack.c.l.b16 %v438
        %v2198 = vunpack.c.h.b16 %v438
        %v2199 = vunpack.c.l.b16 %v439
        %v2200 = vunpack.c.h.b16 %v439
        %v2201 = vunpack.c.l.b16 %v440
        %v2202 = vunpack.c.h.b16 %v440
        %v2203 = vunpack.c.l.b16 %v441
        %v2204 = vunpack.c.h.b16 %v441
        %v2205 = vunpack.c.l.b16 %v442
        %v2206 = vunpack.c.h.b16 %v442
        %v2207 = vunpack.c.l.b16 %v443
        %v2208 = vunpack.c.h.b16 %v443
        %v2209 = vunpack.c.l.b16 %v444
        %v2210 = vunpack.c.h.b16 %v444
        %v2211 = vunpack.c.l.b16 %v445
        %v2212 = vunpack.c.h.b16 %v445
        %v2213 = vunpack.c.l.b16 %v446
        %v2214 = vunpack.c.h.b16 %v446
        %v2215 = vunpack.c.l.b16 %v447
        %v2216 = vunpack.c.h.b16 %v447
        %v2217 = vunpack.c.l.b16 %v448
        %v2218 = vunpack.c.h.b16 %v448
        %v2219 = vunpack.c.l.b16 %v449
        %v2220 = vunpack.c.h.b16 %v449
        %v2221 = vunpack.c.l.b16 %v450
        %v2222 = vunpack.c.h.b16 %v450
        %v2223 = vunpack.c.l.b16 %v451
        %v2224 = vunpack.c.h.b16 %v451
        %v2225 = vunpack.c.l.b16 %v452
        %v2226 = vunpack.c.h.b16 %v452
        %v2227 = vunpack.c.l.b16 %v453
        %v2228 = vunpack.c.h.b16 %v453
        %v2229 = vunpack.c.l.b16 %v454
        %v2230 = vunpack.c.h.b16 %v454
        %v2231 = vunpack.c.l.b16 %v455
        %v2232 = vunpack.c.h.b16 %v455
        %v2233 = vunpack.c.l.b16 %v456
        %v2234 = vunpack.c.h.b16 %v456
        %v2235 = vunpack.c.l.b16 %v457
        %v2236 = vunpack.c.h.b16 %v457
        %v2237 = vunpack.c.l.b16 %v458
        %v2238 = vunpack.c.h.b16 %v458
        %v2239 = vunpack.c.l.b16 %v459
        %v2240 = vunpack.c.h.b16 %v459
        %v2241 = vunpack.c.l.b16 %v460
        %v2242 = vunpack.c.h.b16 %v460
        %v2243 = vunpack.c.l.b16 %v461
        %v2244 = vunpack.c.h.b16 %v461
        %v2245 = vunpack.c.l.b16 %v462
        %v2246 = vunpack.c.h.b16 %v462
        %v2247 = vunpack.c.l.b16 %v463
        %v2248 = vunpack.c.h.b16 %v463
        %v2249 = vunpack.c.l.b16 %v464
        %v2250 = vunpack.c.h.b16 %v464
        %v2251 = vunpack.c.l.b16 %v465
        %v2252 = vunpack.c.h.b16 %v465
        %v2253 = vunpack.c.l.b16 %v466
        %v2254 = vunpack.c.h.b16 %v466
        %v2255 = vunpack.c.l.b16 %v467
        %v2256 = vunpack.c.h.b16 %v467
        %v2257 = vunpack.c.l.b16 %v468
        %v2258 = vunpack.c.h.b16 %v468
        %v2259 = vunpack.c.l.b16 %v469
        %v2260 = vunpack.c.h.b16 %v469
        %v2261 = vunpack.c.l.b16 %v470
        %v2262 = vunpack.c.h.b16 %v470
        %v2263 = vunpack.c.l.b16 %v471
        %v2264 = vunpack.c.h.b16 %v471
        %v2265 = vunpack.c.l.b16 %v472
        %v2266 = vunpack.c.h.b16 %v472
        %v2267 = vunpack.c.l.b16 %v473
        %v2268 = vunpack.c.h.b16 %v473
        %v2269 = vunpack.c.l.b16 %v474
        %v2270 = vunpack.c.h.b16 %v474
        %v2271 = vunpack.c.l.b16 %v475
        %v2272 = vunpack.c.h.b16 %v475
        %v2273 = vunpack.c.l.b16 %v476
        %v2274 = vunpack.c.h.b16 %v476
        %v2275 = vunpack.c.l.b16 %v477
        %v2276 = vunpack.c.h.b16 %v477
        %v2277 = vunpack.c.l.b16 %v478
        %v2278 = vunpack.c.h.b16 %v478
        %v2279 = vunpack.c.l.b16 %v479
        %v2280 = vunpack.c.h.b16 %v479
        %v2281 = vunpack.c.l.b16 %v480
        %v2282 = vunpack.c.h.b16 %v480
        %v2283 = vunpack.c.l.b16 %v481
        %v2284 = vunpack.c.h.b16 %v481
        %v2285 = vunpack.c.l.b16 %v482
        %v2286 = vunpack.c.h.b16 %v482
        %v2287 = vunpack.c.l.b16 %v483
        %v2288 = vunpack.c.h.b16 %v483
        %v2289 = vunpack.c.l.b16 %v484
        %v2290 = vunpack.c.h.b16 %v484
        %v2291 = vunpack.c.l.b16 %v485
        %v2292 = vunpack.c.h.b16 %v485
        %v2293 = vunpack.c.l.b16 %v486
        %v2294 = vunpack.c.h.b16 %v486
        %v2295 = vunpack.c.l.b16 %v487
        %v2296 = vunpack.c.h.b16 %v487
        %v2297 = vunpack.c.l.b16 %v488
        %v2298 = vunpack.c.h.b16 %v488
        %v2299 = vunpack.c.l.b16 %v489
        %v2300 = vunpack.c.h.b16 %v489
        %v2301 = vunpack.c.l.b16 %v490
        %v2302 = vunpack.c.h.b16 %v490
        %v2303 = vunpack.c.l.b16 %v491
        %v2304 = vunpack.c.h.b16 %v491
        %v2305 = vunpack.c.l.b16 %v492
        %v2306 = vunpack.c.h.b16 %v492
        %v2307 = vunpack.c.l.b16 %v493
        %v2308 = vunpack.c.h.b16 %v493
        %v2309 = vunpack.c.l.b16 %v494
        %v2310 = vunpack.c.h.b16 %v494
        %v2311 = vunpack.c.l.b16 %v495
        %v2312 = vunpack.c.h.b16 %v495
        %v2313 = vunpack.c.l.b16 %v496
        %v2314 = vunpack.c.h.b16 %v496
        %v2315 = vunpack.c.l.b16 %v497
        %v2316 = vunpack.c.h.b16 %v497
        %v2317 = vunpack.c.l.b16 %v498
        %v2318 = vunpack.c.h.b16 %v498
        %v2319 = vunpack.c.l.b16 %v499
        %v2320 = vunpack.c.h.b16 %v499
        %v2321 = vunpack.c.l.b16 %v500
        %v2322 = vunpack.c.h.b16 %v500
        %v2323 = vunpack.c.l.b16 %v501
        %v2324 = vunpack.c.h.b16 %v501
        %v2325 = vunpack.c.l.b16 %v502
        %v2326 = vunpack.c.h.b16 %v502
        %v2327 = vunpack.c.l.b16 %v503
        %v2328 = vunpack.c.h.b16 %v503
        %v2329 = vunpack.c.l.b16 %v504
        %v2330 = vunpack.c.h.b16 %v504
        %v2331 = vunpack.c.l.b16 %v505
        %v2332 = vunpack.c.h.b16 %v505
        %v2333 = vunpack.c.l.b16 %v506
        %v2334 = vunpack.c.h.b16 %v506
        %v2335 = vunpack.c.l.b16 %v507
        %v2336 = vunpack.c.h.b16 %v507
        %v2337 = vunpack.c.l.b16 %v508
        %v2338 = vunpack.c.h.b16 %v508
        %v2339 = vunpack.c.l.b16 %v509
        %v2340 = vunpack.c.h.b16 %v509
        %v2341 = vunpack.c.l.b16 %v510
        %v2342 = vunpack.c.h.b16 %v510
        %v2343 = vunpack.c.l.b16 %v511
        %v2344 = vunpack.c.h.b16 %v511
        %v2345 = vunpack.c.l.b16 %v512
        %v2346 = vunpack.c.h.b16 %v512
        %v2347 = vunpack.c.l.b16 %v513
        %v2348 = vunpack.c.h.b16 %v513
        %v2349 = vunpack.c.l.b16 %v514
        %v2350 = vunpack.c.h.b16 %v514
        %v2351 = vunpack.c.l.b16 %v515
        %v2352 = vunpack.c.h.b16 %v515
        %v2353 = vunpack.c.l.b16 %v516
        %v2354 = vunpack.c.h.b16 %v516
        %v2355 = vunpack.c.l.b16 %v517
        %v2356 = vunpack.c.h.b16 %v517
        %v2357 = vunpack.c.l.b16 %v518
        %v2358 = vunpack.c.h.b16 %v518
        %v2359 = vunpack.c.l.b16 %v519
        %v2360 = vunpack.c.h.b16 %v519
        %v2361 = vunpack.c.l.b16 %v520
        %v2362 = vunpack.c.h.b16 %v520
        %v2363 = vunpack.c.l.b16 %v521
        %v2364 = vunpack.c.h.b16 %v521
        %v2365 = vunpack.c.l.b16 %v522
        %v2366 = vunpack.c.h.b16 %v522
        %v2367 = vunpack.c.l.b16 %v523
        %v2368 = vunpack.c.h.b16 %v523
        %v2369 = vunpack.c.l.b16 %v524
        %v2370 = vunpack.c.h.b16 %v524
        %v2371 = vunpack.c.l.b16 %v525
        %v2372 = vunpack.c.h.b16 %v525
        %v2373 = vunpack.c.l.b16 %v526
        %v2374 = vunpack.c.h.b16 %v526
        %v2375 = vunpack.c.l.b16 %v527
        %v2376 = vunpack.c.h.b16 %v527
        %v2377 = vunpack.c.l.b16 %v528
        %v2378 = vunpack.c.h.b16 %v528
        %v2379 = vunpack.c.l.b16 %v529
        %v2380 = vunpack.c.h.b16 %v529
        %v2381 = vunpack.c.l.b16 %v530
        %v2382 = vunpack.c.h.b16 %v530
        %v2383 = vunpack.c.l.b16 %v531
        %v2384 = vunpack.c.h.b16 %v531
        %v2385 = vunpack.c.l.b16 %v532
        %v2386 = vunpack.c.h.b16 %v532
        %v2387 = vunpack.c.l.b16 %v533
        %v2388 = vunpack.c.h.b16 %v533
        %v2389 = vunpack.c.l.b16 %v534
        %v2390 = vunpack.c.h.b16 %v534
        %v2391 = vunpack.c.l.b16 %v535
        %v2392 = vunpack.c.h.b16 %v535
        %v2393 = vunpack.c.l.b16 %v536
        %v2394 = vunpack.c.h.b16 %v536
        %v2395 = vunpack.c.l.b16 %v537
        %v2396 = vunpack.c.h.b16 %v537
        %v2397 = vunpack.c.l.b16 %v538
        %v2398 = vunpack.c.h.b16 %v538
        %v2399 = vunpack.c.l.b16 %v539
        %v2400 = vunpack.c.h.b16 %v539
        %v2401 = vunpack.c.l.b16 %v540
        %v2402 = vunpack.c.h.b16 %v540
        %v2403 = vunpack.c.l.b16 %v541
        %v2404 = vunpack.c.h.b16 %v541
        %v2405 = vunpack.c.l.b16 %v542
        %v2406 = vunpack.c.h.b16 %v542
        %v2407 = vunpack.c.l.b16 %v543
        %v2408 = vunpack.c.h.b16 %v543
        %v2409 = vunpack.c.l.b16 %v544
        %v2410 = vunpack.c.h.b16 %v544
        %v2411 = vunpack.c.l.b16 %v545
        %v2412 = vunpack.c.h.b16 %v545
        %v2413 = vunpack.c.l.b16 %v546
        %v2414 = vunpack.c.h.b16 %v546
        %v2415 = vunpack.c.l.b16 %v547
        %v2416 = vunpack.c.h.b16 %v547
        %v2417 = vunpack.c.l.b16 %v548
        %v2418 = vunpack.c.h.b16 %v548
        %v2419 = vunpack.c.l.b16 %v549
        %v2420 = vunpack.c.h.b16 %v549
        %v2421 = vunpack.c.l.b16 %v550
        %v2422 = vunpack.c.h.b16 %v550
        %v2423 = vunpack.c.l.b16 %v551
        %v2424 = vunpack.c.h.b16 %v551
        %v2425 = vunpack.c.l.b16 %v552
        %v2426 = vunpack.c.h.b16 %v552
        %v2427 = vunpack.c.l.b16 %v553
        %v2428 = vunpack.c.h.b16 %v553
        %v2429 = vunpack.c.l.b16 %v554
        %v2430 = vunpack.c.h.b16 %v554
        %v2431 = vunpack.c.l.b16 %v555
        %v2432 = vunpack.c.h.b16 %v555
        %v2433 = vunpack.c.l.b16 %v556
        %v2434 = vunpack.c.h.b16 %v556
        %v2435 = vunpack.c.l.b16 %v557
        %v2436 = vunpack.c.h.b16 %v557
        %v2437 = vunpack.c.l.b16 %v558
        %v2438 = vunpack.c.h.b16 %v558
        %v2439 = vunpack.c.l.b16 %v559
        %v2440 = vunpack.c.h.b16 %v559
        %v2441 = vunpack.c.l.b16 %v560
        %v2442 = vunpack.c.h.b16 %v560
        %v2443 = vunpack.c.l.b16 %v561
        %v2444 = vunpack.c.h.b16 %v561
        %v2445 = vunpack.c.l.b16 %v562
        %v2446 = vunpack.c.h.b16 %v562
        %v2447 = vunpack.c.l.b16 %v563
        %v2448 = vunpack.c.h.b16 %v563
        %v2449 = vunpack.c.l.b16 %v564
        %v2450 = vunpack.c.h.b16 %v564
        %v2451 = vunpack.c.l.b16 %v565
        %v2452 = vunpack.c.h.b16 %v565
        %v2453 = vunpack.c.l.b16 %v566
        %v2454 = vunpack.c.h.b16 %v566
        %v2455 = vunpack.c.l.b16 %v567
        %v2456 = vunpack.c.h.b16 %v567
        %v2457 = vunpack.c.l.b16 %v568
        %v2458 = vunpack.c.h.b16 %v568
        %v2459 = vunpack.c.l.b16 %v569
        %v2460 = vunpack.c.h.b16 %v569
        %v2461 = vunpack.c.l.b16 %v570
        %v2462 = vunpack.c.h.b16 %v570
        %v2463 = vunpack.c.l.b16 %v571
        %v2464 = vunpack.c.h.b16 %v571
        %v2465 = vunpack.c.l.b16 %v572
        %v2466 = vunpack.c.h.b16 %v572
        %v2467 = vunpack.c.l.b16 %v573
        %v2468 = vunpack.c.h.b16 %v573
        %v2469 = vunpack.c.l.b16 %v574
        %v2470 = vunpack.c.h.b16 %v574
        %v2471 = vunpack.c.l.b16 %v575
        %v2472 = vunpack.c.h.b16 %v575
        %v2473 = vunpack.c.l.b16 %v576
        %v2474 = vunpack.c.h.b16 %v576
        %v2475 = vunpack.c.l.b16 %v577
        %v2476 = vunpack.c.h.b16 %v577
        %v2477 = vunpack.c.l.b16 %v578
        %v2478 = vunpack.c.h.b16 %v578
        %v2479 = vunpack.c.l.b16 %v579
        %v2480 = vunpack.c.h.b16 %v579
        %v2481 = vunpack.c.l.b16 %v580
        %v2482 = vunpack.c.h.b16 %v580
        %v2483 = vunpack.c.l.b16 %v581
        %v2484 = vunpack.c.h.b16 %v581
        %v2485 = vunpack.c.l.b16 %v582
        %v2486 = vunpack.c.h.b16 %v582
        %v2487 = vunpack.c.l.b16 %v583
        %v2488 = vunpack.c.h.b16 %v583
        %v2489 = vunpack.c.l.b16 %v584
        %v2490 = vunpack.c.h.b16 %v584
        %v2491 = vunpack.c.l.b16 %v585
        %v2492 = vunpack.c.h.b16 %v585
        %v2493 = vunpack.c.l.b16 %v586
        %v2494 = vunpack.c.h.b16 %v586
        %v2495 = vunpack.c.l.b16 %v587
        %v2496 = vunpack.c.h.b16 %v587
        %v2497 = vunpack.c.l.b16 %v588
        %v2498 = vunpack.c.h.b16 %v588
        %v2499 = vunpack.c.l.b16 %v589
        %v2500 = vunpack.c.h.b16 %v589
        %v2501 = vunpack.c.l.b16 %v590
        %v2502 = vunpack.c.h.b16 %v590
        %v2503 = vunpack.c.l.b16 %v591
        %v2504 = vunpack.c.h.b16 %v591
        %v2505 = vunpack.c.l.b16 %v592
        %v2506 = vunpack.c.h.b16 %v592
        %v2507 = vunpack.c.l.b16 %v593
        %v2508 = vunpack.c.h.b16 %v593
        %v2509 = vunpack.c.l.b16 %v594
        %v2510 = vunpack.c.h.b16 %v594
        %v2511 = vunpack.c.l.b16 %v595
        %v2512 = vunpack.c.h.b16 %v595
        %v2513 = vunpack.c.l.b16 %v596
        %v2514 = vunpack.c.h.b16 %v596
        %v2515 = vunpack.c.l.b16 %v597
        %v2516 = vunpack.c.h.b16 %v597
        %v2517 = vunpack.c.l.b16 %v598
        %v2518 = vunpack.c.h.b16 %v598
        %v2519 = vunpack.c.l.b16 %v599
        %v2520 = vunpack.c.h.b16 %v599
        %v2521 = vunpack.c.l.b16 %v600
        %v2522 = vunpack.c.h.b16 %v600
        %v2523 = vunpack.c.l.b16 %v601
        %v2524 = vunpack.c.h.b16 %v601
        %v2525 = vunpack.c.l.b16 %v602
        %v2526 = vunpack.c.h.b16 %v602
        %v2527 = vunpack.c.l.b16 %v603
        %v2528 = vunpack.c.h.b16 %v603
        %v2529 = vunpack.c.l.b16 %v604
        %v2530 = vunpack.c.h.b16 %v604
        %v2531 = vunpack.c.l.b16 %v605
        %v2532 = vunpack.c.h.b16 %v605
        %v2533 = vunpack.c.l.b16 %v606
        %v2534 = vunpack.c.h.b16 %v606
        %v2535 = vunpack.c.l.b16 %v607
        %v2536 = vunpack.c.h.b16 %v607
        %v2537 = vunpack.c.l.b16 %v608
        %v2538 = vunpack.c.h.b16 %v608
        %v2539 = vunpack.c.l.b16 %v609
        %v2540 = vunpack.c.h.b16 %v609
        %v2541 = vunpack.c.l.b16 %v610
        %v2542 = vunpack.c.h.b16 %v610
        %v2543 = vunpack.c.l.b16 %v611
        %v2544 = vunpack.c.h.b16 %v611
        %v2545 = vunpack.c.l.b16 %v612
        %v2546 = vunpack.c.h.b16 %v612
        %v2547 = vunpack.c.l.b16 %v613
        %v2548 = vunpack.c.h.b16 %v613
        %v2549 = vunpack.c.l.b16 %v614
        %v2550 = vunpack.c.h.b16 %v614
        %v2551 = vunpack.c.l.b16 %v615
        %v2552 = vunpack.c.h.b16 %v615
        %v2553 = vunpack.c.l.b16 %v616
        %v2554 = vunpack.c.h.b16 %v616
        %v2555 = vunpack.c.l.b16 %v617
        %v2556 = vunpack.c.h.b16 %v617
        %v2557 = vunpack.c.l.b16 %v618
        %v2558 = vunpack.c.h.b16 %v618
        %v2559 = vunpack.c.l.b16 %v619
        %v2560 = vunpack.c.h.b16 %v619
        %v2561 = vunpack.c.l.b16 %v620
        %v2562 = vunpack.c.h.b16 %v620
        %v2563 = vunpack.c.l.b16 %v621
        %v2564 = vunpack.c.h.b16 %v621
        %v2565 = vunpack.c.l.b16 %v622
        %v2566 = vunpack.c.h.b16 %v622
        %v2567 = vunpack.c.l.b16 %v623
        %v2568 = vunpack.c.h.b16 %v623
        %v2569 = vunpack.c.l.b16 %v624
        %v2570 = vunpack.c.h.b16 %v624
        %v2571 = vunpack.c.l.b16 %v625
        %v2572 = vunpack.c.h.b16 %v625
        %v2573 = vunpack.c.l.b16 %v626
        %v2574 = vunpack.c.h.b16 %v626
        %v2575 = vunpack.c.l.b16 %v627
        %v2576 = vunpack.c.h.b16 %v627
        %v2577 = vunpack.c.l.b16 %v628
        %v2578 = vunpack.c.h.b16 %v628
        %v2579 = vunpack.c.l.b16 %v629
        %v2580 = vunpack.c.h.b16 %v629
        %v2581 = vunpack.c.l.b16 %v630
        %v2582 = vunpack.c.h.b16 %v630
        %v2583 = vunpack.c.l.b16 %v631
        %v2584 = vunpack.c.h.b16 %v631
        %v2585 = vunpack.c.l.b16 %v632
        %v2586 = vunpack.c.h.b16 %v632
        %v2587 = vunpack.c.l.b16 %v633
        %v2588 = vunpack.c.h.b16 %v633
        %v2589 = vunpack.c.l.b16 %v634
        %v2590 = vunpack.c.h.b16 %v634
        %v2591 = vunpack.c.l.b16 %v635
        %v2592 = vunpack.c.h.b16 %v635
        %v2593 = vunpack.c.l.b16 %v636
        %v2594 = vunpack.c.h.b16 %v636
        %v2595 = vunpack.c.l.b16 %v637
        %v2596 = vunpack.c.h.b16 %v637
        %v2597 = vunpack.c.l.b16 %v638
        %v2598 = vunpack.c.h.b16 %v638
        %v2599 = vunpack.c.l.b16 %v639
        %v2600 = vunpack.c.h.b16 %v639
        %v2601 = vunpack.c.l.b16 %v640
        %v2602 = vunpack.c.h.b16 %v640
        %v2603 = vunpack.c.l.b16 %v641
        %v2604 = vunpack.c.h.b16 %v641
        %v2605 = vunpack.c.l.b16 %v642
        %v2606 = vunpack.c.h.b16 %v642
        %v2607 = vunpack.c.l.b16 %v643
        %v2608 = vunpack.c.h.b16 %v643
        %v2609 = vunpack.c.l.b16 %v644
        %v2610 = vunpack.c.h.b16 %v644
        %v2611 = vunpack.c.l.b16 %v645
        %v2612 = vunpack.c.h.b16 %v645
        %v2613 = vunpack.c.l.b16 %v646
        %v2614 = vunpack.c.h.b16 %v646
        %v2615 = vunpack.c.l.b16 %v647
        %v2616 = vunpack.c.h.b16 %v647
        %v2617 = vunpack.c.l.b16 %v648
        %v2618 = vunpack.c.h.b16 %v648
        %v2619 = vunpack.c.l.b16 %v649
        %v2620 = vunpack.c.h.b16 %v649
        %v2621 = vunpack.c.l.b16 %v650
        %v2622 = vunpack.c.h.b16 %v650
        %v2623 = vunpack.c.l.b16 %v651
        %v2624 = vunpack.c.h.b16 %v651
        %v2625 = vunpack.c.l.b16 %v652
        %v2626 = vunpack.c.h.b16 %v652
        %v2627 = vunpack.c.l.b16 %v653
        %v2628 = vunpack.c.h.b16 %v653
        %v2629 = vunpack.c.l.b16 %v654
        %v2630 = vunpack.c.h.b16 %v654
        %v2631 = vunpack.c.l.b16 %v655
        %v2632 = vunpack.c.h.b16 %v655
        %v2633 = vunpack.c.l.b16 %v656
        %v2634 = vunpack.c.h.b16 %v656
        %v2635 = vunpack.c.l.b16 %v657
        %v2636 = vunpack.c.h.b16 %v657
        %v2637 = vunpack.c.l.b16 %v658
        %v2638 = vunpack.c.h.b16 %v658
        %v2639 = vunpack.c.l.b16 %v659
        %v2640 = vunpack.c.h.b16 %v659
        %v2641 = vunpack.c.l.b16 %v660
        %v2642 = vunpack.c.h.b16 %v660
        %v2643 = vunpack.c.l.b16 %v661
        %v2644 = vunpack.c.h.b16 %v661
        %v2645 = vunpack.c.l.b16 %v662
        %v2646 = vunpack.c.h.b16 %v662
        %v2647 = vunpack.c.l.b16 %v663
        %v2648 = vunpack.c.h.b16 %v663
        %v2649 = vunpack.c.l.b16 %v664
        %v2650 = vunpack.c.h.b16 %v664
        %v2651 = vunpack.c.l.b16 %v665
        %v2652 = vunpack.c.h.b16 %v665
        %v2653 = vunpack.c.l.b16 %v666
        %v2654 = vunpack.c.h.b16 %v666
        %v2655 = vunpack.c.l.b16 %v667
        %v2656 = vunpack.c.h.b16 %v667
        %v2657 = vunpack.c.l.b16 %v668
        %v2658 = vunpack.c.h.b16 %v668
        %v2659 = vunpack.c.l.b16 %v669
        %v2660 = vunpack.c.h.b16 %v669
        %v2661 = vunpack.c.l.b16 %v670
        %v2662 = vunpack.c.h.b16 %v670
        %v2663 = vunpack.c.l.b16 %v671
        %v2664 = vunpack.c.h.b16 %v671
        %v2665 = vunpack.c.l.b16 %v672
        %v2666 = vunpack.c.h.b16 %v672
        %v2667 = vunpack.c.l.b16 %v673
        %v2668 = vunpack.c.h.b16 %v673
        %v2669 = vunpack.c.l.b16 %v674
        %v2670 = vunpack.c.h.b16 %v674
        %v2671 = vunpack.c.l.b16 %v675
        %v2672 = vunpack.c.h.b16 %v675
        %v2673 = vunpack.c.l.b16 %v676
        %v2674 = vunpack.c.h.b16 %v676
        %v2675 = vunpack.c.l.b16 %v677
        %v2676 = vunpack.c.h.b16 %v677
        %v2677 = vunpack.c.l.b16 %v678
        %v2678 = vunpack.c.h.b16 %v678
        %v2679 = vunpack.c.l.b16 %v679
        %v2680 = vunpack.c.h.b16 %v679
        %v2681 = vunpack.c.l.b16 %v680
        %v2682 = vunpack.c.h.b16 %v680
        %v2683 = vunpack.c.l.b16 %v681
        %v2684 = vunpack.c.h.b16 %v681
        %v2685 = vunpack.c.l.b16 %v682
        %v2686 = vunpack.c.h.b16 %v682
        %v2687 = vunpack.c.l.b16 %v683
        %v2688 = vunpack.c.h.b16 %v683
        %v2689 = vunpack.c.l.b16 %v684
        %v2690 = vunpack.c.h.b16 %v684
        %v2691 = vunpack.c.l.b16 %v685
        %v2692 = vunpack.c.h.b16 %v685
        %v2693 = vunpack.c.l.b16 %v686
        %v2694 = vunpack.c.h.b16 %v686
        %v2695 = vunpack.c.l.b16 %v687
        %v2696 = vunpack.c.h.b16 %v687
        %v2697 = vunpack.c.l.b16 %v688
        %v2698 = vunpack.c.h.b16 %v688
        %v2699 = vunpack.c.l.b16 %v689
        %v2700 = vunpack.c.h.b16 %v689
        %v2701 = vunpack.c.l.b16 %v690
        %v2702 = vunpack.c.h.b16 %v690
        %v2703 = vunpack.c.l.b16 %v691
        %v2704 = vunpack.c.h.b16 %v691
        %v2705 = vunpack.c.l.b16 %v692
        %v2706 = vunpack.c.h.b16 %v692
        %v2707 = vunpack.c.l.b16 %v693
        %v2708 = vunpack.c.h.b16 %v693
        %v2709 = vunpack.c.l.b16 %v694
        %v2710 = vunpack.c.h.b16 %v694
        %v2711 = vunpack.c.l.b16 %v695
        %v2712 = vunpack.c.h.b16 %v695
        %v2713 = vunpack.c.l.b16 %v696
        %v2714 = vunpack.c.h.b16 %v696
        %v2715 = vunpack.c.l.b16 %v697
        %v2716 = vunpack.c.h.b16 %v697
        %v2717 = vunpack.c.l.b16 %v698
        %v2718 = vunpack.c.h.b16 %v698
        %v2719 = vunpack.c.l.b16 %v699
        %v2720 = vunpack.c.h.b16 %v699
        %v2721 = vunpack.c.l.b16 %v700
        %v2722 = vunpack.c.h.b16 %v700
        %v2723 = vunpack.c.l.b16 %v701
        %v2724 = vunpack.c.h.b16 %v701
        %v2725 = vunpack.c.l.b16 %v702
        %v2726 = vunpack.c.h.b16 %v702
        %v2727 = vunpack.c.l.b16 %v703
        %v2728 = vunpack.c.h.b16 %v703
        %v2729 = vunpack.c.l.b16 %v704
        %v2730 = vunpack.c.h.b16 %v704
        %v2731 = vunpack.c.l.b16 %v705
        %v2732 = vunpack.c.h.b16 %v705
        %v2733 = vunpack.c.l.b16 %v706
        %v2734 = vunpack.c.h.b16 %v706
        %v2735 = vunpack.c.l.b16 %v707
        %v2736 = vunpack.c.h.b16 %v707
        %v2737 = vunpack.c.l.b16 %v708
        %v2738 = vunpack.c.h.b16 %v708
        %v2739 = vunpack.c.l.b16 %v709
        %v2740 = vunpack.c.h.b16 %v709
        %v2741 = vunpack.c.l.b16 %v710
        %v2742 = vunpack.c.h.b16 %v710
        %v2743 = vunpack.c.l.b16 %v711
        %v2744 = vunpack.c.h.b16 %v711
        %v2745 = vunpack.c.l.b16 %v712
        %v2746 = vunpack.c.h.b16 %v712
        %v2747 = vunpack.c.l.b16 %v713
        %v2748 = vunpack.c.h.b16 %v713
        %v2749 = vunpack.c.l.b16 %v714
        %v2750 = vunpack.c.h.b16 %v714
        %v2751 = vunpack.c.l.b16 %v715
        %v2752 = vunpack.c.h.b16 %v715
        %v2753 = vunpack.c.l.b16 %v716
        %v2754 = vunpack.c.h.b16 %v716
        %v2755 = vunpack.c.l.b16 %v717
        %v2756 = vunpack.c.h.b16 %v717
        %v2757 = vunpack.c.l.b16 %v718
        %v2758 = vunpack.c.h.b16 %v718
        %v2759 = vunpack.c.l.b16 %v719
        %v2760 = vunpack.c.h.b16 %v719
        %v2761 = vunpack.c.l.b16 %v720
        %v2762 = vunpack.c.h.b16 %v720
        %v2763 = vunpack.c.l.b16 %v721
        %v2764 = vunpack.c.h.b16 %v721
        %v2765 = vunpack.c.l.b16 %v722
        %v2766 = vunpack.c.h.b16 %v722
        %v2767 = vunpack.c.l.b16 %v723
        %v2768 = vunpack.c.h.b16 %v723
        %v2769 = vunpack.c.l.b16 %v724
        %v2770 = vunpack.c.h.b16 %v724
        %v2771 = vunpack.c.l.b16 %v725
        %v2772 = vunpack.c.h.b16 %v725
        %v2773 = vunpack.c.l.b16 %v726
        %v2774 = vunpack.c.h.b16 %v726
        %v2775 = vunpack.c.l.b16 %v727
        %v2776 = vunpack.c.h.b16 %v727
        %v2777 = vunpack.c.l.b16 %v728
        %v2778 = vunpack.c.h.b16 %v728
        %v2779 = vunpack.c.l.b16 %v729
        %v2780 = vunpack.c.h.b16 %v729
        %v2781 = vunpack.c.l.b16 %v730
        %v2782 = vunpack.c.h.b16 %v730
        %v2783 = vunpack.c.l.b16 %v731
        %v2784 = vunpack.c.h.b16 %v731
        %v2785 = vunpack.c.l.b16 %v732
        %v2786 = vunpack.c.h.b16 %v732
        %v2787 = vunpack.c.l.b16 %v733
        %v2788 = vunpack.c.h.b16 %v733
        %v2789 = vunpack.c.l.b16 %v734
        %v2790 = vunpack.c.h.b16 %v734
        %v2791 = vunpack.c.l.b16 %v735
        %v2792 = vunpack.c.h.b16 %v735
        %v2793 = vunpack.c.l.b16 %v736
        %v2794 = vunpack.c.h.b16 %v736
        %v2795 = vunpack.c.l.b16 %v737
        %v2796 = vunpack.c.h.b16 %v737
        %v2797 = vunpack.c.l.b16 %v738
        %v2798 = vunpack.c.h.b16 %v738
        %v2799 = vunpack.c.l.b16 %v739
        %v2800 = vunpack.c.h.b16 %v739
        %v2801 = vunpack.c.l.b16 %v740
        %v2802 = vunpack.c.h.b16 %v740
        %v2803 = vunpack.c.l.b16 %v741
        %v2804 = vunpack.c.h.b16 %v741
        %v2805 = vunpack.c.l.b16 %v742
        %v2806 = vunpack.c.h.b16 %v742
        %v2807 = vunpack.c.l.b16 %v743
        %v2808 = vunpack.c.h.b16 %v743
        %v2809 = vunpack.c.l.b16 %v744
        %v2810 = vunpack.c.h.b16 %v744
        %v2811 = vunpack.c.l.b16 %v745
        %v2812 = vunpack.c.h.b16 %v745
        %v2813 = vunpack.c.l.b16 %v746
        %v2814 = vunpack.c.h.b16 %v746
        %v2815 = vunpack.c.l.b16 %v747
        %v2816 = vunpack.c.h.b16 %v747
        %v2817 = vunpack.c.l.b16 %v748
        %v2818 = vunpack.c.h.b16 %v748
        %v2819 = vunpack.c.l.b16 %v749
        %v2820 = vunpack.c.h.b16 %v749
        %v2821 = vunpack.c.l.b16 %v750
        %v2822 = vunpack.c.h.b16 %v750
        %v2823 = vunpack.c.l.b16 %v751
        %v2824 = vunpack.c.h.b16 %v751
        %v2825 = vunpack.c.l.b16 %v752
        %v2826 = vunpack.c.h.b16 %v752
        %v2827 = vunpack.c.l.b16 %v753
        %v2828 = vunpack.c.h.b16 %v753
        %v2829 = vunpack.c.l.b16 %v754
        %v2830 = vunpack.c.h.b16 %v754
        %v2831 = vunpack.c.l.b16 %v755
        %v2832 = vunpack.c.h.b16 %v755
        %v2833 = vunpack.c.l.b16 %v756
        %v2834 = vunpack.c.h.b16 %v756
        %v2835 = vunpack.c.l.b16 %v757
        %v2836 = vunpack.c.h.b16 %v757
        %v2837 = vunpack.c.l.b16 %v758
        %v2838 = vunpack.c.h.b16 %v758
        %v2839 = vunpack.c.l.b16 %v759
        %v2840 = vunpack.c.h.b16 %v759
        %v2841 = vunpack.c.l.b16 %v760
        %v2842 = vunpack.c.h.b16 %v760
        %v2843 = vunpack.c.l.b16 %v761
        %v2844 = vunpack.c.h.b16 %v761
        %v2845 = vunpack.c.l.b16 %v762
        %v2846 = vunpack.c.h.b16 %v762
        %v2847 = vunpack.c.l.b16 %v763
        %v2848 = vunpack.c.h.b16 %v763
        %v2849 = vunpack.c.l.b16 %v764
        %v2850 = vunpack.c.h.b16 %v764
        %v2851 = vunpack.c.l.b16 %v765
        %v2852 = vunpack.c.h.b16 %v765
        %v2853 = vunpack.c.l.b16 %v766
        %v2854 = vunpack.c.h.b16 %v766
        %v2855 = vunpack.c.l.b16 %v767
        %v2856 = vunpack.c.h.b16 %v767
        %v2857 = vunpack.c.l.b16 %v768
        %v2858 = vunpack.c.h.b16 %v768
        %v2859 = vunpack.c.l.b16 %v769
        %v2860 = vunpack.c.h.b16 %v769
        %v2861 = vunpack.c.l.b16 %v770
        %v2862 = vunpack.c.h.b16 %v770
        %v2863 = vunpack.c.l.b16 %v771
        %v2864 = vunpack.c.h.b16 %v771
        %v2865 = vunpack.c.l.b16 %v772
        %v2866 = vunpack.c.h.b16 %v772
        %v2867 = vunpack.c.l.b16 %v773
        %v2868 = vunpack.c.h.b16 %v773
        %v2869 = vunpack.c.l.b16 %v774
        %v2870 = vunpack.c.h.b16 %v774
        %v2871 = vunpack.c.l.b16 %v775
        %v2872 = vunpack.c.h.b16 %v775
        %v2873 = vunpack.c.l.b16 %v776
        %v2874 = vunpack.c.h.b16 %v776
        %v2875 = vunpack.c.l.b16 %v777
        %v2876 = vunpack.c.h.b16 %v777
        %v2877 = vunpack.c.l.b16 %v778
        %v2878 = vunpack.c.h.b16 %v778
        %v2879 = vunpack.c.l.b16 %v779
        %v2880 = vunpack.c.h.b16 %v779
        %v2881 = vunpack.c.l.b16 %v780
        %v2882 = vunpack.c.h.b16 %v780
        %v2883 = vunpack.c.l.b16 %v781
        %v2884 = vunpack.c.h.b16 %v781
        %v2885 = vunpack.c.l.b16 %v782
        %v2886 = vunpack.c.h.b16 %v782
        %v2887 = vunpack.c.l.b16 %v783
        %v2888 = vunpack.c.h.b16 %v783
        %v2889 = vunpack.c.l.b16 %v784
        %v2890 = vunpack.c.h.b16 %v784
        %v2891 = vunpack.c.l.b16 %v785
        %v2892 = vunpack.c.h.b16 %v785
        %v2893 = vunpack.c.l.b16 %v786
        %v2894 = vunpack.c.h.b16 %v786
        %v2895 = vunpack.c.l.b16 %v787
        %v2896 = vunpack.c.h.b16 %v787
        %v2897 = vunpack.c.l.b16 %v788
        %v2898 = vunpack.c.h.b16 %v788
        %v2899 = vunpack.c.l.b16 %v789
        %v2900 = vunpack.c.h.b16 %v789
        %v2901 = vunpack.c.l.b16 %v790
        %v2902 = vunpack.c.h.b16 %v790
        %v2903 = vunpack.c.l.b16 %v791
        %v2904 = vunpack.c.h.b16 %v791
        %v2905 = vunpack.c.l.b16 %v792
        %v2906 = vunpack.c.h.b16 %v792
        %v2907 = vunpack.c.l.b16 %v793
        %v2908 = vunpack.c.h.b16 %v793
        %v2909 = vunpack.c.l.b16 %v794
        %v2910 = vunpack.c.h.b16 %v794
        %v2911 = vunpack.c.l.b16 %v795
        %v2912 = vunpack.c.h.b16 %v795
        %v2913 = vunpack.c.l.b16 %v796
        %v2914 = vunpack.c.h.b16 %v796
        %v2915 = vunpack.c.l.b16 %v797
        %v2916 = vunpack.c.h.b16 %v797
        %v2917 = vunpack.c.l.b16 %v798
        %v2918 = vunpack.c.h.b16 %v798
        %v2919 = vunpack.c.l.b16 %v799
        %v2920 = vunpack.c.h.b16 %v799
        %v2921 = vunpack.c.l.b16 %v800
        %v2922 = vunpack.c.h.b16 %v800
        %v2923 = vunpack.c.l.b16 %v801
        %v2924 = vunpack.c.h.b16 %v801
        %v2925 = vunpack.c.l.b16 %v802
        %v2926 = vunpack.c.h.b16 %v802
        %v2927 = vunpack.c.l.b16 %v803
        %v2928 = vunpack.c.h.b16 %v803
        %v2929 = vunpack.c.l.b16 %v804
        %v2930 = vunpack.c.h.b16 %v804
        %v2931 = vunpack.c.l.b16 %v805
        %v2932 = vunpack.c.h.b16 %v805
        %v2933 = vunpack.c.l.b16 %v806
        %v2934 = vunpack.c.h.b16 %v806
        %v2935 = vunpack.c.l.b16 %v807
        %v2936 = vunpack.c.h.b16 %v807
        %v2937 = vunpack.c.l.b16 %v808
        %v2938 = vunpack.c.h.b16 %v808
        %v2939 = vunpack.c.l.b16 %v809
        %v2940 = vunpack.c.h.b16 %v809
        %v2941 = vunpack.c.l.b16 %v810
        %v2942 = vunpack.c.h.b16 %v810
        %v2943 = vunpack.c.l.b16 %v811
        %v2944 = vunpack.c.h.b16 %v811
        %v2945 = vunpack.c.l.b16 %v812
        %v2946 = vunpack.c.h.b16 %v812
        %v2947 = vunpack.c.l.b16 %v813
        %v2948 = vunpack.c.h.b16 %v813
        %v2949 = vunpack.c.l.b16 %v814
        %v2950 = vunpack.c.h.b16 %v814
        %v2951 = vunpack.c.l.b16 %v815
        %v2952 = vunpack.c.h.b16 %v815
        %v2953 = vunpack.c.l.b16 %v816
        %v2954 = vunpack.c.h.b16 %v816
        %v2955 = vunpack.c.l.b16 %v817
        %v2956 = vunpack.c.h.b16 %v817
        %v2957 = vunpack.c.l.b16 %v818
        %v2958 = vunpack.c.h.b16 %v818
        %v2959 = vunpack.c.l.b16 %v819
        %v2960 = vunpack.c.h.b16 %v819
        %v2961 = vunpack.c.l.b16 %v820
        %v2962 = vunpack.c.h.b16 %v820
        %v2963 = vunpack.c.l.b16 %v821
        %v2964 = vunpack.c.h.b16 %v821
        %v2965 = vunpack.c.l.b16 %v822
        %v2966 = vunpack.c.h.b16 %v822
        %v2967 = vunpack.c.l.b16 %v823
        %v2968 = vunpack.c.h.b16 %v823
        %v2969 = vunpack.c.l.b16 %v824
        %v2970 = vunpack.c.h.b16 %v824
        %v2971 = vunpack.c.l.b16 %v825
        %v2972 = vunpack.c.h.b16 %v825
        %v2973 = vunpack.c.l.b16 %v826
        %v2974 = vunpack.c.h.b16 %v826
        %v2975 = vunpack.c.l.b16 %v827
        %v2976 = vunpack.c.h.b16 %v827
        %v2977 = vunpack.c.l.b16 %v828
        %v2978 = vunpack.c.h.b16 %v828
        %v2979 = vunpack.c.l.b16 %v829
        %v2980 = vunpack.c.h.b16 %v829
        %v2981 = vunpack.c.l.b16 %v830
        %v2982 = vunpack.c.h.b16 %v830
        %v2983 = vunpack.c.l.b16 %v831
        %v2984 = vunpack.c.h.b16 %v831
        %v2985 = vunpack.c.l.b16 %v832
        %v2986 = vunpack.c.h.b16 %v832
        %v2987 = vunpack.c.l.b16 %v833
        %v2988 = vunpack.c.h.b16 %v833
        %v2989 = vunpack.c.l.b16 %v834
        %v2990 = vunpack.c.h.b16 %v834
        %v2991 = vunpack.c.l.b16 %v835
        %v2992 = vunpack.c.h.b16 %v835
        %v2993 = vunpack.c.l.b16 %v836
        %v2994 = vunpack.c.h.b16 %v836
        %v2995 = vunpack.c.l.b16 %v837
        %v2996 = vunpack.c.h.b16 %v837
        %v2997 = vunpack.c.l.b16 %v838
        %v2998 = vunpack.c.h.b16 %v838
        %v2999 = vunpack.c.l.b16 %v839
        %v3000 = vunpack.c.h.b16 %v839
        %v3001 = vunpack.c.l.b16 %v840
        %v3002 = vunpack.c.h.b16 %v840
        %v3003 = vunpack.c.l.b16 %v841
        %v3004 = vunpack.c.h.b16 %v841
        %v3005 = vunpack.c.l.b16 %v842
        %v3006 = vunpack.c.h.b16 %v842
        %v3007 = vunpack.c.l.b16 %v843
        %v3008 = vunpack.c.h.b16 %v843
        %v3009 = vunpack.c.l.b16 %v844
        %v3010 = vunpack.c.h.b16 %v844
        %v3011 = vunpack.c.l.b16 %v845
        %v3012 = vunpack.c.h.b16 %v845
        %v3013 = vunpack.c.l.b16 %v846
        %v3014 = vunpack.c.h.b16 %v846
        %v3015 = vunpack.c.l.b16 %v847
        %v3016 = vunpack.c.h.b16 %v847
        %v3017 = vunpack.c.l.b16 %v848
        %v3018 = vunpack.c.h.b16 %v848
        %v3019 = vunpack.c.l.b16 %v849
        %v3020 = vunpack.c.h.b16 %v849
        %v3021 = vunpack.c.l.b16 %v850
        %v3022 = vunpack.c.h.b16 %v850
        %v3023 = vunpack.c.l.b16 %v851
        %v3024 = vunpack.c.h.b16 %v851
        %v3025 = vunpack.c.l.b16 %v852
        %v3026 = vunpack.c.h.b16 %v852
        %v3027 = vunpack.c.l.b16 %v853
        %v3028 = vunpack.c.h.b16 %v853
        %v3029 = vunpack.c.l.b16 %v854
        %v3030 = vunpack.c.h.b16 %v854
        %v3031 = vunpack.c.l.b16 %v855
        %v3032 = vunpack.c.h.b16 %v855
        %v3033 = vunpack.c.l.b16 %v856
        %v3034 = vunpack.c.h.b16 %v856
        %v3035 = vunpack.c.l.b16 %v857
        %v3036 = vunpack.c.h.b16 %v857
        %v3037 = vunpack.c.l.b16 %v858
        %v3038 = vunpack.c.h.b16 %v858
        %v3039 = vunpack.c.l.b16 %v859
        %v3040 = vunpack.c.h.b16 %v859
        %v3041 = vunpack.c.l.b16 %v860
        %v3042 = vunpack.c.h.b16 %v860
        %v3043 = vunpack.c.l.b16 %v861
        %v3044 = vunpack.c.h.b16 %v861
        %v3045 = vunpack.c.l.b16 %v862
        %v3046 = vunpack.c.h.b16 %v862
        %v3047 = vunpack.c.l.b16 %v863
        %v3048 = vunpack.c.h.b16 %v863
        %v3049 = vunpack.c.l.b16 %v864
        %v3050 = vunpack.c.h.b16 %v864
        %v3051 = vunpack.c.l.b16 %v865
        %v3052 = vunpack.c.h.b16 %v865
        %v3053 = vunpack.c.l.b16 %v866
        %v3054 = vunpack.c.h.b16 %v866
        %v3055 = vunpack.c.l.b16 %v867
        %v3056 = vunpack.c.h.b16 %v867
        %v3057 = vunpack.c.l.b16 %v868
        %v3058 = vunpack.c.h.b16 %v868
        %v3059 = vunpack.c.l.b16 %v869
        %v3060 = vunpack.c.h.b16 %v869
        %v3061 = vunpack.c.l.b16 %v870
        %v3062 = vunpack.c.h.b16 %v870
        %v3063 = vunpack.c.l.b16 %v871
        %v3064 = vunpack.c.h.b16 %v871
        %v3065 = vunpack.c.l.b16 %v872
        %v3066 = vunpack.c.h.b16 %v872
        %v3067 = vunpack.c.l.b16 %v873
        %v3068 = vunpack.c.h.b16 %v873
        %v3069 = vunpack.c.l.b16 %v874
        %v3070 = vunpack.c.h.b16 %v874
        %v3071 = vunpack.c.l.b16 %v875
        %v3072 = vunpack.c.h.b16 %v875
        %v3073 = vunpack.c.l.b16 %v876
        %v3074 = vunpack.c.h.b16 %v876
        %v3075 = vunpack.c.l.b16 %v877
        %v3076 = vunpack.c.h.b16 %v877
        %v3077 = vunpack.c.l.b16 %v878
        %v3078 = vunpack.c.h.b16 %v878
        %v3079 = vunpack.c.l.b16 %v879
        %v3080 = vunpack.c.h.b16 %v879
        %v3081 = vunpack.c.l.b16 %v880
        %v3082 = vunpack.c.h.b16 %v880
        %v3083 = vunpack.c.l.b16 %v881
        %v3084 = vunpack.c.h.b16 %v881
        %v3085 = vunpack.c.l.b16 %v882
        %v3086 = vunpack.c.h.b16 %v882
        %v3087 = vunpack.c.l.b16 %v883
        %v3088 = vunpack.c.h.b16 %v883
        %v3089 = vunpack.c.l.b16 %v884
        %v3090 = vunpack.c.h.b16 %v884
        %v3091 = vunpack.c.l.b16 %v885
        %v3092 = vunpack.c.h.b16 %v885
        %v3093 = vunpack.c.l.b16 %v886
        %v3094 = vunpack.c.h.b16 %v886
        %v3095 = vunpack.c.l.b16 %v887
        %v3096 = vunpack.c.h.b16 %v887
        %v3097 = vunpack.c.l.b16 %v888
        %v3098 = vunpack.c.h.b16 %v888
        %v3099 = vpack.c.b16 %v1821, %v1819
        %v3100 = vpack.c.b16 %v1822, %v1820
        %v3101 = vpack.c.b16 %v1825, %v1823
        %v3102 = vpack.c.b16 %v1826, %v1824
        %v3103 = vpack.c.b16 %v1829, %v1827
        %v3104 = vpack.c.b16 %v1830, %v1828
        %v3105 = vpack.c.b16 %v1833, %v1831
        %v3106 = vpack.c.b16 %v1834, %v1832
        %v3107 = vpack.c.b16 %v1837, %v1835
        %v3108 = vpack.c.b16 %v1838, %v1836
        %v3109 = vpack.c.b16 %v1841, %v1839
        %v3110 = vpack.c.b16 %v1842, %v1840
        %v3111 = vpack.c.b16 %v1845, %v1843
        %v3112 = vpack.c.b16 %v1846, %v1844
        %v3113 = vpack.c.b16 %v1849, %v1847
        %v3114 = vpack.c.b16 %v1850, %v1848
        %v3115 = vpack.c.b16 %v1853, %v1851
        %v3116 = vpack.c.b16 %v1854, %v1852
        %v3117 = vpack.c.b16 %v1857, %v1855
        %v3118 = vpack.c.b16 %v1858, %v1856
        %v3119 = vpack.c.b16 %v1861, %v1859
        %v3120 = vpack.c.b16 %v1862, %v1860
        %v3121 = vpack.c.b16 %v1865, %v1863
        %v3122 = vpack.c.b16 %v1866, %v1864
        %v3123 = vpack.c.b16 %v1869, %v1867
        %v3124 = vpack.c.b16 %v1870, %v1868
        %v3125 = vpack.c.b16 %v1873, %v1871
        %v3126 = vpack.c.b16 %v1874, %v1872
        %v3127 = vpack.c.b16 %v1877, %v1875
        %v3128 = vpack.c.b16 %v1878, %v1876
        %v3129 = vpack.c.b16 %v1881, %v1879
        %v3130 = vpack.c.b16 %v1882, %v1880
        %v3131 = vpack.c.b16 %v1885, %v1883
        %v3132 = vpack.c.b16 %v1886, %v1884
        %v3133 = vpack.c.b16 %v1889, %v1887
        %v3134 = vpack.c.b16 %v1890, %v1888
        %v3135 = vpack.c.b16 %v1893, %v1891
        %v3136 = vpack.c.b16 %v1894, %v1892
        %v3137 = vpack.c.b16 %v1897, %v1895
        %v3138 = vpack.c.b16 %v1898, %v1896
        %v3139 = vpack.c.b16 %v1901, %v1899
        %v3140 = vpack.c.b16 %v1902, %v1900
        %v3141 = vpack.c.b16 %v1905, %v1903
        %v3142 = vpack.c.b16 %v1906, %v1904
        %v3143 = vpack.c.b16 %v1909, %v1907
        %v3144 = vpack.c.b16 %v1910, %v1908
        %v3145 = vpack.c.b16 %v1913, %v1911
        %v3146 = vpack.c.b16 %v1914, %v1912
        %v3147 = vpack.c.b16 %v1917, %v1915
        %v3148 = vpack.c.b16 %v1918, %v1916
        %v3149 = vpack.c.b16 %v1921, %v1919
        %v3150 = vpack.c.b16 %v1922, %v1920
        %v3151 = vpack.c.b16 %v1925, %v1923
        %v3152 = vpack.c.b16 %v1926, %v1924
        %v3153 = vpack.c.b16 %v1929, %v1927
        %v3154 = vpack.c.b16 %v1930, %v1928
        %v3155 = vpack.c.b16 %v1933, %v1931
        %v3156 = vpack.c.b16 %v1934, %v1932
        %v3157 = vpack.c.b16 %v1937, %v1935
        %v3158 = vpack.c.b16 %v1938, %v1936
        %v3159 = vpack.c.b16 %v1941, %v1939
        %v3160 = vpack.c.b16 %v1942, %v1940
        %v3161 = vpack.c.b16 %v1945, %v1943
        %v3162 = vpack.c.b16 %v1946, %v1944
        %v3163 = vpack.c.b16 %v1949, %v1947
        %v3164 = vpack.c.b16 %v1950, %v1948
        %v3165 = vpack.c.b16 %v1953, %v1951
        %v3166 = vpack.c.b16 %v1954, %v1952
        %v3167 = vpack.c.b16 %v1957, %v1955
        %v3168 = vpack.c.b16 %v1958, %v1956
        %v3169 = vpack.c.b16 %v1961, %v1959
        %v3170 = vpack.c.b16 %v1962, %v1960
        %v3171 = vpack.c.b16 %v1965, %v1963
        %v3172 = vpack.c.b16 %v1966, %v1964
        %v3173 = vpack.c.b16 %v1969, %v1967
        %v3174 = vpack.c.b16 %v1970, %v1968
        %v3175 = vpack.c.b16 %v1973, %v1971
        %v3176 = vpack.c.b16 %v1974, %v1972
        %v3177 = vpack.c.b16 %v1977, %v1975
        %v3178 = vpack.c.b16 %v1978, %v1976
        %v3179 = vpack.c.b16 %v1981, %v1979
        %v3180 = vpack.c.b16 %v1982, %v1980
        %v3181 = vpack.c.b16 %v1985, %v1983
        %v3182 = vpack.c.b16 %v1986, %v1984
        %v3183 = vpack.c.b16 %v1989, %v1987
        %v3184 = vpack.c.b16 %v1990, %v1988
        %v3185 = vpack.c.b16 %v1993, %v1991
        %v3186 = vpack.c.b16 %v1994, %v1992
        %v3187 = vpack.c.b16 %v1997, %v1995
        %v3188 = vpack.c.b16 %v1998, %v1996
        %v3189 = vpack.c.b16 %v2001, %v1999
        %v3190 = vpack.c.b16 %v2002, %v2000
        %v3191 = vpack.c.b16 %v2005, %v2003
        %v3192 = vpack.c.b16 %v2006, %v2004
        %v3193 = vpack.c.b16 %v2009, %v2007
        %v3194 = vpack.c.b16 %v2010, %v2008
        %v3195 = vpack.c.b16 %v2013, %v2011
        %v3196 = vpack.c.b16 %v2014, %v2012
        %v3197 = vpack.c.b16 %v2017, %v2015
        %v3198 = vpack.c.b16 %v2018, %v2016
        %v3199 = vpack.c.b16 %v2021, %v2019
        %v3200 = vpack.c.b16 %v2022, %v2020
        %v3201 = vpack.c.b16 %v2025, %v2023
        %v3202 = vpack.c.b16 %v2026, %v2024
        %v3203 = vpack.c.b16 %v2029, %v2027
        %v3204 = vpack.c.b16 %v2030, %v2028
        %v3205 = vpack.c.b16 %v2033, %v2031
        %v3206 = vpack.c.b16 %v2034, %v2032
        %v3207 = vpack.c.b16 %v2037, %v2035
        %v3208 = vpack.c.b16 %v2038, %v2036
        %v3209 = vpack.c.b16 %v2041, %v2039
        %v3210 = vpack.c.b16 %v2042, %v2040
        %v3211 = vpack.c.b16 %v2045, %v2043
        %v3212 = vpack.c.b16 %v2046, %v2044
        %v3213 = vpack.c.b16 %v2049, %v2047
        %v3214 = vpack.c.b16 %v2050, %v2048
        %v3215 = vpack.c.b16 %v2053, %v2051
        %v3216 = vpack.c.b16 %v2054, %v2052
        %v3217 = vpack.c.b16 %v2057, %v2055
        %v3218 = vpack.c.b16 %v2058, %v2056
        %v3219 = vpack.c.b16 %v2061, %v2059
        %v3220 = vpack.c.b16 %v2062, %v2060
        %v3221 = vpack.c.b16 %v2065, %v2063
        %v3222 = vpack.c.b16 %v2066, %v2064
        %v3223 = vpack.c.b16 %v2069, %v2067
        %v3224 = vpack.c.b16 %v2070, %v2068
        %v3225 = vpack.c.b16 %v2073, %v2071
        %v3226 = vpack.c.b16 %v2074, %v2072
        %v3227 = vpack.c.b16 %v2077, %v2075
        %v3228 = vpack.c.b16 %v2078, %v2076
        %v3229 = vpack.c.b16 %v2081, %v2079
        %v3230 = vpack.c.b16 %v2082, %v2080
        %v3231 = vpack.c.b16 %v2085, %v2083
        %v3232 = vpack.c.b16 %v2086, %v2084
        %v3233 = vpack.c.b16 %v2089, %v2087
        %v3234 = vpack.c.b16 %v2090, %v2088
        %v3235 = vpack.c.b16 %v2093, %v2091
        %v3236 = vpack.c.b16 %v2094, %v2092
        %v3237 = vpack.c.b16 %v2097, %v2095
        %v3238 = vpack.c.b16 %v2098, %v2096
        %v3239 = vpack.c.b16 %v2101, %v2099
        %v3240 = vpack.c.b16 %v2102, %v2100
        %v3241 = vpack.c.b16 %v2105, %v2103
        %v3242 = vpack.c.b16 %v2106, %v2104
        %v3243 = vpack.c.b16 %v2109, %v2107
        %v3244 = vpack.c.b16 %v2110, %v2108
        %v3245 = vpack.c.b16 %v2113, %v2111
        %v3246 = vpack.c.b16 %v2114, %v2112
        %v3247 = vpack.c.b16 %v2117, %v2115
        %v3248 = vpack.c.b16 %v2118, %v2116
        %v3249 = vpack.c.b16 %v2121, %v2119
        %v3250 = vpack.c.b16 %v2122, %v2120
        %v3251 = vpack.c.b16 %v2125, %v2123
        %v3252 = vpack.c.b16 %v2126, %v2124
        %v3253 = vpack.c.b16 %v2129, %v2127
        %v3254 = vpack.c.b16 %v2130, %v2128
        %v3255 = vpack.c.b16 %v2133, %v2131
        %v3256 = vpack.c.b16 %v2134, %v2132
        %v3257 = vpack.c.b16 %v2137, %v2135
        %v3258 = vpack.c.b16 %v2138, %v2136
        %v3259 = vpack.c.b16 %v2141, %v2139
        %v3260 = vpack.c.b16 %v2142, %v2140
        %v3261 = vpack.c.b16 %v2145, %v2143
        %v3262 = vpack.c.b16 %v2146, %v2144
        %v3263 = vpack.c.b16 %v2149, %v2147
        %v3264 = vpack.c.b16 %v2150, %v2148
        %v3265 = vpack.c.b16 %v2153, %v2151
        %v3266 = vpack.c.b16 %v2154, %v2152
        %v3267 = vpack.c.b16 %v2157, %v2155
        %v3268 = vpack.c.b16 %v2158, %v2156
        %v3269 = vpack.c.b16 %v2161, %v2159
        %v3270 = vpack.c.b16 %v2162, %v2160
        %v3271 = vpack.c.b16 %v2165, %v2163
        %v3272 = vpack.c.b16 %v2166, %v2164
        %v3273 = vpack.c.b16 %v2169, %v2167
        %v3274 = vpack.c.b16 %v2170, %v2168
        %v3275 = vpack.c.b16 %v2173, %v2171
        %v3276 = vpack.c.b16 %v2174, %v2172
        %v3277 = vpack.c.b16 %v2177, %v2175
        %v3278 = vpack.c.b16 %v2178, %v2176
        %v3279 = vpack.c.b16 %v2181, %v2179
        %v3280 = vpack.c.b16 %v2182, %v2180
        %v3281 = vpack.c.b16 %v2185, %v2183
        %v3282 = vpack.c.b16 %v2186, %v2184
        %v3283 = vpack.c.b16 %v2189, %v2187
        %v3284 = vpack.c.b16 %v2190, %v2188
        %v3285 = vpack.c.b16 %v2193, %v2191
        %v3286 = vpack.c.b16 %v2194, %v2192
        %v3287 = vpack.c.b16 %v2197, %v2195
        %v3288 = vpack.c.b16 %v2198, %v2196
        %v3289 = vpack.c.b16 %v2201, %v2199
        %v3290 = vpack.c.b16 %v2202, %v2200
        %v3291 = vpack.c.b16 %v2205, %v2203
        %v3292 = vpack.c.b16 %v2206, %v2204
        %v3293 = vpack.c.b16 %v2209, %v2207
        %v3294 = vpack.c.b16 %v2210, %v2208
        %v3295 = vpack.c.b16 %v2213, %v2211
        %v3296 = vpack.c.b16 %v2214, %v2212
        %v3297 = vpack.c.b16 %v2217, %v2215
        %v3298 = vpack.c.b16 %v2218, %v2216
        %v3299 = vpack.c.b16 %v2221, %v2219
        %v3300 = vpack.c.b16 %v2222, %v2220
        %v3301 = vpack.c.b16 %v2225, %v2223
        %v3302 = vpack.c.b16 %v2226, %v2224
        %v3303 = vpack.c.b16 %v2229, %v2227
        %v3304 = vpack.c.b16 %v2230, %v2228
        %v3305 = vpack.c.b16 %v2233, %v2231
        %v3306 = vpack.c.b16 %v2234, %v2232
        %v3307 = vpack.c.b16 %v2237, %v2235
        %v3308 = vpack.c.b16 %v2238, %v2236
        %v3309 = vpack.c.b16 %v2241, %v2239
        %v3310 = vpack.c.b16 %v2242, %v2240
        %v3311 = vpack.c.b16 %v2245, %v2243
        %v3312 = vpack.c.b16 %v2246, %v2244
        %v3313 = vpack.c.b16 %v2249, %v2247
        %v3314 = vpack.c.b16 %v2250, %v2248
        %v3315 = vpack.c.b16 %v2253, %v2251
        %v3316 = vpack.c.b16 %v2254, %v2252
        %v3317 = vpack.c.b16 %v2257, %v2255
        %v3318 = vpack.c.b16 %v2258, %v2256
        %v3319 = vpack.c.b16 %v2261, %v2259
        %v3320 = vpack.c.b16 %v2262, %v2260
        %v3321 = vpack.c.b16 %v2265, %v2263
        %v3322 = vpack.c.b16 %v2266, %v2264
        %v3323 = vpack.c.b16 %v2269, %v2267
        %v3324 = vpack.c.b16 %v2270, %v2268
        %v3325 = vpack.c.b16 %v2273, %v2271
        %v3326 = vpack.c.b16 %v2274, %v2272
        %v3327 = vpack.c.b16 %v2277, %v2275
        %v3328 = vpack.c.b16 %v2278, %v2276
        %v3329 = vpack.c.b16 %v2281, %v2279
        %v3330 = vpack.c.b16 %v2282, %v2280
        %v3331 = vpack.c.b16 %v2285, %v2283
        %v3332 = vpack.c.b16 %v2286, %v2284
        %v3333 = vpack.c.b16 %v2289, %v2287
        %v3334 = vpack.c.b16 %v2290, %v2288
        %v3335 = vpack.c.b16 %v2293, %v2291
        %v3336 = vpack.c.b16 %v2294, %v2292
        %v3337 = vpack.c.b16 %v2297, %v2295
        %v3338 = vpack.c.b16 %v2298, %v2296
        %v3339 = vpack.c.b16 %v2301, %v2299
        %v3340 = vpack.c.b16 %v2302, %v2300
        %v3341 = vpack.c.b16 %v2305, %v2303
        %v3342 = vpack.c.b16 %v2306, %v2304
        %v3343 = vpack.c.b16 %v2309, %v2307
        %v3344 = vpack.c.b16 %v2310, %v2308
        %v3345 = vpack.c.b16 %v2313, %v2311
        %v3346 = vpack.c.b16 %v2314, %v2312
        %v3347 = vpack.c.b16 %v2317, %v2315
        %v3348 = vpack.c.b16 %v2318, %v2316
        %v3349 = vpack.c.b16 %v2321, %v2319
        %v3350 = vpack.c.b16 %v2322, %v2320
        %v3351 = vpack.c.b16 %v2325, %v2323
        %v3352 = vpack.c.b16 %v2326, %v2324
        %v3353 = vpack.c.b16 %v2329, %v2327
        %v3354 = vpack.c.b16 %v2330, %v2328
        %v3355 = vpack.c.b16 %v2333, %v2331
        %v3356 = vpack.c.b16 %v2334, %v2332
        %v3357 = vpack.c.b16 %v2337, %v2335
        %v3358 = vpack.c.b16 %v2338, %v2336
        %v3359 = vpack.c.b16 %v2341, %v2339
        %v3360 = vpack.c.b16 %v2342, %v2340
        %v3361 = vpack.c.b16 %v2345, %v2343
        %v3362 = vpack.c.b16 %v2346, %v2344
        %v3363 = vpack.c.b16 %v2349, %v2347
        %v3364 = vpack.c.b16 %v2350, %v2348
        %v3365 = vpack.c.b16 %v2353, %v2351
        %v3366 = vpack.c.b16 %v2354, %v2352
        %v3367 = vpack.c.b16 %v2357, %v2355
        %v3368 = vpack.c.b16 %v2358, %v2356
        %v3369 = vpack.c.b16 %v2361, %v2359
        %v3370 = vpack.c.b16 %v2362, %v2360
        %v3371 = vpack.c.b16 %v2365, %v2363
        %v3372 = vpack.c.b16 %v2366, %v2364
        %v3373 = vpack.c.b16 %v2369, %v2367
        %v3374 = vpack.c.b16 %v2370, %v2368
        %v3375 = vpack.c.b16 %v2373, %v2371
        %v3376 = vpack.c.b16 %v2374, %v2372
        %v3377 = vpack.c.b16 %v2377, %v2375
        %v3378 = vpack.c.b16 %v2378, %v2376
        %v3379 = vpack.c.b16 %v2381, %v2379
        %v3380 = vpack.c.b16 %v2382, %v2380
        %v3381 = vpack.c.b16 %v2385, %v2383
        %v3382 = vpack.c.b16 %v2386, %v2384
        %v3383 = vpack.c.b16 %v2389, %v2387
        %v3384 = vpack.c.b16 %v2390, %v2388
        %v3385 = vpack.c.b16 %v2393, %v2391
        %v3386 = vpack.c.b16 %v2394, %v2392
        %v3387 = vpack.c.b16 %v2397, %v2395
        %v3388 = vpack.c.b16 %v2398, %v2396
        %v3389 = vpack.c.b16 %v2401, %v2399
        %v3390 = vpack.c.b16 %v2402, %v2400
        %v3391 = vpack.c.b16 %v2405, %v2403
        %v3392 = vpack.c.b16 %v2406, %v2404
        %v3393 = vpack.c.b16 %v2409, %v2407
        %v3394 = vpack.c.b16 %v2410, %v2408
        %v3395 = vpack.c.b16 %v2413, %v2411
        %v3396 = vpack.c.b16 %v2414, %v2412
        %v3397 = vpack.c.b16 %v2417, %v2415
        %v3398 = vpack.c.b16 %v2418, %v2416
        %v3399 = vpack.c.b16 %v2421, %v2419
        %v3400 = vpack.c.b16 %v2422, %v2420
        %v3401 = vpack.c.b16 %v2425, %v2423
        %v3402 = vpack.c.b16 %v2426, %v2424
        %v3403 = vpack.c.b16 %v2429, %v2427
        %v3404 = vpack.c.b16 %v2430, %v2428
        %v3405 = vpack.c.b16 %v2433, %v2431
        %v3406 = vpack.c.b16 %v2434, %v2432
        %v3407 = vpack.c.b16 %v2437, %v2435
        %v3408 = vpack.c.b16 %v2438, %v2436
        %v3409 = vpack.c.b16 %v2441, %v2439
        %v3410 = vpack.c.b16 %v2442, %v2440
        %v3411 = vpack.c.b16 %v2445, %v2443
        %v3412 = vpack.c.b16 %v2446, %v2444
        %v3413 = vpack.c.b16 %v2449, %v2447
        %v3414 = vpack.c.b16 %v2450, %v2448
        %v3415 = vpack.c.b16 %v2453, %v2451
        %v3416 = vpack.c.b16 %v2454, %v2452
        %v3417 = vpack.c.b16 %v2457, %v2455
        %v3418 = vpack.c.b16 %v2458, %v2456
        %v3419 = vpack.c.b16 %v2461, %v2459
        %v3420 = vpack.c.b16 %v2462, %v2460
        %v3421 = vpack.c.b16 %v2465, %v2463
        %v3422 = vpack.c.b16 %v2466, %v2464
        %v3423 = vpack.c.b16 %v2469, %v2467
        %v3424 = vpack.c.b16 %v2470, %v2468
        %v3425 = vpack.c.b16 %v2473, %v2471
        %v3426 = vpack.c.b16 %v2474, %v2472
        %v3427 = vpack.c.b16 %v2477, %v2475
        %v3428 = vpack.c.b16 %v2478, %v2476
        %v3429 = vpack.c.b16 %v2481, %v2479
        %v3430 = vpack.c.b16 %v2482, %v2480
        %v3431 = vpack.c.b16 %v2485, %v2483
        %v3432 = vpack.c.b16 %v2486, %v2484
        %v3433 = vpack.c.b16 %v2489, %v2487
        %v3434 = vpack.c.b16 %v2490, %v2488
        %v3435 = vpack.c.b16 %v2493, %v2491
        %v3436 = vpack.c.b16 %v2494, %v2492
        %v3437 = vpack.c.b16 %v2497, %v2495
        %v3438 = vpack.c.b16 %v2498, %v2496
        %v3439 = vpack.c.b16 %v2501, %v2499
        %v3440 = vpack.c.b16 %v2502, %v2500
        %v3441 = vpack.c.b16 %v2505, %v2503
        %v3442 = vpack.c.b16 %v2506, %v2504
        %v3443 = vpack.c.b16 %v2509, %v2507
        %v3444 = vpack.c.b16 %v2510, %v2508
        %v3445 = vpack.c.b16 %v2513, %v2511
        %v3446 = vpack.c.b16 %v2514, %v2512
        %v3447 = vpack.c.b16 %v2517, %v2515
        %v3448 = vpack.c.b16 %v2518, %v2516
        %v3449 = vpack.c.b16 %v2521, %v2519
        %v3450 = vpack.c.b16 %v2522, %v2520
        %v3451 = vpack.c.b16 %v2525, %v2523
        %v3452 = vpack.c.b16 %v2526, %v2524
        %v3453 = vpack.c.b16 %v2529, %v2527
        %v3454 = vpack.c.b16 %v2530, %v2528
        %v3455 = vpack.c.b16 %v2533, %v2531
        %v3456 = vpack.c.b16 %v2534, %v2532
        %v3457 = vpack.c.b16 %v2537, %v2535
        %v3458 = vpack.c.b16 %v2538, %v2536
        %v3459 = vpack.c.b16 %v2541, %v2539
        %v3460 = vpack.c.b16 %v2542, %v2540
        %v3461 = vpack.c.b16 %v2545, %v2543
        %v3462 = vpack.c.b16 %v2546, %v2544
        %v3463 = vpack.c.b16 %v2549, %v2547
        %v3464 = vpack.c.b16 %v2550, %v2548
        %v3465 = vpack.c.b16 %v2553, %v2551
        %v3466 = vpack.c.b16 %v2554, %v2552
        %v3467 = vpack.c.b16 %v2557, %v2555
        %v3468 = vpack.c.b16 %v2558, %v2556
        %v3469 = vpack.c.b16 %v2561, %v2559
        %v3470 = vpack.c.b16 %v2562, %v2560
        %v3471 = vpack.c.b16 %v2565, %v2563
        %v3472 = vpack.c.b16 %v2566, %v2564
        %v3473 = vpack.c.b16 %v2569, %v2567
        %v3474 = vpack.c.b16 %v2570, %v2568
        %v3475 = vpack.c.b16 %v2573, %v2571
        %v3476 = vpack.c.b16 %v2574, %v2572
        %v3477 = vpack.c.b16 %v2577, %v2575
        %v3478 = vpack.c.b16 %v2578, %v2576
        %v3479 = vpack.c.b16 %v2581, %v2579
        %v3480 = vpack.c.b16 %v2582, %v2580
        %v3481 = vpack.c.b16 %v2585, %v2583
        %v3482 = vpack.c.b16 %v2586, %v2584
        %v3483 = vpack.c.b16 %v2589, %v2587
        %v3484 = vpack.c.b16 %v2590, %v2588
        %v3485 = vpack.c.b16 %v2593, %v2591
        %v3486 = vpack.c.b16 %v2594, %v2592
        %v3487 = vpack.c.b16 %v2597, %v2595
        %v3488 = vpack.c.b16 %v2598, %v2596
        %v3489 = vpack.c.b16 %v2601, %v2599
        %v3490 = vpack.c.b16 %v2602, %v2600
        %v3491 = vpack.c.b16 %v2605, %v2603
        %v3492 = vpack.c.b16 %v2606, %v2604
        %v3493 = vpack.c.b16 %v2609, %v2607
        %v3494 = vpack.c.b16 %v2610, %v2608
        %v3495 = vpack.c.b16 %v2613, %v2611
        %v3496 = vpack.c.b16 %v2614, %v2612
        %v3497 = vpack.c.b16 %v2617, %v2615
        %v3498 = vpack.c.b16 %v2618, %v2616
        %v3499 = vpack.c.b16 %v2621, %v2619
        %v3500 = vpack.c.b16 %v2622, %v2620
        %v3501 = vpack.c.b16 %v2625, %v2623
        %v3502 = vpack.c.b16 %v2626, %v2624
        %v3503 = vpack.c.b16 %v2629, %v2627
        %v3504 = vpack.c.b16 %v2630, %v2628
        %v3505 = vpack.c.b16 %v2633, %v2631
        %v3506 = vpack.c.b16 %v2634, %v2632
        %v3507 = vpack.c.b16 %v2637, %v2635
        %v3508 = vpack.c.b16 %v2638, %v2636
        %v3509 = vpack.c.b16 %v2641, %v2639
        %v3510 = vpack.c.b16 %v2642, %v2640
        %v3511 = vpack.c.b16 %v2645, %v2643
        %v3512 = vpack.c.b16 %v2646, %v2644
        %v3513 = vpack.c.b16 %v2649, %v2647
        %v3514 = vpack.c.b16 %v2650, %v2648
        %v3515 = vpack.c.b16 %v2653, %v2651
        %v3516 = vpack.c.b16 %v2654, %v2652
        %v3517 = vpack.c.b16 %v2657, %v2655
        %v3518 = vpack.c.b16 %v2658, %v2656
        %v3519 = vpack.c.b16 %v2661, %v2659
        %v3520 = vpack.c.b16 %v2662, %v2660
        %v3521 = vpack.c.b16 %v2665, %v2663
        %v3522 = vpack.c.b16 %v2666, %v2664
        %v3523 = vpack.c.b16 %v2669, %v2667
        %v3524 = vpack.c.b16 %v2670, %v2668
        %v3525 = vpack.c.b16 %v2673, %v2671
        %v3526 = vpack.c.b16 %v2674, %v2672
        %v3527 = vpack.c.b16 %v2677, %v2675
        %v3528 = vpack.c.b16 %v2678, %v2676
        %v3529 = vpack.c.b16 %v2681, %v2679
        %v3530 = vpack.c.b16 %v2682, %v2680
        %v3531 = vpack.c.b16 %v2685, %v2683
        %v3532 = vpack.c.b16 %v2686, %v2684
        %v3533 = vpack.c.b16 %v2689, %v2687
        %v3534 = vpack.c.b16 %v2690, %v2688
        %v3535 = vpack.c.b16 %v2693, %v2691
        %v3536 = vpack.c.b16 %v2694, %v2692
        %v3537 = vpack.c.b16 %v2697, %v2695
        %v3538 = vpack.c.b16 %v2698, %v2696
        %v3539 = vpack.c.b16 %v2701, %v2699
        %v3540 = vpack.c.b16 %v2702, %v2700
        %v3541 = vpack.c.b16 %v2705, %v2703
        %v3542 = vpack.c.b16 %v2706, %v2704
        %v3543 = vpack.c.b16 %v2709, %v2707
        %v3544 = vpack.c.b16 %v2710, %v2708
        %v3545 = vpack.c.b16 %v2713, %v2711
        %v3546 = vpack.c.b16 %v2714, %v2712
        %v3547 = vpack.c.b16 %v2717, %v2715
        %v3548 = vpack.c.b16 %v2718, %v2716
        %v3549 = vpack.c.b16 %v2721, %v2719
        %v3550 = vpack.c.b16 %v2722, %v2720
        %v3551 = vpack.c.b16 %v2725, %v2723
        %v3552 = vpack.c.b16 %v2726, %v2724
        %v3553 = vpack.c.b16 %v2729, %v2727
        %v3554 = vpack.c.b16 %v2730, %v2728
        %v3555 = vpack.c.b16 %v2733, %v2731
        %v3556 = vpack.c.b16 %v2734, %v2732
        %v3557 = vpack.c.b16 %v2737, %v2735
        %v3558 = vpack.c.b16 %v2738, %v2736
        %v3559 = vpack.c.b16 %v2741, %v2739
        %v3560 = vpack.c.b16 %v2742, %v2740
        %v3561 = vpack.c.b16 %v2745, %v2743
        %v3562 = vpack.c.b16 %v2746, %v2744
        %v3563 = vpack.c.b16 %v2749, %v2747
        %v3564 = vpack.c.b16 %v2750, %v2748
        %v3565 = vpack.c.b16 %v2753, %v2751
        %v3566 = vpack.c.b16 %v2754, %v2752
        %v3567 = vpack.c.b16 %v2757, %v2755
        %v3568 = vpack.c.b16 %v2758, %v2756
        %v3569 = vpack.c.b16 %v2761, %v2759
        %v3570 = vpack.c.b16 %v2762, %v2760
        %v3571 = vpack.c.b16 %v2765, %v2763
        %v3572 = vpack.c.b16 %v2766, %v2764
        %v3573 = vpack.c.b16 %v2769, %v2767
        %v3574 = vpack.c.b16 %v2770, %v2768
        %v3575 = vpack.c.b16 %v2773, %v2771
        %v3576 = vpack.c.b16 %v2774, %v2772
        %v3577 = vpack.c.b16 %v2777, %v2775
        %v3578 = vpack.c.b16 %v2778, %v2776
        %v3579 = vpack.c.b16 %v2781, %v2779
        %v3580 = vpack.c.b16 %v2782, %v2780
        %v3581 = vpack.c.b16 %v2785, %v2783
        %v3582 = vpack.c.b16 %v2786, %v2784
        %v3583 = vpack.c.b16 %v2789, %v2787
        %v3584 = vpack.c.b16 %v2790, %v2788
        %v3585 = vpack.c.b16 %v2793, %v2791
        %v3586 = vpack.c.b16 %v2794, %v2792
        %v3587 = vpack.c.b16 %v2797, %v2795
        %v3588 = vpack.c.b16 %v2798, %v2796
        %v3589 = vpack.c.b16 %v2801, %v2799
        %v3590 = vpack.c.b16 %v2802, %v2800
        %v3591 = vpack.c.b16 %v2805, %v2803
        %v3592 = vpack.c.b16 %v2806, %v2804
        %v3593 = vpack.c.b16 %v2809, %v2807
        %v3594 = vpack.c.b16 %v2810, %v2808
        %v3595 = vpack.c.b16 %v2813, %v2811
        %v3596 = vpack.c.b16 %v2814, %v2812
        %v3597 = vpack.c.b16 %v2817, %v2815
        %v3598 = vpack.c.b16 %v2818, %v2816
        %v3599 = vpack.c.b16 %v2821, %v2819
        %v3600 = vpack.c.b16 %v2822, %v2820
        %v3601 = vpack.c.b16 %v2825, %v2823
        %v3602 = vpack.c.b16 %v2826, %v2824
        %v3603 = vpack.c.b16 %v2829, %v2827
        %v3604 = vpack.c.b16 %v2830, %v2828
        %v3605 = vpack.c.b16 %v2833, %v2831
        %v3606 = vpack.c.b16 %v2834, %v2832
        %v3607 = vpack.c.b16 %v2837, %v2835
        %v3608 = vpack.c.b16 %v2838, %v2836
        %v3609 = vpack.c.b16 %v2841, %v2839
        %v3610 = vpack.c.b16 %v2842, %v2840
        %v3611 = vpack.c.b16 %v2845, %v2843
        %v3612 = vpack.c.b16 %v2846, %v2844
        %v3613 = vpack.c.b16 %v2849, %v2847
        %v3614 = vpack.c.b16 %v2850, %v2848
        %v3615 = vpack.c.b16 %v2853, %v2851
        %v3616 = vpack.c.b16 %v2854, %v2852
        %v3617 = vpack.c.b16 %v2857, %v2855
        %v3618 = vpack.c.b16 %v2858, %v2856
        %v3619 = vpack.c.b16 %v2861, %v2859
        %v3620 = vpack.c.b16 %v2862, %v2860
        %v3621 = vpack.c.b16 %v2865, %v2863
        %v3622 = vpack.c.b16 %v2866, %v2864
        %v3623 = vpack.c.b16 %v2869, %v2867
        %v3624 = vpack.c.b16 %v2870, %v2868
        %v3625 = vpack.c.b16 %v2873, %v2871
        %v3626 = vpack.c.b16 %v2874, %v2872
        %v3627 = vpack.c.b16 %v2877, %v2875
        %v3628 = vpack.c.b16 %v2878, %v2876
        %v3629 = vpack.c.b16 %v2881, %v2879
        %v3630 = vpack.c.b16 %v2882, %v2880
        %v3631 = vpack.c.b16 %v2885, %v2883
        %v3632 = vpack.c.b16 %v2886, %v2884
        %v3633 = vpack.c.b16 %v2889, %v2887
        %v3634 = vpack.c.b16 %v2890, %v2888
        %v3635 = vpack.c.b16 %v2893, %v2891
        %v3636 = vpack.c.b16 %v2894, %v2892
        %v3637 = vpack.c.b16 %v2897, %v2895
        %v3638 = vpack.c.b16 %v2898, %v2896
        %v3639 = vpack.c.b16 %v2901, %v2899
        %v3640 = vpack.c.b16 %v2902, %v2900
        %v3641 = vpack.c.b16 %v2905, %v2903
        %v3642 = vpack.c.b16 %v2906, %v2904
        %v3643 = vpack.c.b16 %v2909, %v2907
        %v3644 = vpack.c.b16 %v2910, %v2908
        %v3645 = vpack.c.b16 %v2913, %v2911
        %v3646 = vpack.c.b16 %v2914, %v2912
        %v3647 = vpack.c.b16 %v2917, %v2915
        %v3648 = vpack.c.b16 %v2918, %v2916
        %v3649 = vpack.c.b16 %v2921, %v2919
        %v3650 = vpack.c.b16 %v2922, %v2920
        %v3651 = vpack.c.b16 %v2925, %v2923
        %v3652 = vpack.c.b16 %v2926, %v2924
        %v3653 = vpack.c.b16 %v2929, %v2927
        %v3654 = vpack.c.b16 %v2930, %v2928
        %v3655 = vpack.c.b16 %v2933, %v2931
        %v3656 = vpack.c.b16 %v2934, %v2932
        %v3657 = vpack.c.b16 %v2937, %v2935
        %v3658 = vpack.c.b16 %v2938, %v2936
        %v3659 = vpack.c.b16 %v2941, %v2939
        %v3660 = vpack.c.b16 %v2942, %v2940
        %v3661 = vpack.c.b16 %v2945, %v2943
        %v3662 = vpack.c.b16 %v2946, %v2944
        %v3663 = vpack.c.b16 %v2949, %v2947
        %v3664 = vpack.c.b16 %v2950, %v2948
        %v3665 = vpack.c.b16 %v2953, %v2951
        %v3666 = vpack.c.b16 %v2954, %v2952
        %v3667 = vpack.c.b16 %v2957, %v2955
        %v3668 = vpack.c.b16 %v2958, %v2956
        %v3669 = vpack.c.b16 %v2961, %v2959
        %v3670 = vpack.c.b16 %v2962, %v2960
        %v3671 = vpack.c.b16 %v2965, %v2963
        %v3672 = vpack.c.b16 %v2966, %v2964
        %v3673 = vpack.c.b16 %v2969, %v2967
        %v3674 = vpack.c.b16 %v2970, %v2968
        %v3675 = vpack.c.b16 %v2973, %v2971
        %v3676 = vpack.c.b16 %v2974, %v2972
        %v3677 = vpack.c.b16 %v2977, %v2975
        %v3678 = vpack.c.b16 %v2978, %v2976
        %v3679 = vpack.c.b16 %v2981, %v2979
        %v3680 = vpack.c.b16 %v2982, %v2980
        %v3681 = vpack.c.b16 %v2985, %v2983
        %v3682 = vpack.c.b16 %v2986, %v2984
        %v3683 = vpack.c.b16 %v2989, %v2987
        %v3684 = vpack.c.b16 %v2990, %v2988
        %v3685 = vpack.c.b16 %v2993, %v2991
        %v3686 = vpack.c.b16 %v2994, %v2992
        %v3687 = vpack.c.b16 %v2997, %v2995
        %v3688 = vpack.c.b16 %v2998, %v2996
        %v3689 = vpack.c.b16 %v3001, %v2999
        %v3690 = vpack.c.b16 %v3002, %v3000
        %v3691 = vpack.c.b16 %v3005, %v3003
        %v3692 = vpack.c.b16 %v3006, %v3004
        %v3693 = vpack.c.b16 %v3009, %v3007
        %v3694 = vpack.c.b16 %v3010, %v3008
        %v3695 = vpack.c.b16 %v3013, %v3011
        %v3696 = vpack.c.b16 %v3014, %v3012
        %v3697 = vpack.c.b16 %v3017, %v3015
        %v3698 = vpack.c.b16 %v3018, %v3016
        %v3699 = vpack.c.b16 %v3021, %v3019
        %v3700 = vpack.c.b16 %v3022, %v3020
        %v3701 = vpack.c.b16 %v3025, %v3023
        %v3702 = vpack.c.b16 %v3026, %v3024
        %v3703 = vpack.c.b16 %v3029, %v3027
        %v3704 = vpack.c.b16 %v3030, %v3028
        %v3705 = vpack.c.b16 %v3033, %v3031
        %v3706 = vpack.c.b16 %v3034, %v3032
        %v3707 = vpack.c.b16 %v3037, %v3035
        %v3708 = vpack.c.b16 %v3038, %v3036
        %v3709 = vpack.c.b16 %v3041, %v3039
        %v3710 = vpack.c.b16 %v3042, %v3040
        %v3711 = vpack.c.b16 %v3045, %v3043
        %v3712 = vpack.c.b16 %v3046, %v3044
        %v3713 = vpack.c.b16 %v3049, %v3047
        %v3714 = vpack.c.b16 %v3050, %v3048
        %v3715 = vpack.c.b16 %v3053, %v3051
        %v3716 = vpack.c.b16 %v3054, %v3052
        %v3717 = vpack.c.b16 %v3057, %v3055
        %v3718 = vpack.c.b16 %v3058, %v3056
        %v3719 = vpack.c.b16 %v3061, %v3059
        %v3720 = vpack.c.b16 %v3062, %v3060
        %v3721 = vpack.c.b16 %v3065, %v3063
        %v3722 = vpack.c.b16 %v3066, %v3064
        %v3723 = vpack.c.b16 %v3069, %v3067
        %v3724 = vpack.c.b16 %v3070, %v3068
        %v3725 = vpack.c.b16 %v3073, %v3071
        %v3726 = vpack.c.b16 %v3074, %v3072
        %v3727 = vpack.c.b16 %v3077, %v3075
        %v3728 = vpack.c.b16 %v3078, %v3076
        %v3729 = vpack.c.b16 %v3081, %v3079
        %v3730 = vpack.c.b16 %v3082, %v3080
        %v3731 = vpack.c.b16 %v3085, %v3083
        %v3732 = vpack.c.b16 %v3086, %v3084
        %v3733 = vpack.c.b16 %v3089, %v3087
        %v3734 = vpack.c.b16 %v3090, %v3088
        %v3735 = vpack.c.b16 %v3093, %v3091
        %v3736 = vpack.c.b16 %v3094, %v3092
        %v3737 = vpack.c.b16 %v3097, %v3095
        %v3738 = vpack.c.b16 %v3098, %v3096
        %4379 = vmatprep.subr.bf16.mxu0 %v3100
        %4380 = vmatpush1.bf16.msra.mxu0 %v3099
        %4381 = vmatprep.subr.bf16.mxu0 %v3102
        %4382 = vmatpush1.bf16.msra.mxu0 %v3101
        %4383 = vmatprep.subr.bf16.mxu0 %v3104
        %4384 = vmatpush1.bf16.msra.mxu0 %v3103
        %4385 = vmatprep.subr.bf16.mxu0 %v3106
        %4386 = vmatpush1.bf16.msra.mxu0 %v3105
        %4387 = vmatprep.subr.bf16.mxu0 %v3108
        %4388 = vmatpush1.bf16.msra.mxu0 %v3107
        %4389 = vmatprep.subr.bf16.mxu0 %v3110
        %4390 = vmatpush1.bf16.msra.mxu0 %v3109
        %4391 = vmatprep.subr.bf16.mxu0 %v3112
        %4392 = vmatpush1.bf16.msra.mxu0 %v3111
        %4393 = vmatprep.subr.bf16.mxu0 %v3114
        %4394 = vmatpush1.bf16.msra.mxu0 %v3113
        %4395 = vmatprep.subr.bf16.mxu0 %v3116
        %4396 = vmatpush1.bf16.msra.mxu0 %v3115
        %4397 = vmatprep.subr.bf16.mxu0 %v3118
        %4398 = vmatpush1.bf16.msra.mxu0 %v3117
        %4399 = vmatprep.subr.bf16.mxu0 %v3120
        %4400 = vmatpush1.bf16.msra.mxu0 %v3119
        %4401 = vmatprep.subr.bf16.mxu0 %v3122
        %4402 = vmatpush1.bf16.msra.mxu0 %v3121
        %4403 = vmatprep.subr.bf16.mxu0 %v3124
        %4404 = vmatpush1.bf16.msra.mxu0 %v3123
        %4405 = vmatprep.subr.bf16.mxu0 %v3126
        %4406 = vmatpush1.bf16.msra.mxu0 %v3125
        %4407 = vmatprep.subr.bf16.mxu0 %v3128
        %4408 = vmatpush1.bf16.msra.mxu0 %v3127
        %4409 = vmatprep.subr.bf16.mxu0 %v3130
        %4410 = vmatpush1.bf16.msra.mxu0 %v3129
        %4411 = vmatprep.mubr.bf16.mxu0 %v931
        %4412 = vmatmul.mubr.bf16.gmra.mrb[0].mxu0 %v917
        %v4413 = vpop.f32.mrb[0].mxu0
        %v4414 = vadd.f32 0.0, %v4413
        %v4415 = vpop.f32.mrb[0].mxu0
        %v4416 = vadd.f32 0.0, %v4415
        %v4417 = vpop.f32.mrb[0].mxu0
        %v4418 = vpop.f32.mrb[0].mxu0
        %4419 = vdwg.mxu0
        %4420 = vmatprep.subr.bf16.mxu0 %v3132
        %4421 = vmatpush1.bf16.msra.mxu0 %v3131
        %4422 = vmatprep.subr.bf16.mxu0 %v3134
        %4423 = vmatpush1.bf16.msra.mxu0 %v3133
        %4424 = vmatprep.subr.bf16.mxu0 %v3136
        %4425 = vmatpush1.bf16.msra.mxu0 %v3135
        %4426 = vmatprep.subr.bf16.mxu0 %v3138
        %4427 = vmatpush1.bf16.msra.mxu0 %v3137
        %4428 = vmatprep.subr.bf16.mxu0 %v3140
        %4429 = vmatpush1.bf16.msra.mxu0 %v3139
        %4430 = vmatprep.subr.bf16.mxu0 %v3142
        %4431 = vmatpush1.bf16.msra.mxu0 %v3141
        %4432 = vmatprep.subr.bf16.mxu0 %v3144
        %4433 = vmatpush1.bf16.msra.mxu0 %v3143
        %4434 = vmatprep.subr.bf16.mxu0 %v3146
        %4435 = vmatpush1.bf16.msra.mxu0 %v3145
        %4436 = vmatprep.subr.bf16.mxu0 %v3148
        %4437 = vmatpush1.bf16.msra.mxu0 %v3147
        %4438 = vmatprep.subr.bf16.mxu0 %v3150
        %4439 = vmatpush1.bf16.msra.mxu0 %v3149
        %4440 = vmatprep.subr.bf16.mxu0 %v3152
        %4441 = vmatpush1.bf16.msra.mxu0 %v3151
        %4442 = vmatprep.subr.bf16.mxu0 %v3154
        %4443 = vmatpush1.bf16.msra.mxu0 %v3153
        %4444 = vmatprep.subr.bf16.mxu0 %v3156
        %4445 = vmatpush1.bf16.msra.mxu0 %v3155
        %4446 = vmatprep.subr.bf16.mxu0 %v3158
        %4447 = vmatpush1.bf16.msra.mxu0 %v3157
        %4448 = vmatprep.subr.bf16.mxu0 %v3160
        %4449 = vmatpush1.bf16.msra.mxu0 %v3159
        %4450 = vmatprep.subr.bf16.mxu0 %v3162
        %4451 = vmatpush1.bf16.msra.mxu0 %v3161
        %4452 = vmatprep.mubr.bf16.mxu0 %v941
        %4453 = vmatmul.mubr.bf16.gmra.mrb[0].mxu0 %v939
        %v4454 = vpop.f32.mrb[0].mxu0
        %v4455 = vadd.f32 %v4414, %v4454
        %v4456 = vpop.f32.mrb[0].mxu0
        %v4457 = vadd.f32 %v4416, %v4456
        %v4458 = vpop.f32.mrb[0].mxu0
        %v4459 = vpop.f32.mrb[0].mxu0
        %4460 = vdwg.mxu0
        %4461 = vmatprep.subr.bf16.mxu0 %v3164
        %4462 = vmatpush1.bf16.msra.mxu0 %v3163
        %4463 = vmatprep.subr.bf16.mxu0 %v3166
        %4464 = vmatpush1.bf16.msra.mxu0 %v3165
        %4465 = vmatprep.subr.bf16.mxu0 %v3168
        %4466 = vmatpush1.bf16.msra.mxu0 %v3167
        %4467 = vmatprep.subr.bf16.mxu0 %v3170
        %4468 = vmatpush1.bf16.msra.mxu0 %v3169
        %4469 = vmatprep.subr.bf16.mxu0 %v3172
        %4470 = vmatpush1.bf16.msra.mxu0 %v3171
        %4471 = vmatprep.subr.bf16.mxu0 %v3174
        %4472 = vmatpush1.bf16.msra.mxu0 %v3173
        %4473 = vmatprep.subr.bf16.mxu0 %v3176
        %4474 = vmatpush1.bf16.msra.mxu0 %v3175
        %4475 = vmatprep.subr.bf16.mxu0 %v3178
        %4476 = vmatpush1.bf16.msra.mxu0 %v3177
        %4477 = vmatprep.subr.bf16.mxu0 %v3180
        %4478 = vmatpush1.bf16.msra.mxu0 %v3179
        %4479 = vmatprep.subr.bf16.mxu0 %v3182
        %4480 = vmatpush1.bf16.msra.mxu0 %v3181
        %4481 = vmatprep.subr.bf16.mxu0 %v3184
        %4482 = vmatpush1.bf16.msra.mxu0 %v3183
        %4483 = vmatprep.subr.bf16.mxu0 %v3186
        %4484 = vmatpush1.bf16.msra.mxu0 %v3185
        %4485 = vmatprep.subr.bf16.mxu0 %v3188
        %4486 = vmatpush1.bf16.msra.mxu0 %v3187
        %4487 = vmatprep.subr.bf16.mxu0 %v3190
        %4488 = vmatpush1.bf16.msra.mxu0 %v3189
        %4489 = vmatprep.subr.bf16.mxu0 %v3192
        %4490 = vmatpush1.bf16.msra.mxu0 %v3191
        %4491 = vmatprep.subr.bf16.mxu0 %v3194
        %4492 = vmatpush1.bf16.msra.mxu0 %v3193
        %4493 = vmatprep.mubr.bf16.mxu0 %v938
        %4494 = vmatmul.mubr.bf16.gmra.mrb[0].mxu0 %v924
        %v4495 = vpop.f32.mrb[0].mxu0
        %v4496 = vadd.f32 %v4455, %v4495
        %v4497 = vpop.f32.mrb[0].mxu0
        %v4498 = vadd.f32 %v4457, %v4497
        %v4499 = vpop.f32.mrb[0].mxu0
        %v4500 = vpop.f32.mrb[0].mxu0
        %4501 = vdwg.mxu0
        %4502 = vmatprep.subr.bf16.mxu0 %v3196
        %4503 = vmatpush1.bf16.msra.mxu0 %v3195
        %4504 = vmatprep.subr.bf16.mxu0 %v3198
        %4505 = vmatpush1.bf16.msra.mxu0 %v3197
        %4506 = vmatprep.subr.bf16.mxu0 %v3200
        %4507 = vmatpush1.bf16.msra.mxu0 %v3199
        %4508 = vmatprep.subr.bf16.mxu0 %v3202
        %4509 = vmatpush1.bf16.msra.mxu0 %v3201
        %4510 = vmatprep.subr.bf16.mxu0 %v3204
        %4511 = vmatpush1.bf16.msra.mxu0 %v3203
        %4512 = vmatprep.subr.bf16.mxu0 %v3206
        %4513 = vmatpush1.bf16.msra.mxu0 %v3205
        %4514 = vmatprep.subr.bf16.mxu0 %v3208
        %4515 = vmatpush1.bf16.msra.mxu0 %v3207
        %4516 = vmatprep.subr.bf16.mxu0 %v3210
        %4517 = vmatpush1.bf16.msra.mxu0 %v3209
        %4518 = vmatprep.subr.bf16.mxu0 %v3212
        %4519 = vmatpush1.bf16.msra.mxu0 %v3211
        %4520 = vmatprep.subr.bf16.mxu0 %v3214
        %4521 = vmatpush1.bf16.msra.mxu0 %v3213
        %4522 = vmatprep.subr.bf16.mxu0 %v3216
        %4523 = vmatpush1.bf16.msra.mxu0 %v3215
        %4524 = vmatprep.subr.bf16.mxu0 %v3218
        %4525 = vmatpush1.bf16.msra.mxu0 %v3217
        %4526 = vmatprep.subr.bf16.mxu0 %v3220
        %4527 = vmatpush1.bf16.msra.mxu0 %v3219
        %4528 = vmatprep.subr.bf16.mxu0 %v3222
        %4529 = vmatpush1.bf16.msra.mxu0 %v3221
        %4530 = vmatprep.subr.bf16.mxu0 %v3224
        %4531 = vmatpush1.bf16.msra.mxu0 %v3223
        %4532 = vmatprep.subr.bf16.mxu0 %v3226
        %4533 = vmatpush1.bf16.msra.mxu0 %v3225
        %4534 = vmatprep.mubr.bf16.mxu0 %v942
        %4535 = vmatmul.mubr.bf16.gmra.mrb[0].mxu0 %v940
        %v4536 = vpop.f32.mrb[0].mxu0
        %v4537 = vadd.f32 %v4496, %v4536
        %v4538 = vpop.f32.mrb[0].mxu0
        %v4539 = vadd.f32 %v4498, %v4538
        %v4540 = vpop.f32.mrb[0].mxu0
        %v4541 = vpop.f32.mrb[0].mxu0
        %4542 = vdwg.mxu0
        %4543 = vmatprep.subr.bf16.mxu0 %v3228
        %4544 = vmatpush1.bf16.msra.mxu0 %v3227
        %4545 = vmatprep.subr.bf16.mxu0 %v3230
        %4546 = vmatpush1.bf16.msra.mxu0 %v3229
        %4547 = vmatprep.subr.bf16.mxu0 %v3232
        %4548 = vmatpush1.bf16.msra.mxu0 %v3231
        %4549 = vmatprep.subr.bf16.mxu0 %v3234
        %4550 = vmatpush1.bf16.msra.mxu0 %v3233
        %4551 = vmatprep.subr.bf16.mxu0 %v3236
        %4552 = vmatpush1.bf16.msra.mxu0 %v3235
        %4553 = vmatprep.subr.bf16.mxu0 %v3238
        %4554 = vmatpush1.bf16.msra.mxu0 %v3237
        %4555 = vmatprep.subr.bf16.mxu0 %v3240
        %4556 = vmatpush1.bf16.msra.mxu0 %v3239
        %4557 = vmatprep.subr.bf16.mxu0 %v3242
        %4558 = vmatpush1.bf16.msra.mxu0 %v3241
        %4559 = vmatprep.subr.bf16.mxu0 %v3244
        %4560 = vmatpush1.bf16.msra.mxu0 %v3243
        %4561 = vmatprep.subr.bf16.mxu0 %v3246
        %4562 = vmatpush1.bf16.msra.mxu0 %v3245
        %4563 = vmatprep.subr.bf16.mxu0 %v3248
        %4564 = vmatpush1.bf16.msra.mxu0 %v3247
        %4565 = vmatprep.subr.bf16.mxu0 %v3250
        %4566 = vmatpush1.bf16.msra.mxu0 %v3249
        %4567 = vmatprep.subr.bf16.mxu0 %v3252
        %4568 = vmatpush1.bf16.msra.mxu0 %v3251
        %4569 = vmatprep.subr.bf16.mxu0 %v3254
        %4570 = vmatpush1.bf16.msra.mxu0 %v3253
        %4571 = vmatprep.subr.bf16.mxu0 %v3256
        %4572 = vmatpush1.bf16.msra.mxu0 %v3255
        %4573 = vmatprep.subr.bf16.mxu0 %v3258
        %4574 = vmatpush1.bf16.msra.mxu0 %v3257
        %4575 = vmatprep.mubr.bf16.mxu0 %v980
        %4576 = vmatmul.mubr.bf16.gmra.mrb[0].mxu0 %v966
        %v4577 = vpop.f32.mrb[0].mxu0
        %v4578 = vadd.f32 %v4537, %v4577
        %v4579 = vpop.f32.mrb[0].mxu0
        %v4580 = vadd.f32 %v4539, %v4579
        %v4581 = vpop.f32.mrb[0].mxu0
        %v4582 = vpop.f32.mrb[0].mxu0
        %4583 = vdwg.mxu0
        %4584 = vmatprep.subr.bf16.mxu0 %v3260
        %4585 = vmatpush1.bf16.msra.mxu0 %v3259
        %4586 = vmatprep.subr.bf16.mxu0 %v3262
        %4587 = vmatpush1.bf16.msra.mxu0 %v3261
        %4588 = vmatprep.subr.bf16.mxu0 %v3264
        %4589 = vmatpush1.bf16.msra.mxu0 %v3263
        %4590 = vmatprep.subr.bf16.mxu0 %v3266
        %4591 = vmatpush1.bf16.msra.mxu0 %v3265
        %4592 = vmatprep.subr.bf16.mxu0 %v3268
        %4593 = vmatpush1.bf16.msra.mxu0 %v3267
        %4594 = vmatprep.subr.bf16.mxu0 %v3270
        %4595 = vmatpush1.bf16.msra.mxu0 %v3269
        %4596 = vmatprep.subr.bf16.mxu0 %v3272
        %4597 = vmatpush1.bf16.msra.mxu0 %v3271
        %4598 = vmatprep.subr.bf16.mxu0 %v3274
        %4599 = vmatpush1.bf16.msra.mxu0 %v3273
        %4600 = vmatprep.subr.bf16.mxu0 %v3276
        %4601 = vmatpush1.bf16.msra.mxu0 %v3275
        %4602 = vmatprep.subr.bf16.mxu0 %v3278
        %4603 = vmatpush1.bf16.msra.mxu0 %v3277
        %4604 = vmatprep.subr.bf16.mxu0 %v3280
        %4605 = vmatpush1.bf16.msra.mxu0 %v3279
        %4606 = vmatprep.subr.bf16.mxu0 %v3282
        %4607 = vmatpush1.bf16.msra.mxu0 %v3281
        %4608 = vmatprep.subr.bf16.mxu0 %v3284
        %4609 = vmatpush1.bf16.msra.mxu0 %v3283
        %4610 = vmatprep.subr.bf16.mxu0 %v3286
        %4611 = vmatpush1.bf16.msra.mxu0 %v3285
        %4612 = vmatprep.subr.bf16.mxu0 %v3288
        %4613 = vmatpush1.bf16.msra.mxu0 %v3287
        %4614 = vmatprep.subr.bf16.mxu0 %v3290
        %4615 = vmatpush1.bf16.msra.mxu0 %v3289
        %4616 = vmatprep.mubr.bf16.mxu0 %v990
        %4617 = vmatmul.mubr.bf16.gmra.mrb[0].mxu0 %v988
        %v4618 = vpop.f32.mrb[0].mxu0
        %v4619 = vadd.f32 %v4578, %v4618
        %v4620 = vpop.f32.mrb[0].mxu0
        %v4621 = vadd.f32 %v4580, %v4620
        %v4622 = vpop.f32.mrb[0].mxu0
        %v4623 = vpop.f32.mrb[0].mxu0
        %4624 = vdwg.mxu0
        %4625 = vmatprep.subr.bf16.mxu0 %v3292
        %4626 = vmatpush1.bf16.msra.mxu0 %v3291
        %4627 = vmatprep.subr.bf16.mxu0 %v3294
        %4628 = vmatpush1.bf16.msra.mxu0 %v3293
        %4629 = vmatprep.subr.bf16.mxu0 %v3296
        %4630 = vmatpush1.bf16.msra.mxu0 %v3295
        %4631 = vmatprep.subr.bf16.mxu0 %v3298
        %4632 = vmatpush1.bf16.msra.mxu0 %v3297
        %4633 = vmatprep.subr.bf16.mxu0 %v3300
        %4634 = vmatpush1.bf16.msra.mxu0 %v3299
        %4635 = vmatprep.subr.bf16.mxu0 %v3302
        %4636 = vmatpush1.bf16.msra.mxu0 %v3301
        %4637 = vmatprep.subr.bf16.mxu0 %v3304
        %4638 = vmatpush1.bf16.msra.mxu0 %v3303
        %4639 = vmatprep.subr.bf16.mxu0 %v3306
        %4640 = vmatpush1.bf16.msra.mxu0 %v3305
        %4641 = vmatprep.subr.bf16.mxu0 %v3308
        %4642 = vmatpush1.bf16.msra.mxu0 %v3307
        %4643 = vmatprep.subr.bf16.mxu0 %v3310
        %4644 = vmatpush1.bf16.msra.mxu0 %v3309
        %4645 = vmatprep.subr.bf16.mxu0 %v3312
        %4646 = vmatpush1.bf16.msra.mxu0 %v3311
        %4647 = vmatprep.subr.bf16.mxu0 %v3314
        %4648 = vmatpush1.bf16.msra.mxu0 %v3313
        %4649 = vmatprep.subr.bf16.mxu0 %v3316
        %4650 = vmatpush1.bf16.msra.mxu0 %v3315
        %4651 = vmatprep.subr.bf16.mxu0 %v3318
        %4652 = vmatpush1.bf16.msra.mxu0 %v3317
        %4653 = vmatprep.subr.bf16.mxu0 %v3320
        %4654 = vmatpush1.bf16.msra.mxu0 %v3319
        %4655 = vmatprep.subr.bf16.mxu0 %v3322
        %4656 = vmatpush1.bf16.msra.mxu0 %v3321
        %4657 = vmatprep.mubr.bf16.mxu0 %v987
        %4658 = vmatmul.mubr.bf16.gmra.mrb[0].mxu0 %v973
        %v4659 = vpop.f32.mrb[0].mxu0
        %v4660 = vadd.f32 %v4619, %v4659
        %v4661 = vpop.f32.mrb[0].mxu0
        %v4662 = vadd.f32 %v4621, %v4661
        %v4663 = vpop.f32.mrb[0].mxu0
        %v4664 = vpop.f32.mrb[0].mxu0
        %4665 = vdwg.mxu0
        %4666 = vmatprep.subr.bf16.mxu0 %v3324
        %4667 = vmatpush1.bf16.msra.mxu0 %v3323
        %4668 = vmatprep.subr.bf16.mxu0 %v3326
        %4669 = vmatpush1.bf16.msra.mxu0 %v3325
        %4670 = vmatprep.subr.bf16.mxu0 %v3328
        %4671 = vmatpush1.bf16.msra.mxu0 %v3327
        %4672 = vmatprep.subr.bf16.mxu0 %v3330
        %4673 = vmatpush1.bf16.msra.mxu0 %v3329
        %4674 = vmatprep.subr.bf16.mxu0 %v3332
        %4675 = vmatpush1.bf16.msra.mxu0 %v3331
        %4676 = vmatprep.subr.bf16.mxu0 %v3334
        %4677 = vmatpush1.bf16.msra.mxu0 %v3333
        %4678 = vmatprep.subr.bf16.mxu0 %v3336
        %4679 = vmatpush1.bf16.msra.mxu0 %v3335
        %4680 = vmatprep.subr.bf16.mxu0 %v3338
        %4681 = vmatpush1.bf16.msra.mxu0 %v3337
        %4682 = vmatprep.subr.bf16.mxu0 %v3340
        %4683 = vmatpush1.bf16.msra.mxu0 %v3339
        %4684 = vmatprep.subr.bf16.mxu0 %v3342
        %4685 = vmatpush1.bf16.msra.mxu0 %v3341
        %4686 = vmatprep.subr.bf16.mxu0 %v3344
        %4687 = vmatpush1.bf16.msra.mxu0 %v3343
        %4688 = vmatprep.subr.bf16.mxu0 %v3346
        %4689 = vmatpush1.bf16.msra.mxu0 %v3345
        %4690 = vmatprep.subr.bf16.mxu0 %v3348
        %4691 = vmatpush1.bf16.msra.mxu0 %v3347
        %4692 = vmatprep.subr.bf16.mxu0 %v3350
        %4693 = vmatpush1.bf16.msra.mxu0 %v3349
        %4694 = vmatprep.subr.bf16.mxu0 %v3352
        %4695 = vmatpush1.bf16.msra.mxu0 %v3351
        %4696 = vmatprep.subr.bf16.mxu0 %v3354
        %4697 = vmatpush1.bf16.msra.mxu0 %v3353
        %4698 = vmatprep.mubr.bf16.mxu0 %v991
        %4699 = vmatmul.mubr.bf16.gmra.mrb[0].mxu0 %v989
        %v4700 = vpop.f32.mrb[0].mxu0
        %v4701 = vadd.f32 %v4660, %v4700
        %v4702 = vpop.f32.mrb[0].mxu0
        %v4703 = vadd.f32 %v4662, %v4702
        %v4704 = vpop.f32.mrb[0].mxu0
        %v4705 = vpop.f32.mrb[0].mxu0
        %4706 = vdwg.mxu0
        %4707 = vmatprep.subr.bf16.mxu0 %v3356
        %4708 = vmatpush1.bf16.msra.mxu0 %v3355
        %4709 = vmatprep.subr.bf16.mxu0 %v3358
        %4710 = vmatpush1.bf16.msra.mxu0 %v3357
        %4711 = vmatprep.subr.bf16.mxu0 %v3360
        %4712 = vmatpush1.bf16.msra.mxu0 %v3359
        %4713 = vmatprep.subr.bf16.mxu0 %v3362
        %4714 = vmatpush1.bf16.msra.mxu0 %v3361
        %4715 = vmatprep.subr.bf16.mxu0 %v3364
        %4716 = vmatpush1.bf16.msra.mxu0 %v3363
        %4717 = vmatprep.subr.bf16.mxu0 %v3366
        %4718 = vmatpush1.bf16.msra.mxu0 %v3365
        %4719 = vmatprep.subr.bf16.mxu0 %v3368
        %4720 = vmatpush1.bf16.msra.mxu0 %v3367
        %4721 = vmatprep.subr.bf16.mxu0 %v3370
        %4722 = vmatpush1.bf16.msra.mxu0 %v3369
        %4723 = vmatprep.subr.bf16.mxu0 %v3372
        %4724 = vmatpush1.bf16.msra.mxu0 %v3371
        %4725 = vmatprep.subr.bf16.mxu0 %v3374
        %4726 = vmatpush1.bf16.msra.mxu0 %v3373
        %4727 = vmatprep.subr.bf16.mxu0 %v3376
        %4728 = vmatpush1.bf16.msra.mxu0 %v3375
        %4729 = vmatprep.subr.bf16.mxu0 %v3378
        %4730 = vmatpush1.bf16.msra.mxu0 %v3377
        %4731 = vmatprep.subr.bf16.mxu0 %v3380
        %4732 = vmatpush1.bf16.msra.mxu0 %v3379
        %4733 = vmatprep.subr.bf16.mxu0 %v3382
        %4734 = vmatpush1.bf16.msra.mxu0 %v3381
        %4735 = vmatprep.subr.bf16.mxu0 %v3384
        %4736 = vmatpush1.bf16.msra.mxu0 %v3383
        %4737 = vmatprep.subr.bf16.mxu0 %v3386
        %4738 = vmatpush1.bf16.msra.mxu0 %v3385
        %4739 = vmatprep.mubr.bf16.mxu0 %v1029
        %4740 = vmatmul.mubr.bf16.gmra.mrb[0].mxu0 %v1015
        %v4741 = vpop.f32.mrb[0].mxu0
        %v4742 = vadd.f32 %v4701, %v4741
        %v4743 = vpop.f32.mrb[0].mxu0
        %v4744 = vadd.f32 %v4703, %v4743
        %v4745 = vpop.f32.mrb[0].mxu0
        %v4746 = vpop.f32.mrb[0].mxu0
        %4747 = vdwg.mxu0
        %4748 = vmatprep.subr.bf16.mxu0 %v3388
        %4749 = vmatpush1.bf16.msra.mxu0 %v3387
        %4750 = vmatprep.subr.bf16.mxu0 %v3390
        %4751 = vmatpush1.bf16.msra.mxu0 %v3389
        %4752 = vmatprep.subr.bf16.mxu0 %v3392
        %4753 = vmatpush1.bf16.msra.mxu0 %v3391
        %4754 = vmatprep.subr.bf16.mxu0 %v3394
        %4755 = vmatpush1.bf16.msra.mxu0 %v3393
        %4756 = vmatprep.subr.bf16.mxu0 %v3396
        %4757 = vmatpush1.bf16.msra.mxu0 %v3395
        %4758 = vmatprep.subr.bf16.mxu0 %v3398
        %4759 = vmatpush1.bf16.msra.mxu0 %v3397
        %4760 = vmatprep.subr.bf16.mxu0 %v3400
        %4761 = vmatpush1.bf16.msra.mxu0 %v3399
        %4762 = vmatprep.subr.bf16.mxu0 %v3402
        %4763 = vmatpush1.bf16.msra.mxu0 %v3401
        %4764 = vmatprep.subr.bf16.mxu0 %v3404
        %4765 = vmatpush1.bf16.msra.mxu0 %v3403
        %4766 = vmatprep.subr.bf16.mxu0 %v3406
        %4767 = vmatpush1.bf16.msra.mxu0 %v3405
        %4768 = vmatprep.subr.bf16.mxu0 %v3408
        %4769 = vmatpush1.bf16.msra.mxu0 %v3407
        %4770 = vmatprep.subr.bf16.mxu0 %v3410
        %4771 = vmatpush1.bf16.msra.mxu0 %v3409
        %4772 = vmatprep.subr.bf16.mxu0 %v3412
        %4773 = vmatpush1.bf16.msra.mxu0 %v3411
        %4774 = vmatprep.subr.bf16.mxu0 %v3414
        %4775 = vmatpush1.bf16.msra.mxu0 %v3413
        %4776 = vmatprep.subr.bf16.mxu0 %v3416
        %4777 = vmatpush1.bf16.msra.mxu0 %v3415
        %4778 = vmatprep.subr.bf16.mxu0 %v3418
        %4779 = vmatpush1.bf16.msra.mxu0 %v3417
        %4780 = vmatprep.mubr.bf16.mxu0 %v1039
        %4781 = vmatmul.mubr.bf16.gmra.mrb[0].mxu0 %v1037
        %v4782 = vpop.f32.mrb[0].mxu0
        %v4783 = vadd.f32 %v4742, %v4782
        %v4784 = vpop.f32.mrb[0].mxu0
        %v4785 = vadd.f32 %v4744, %v4784
        %v4786 = vpop.f32.mrb[0].mxu0
        %v4787 = vpop.f32.mrb[0].mxu0
        %4788 = vdwg.mxu0
        %4789 = vmatprep.subr.bf16.mxu0 %v3420
        %4790 = vmatpush1.bf16.msra.mxu0 %v3419
        %4791 = vmatprep.subr.bf16.mxu0 %v3422
        %4792 = vmatpush1.bf16.msra.mxu0 %v3421
        %4793 = vmatprep.subr.bf16.mxu0 %v3424
        %4794 = vmatpush1.bf16.msra.mxu0 %v3423
        %4795 = vmatprep.subr.bf16.mxu0 %v3426
        %4796 = vmatpush1.bf16.msra.mxu0 %v3425
        %4797 = vmatprep.subr.bf16.mxu0 %v3428
        %4798 = vmatpush1.bf16.msra.mxu0 %v3427
        %4799 = vmatprep.subr.bf16.mxu0 %v3430
        %4800 = vmatpush1.bf16.msra.mxu0 %v3429
        %4801 = vmatprep.subr.bf16.mxu0 %v3432
        %4802 = vmatpush1.bf16.msra.mxu0 %v3431
        %4803 = vmatprep.subr.bf16.mxu0 %v3434
        %4804 = vmatpush1.bf16.msra.mxu0 %v3433
        %4805 = vmatprep.subr.bf16.mxu0 %v3436
        %4806 = vmatpush1.bf16.msra.mxu0 %v3435
        %4807 = vmatprep.subr.bf16.mxu0 %v3438
        %4808 = vmatpush1.bf16.msra.mxu0 %v3437
        %4809 = vmatprep.subr.bf16.mxu0 %v3440
        %4810 = vmatpush1.bf16.msra.mxu0 %v3439
        %4811 = vmatprep.subr.bf16.mxu0 %v3442
        %4812 = vmatpush1.bf16.msra.mxu0 %v3441
        %4813 = vmatprep.subr.bf16.mxu0 %v3444
        %4814 = vmatpush1.bf16.msra.mxu0 %v3443
        %4815 = vmatprep.subr.bf16.mxu0 %v3446
        %4816 = vmatpush1.bf16.msra.mxu0 %v3445
        %4817 = vmatprep.subr.bf16.mxu0 %v3448
        %4818 = vmatpush1.bf16.msra.mxu0 %v3447
        %4819 = vmatprep.subr.bf16.mxu0 %v3450
        %4820 = vmatpush1.bf16.msra.mxu0 %v3449
        %4821 = vmatprep.mubr.bf16.mxu0 %v1036
        %4822 = vmatmul.mubr.bf16.gmra.mrb[0].mxu0 %v1022
        %v4823 = vpop.f32.mrb[0].mxu0
        %v4824 = vadd.f32 %v4783, %v4823
        %v4825 = vpop.f32.mrb[0].mxu0
        %v4826 = vadd.f32 %v4785, %v4825
        %v4827 = vpop.f32.mrb[0].mxu0
        %v4828 = vpop.f32.mrb[0].mxu0
        %4829 = vdwg.mxu0
        %4830 = vmatprep.subr.bf16.mxu0 %v3452
        %4831 = vmatpush1.bf16.msra.mxu0 %v3451
        %4832 = vmatprep.subr.bf16.mxu0 %v3454
        %4833 = vmatpush1.bf16.msra.mxu0 %v3453
        %4834 = vmatprep.subr.bf16.mxu0 %v3456
        %4835 = vmatpush1.bf16.msra.mxu0 %v3455
        %4836 = vmatprep.subr.bf16.mxu0 %v3458
        %4837 = vmatpush1.bf16.msra.mxu0 %v3457
        %4838 = vmatprep.subr.bf16.mxu0 %v3460
        %4839 = vmatpush1.bf16.msra.mxu0 %v3459
        %4840 = vmatprep.subr.bf16.mxu0 %v3462
        %4841 = vmatpush1.bf16.msra.mxu0 %v3461
        %4842 = vmatprep.subr.bf16.mxu0 %v3464
        %4843 = vmatpush1.bf16.msra.mxu0 %v3463
        %4844 = vmatprep.subr.bf16.mxu0 %v3466
        %4845 = vmatpush1.bf16.msra.mxu0 %v3465
        %4846 = vmatprep.subr.bf16.mxu0 %v3468
        %4847 = vmatpush1.bf16.msra.mxu0 %v3467
        %4848 = vmatprep.subr.bf16.mxu0 %v3470
        %4849 = vmatpush1.bf16.msra.mxu0 %v3469
        %4850 = vmatprep.subr.bf16.mxu0 %v3472
        %4851 = vmatpush1.bf16.msra.mxu0 %v3471
        %4852 = vmatprep.subr.bf16.mxu0 %v3474
        %4853 = vmatpush1.bf16.msra.mxu0 %v3473
        %4854 = vmatprep.subr.bf16.mxu0 %v3476
        %4855 = vmatpush1.bf16.msra.mxu0 %v3475
        %4856 = vmatprep.subr.bf16.mxu0 %v3478
        %4857 = vmatpush1.bf16.msra.mxu0 %v3477
        %4858 = vmatprep.subr.bf16.mxu0 %v3480
        %4859 = vmatpush1.bf16.msra.mxu0 %v3479
        %4860 = vmatprep.subr.bf16.mxu0 %v3482
        %4861 = vmatpush1.bf16.msra.mxu0 %v3481
        %4862 = vmatprep.mubr.bf16.mxu0 %v1040
        %4863 = vmatmul.mubr.bf16.gmra.mrb[0].mxu0 %v1038
        %v4864 = vpop.f32.mrb[0].mxu0
        %v4865 = vadd.f32 %v4824, %v4864
        %v4866 = vpop.f32.mrb[0].mxu0
        %v4867 = vadd.f32 %v4826, %v4866
        %v4868 = vpop.f32.mrb[0].mxu0
        %v4869 = vpop.f32.mrb[0].mxu0
        %4870 = vdwg.mxu0
        %4871 = vmatprep.subr.bf16.mxu0 %v3484
        %4872 = vmatpush1.bf16.msra.mxu0 %v3483
        %4873 = vmatprep.subr.bf16.mxu0 %v3486
        %4874 = vmatpush1.bf16.msra.mxu0 %v3485
        %4875 = vmatprep.subr.bf16.mxu0 %v3488
        %4876 = vmatpush1.bf16.msra.mxu0 %v3487
        %4877 = vmatprep.subr.bf16.mxu0 %v3490
        %4878 = vmatpush1.bf16.msra.mxu0 %v3489
        %4879 = vmatprep.subr.bf16.mxu0 %v3492
        %4880 = vmatpush1.bf16.msra.mxu0 %v3491
        %4881 = vmatprep.subr.bf16.mxu0 %v3494
        %4882 = vmatpush1.bf16.msra.mxu0 %v3493
        %4883 = vmatprep.subr.bf16.mxu0 %v3496
        %4884 = vmatpush1.bf16.msra.mxu0 %v3495
        %4885 = vmatprep.subr.bf16.mxu0 %v3498
        %4886 = vmatpush1.bf16.msra.mxu0 %v3497
        %4887 = vmatprep.subr.bf16.mxu0 %v3500
        %4888 = vmatpush1.bf16.msra.mxu0 %v3499
        %4889 = vmatprep.subr.bf16.mxu0 %v3502
        %4890 = vmatpush1.bf16.msra.mxu0 %v3501
        %4891 = vmatprep.subr.bf16.mxu0 %v3504
        %4892 = vmatpush1.bf16.msra.mxu0 %v3503
        %4893 = vmatprep.subr.bf16.mxu0 %v3506
        %4894 = vmatpush1.bf16.msra.mxu0 %v3505
        %4895 = vmatprep.subr.bf16.mxu0 %v3508
        %4896 = vmatpush1.bf16.msra.mxu0 %v3507
        %4897 = vmatprep.subr.bf16.mxu0 %v3510
        %4898 = vmatpush1.bf16.msra.mxu0 %v3509
        %4899 = vmatprep.subr.bf16.mxu0 %v3512
        %4900 = vmatpush1.bf16.msra.mxu0 %v3511
        %4901 = vmatprep.subr.bf16.mxu0 %v3514
        %4902 = vmatpush1.bf16.msra.mxu0 %v3513
        %4903 = vmatprep.mubr.bf16.mxu0 %v1078
        %4904 = vmatmul.mubr.bf16.gmra.mrb[0].mxu0 %v1064
        %v4905 = vpop.f32.mrb[0].mxu0
        %v4906 = vadd.f32 %v4865, %v4905
        %v4907 = vpop.f32.mrb[0].mxu0
        %v4908 = vadd.f32 %v4867, %v4907
        %v4909 = vpop.f32.mrb[0].mxu0
        %v4910 = vpop.f32.mrb[0].mxu0
        %4911 = vdwg.mxu0
        %4912 = vmatprep.subr.bf16.mxu0 %v3516
        %4913 = vmatpush1.bf16.msra.mxu0 %v3515
        %4914 = vmatprep.subr.bf16.mxu0 %v3518
        %4915 = vmatpush1.bf16.msra.mxu0 %v3517
        %4916 = vmatprep.subr.bf16.mxu0 %v3520
        %4917 = vmatpush1.bf16.msra.mxu0 %v3519
        %4918 = vmatprep.subr.bf16.mxu0 %v3522
        %4919 = vmatpush1.bf16.msra.mxu0 %v3521
        %4920 = vmatprep.subr.bf16.mxu0 %v3524
        %4921 = vmatpush1.bf16.msra.mxu0 %v3523
        %4922 = vmatprep.subr.bf16.mxu0 %v3526
        %4923 = vmatpush1.bf16.msra.mxu0 %v3525
        %4924 = vmatprep.subr.bf16.mxu0 %v3528
        %4925 = vmatpush1.bf16.msra.mxu0 %v3527
        %4926 = vmatprep.subr.bf16.mxu0 %v3530
        %4927 = vmatpush1.bf16.msra.mxu0 %v3529
        %4928 = vmatprep.subr.bf16.mxu0 %v3532
        %4929 = vmatpush1.bf16.msra.mxu0 %v3531
        %4930 = vmatprep.subr.bf16.mxu0 %v3534
        %4931 = vmatpush1.bf16.msra.mxu0 %v3533
        %4932 = vmatprep.subr.bf16.mxu0 %v3536
        %4933 = vmatpush1.bf16.msra.mxu0 %v3535
        %4934 = vmatprep.subr.bf16.mxu0 %v3538
        %4935 = vmatpush1.bf16.msra.mxu0 %v3537
        %4936 = vmatprep.subr.bf16.mxu0 %v3540
        %4937 = vmatpush1.bf16.msra.mxu0 %v3539
        %4938 = vmatprep.subr.bf16.mxu0 %v3542
        %4939 = vmatpush1.bf16.msra.mxu0 %v3541
        %4940 = vmatprep.subr.bf16.mxu0 %v3544
        %4941 = vmatpush1.bf16.msra.mxu0 %v3543
        %4942 = vmatprep.subr.bf16.mxu0 %v3546
        %4943 = vmatpush1.bf16.msra.mxu0 %v3545
        %4944 = vmatprep.mubr.bf16.mxu0 %v1088
        %4945 = vmatmul.mubr.bf16.gmra.mrb[0].mxu0 %v1086
        %v4946 = vpop.f32.mrb[0].mxu0
        %v4947 = vadd.f32 %v4906, %v4946
        %v4948 = vpop.f32.mrb[0].mxu0
        %v4949 = vadd.f32 %v4908, %v4948
        %v4950 = vpop.f32.mrb[0].mxu0
        %v4951 = vpop.f32.mrb[0].mxu0
        %4952 = vdwg.mxu0
        %4953 = vmatprep.subr.bf16.mxu0 %v3548
        %4954 = vmatpush1.bf16.msra.mxu0 %v3547
        %4955 = vmatprep.subr.bf16.mxu0 %v3550
        %4956 = vmatpush1.bf16.msra.mxu0 %v3549
        %4957 = vmatprep.subr.bf16.mxu0 %v3552
        %4958 = vmatpush1.bf16.msra.mxu0 %v3551
        %4959 = vmatprep.subr.bf16.mxu0 %v3554
        %4960 = vmatpush1.bf16.msra.mxu0 %v3553
        %4961 = vmatprep.subr.bf16.mxu0 %v3556
        %4962 = vmatpush1.bf16.msra.mxu0 %v3555
        %4963 = vmatprep.subr.bf16.mxu0 %v3558
        %4964 = vmatpush1.bf16.msra.mxu0 %v3557
        %4965 = vmatprep.subr.bf16.mxu0 %v3560
        %4966 = vmatpush1.bf16.msra.mxu0 %v3559
        %4967 = vmatprep.subr.bf16.mxu0 %v3562
        %4968 = vmatpush1.bf16.msra.mxu0 %v3561
        %4969 = vmatprep.subr.bf16.mxu0 %v3564
        %4970 = vmatpush1.bf16.msra.mxu0 %v3563
        %4971 = vmatprep.subr.bf16.mxu0 %v3566
        %4972 = vmatpush1.bf16.msra.mxu0 %v3565
        %4973 = vmatprep.subr.bf16.mxu0 %v3568
        %4974 = vmatpush1.bf16.msra.mxu0 %v3567
        %4975 = vmatprep.subr.bf16.mxu0 %v3570
        %4976 = vmatpush1.bf16.msra.mxu0 %v3569
        %4977 = vmatprep.subr.bf16.mxu0 %v3572
        %4978 = vmatpush1.bf16.msra.mxu0 %v3571
        %4979 = vmatprep.subr.bf16.mxu0 %v3574
        %4980 = vmatpush1.bf16.msra.mxu0 %v3573
        %4981 = vmatprep.subr.bf16.mxu0 %v3576
        %4982 = vmatpush1.bf16.msra.mxu0 %v3575
        %4983 = vmatprep.subr.bf16.mxu0 %v3578
        %4984 = vmatpush1.bf16.msra.mxu0 %v3577
        %4985 = vmatprep.mubr.bf16.mxu0 %v1085
        %4986 = vmatmul.mubr.bf16.gmra.mrb[0].mxu0 %v1071
        %v4987 = vpop.f32.mrb[0].mxu0
        %v4988 = vadd.f32 %v4947, %v4987
        %v4989 = vpop.f32.mrb[0].mxu0
        %v4990 = vadd.f32 %v4949, %v4989
        %v4991 = vpop.f32.mrb[0].mxu0
        %v4992 = vpop.f32.mrb[0].mxu0
        %4993 = vdwg.mxu0
        %4994 = vmatprep.subr.bf16.mxu0 %v3580
        %4995 = vmatpush1.bf16.msra.mxu0 %v3579
        %4996 = vmatprep.subr.bf16.mxu0 %v3582
        %4997 = vmatpush1.bf16.msra.mxu0 %v3581
        %4998 = vmatprep.subr.bf16.mxu0 %v3584
        %4999 = vmatpush1.bf16.msra.mxu0 %v3583
        %5000 = vmatprep.subr.bf16.mxu0 %v3586
        %5001 = vmatpush1.bf16.msra.mxu0 %v3585
        %5002 = vmatprep.subr.bf16.mxu0 %v3588
        %5003 = vmatpush1.bf16.msra.mxu0 %v3587
        %5004 = vmatprep.subr.bf16.mxu0 %v3590
        %5005 = vmatpush1.bf16.msra.mxu0 %v3589
        %5006 = vmatprep.subr.bf16.mxu0 %v3592
        %5007 = vmatpush1.bf16.msra.mxu0 %v3591
        %5008 = vmatprep.subr.bf16.mxu0 %v3594
        %5009 = vmatpush1.bf16.msra.mxu0 %v3593
        %5010 = vmatprep.subr.bf16.mxu0 %v3596
        %5011 = vmatpush1.bf16.msra.mxu0 %v3595
        %5012 = vmatprep.subr.bf16.mxu0 %v3598
        %5013 = vmatpush1.bf16.msra.mxu0 %v3597
        %5014 = vmatprep.subr.bf16.mxu0 %v3600
        %5015 = vmatpush1.bf16.msra.mxu0 %v3599
        %5016 = vmatprep.subr.bf16.mxu0 %v3602
        %5017 = vmatpush1.bf16.msra.mxu0 %v3601
        %5018 = vmatprep.subr.bf16.mxu0 %v3604
        %5019 = vmatpush1.bf16.msra.mxu0 %v3603
        %5020 = vmatprep.subr.bf16.mxu0 %v3606
        %5021 = vmatpush1.bf16.msra.mxu0 %v3605
        %5022 = vmatprep.subr.bf16.mxu0 %v3608
        %5023 = vmatpush1.bf16.msra.mxu0 %v3607
        %5024 = vmatprep.subr.bf16.mxu0 %v3610
        %5025 = vmatpush1.bf16.msra.mxu0 %v3609
        %5026 = vmatprep.mubr.bf16.mxu0 %v1089
        %5027 = vmatmul.mubr.bf16.gmra.mrb[0].mxu0 %v1087
        %v5028 = vpop.f32.mrb[0].mxu0
        %v5029 = vadd.f32 %v4988, %v5028
        %v5030 = vpop.f32.mrb[0].mxu0
        %v5031 = vadd.f32 %v4990, %v5030
        %v5032 = vpop.f32.mrb[0].mxu0
        %v5033 = vpop.f32.mrb[0].mxu0
        %5034 = vdwg.mxu0
        %5035 = vmatprep.subr.bf16.mxu0 %v3612
        %5036 = vmatpush1.bf16.msra.mxu0 %v3611
        %5037 = vmatprep.subr.bf16.mxu0 %v3614
        %5038 = vmatpush1.bf16.msra.mxu0 %v3613
        %5039 = vmatprep.subr.bf16.mxu0 %v3616
        %5040 = vmatpush1.bf16.msra.mxu0 %v3615
        %5041 = vmatprep.subr.bf16.mxu0 %v3618
        %5042 = vmatpush1.bf16.msra.mxu0 %v3617
        %5043 = vmatprep.subr.bf16.mxu0 %v3620
        %5044 = vmatpush1.bf16.msra.mxu0 %v3619
        %5045 = vmatprep.subr.bf16.mxu0 %v3622
        %5046 = vmatpush1.bf16.msra.mxu0 %v3621
        %5047 = vmatprep.subr.bf16.mxu0 %v3624
        %5048 = vmatpush1.bf16.msra.mxu0 %v3623
        %5049 = vmatprep.subr.bf16.mxu0 %v3626
        %5050 = vmatpush1.bf16.msra.mxu0 %v3625
        %5051 = vmatprep.subr.bf16.mxu0 %v3628
        %5052 = vmatpush1.bf16.msra.mxu0 %v3627
        %5053 = vmatprep.subr.bf16.mxu0 %v3630
        %5054 = vmatpush1.bf16.msra.mxu0 %v3629
        %5055 = vmatprep.subr.bf16.mxu0 %v3632
        %5056 = vmatpush1.bf16.msra.mxu0 %v3631
        %5057 = vmatprep.subr.bf16.mxu0 %v3634
        %5058 = vmatpush1.bf16.msra.mxu0 %v3633
        %5059 = vmatprep.subr.bf16.mxu0 %v3636
        %5060 = vmatpush1.bf16.msra.mxu0 %v3635
        %5061 = vmatprep.subr.bf16.mxu0 %v3638
        %5062 = vmatpush1.bf16.msra.mxu0 %v3637
        %5063 = vmatprep.subr.bf16.mxu0 %v3640
        %5064 = vmatpush1.bf16.msra.mxu0 %v3639
        %5065 = vmatprep.subr.bf16.mxu0 %v3642
        %5066 = vmatpush1.bf16.msra.mxu0 %v3641
        %5067 = vmatprep.mubr.bf16.mxu0 %v1127
        %5068 = vmatmul.mubr.bf16.gmra.mrb[0].mxu0 %v1113
        %v5069 = vpop.f32.mrb[0].mxu0
        %v5070 = vadd.f32 %v5029, %v5069
        %v5071 = vpop.f32.mrb[0].mxu0
        %v5072 = vadd.f32 %v5031, %v5071
        %v5073 = vpop.f32.mrb[0].mxu0
        %v5074 = vpop.f32.mrb[0].mxu0
        %5075 = vdwg.mxu0
        %5076 = vmatprep.subr.bf16.mxu0 %v3644
        %5077 = vmatpush1.bf16.msra.mxu0 %v3643
        %5078 = vmatprep.subr.bf16.mxu0 %v3646
        %5079 = vmatpush1.bf16.msra.mxu0 %v3645
        %5080 = vmatprep.subr.bf16.mxu0 %v3648
        %5081 = vmatpush1.bf16.msra.mxu0 %v3647
        %5082 = vmatprep.subr.bf16.mxu0 %v3650
        %5083 = vmatpush1.bf16.msra.mxu0 %v3649
        %5084 = vmatprep.subr.bf16.mxu0 %v3652
        %5085 = vmatpush1.bf16.msra.mxu0 %v3651
        %5086 = vmatprep.subr.bf16.mxu0 %v3654
        %5087 = vmatpush1.bf16.msra.mxu0 %v3653
        %5088 = vmatprep.subr.bf16.mxu0 %v3656
        %5089 = vmatpush1.bf16.msra.mxu0 %v3655
        %5090 = vmatprep.subr.bf16.mxu0 %v3658
        %5091 = vmatpush1.bf16.msra.mxu0 %v3657
        %5092 = vmatprep.subr.bf16.mxu0 %v3660
        %5093 = vmatpush1.bf16.msra.mxu0 %v3659
        %5094 = vmatprep.subr.bf16.mxu0 %v3662
        %5095 = vmatpush1.bf16.msra.mxu0 %v3661
        %5096 = vmatprep.subr.bf16.mxu0 %v3664
        %5097 = vmatpush1.bf16.msra.mxu0 %v3663
        %5098 = vmatprep.subr.bf16.mxu0 %v3666
        %5099 = vmatpush1.bf16.msra.mxu0 %v3665
        %5100 = vmatprep.subr.bf16.mxu0 %v3668
        %5101 = vmatpush1.bf16.msra.mxu0 %v3667
        %5102 = vmatprep.subr.bf16.mxu0 %v3670
        %5103 = vmatpush1.bf16.msra.mxu0 %v3669
        %5104 = vmatprep.subr.bf16.mxu0 %v3672
        %5105 = vmatpush1.bf16.msra.mxu0 %v3671
        %5106 = vmatprep.subr.bf16.mxu0 %v3674
        %5107 = vmatpush1.bf16.msra.mxu0 %v3673
        %5108 = vmatprep.mubr.bf16.mxu0 %v1137
        %5109 = vmatmul.mubr.bf16.gmra.mrb[0].mxu0 %v1135
        %v5110 = vpop.f32.mrb[0].mxu0
        %v5111 = vadd.f32 %v5070, %v5110
        %v5112 = vpop.f32.mrb[0].mxu0
        %v5113 = vadd.f32 %v5072, %v5112
        %v5114 = vpop.f32.mrb[0].mxu0
        %v5115 = vpop.f32.mrb[0].mxu0
        %5116 = vdwg.mxu0
        %5117 = vmatprep.subr.bf16.mxu0 %v3676
        %5118 = vmatpush1.bf16.msra.mxu0 %v3675
        %5119 = vmatprep.subr.bf16.mxu0 %v3678
        %5120 = vmatpush1.bf16.msra.mxu0 %v3677
        %5121 = vmatprep.subr.bf16.mxu0 %v3680
        %5122 = vmatpush1.bf16.msra.mxu0 %v3679
        %5123 = vmatprep.subr.bf16.mxu0 %v3682
        %5124 = vmatpush1.bf16.msra.mxu0 %v3681
        %5125 = vmatprep.subr.bf16.mxu0 %v3684
        %5126 = vmatpush1.bf16.msra.mxu0 %v3683
        %5127 = vmatprep.subr.bf16.mxu0 %v3686
        %5128 = vmatpush1.bf16.msra.mxu0 %v3685
        %5129 = vmatprep.subr.bf16.mxu0 %v3688
        %5130 = vmatpush1.bf16.msra.mxu0 %v3687
        %5131 = vmatprep.subr.bf16.mxu0 %v3690
        %5132 = vmatpush1.bf16.msra.mxu0 %v3689
        %5133 = vmatprep.subr.bf16.mxu0 %v3692
        %5134 = vmatpush1.bf16.msra.mxu0 %v3691
        %5135 = vmatprep.subr.bf16.mxu0 %v3694
        %5136 = vmatpush1.bf16.msra.mxu0 %v3693
        %5137 = vmatprep.subr.bf16.mxu0 %v3696
        %5138 = vmatpush1.bf16.msra.mxu0 %v3695
        %5139 = vmatprep.subr.bf16.mxu0 %v3698
        %5140 = vmatpush1.bf16.msra.mxu0 %v3697
        %5141 = vmatprep.subr.bf16.mxu0 %v3700
        %5142 = vmatpush1.bf16.msra.mxu0 %v3699
        %5143 = vmatprep.subr.bf16.mxu0 %v3702
        %5144 = vmatpush1.bf16.msra.mxu0 %v3701
        %5145 = vmatprep.subr.bf16.mxu0 %v3704
        %5146 = vmatpush1.bf16.msra.mxu0 %v3703
        %5147 = vmatprep.subr.bf16.mxu0 %v3706
        %5148 = vmatpush1.bf16.msra.mxu0 %v3705
        %5149 = vmatprep.mubr.bf16.mxu0 %v1134
        %5150 = vmatmul.mubr.bf16.gmra.mrb[0].mxu0 %v1120
        %v5151 = vpop.f32.mrb[0].mxu0
        %v5152 = vadd.f32 %v5111, %v5151
        %v5153 = vpop.f32.mrb[0].mxu0
        %v5154 = vadd.f32 %v5113, %v5153
        %v5155 = vpop.f32.mrb[0].mxu0
        %v5156 = vpop.f32.mrb[0].mxu0
        %5157 = vdwg.mxu0
        %5158 = vmatprep.subr.bf16.mxu0 %v3708
        %5159 = vmatpush1.bf16.msra.mxu0 %v3707
        %5160 = vmatprep.subr.bf16.mxu0 %v3710
        %5161 = vmatpush1.bf16.msra.mxu0 %v3709
        %5162 = vmatprep.subr.bf16.mxu0 %v3712
        %5163 = vmatpush1.bf16.msra.mxu0 %v3711
        %5164 = vmatprep.subr.bf16.mxu0 %v3714
        %5165 = vmatpush1.bf16.msra.mxu0 %v3713
        %5166 = vmatprep.subr.bf16.mxu0 %v3716
        %5167 = vmatpush1.bf16.msra.mxu0 %v3715
        %5168 = vmatprep.subr.bf16.mxu0 %v3718
        %5169 = vmatpush1.bf16.msra.mxu0 %v3717
        %5170 = vmatprep.subr.bf16.mxu0 %v3720
        %5171 = vmatpush1.bf16.msra.mxu0 %v3719
        %5172 = vmatprep.subr.bf16.mxu0 %v3722
        %5173 = vmatpush1.bf16.msra.mxu0 %v3721
        %5174 = vmatprep.subr.bf16.mxu0 %v3724
        %5175 = vmatpush1.bf16.msra.mxu0 %v3723
        %5176 = vmatprep.subr.bf16.mxu0 %v3726
        %5177 = vmatpush1.bf16.msra.mxu0 %v3725
        %5178 = vmatprep.subr.bf16.mxu0 %v3728
        %5179 = vmatpush1.bf16.msra.mxu0 %v3727
        %5180 = vmatprep.subr.bf16.mxu0 %v3730
        %5181 = vmatpush1.bf16.msra.mxu0 %v3729
        %5182 = vmatprep.subr.bf16.mxu0 %v3732
        %5183 = vmatpush1.bf16.msra.mxu0 %v3731
        %5184 = vmatprep.subr.bf16.mxu0 %v3734
        %5185 = vmatpush1.bf16.msra.mxu0 %v3733
        %5186 = vmatprep.subr.bf16.mxu0 %v3736
        %5187 = vmatpush1.bf16.msra.mxu0 %v3735
        %5188 = vmatprep.subr.bf16.mxu0 %v3738
        %5189 = vmatpush1.bf16.msra.mxu0 %v3737
        %5190 = vmatprep.mubr.bf16.mxu0 %v1138
        %5191 = vmatmul.mubr.bf16.gmra.mrb[0].mxu0 %v1136
        %v5192 = vpop.f32.mrb[0].mxu0
        %v5193 = vadd.f32 %v5152, %v5192
        %v5194 = vpop.f32.mrb[0].mxu0
        %v5195 = vadd.f32 %v5154, %v5194
        %v5196 = vpop.f32.mrb[0].mxu0
        %v5197 = vpop.f32.mrb[0].mxu0
        %5198 = vdwg.mxu0
        %v5201 = vcombine.low %v5193, %v5195
        %v5203 = vunpack.c.l.s4 1983009808
        %v5204 = vunpack.c.0.s8 %v5203
        %v5205 = vlaneseq
        %v5206 = vshrl.u32 %v5205, 7
        %v5207 = vsub.s32 %v5204, %v5206
        %v5208 = vrot.slane %v5201, %v5207
        %v5210 = vadd.f32 %v243, %v5208
        %vm5211 = vcmask 1041408
        %vm5212 = vcmask 584706
        %vm5213 = vmor %vm5212, %vm5211
        %5214 = vst.msk [vmem:[#allocation2] sm:$0xf] %vm5213, %v5210
        %p5215 = scmp.eq.s32.totalorder %s17, 1
        // Predicated region
        $region45: #{shallow_net_forward.5} parent=39 // pred_check
          %p5216 = pneg %p5215
        $region46: #{shallow_net_forward.5} parent=39 // pred_check_branch
          %5218 = sbr.rel (%p5216) target = $region48
        $region47: #{shallow_net_forward.5} parent=39 // pred_region
          %v5219 = vld [vmem:[#allocation2] sm:$0xf]
          %v5220 = vld [vmem:[%s2] sm:$0x3]
          %v5222 = vlaneseq
          %v5223 = vshrl.u32 %v5222, 7
          %v5224 = vsub.s32 0, %v5223
          %v5225 = vrot.slane %v5220, %v5224
          %v5226 = vlaneseq
          %v5227 = vshrl.u32 %v5226, 7
          %v5228 = vsub.s32 1, %v5227
          %v5229 = vrot.slane %v5220, %v5228
          %v5230 = vcombine.low %v5225, %v5229
          %v5232 = vunpack.c.l.s4 1983009808
          %v5233 = vunpack.c.0.s8 %v5232
          %v5234 = vlaneseq
          %v5235 = vshrl.u32 %v5234, 7
          %v5236 = vsub.s32 %v5233, %v5235
          %v5237 = vrot.slane %v5230, %v5236
          %v5239 = vadd.f32 %v5219, %v5237
          %vm5240 = vcmp.ge.f32.partialorder %v5239, 0.0
          %v5241 = vmul.f32 %v5239, 0.3
          %v5242 = vsel %vm5240, %v5239, %v5241
          %v5243 = vld [vmem:[%s3] sm:$0xff]
          %v5244 = vld [vmem:[%s3 + $0x8] sm:$0xff]
          %v5245 = vld [vmem:[%s3 + $0x10] sm:$0xff]
          %v5246 = vld [vmem:[%s3 + $0x18] sm:$0xff]
          %v5247 = vld [vmem:[%s3 + $0x20] sm:$0xff]
          %v5248 = vld [vmem:[%s3 + $0x28] sm:$0xff]
          %v5249 = vld [vmem:[%s3 + $0x30] sm:$0xff]
          %v5250 = vld [vmem:[%s3 + $0x38] sm:$0xff]
          %v5251 = vld [vmem:[%s3 + $0x40] sm:$0xff]
          %v5252 = vld [vmem:[%s3 + $0x48] sm:$0xff]
          %v5253 = vld [vmem:[%s3 + $0x50] sm:$0xff]
          %v5254 = vld [vmem:[%s3 + $0x58] sm:$0xff]
          %v5255 = vld [vmem:[%s3 + $0x60] sm:$0xff]
          %v5256 = vld [vmem:[%s3 + $0x68] sm:$0xff]
          %v5257 = vld [vmem:[%s3 + $0x70] sm:$0xff]
          %v5258 = vld [vmem:[%s3 + $0x78] sm:$0xff]
          %v5259 = vld [vmem:[%s3 + $0x80] sm:$0xff]
          %v5260 = vld [vmem:[%s3 + $0x88] sm:$0xff]
          %v5261 = vld [vmem:[%s3 + $0x90] sm:$0xff]
          %v5262 = vld [vmem:[%s3 + $0x98] sm:$0xff]
          %v5263 = vld [vmem:[%s3 + $0xa0] sm:$0xff]
          %v5264 = vld [vmem:[%s3 + $0xa8] sm:$0xff]
          %v5265 = vld [vmem:[%s3 + $0xb0] sm:$0xff]
          %v5266 = vld [vmem:[%s3 + $0xb8] sm:$0xff]
          %v5267 = vld [vmem:[%s3 + $0xc0] sm:$0xff]
          %v5268 = vld [vmem:[%s4] sm:$0x1]
          %v5270 = vlaneseq
          %v5271 = vshrl.u32 %v5270, 7
          %v5272 = vsub.s32 0, %v5271
          %v5273 = vrot.slane %v5268, %v5272
          %v5277 = vunpack.c.l.s4 1983009808
          %v5278 = vunpack.c.0.s8 %v5277
          %v5279 = vlaneseq
          %v5280 = vshrl.u32 %v5279, 7
          %v5281 = vsub.s32 %v5278, %v5280
          %v5282 = vrot.slane %v5242, %v5281
          %v5283 = vcombine.high %v5282, %v5282
          %vm5285 = vcmask 588800
          %v5286 = vsel %vm5285, %v5283, 0
          %5288 = vmatprep.subr.mxu0 0.0
          %5289 = vmatpush1.msra.mxu0 %v5243
          %5290 = vmatprep.subr.mxu0 0.0
          %5291 = vmatpush1.msra.mxu0 %v5244
          %5292 = vmatprep.subr.mxu0 0.0
          %5293 = vmatpush1.msra.mxu0 %v5245
          %5294 = vmatprep.subr.mxu0 0.0
          %5295 = vmatpush1.msra.mxu0 %v5246
          %5296 = vmatprep.subr.mxu0 0.0
          %5297 = vmatpush1.msra.mxu0 %v5247
          %5298 = vmatprep.subr.mxu0 0.0
          %5299 = vmatpush1.msra.mxu0 %v5248
          %5300 = vmatprep.subr.mxu0 0.0
          %5301 = vmatpush1.msra.mxu0 %v5249
          %5302 = vmatprep.subr.mxu0 0.0
          %5303 = vmatpush1.msra.mxu0 %v5250
          %5304 = vmatprep.subr.mxu0 0.0
          %5305 = vmatpush1.msra.mxu0 %v5251
          %5306 = vmatprep.subr.mxu0 0.0
          %5307 = vmatpush1.msra.mxu0 %v5252
          %5308 = vmatprep.subr.mxu0 0.0
          %5309 = vmatpush1.msra.mxu0 %v5253
          %5310 = vmatprep.subr.mxu0 0.0
          %5311 = vmatpush1.msra.mxu0 %v5254
          %5312 = vmatprep.subr.mxu0 0.0
          %5313 = vmatpush1.msra.mxu0 %v5255
          %5314 = vmatprep.subr.mxu0 0.0
          %5315 = vmatpush1.msra.mxu0 %v5256
          %5316 = vmatprep.subr.mxu0 0.0
          %5317 = vmatpush1.msra.mxu0 %v5257
          %5318 = vmatprep.subr.mxu0 0.0
          %5319 = vmatpush1.msra.mxu0 %v5258
          %5320 = vmatprep.subr.mxu0 0.0
          %5321 = vmatpush1.msra.mxu0 %v5259
          %5322 = vmatprep.subr.mxu0 0.0
          %5323 = vmatpush1.msra.mxu0 %v5260
          %5324 = vmatprep.subr.mxu0 0.0
          %5325 = vmatpush1.msra.mxu0 %v5261
          %5326 = vmatprep.subr.mxu0 0.0
          %5327 = vmatpush1.msra.mxu0 %v5262
          %5328 = vmatprep.subr.mxu0 0.0
          %5329 = vmatpush1.msra.mxu0 %v5263
          %5330 = vmatprep.subr.mxu0 0.0
          %5331 = vmatpush1.msra.mxu0 %v5264
          %5332 = vmatprep.subr.mxu0 0.0
          %5333 = vmatpush1.msra.mxu0 %v5265
          %5334 = vmatprep.subr.mxu0 0.0
          %5335 = vmatpush1.msra.mxu0 %v5266
          %5336 = vmatprep.subr.mxu0 0.0
          %5337 = vmatpush1.msra.mxu0 %v5267
          %5338 = vmatprep.subr.mxu0 0.0
          %5339 = vmatpush1.msra.mxu0 0.0
          %5340 = vmatprep.subr.mxu0 0.0
          %5341 = vmatpush1.msra.mxu0 0.0
          %5342 = vmatprep.subr.mxu0 0.0
          %5343 = vmatpush1.msra.mxu0 0.0
          %5344 = vmatprep.subr.mxu0 0.0
          %5345 = vmatpush1.msra.mxu0 0.0
          %5346 = vmatprep.subr.mxu0 0.0
          %5347 = vmatpush1.msra.mxu0 0.0
          %5348 = vmatprep.subr.mxu0 0.0
          %5349 = vmatpush1.msra.mxu0 0.0
          %5350 = vmatprep.subr.mxu0 0.0
          %5351 = vmatpush1.msra.mxu0 0.0
          %5352 = vmatprep.mubr.f32.mxu0 %v5286
          %5353 = vmatmul.mubr.f32.gmra.mrb[0].mxu0 %v5282
          %v5354 = vpop.f32.mrb[0].mxu0
          %v5355 = vadd.f32 %v5273, %v5354
          %v5356 = vpop.f32.mrb[0].mxu0
          %5357 = vdwg.mxu0
          %vm5358 = vcmask 74752
          %5359 = vst.msk [vmem:[#allocation3] sm:$0x3] %vm5358, %v5355
        $region48: #{shallow_net_forward.5} parent=39 // pred_fallthru
          _
        // Predicated region
        $region49: #{shallow_net_forward.5} parent=39 // pred_check
          %p5360 = pneg %p145
        $region50: #{shallow_net_forward.5} parent=39 // pred_check_branch
          %5362 = sbr.rel (%p5360) target = $region52
        $region51: #{shallow_net_forward.5} parent=39 // pred_region
          %s5364 = ssub.s32 32, 32
          %5365 = vsyncadd [#allocation4], %s5364
          %s5367 = sshll.u32 [#allocation3], 4
          %s5368 = int_to_ptr.vmem [resolvable:$true] %s5367
          %5370 = dma.vmem_to_hbm [thread:$0]  %s5368, 32, %s5, [#allocation4]
        $region52: #{shallow_net_forward.5} parent=39 // pred_fallthru
          _
        // Predicated region
        $region53: #{shallow_net_forward.5} parent=39 // pred_check
          %p5371 = pneg %p145
        $region54: #{shallow_net_forward.5} parent=39 // pred_check_branch
          %5373 = sbr.rel (%p5371) target = $region56
        $region55: #{shallow_net_forward.5} parent=39 // pred_region
          %5374 = dma.done [#allocation4], 32
        $region56: #{shallow_net_forward.5} parent=39 // pred_fallthru
          _
      $region40: #{shallow_net_forward.5} parent=5 // pred_fallthru
        _
      %p5375 = scmp.le.s32.totalorder 2, %s12
      // Predicated region
      $region57: #{shallow_net_forward.5} parent=5 // pred_check
        %p5376 = pneg %p5375
      $region58: #{shallow_net_forward.5} parent=5 // pred_check_branch
        %5378 = sbr.rel (%p5376) target = $region60
      $region59: #{shallow_net_forward.5} parent=5 // pred_region
        %s5379 = ssub.s32 %s12, 2
      $region60: #{shallow_net_forward.5} parent=5 // pred_fallthru
        _
    $region6: #{shallow_net_forward.5} parent=1 // loop_footer
      %s16 = sadd.s32 1, %s12
    $region7: #{shallow_net_forward.5} parent=1 // loop_footer_branch
      %11 = sbr.rel target = $region3
    $region8: #{shallow_net_forward.5} parent=1 // loop_exit
      _
    %5380 = vsyncpa [#allocation4], 1
    %s5381 = scalar_lea.sflag [#allocation4], 1
    %5382 = vsyncpa %s5381, 1

</llo_original>
